<compile_context>
chip_gen: v6e
topology: v6e:2x2x1
jax: 0.10.0
libtpu: 0.0.40
codegen_flags: <defaults>
</compile_context>

<pallas_src>
import functools
import math

import jax
import jax.numpy as jnp
import numpy as np
from jax.experimental import pallas as pl
from jax.experimental.pallas import tpu as pltpu


def _self_attention_kernel(
    x_ref,          # (TB*S, H)  f32 row tile (TB whole sequences)
    wqkv_ref,       # (H, 3H)    compute dtype (bf16 default) — fused Wq|Wk|Wv
    bqkv_ref,       # (1, 3H)    f32
    wd_ref,         # (H, H)     compute dtype
    bd_ref,         # (1, H)     f32
    gamma_ref,      # (1, H)     f32 LayerNorm weight
    beta_ref,       # (1, H)     f32 LayerNorm bias
    o_ref,          # (TB*S, H)
    *,
    seqs_per_block: int,
    seq: int,
    num_heads: int,
    head_dim: int,
    ln_eps: float,
    mm_precision,
):
    TB, S, nh, dh = seqs_per_block, seq, num_heads, head_dim
    R = TB * S
    H = nh * dh
    inv_sqrt_dh = 1.0 / math.sqrt(dh)

    x = x_ref[...]                                   # f32, kept for the residual
    cdt = wqkv_ref.dtype                             # MXU operand dtype (bf16 or f32)

    # --- fused lane-dense QKV projection: one (R,H)@(H,3H) MXU matmul, f32 accumulation ---
    qkv = jnp.dot(x.astype(cdt), wqkv_ref[...],
                  precision=mm_precision,
                  preferred_element_type=jnp.float32) + bqkv_ref[...]     # (R, 3H) f32

    q = qkv[:, :H] * inv_sqrt_dh        # scale q (dh-wide) instead of the SxS scores
    k = qkv[:, H:2 * H]
    v = qkv[:, 2 * H:]

    # --- head-batched views: (R, H) -> (nh*TB, S, dh) ---
    def split_heads(z):
        z = z.reshape(R, nh, dh)                     # lane-dim split (dh stays minor)
        z = jnp.swapaxes(z, 0, 1)                    # (nh, R, dh)
        return z.reshape(nh * TB, S, dh)             # pure major-dim regroup

    qh = split_heads(q).astype(cdt)
    kh = split_heads(k).astype(cdt)
    vh = split_heads(v).astype(cdt)

    # --- scaled dot-product attention batched over (head, sequence); no explicit .T ---
    s = jnp.einsum('nqd,nkd->nqk', qh, kh,
                   precision=mm_precision,
                   preferred_element_type=jnp.float32)                    # (nh*TB, S, S)
    s = s - jnp.max(s, axis=-1, keepdims=True)                            # stable softmax
    e = jnp.exp(s)
    p = e / jnp.sum(e, axis=-1, keepdims=True)       # exact divide (correctness fix)

    ctx = jnp.einsum('nqk,nkd->nqd', p.astype(cdt), vh,
                     precision=mm_precision,
                     preferred_element_type=jnp.float32)                  # (nh*TB, S, dh)

    # --- merge heads back to lanes (head-major feature order, matches PyTorch .view) ---
    ctx = ctx.reshape(nh, R, dh)
    ctx_m = jnp.concatenate([ctx[h] for h in range(nh)], axis=-1)         # (R, H)

    # --- dense output projection: one (R,H)@(H,H) MXU matmul ---
    d = jnp.dot(ctx_m.astype(cdt), wd_ref[...],
                precision=mm_precision,
                preferred_element_type=jnp.float32) + bd_ref[...]         # (R, H) f32

    # --- LayerNorm over the feature dim (f32) + residual ---
    mean = jnp.mean(d, axis=-1, keepdims=True)
    cent = d - mean
    var = jnp.mean(cent * cent, axis=-1, keepdims=True)
    ln = cent * jax.lax.rsqrt(var + ln_eps) * gamma_ref[...] + beta_ref[...]

    o_ref[...] = (ln + x).astype(o_ref.dtype)


def self_attention_pallas(x, params, *, num_heads, compute_dtype=jnp.bfloat16,
                          ln_eps=1e-5, seqs_per_block=None):
    """x: (B, S, H) float32.  params: PyTorch-convention weights (Linear W is (out, in))."""
    B, S, H = x.shape
    if H % num_heads != 0:
        raise ValueError("hidden size must be a multiple of num_heads")
    dh = H // num_heads

    # Row-tile choice: >=2 grid steps when possible (feeds both v7x TensorCores via the
    # "parallel" axis) while keeping per-step work as large as possible.  Each tile holds
    # whole sequences so attention stays tile-local.
    if seqs_per_block is None:
        seqs_per_block = max(1, B // 2)
    while B % seqs_per_block != 0:
        seqs_per_block -= 1
    row_block = seqs_per_block * S
    if row_block % 8 != 0 and row_block != B * S:
        seqs_per_block, row_block = B, B * S        # fall back to one full-size tile
    grid = (B // seqs_per_block,)

    cdt = compute_dtype
    # PyTorch Linear computes y = x @ W.T + b.  Pre-transpose (free, in the wrapper) and
    # fuse q|k|v along the output dim -> one lane-dense (H, 3H) weight operand.
    wq = jnp.asarray(params["wq"]).T
    wk = jnp.asarray(params["wk"]).T
    wv = jnp.asarray(params["wv"]).T
    wqkv = jnp.concatenate([wq, wk, wv], axis=1).astype(cdt)              # (H, 3H)
    bqkv = jnp.concatenate([jnp.asarray(params["bq"]),
                            jnp.asarray(params["bk"]),
                            jnp.asarray(params["bv"])]).reshape(1, 3 * H).astype(jnp.float32)
    wd = jnp.asarray(params["wd"]).T.astype(cdt)                          # (H, H)
    bd = jnp.asarray(params["bd"]).reshape(1, H).astype(jnp.float32)
    gamma = jnp.asarray(params["ln_w"]).reshape(1, H).astype(jnp.float32)
    beta = jnp.asarray(params["ln_b"]).reshape(1, H).astype(jnp.float32)

    x2d = x.reshape(B * S, H).astype(jnp.float32)     # lane-dense rows when H % 128 == 0

    # f32 path is the verification path -> exact matmuls; bf16 path uses default precision.
    mm_precision = (jax.lax.Precision.HIGHEST
                    if jnp.dtype(compute_dtype) == jnp.dtype(jnp.float32)
                    else jax.lax.Precision.DEFAULT)

    kernel = functools.partial(
        _self_attention_kernel,
        seqs_per_block=seqs_per_block, seq=S, num_heads=num_heads, head_dim=dh,
        ln_eps=ln_eps, mm_precision=mm_precision)

    const = lambda i: (0, 0)   # weights: same block every grid step (resident)
    out = pl.pallas_call(
        kernel,
        out_shape=jax.ShapeDtypeStruct((B * S, H), x.dtype),
        grid=grid,
        in_specs=[
            pl.BlockSpec((row_block, H), lambda i: (i, 0)),   # x row tile
            pl.BlockSpec((H, 3 * H), const),                  # fused Wqkv
            pl.BlockSpec((1, 3 * H), const),                  # fused bias
            pl.BlockSpec((H, H), const),                      # Wd
            pl.BlockSpec((1, H), const),                      # bd
            pl.BlockSpec((1, H), const),                      # LayerNorm gamma
            pl.BlockSpec((1, H), const),                      # LayerNorm beta
        ],
        out_specs=pl.BlockSpec((row_block, H), lambda i: (i, 0)),
        compiler_params=pltpu.CompilerParams(
            dimension_semantics=("parallel",)),               # v7x: 2 TCs split row tiles
    )(x2d, wqkv, bqkv, wd, bd, gamma, beta)

    return out.reshape(B, S, H)


def self_attention_reference(x, params, *, num_heads):
    """Plain-JAX reference matching the PyTorch forward (eval mode), exact-f32 matmuls."""
    B, S, H = x.shape
    dh = H // num_heads
    hp = jax.lax.Precision.HIGHEST

    def lin(z, w, b):
        return jnp.einsum("bsh,oh->bso", z, w, precision=hp) + b

    q = lin(x, params["wq"], params["bq"])
    k = lin(x, params["wk"], params["bk"])
    v = lin(x, params["wv"], params["bv"])

    def split(z):  # (B,S,H) -> (B,nh,S,dh)
        return z.reshape(B, S, num_heads, dh).transpose(0, 2, 1, 3)

    q, k, v = split(q), split(k), split(v)
    scores = jnp.einsum("bhqd,bhkd->bhqk", q, k, precision=hp) / math.sqrt(dh)
    probs = jax.nn.softmax(scores, axis=-1)
    ctx = jnp.einsum("bhqk,bhkd->bhqd", probs, v, precision=hp)
    ctx = ctx.transpose(0, 2, 1, 3).reshape(B, S, H)

    d = lin(ctx, params["wd"], params["bd"])
    mean = d.mean(-1, keepdims=True)
    var = ((d - mean) ** 2).mean(-1, keepdims=True)
    ln = (d - mean) / jnp.sqrt(var + 1e-5) * params["ln_w"] + params["ln_b"]
    return ln + x


if __name__ == "__main__":
    # Hidden size a multiple of 128 so every activation/weight load/store is lane-dense;
    # head_dim = 128 // 4 = 32.
    B, S, H = 2, 8, 128
    NUM_HEADS = 4

    key = jax.random.PRNGKey(0)
    keys = jax.random.split(key, 10)

    x = jax.random.normal(keys[0], (B, S, H), dtype=jnp.float32)

    bound = 1.0 / math.sqrt(H)  # mimic nn.Linear default init range
    params = {
        "wq": jax.random.uniform(keys[1], (H, H), jnp.float32, -bound, bound),
        "bq": jax.random.uniform(keys[2], (H,), jnp.float32, -bound, bound),
        "wk": jax.random.uniform(keys[3], (H, H), jnp.float32, -bound, bound),
        "bk": jax.random.uniform(keys[4], (H,), jnp.float32, -bound, bound),
        "wv": jax.random.uniform(keys[5], (H, H), jnp.float32, -bound, bound),
        "bv": jax.random.uniform(keys[6], (H,), jnp.float32, -bound, bound),
        "wd": jax.random.uniform(keys[7], (H, H), jnp.float32, -bound, bound),
        "bd": jax.random.uniform(keys[8], (H,), jnp.float32, -bound, bound),
        "ln_w": jnp.ones((H,), jnp.float32),
        "ln_b": jnp.zeros((H,), jnp.float32),
    }

    ref = jax.block_until_ready(
        self_attention_reference(x, params, num_heads=NUM_HEADS))

    # 1) f32 verification path: exact softmax divide + HIGHEST-precision matmuls on both
    #    sides -> tight agreement.
    out_f32 = jax.block_until_ready(
        self_attention_pallas(x, params, num_heads=NUM_HEADS, compute_dtype=jnp.float32))
    np.testing.assert_allclose(np.asarray(out_f32), np.asarray(ref), rtol=2e-3, atol=2e-3)

    # 2) default bf16-MXU-operand fast path: coarse sanity bound only (bf16 operand
    #    rounding is by design; a layout/head-merge bug would show O(1) errors).
    out_bf16 = jax.block_until_ready(
        self_attention_pallas(x, params, num_heads=NUM_HEADS))
    np.testing.assert_allclose(np.asarray(out_bf16), np.asarray(ref), rtol=0.15, atol=0.15)

    print("KERNEL_OK")
</pallas_src>

<mosaic_0001>
module attributes {stable_mosaic.version = 11 : i64} {
  func.func @_self_attention_kernel(%arg0: i32, %arg1: memref<8x128xf32, #tpu.memory_space<vmem>>, %arg2: memref<128x384xf32, #tpu.memory_space<vmem>>, %arg3: memref<1x384xf32, #tpu.memory_space<vmem>>, %arg4: memref<128x128xf32, #tpu.memory_space<vmem>>, %arg5: memref<1x128xf32, #tpu.memory_space<vmem>>, %arg6: memref<1x128xf32, #tpu.memory_space<vmem>>, %arg7: memref<1x128xf32, #tpu.memory_space<vmem>>, %arg8: memref<8x128xf32, #tpu.memory_space<vmem>>) attributes {dimension_semantics = [#tpu.dimension_semantics<parallel>], iteration_bounds = array<i64: 2>, scalar_prefetch = 0 : i64, scratch_operands = 0 : i64, tpu.core_type = #tpu.core_type<tc>, window_params = [{transform_indices = @transform_0, window_bounds = array<i64: 8, 128>}, {pipeline_mode = #tpu.pipeline_mode<synchronous>, transform_indices = @transform_1, window_bounds = array<i64: 128, 384>}, {pipeline_mode = #tpu.pipeline_mode<synchronous>, transform_indices = @transform_2, window_bounds = array<i64: 1, 384>}, {pipeline_mode = #tpu.pipeline_mode<synchronous>, transform_indices = @transform_3, window_bounds = array<i64: 128, 128>}, {pipeline_mode = #tpu.pipeline_mode<synchronous>, transform_indices = @transform_4, window_bounds = array<i64: 1, 128>}, {pipeline_mode = #tpu.pipeline_mode<synchronous>, transform_indices = @transform_5, window_bounds = array<i64: 1, 128>}, {pipeline_mode = #tpu.pipeline_mode<synchronous>, transform_indices = @transform_6, window_bounds = array<i64: 1, 128>}, {transform_indices = @transform_7, window_bounds = array<i64: 8, 128>}]} {
    %c0 = arith.constant 0 : index
    %c0_0 = arith.constant 0 : index
    %0 = vector.load %arg1[%c0, %c0_0] : memref<8x128xf32, #tpu.memory_space<vmem>>, vector<8x128xf32>
    %c0_1 = arith.constant 0 : index
    %c0_2 = arith.constant 0 : index
    %1 = vector.load %arg2[%c0_1, %c0_2] : memref<128x384xf32, #tpu.memory_space<vmem>>, vector<128x384xf32>
    %cst = arith.constant dense<0.000000e+00> : vector<8x384xf32>
    %2 = tpu.matmul %0, %1, %cst {dimension_numbers = #tpu.dot_dimension_numbers<[1], [0], [0], [1], [0, 0, 1, 1], [], []>, precision = #tpu.contract_precision<fp32>} : vector<8x128xf32>, vector<128x384xf32>, vector<8x384xf32> -> vector<8x384xf32>
    %c0_3 = arith.constant 0 : index
    %c0_4 = arith.constant 0 : index
    %3 = vector.load %arg3[%c0_3, %c0_4] : memref<1x384xf32, #tpu.memory_space<vmem>>, vector<1x384xf32>
    %4 = vector.broadcast %3 : vector<1x384xf32> to vector<8x384xf32>
    %5 = arith.addf %2, %4 : vector<8x384xf32>
    %6 = vector.extract_strided_slice %5 {offsets = [0, 0], sizes = [8, 128], strides = [1, 1]} : vector<8x384xf32> to vector<8x128xf32>
    %cst_5 = arith.constant 0.176776692 : f32
    %7 = vector.broadcast %cst_5 : f32 to vector<8x128xf32>
    %8 = arith.mulf %6, %7 : vector<8x128xf32>
    %9 = vector.extract_strided_slice %5 {offsets = [0, 128], sizes = [8, 128], strides = [1, 1]} : vector<8x384xf32> to vector<8x128xf32>
    %10 = vector.extract_strided_slice %5 {offsets = [0, 256], sizes = [8, 128], strides = [1, 1]} : vector<8x384xf32> to vector<8x128xf32>
    %11 = vector.shape_cast %8 : vector<8x128xf32> to vector<8x4x32xf32>
    %12 = tpu.transpose %11, [1, 0, 2] : vector<8x4x32xf32> -> vector<4x8x32xf32>
    %13 = vector.shape_cast %9 : vector<8x128xf32> to vector<8x4x32xf32>
    %14 = tpu.transpose %13, [1, 0, 2] : vector<8x4x32xf32> -> vector<4x8x32xf32>
    %15 = vector.shape_cast %10 : vector<8x128xf32> to vector<8x4x32xf32>
    %16 = tpu.transpose %15, [1, 0, 2] : vector<8x4x32xf32> -> vector<4x8x32xf32>
    "tpu.trace_start"() <{level = 10 : i32, message = "nqd,nkd->nqk"}> : () -> ()
    %cst_6 = arith.constant dense<0.000000e+00> : vector<4x8x8xf32>
    %17 = tpu.matmul %12, %14, %cst_6 {dimension_numbers = #tpu.dot_dimension_numbers<[2], [2], [1], [1], [0, 0, 0, 1, 1, 1], [0], [0]>, precision = #tpu.contract_precision<fp32>} : vector<4x8x32xf32>, vector<4x8x32xf32>, vector<4x8x8xf32> -> vector<4x8x8xf32>
    "tpu.trace_stop"() : () -> ()
    %cst_7 = arith.constant dense<0xFF800000> : vector<4x8xf32>
    %18 = vector.multi_reduction <maximumf>, %17, %cst_7 [2] : vector<4x8x8xf32> to vector<4x8xf32>
    %19 = vector.shape_cast %18 : vector<4x8xf32> to vector<4x8x1xf32>
    %20 = vector.broadcast %19 : vector<4x8x1xf32> to vector<4x8x8xf32>
    %21 = arith.subf %17, %20 : vector<4x8x8xf32>
    %22 = math.exp %21 : vector<4x8x8xf32>
    %cst_8 = arith.constant dense<0.000000e+00> : vector<4x8xf32>
    %23 = vector.multi_reduction <add>, %22, %cst_8 [2] : vector<4x8x8xf32> to vector<4x8xf32>
    %24 = vector.shape_cast %23 : vector<4x8xf32> to vector<4x8x1xf32>
    %25 = vector.broadcast %24 : vector<4x8x1xf32> to vector<4x8x8xf32>
    %26 = arith.divf %22, %25 : vector<4x8x8xf32>
    "tpu.trace_start"() <{level = 10 : i32, message = "nqk,nkd->nqd"}> : () -> ()
    %cst_9 = arith.constant dense<0.000000e+00> : vector<4x8x32xf32>
    %27 = tpu.matmul %26, %16, %cst_9 {dimension_numbers = #tpu.dot_dimension_numbers<[2], [1], [1], [2], [0, 0, 0, 1, 1, 2], [0], [0]>, precision = #tpu.contract_precision<fp32>} : vector<4x8x8xf32>, vector<4x8x32xf32>, vector<4x8x32xf32> -> vector<4x8x32xf32>
    "tpu.trace_stop"() : () -> ()
    %28 = vector.extract_strided_slice %27 {offsets = [0, 0, 0], sizes = [1, 8, 32], strides = [1, 1, 1]} : vector<4x8x32xf32> to vector<1x8x32xf32>
    %29 = vector.shape_cast %28 : vector<1x8x32xf32> to vector<8x32xf32>
    %30 = vector.extract_strided_slice %27 {offsets = [1, 0, 0], sizes = [1, 8, 32], strides = [1, 1, 1]} : vector<4x8x32xf32> to vector<1x8x32xf32>
    %31 = vector.shape_cast %30 : vector<1x8x32xf32> to vector<8x32xf32>
    %32 = vector.extract_strided_slice %27 {offsets = [2, 0, 0], sizes = [1, 8, 32], strides = [1, 1, 1]} : vector<4x8x32xf32> to vector<1x8x32xf32>
    %33 = vector.shape_cast %32 : vector<1x8x32xf32> to vector<8x32xf32>
    %34 = vector.extract_strided_slice %27 {offsets = [3, 0, 0], sizes = [1, 8, 32], strides = [1, 1, 1]} : vector<4x8x32xf32> to vector<1x8x32xf32>
    %35 = vector.shape_cast %34 : vector<1x8x32xf32> to vector<8x32xf32>
    %36 = tpu.concatenate %29, %31, %33, %35 in 1 : vector<8x32xf32>, vector<8x32xf32>, vector<8x32xf32>, vector<8x32xf32> -> vector<8x128xf32>
    %c0_10 = arith.constant 0 : index
    %c0_11 = arith.constant 0 : index
    %37 = vector.load %arg4[%c0_10, %c0_11] : memref<128x128xf32, #tpu.memory_space<vmem>>, vector<128x128xf32>
    %cst_12 = arith.constant dense<0.000000e+00> : vector<8x128xf32>
    %38 = tpu.matmul %36, %37, %cst_12 {dimension_numbers = #tpu.dot_dimension_numbers<[1], [0], [0], [1], [0, 0, 1, 1], [], []>, precision = #tpu.contract_precision<fp32>} : vector<8x128xf32>, vector<128x128xf32>, vector<8x128xf32> -> vector<8x128xf32>
    %c0_13 = arith.constant 0 : index
    %c0_14 = arith.constant 0 : index
    %39 = vector.load %arg5[%c0_13, %c0_14] : memref<1x128xf32, #tpu.memory_space<vmem>>, vector<1x128xf32>
    %40 = vector.broadcast %39 : vector<1x128xf32> to vector<8x128xf32>
    %41 = arith.addf %38, %40 : vector<8x128xf32>
    %cst_15 = arith.constant dense<0.000000e+00> : vector<8xf32>
    %42 = vector.multi_reduction <add>, %41, %cst_15 [1] : vector<8x128xf32> to vector<8xf32>
    %43 = vector.shape_cast %42 : vector<8xf32> to vector<8x1xf32>
    %cst_16 = arith.constant 1.280000e+02 : f32
    %44 = vector.broadcast %cst_16 : f32 to vector<8x1xf32>
    %45 = arith.divf %43, %44 : vector<8x1xf32>
    %46 = vector.broadcast %45 : vector<8x1xf32> to vector<8x128xf32>
    %47 = arith.subf %41, %46 : vector<8x128xf32>
    %48 = arith.mulf %47, %47 : vector<8x128xf32>
    %cst_17 = arith.constant dense<0.000000e+00> : vector<8xf32>
    %49 = vector.multi_reduction <add>, %48, %cst_17 [1] : vector<8x128xf32> to vector<8xf32>
    %50 = vector.shape_cast %49 : vector<8xf32> to vector<8x1xf32>
    %cst_18 = arith.constant 1.280000e+02 : f32
    %51 = vector.broadcast %cst_18 : f32 to vector<8x1xf32>
    %52 = arith.divf %50, %51 : vector<8x1xf32>
    %cst_19 = arith.constant 9.99999974E-6 : f32
    %53 = vector.broadcast %cst_19 : f32 to vector<8x1xf32>
    %54 = arith.addf %52, %53 : vector<8x1xf32>
    %55 = math.rsqrt %54 : vector<8x1xf32>
    %56 = vector.broadcast %55 : vector<8x1xf32> to vector<8x128xf32>
    %57 = arith.mulf %47, %56 : vector<8x128xf32>
    %c0_20 = arith.constant 0 : index
    %c0_21 = arith.constant 0 : index
    %58 = vector.load %arg6[%c0_20, %c0_21] : memref<1x128xf32, #tpu.memory_space<vmem>>, vector<1x128xf32>
    %59 = vector.broadcast %58 : vector<1x128xf32> to vector<8x128xf32>
    %60 = arith.mulf %57, %59 : vector<8x128xf32>
    %c0_22 = arith.constant 0 : index
    %c0_23 = arith.constant 0 : index
    %61 = vector.load %arg7[%c0_22, %c0_23] : memref<1x128xf32, #tpu.memory_space<vmem>>, vector<1x128xf32>
    %62 = vector.broadcast %61 : vector<1x128xf32> to vector<8x128xf32>
    %63 = arith.addf %60, %62 : vector<8x128xf32>
    %64 = arith.addf %63, %0 : vector<8x128xf32>
    %c0_24 = arith.constant 0 : index
    %c0_25 = arith.constant 0 : index
    %65 = vector.load %arg8[%c0_24, %c0_25] : memref<8x128xf32, #tpu.memory_space<vmem>>, vector<8x128xf32>
    tpu.vector_store %arg8[%c0_24, %c0_25], %64 {strides = array<i32>} : memref<8x128xf32, #tpu.memory_space<vmem>>, vector<8x128xf32>,
    return
  }
  func.func @transform_0(%arg0: i32) -> (i32, i32) {
    %c0_i32 = arith.constant 0 : i32
    %c0_i32_0 = arith.constant 0 : i32
    return %arg0, %c0_i32 : i32, i32
  }
  func.func @transform_1(%arg0: i32) -> (i32, i32) {
    %c0_i32 = arith.constant 0 : i32
    %c0_i32_0 = arith.constant 0 : i32
    %c0_i32_1 = arith.constant 0 : i32
    return %c0_i32, %c0_i32_0 : i32, i32
  }
  func.func @transform_2(%arg0: i32) -> (i32, i32) {
    %c0_i32 = arith.constant 0 : i32
    %c0_i32_0 = arith.constant 0 : i32
    %c0_i32_1 = arith.constant 0 : i32
    return %c0_i32, %c0_i32_0 : i32, i32
  }
  func.func @transform_3(%arg0: i32) -> (i32, i32) {
    %c0_i32 = arith.constant 0 : i32
    %c0_i32_0 = arith.constant 0 : i32
    %c0_i32_1 = arith.constant 0 : i32
    return %c0_i32, %c0_i32_0 : i32, i32
  }
  func.func @transform_4(%arg0: i32) -> (i32, i32) {
    %c0_i32 = arith.constant 0 : i32
    %c0_i32_0 = arith.constant 0 : i32
    %c0_i32_1 = arith.constant 0 : i32
    return %c0_i32, %c0_i32_0 : i32, i32
  }
  func.func @transform_5(%arg0: i32) -> (i32, i32) {
    %c0_i32 = arith.constant 0 : i32
    %c0_i32_0 = arith.constant 0 : i32
    %c0_i32_1 = arith.constant 0 : i32
    return %c0_i32, %c0_i32_0 : i32, i32
  }
  func.func @transform_6(%arg0: i32) -> (i32, i32) {
    %c0_i32 = arith.constant 0 : i32
    %c0_i32_0 = arith.constant 0 : i32
    %c0_i32_1 = arith.constant 0 : i32
    return %c0_i32, %c0_i32_0 : i32, i32
  }
  func.func @transform_7(%arg0: i32) -> (i32, i32) {
    %c0_i32 = arith.constant 0 : i32
    %c0_i32_0 = arith.constant 0 : i32
    return %arg0, %c0_i32 : i32, i32
  }
}

</mosaic_0001>

<llo_original>
// kernel: tpu_custom_call.1
$region0: #{tpu_custom_call.1}
  #allocation0 [shape = 'u32[]', space=smem, size = 0x4, offset = 0x4, fixed_abs, tag = 'smem constant byte address 0x4 - core index']
  #allocation1 [shape = 'u32[144,128]{1,0:T(1,128)}', space=vmem, size = 0x12000, scoped, tag = 'internal scratch']
  %s0 = inlined_call_operand.hbm [shape: f32[16,128], index: 0, kind: input, shape index: {}]
  %s1 = inlined_call_operand.hbm [shape: f32[128,384], index: 1, kind: input, shape index: {}]
  %s2 = inlined_call_operand.vmem [shape: f32[1,384], index: 2, kind: input, shape index: {}]
  %s3 = inlined_call_operand.hbm [shape: f32[128,128], index: 3, kind: input, shape index: {}]
  %s4 = inlined_call_operand.vmem [shape: f32[1,128], index: 4, kind: input, shape index: {}]
  %s5 = inlined_call_operand.vmem [shape: f32[1,128], index: 5, kind: input, shape index: {}]
  %s6 = inlined_call_operand.vmem [shape: f32[1,128], index: 6, kind: input, shape index: {}]
  %s7 = inlined_call_operand.hbm [shape: f32[16,128], index: 7, kind: output, shape index: {}]
  %s8 = sld [smem:[#allocation0]]
  $region73: #{tpu_custom_call.1} parent=0
    _
  %s10 = ssub.s32 1, %s8
  %s11 = scalar_select 0, %s10, %s8
  $region1: #{tpu_custom_call.1} parent=0
    #allocation2 [shape = 'u8[8192]{0}', space=vmem, size = 0x2000, scoped, tag = 'input window, operand 0']
    #allocation3 [shape = 's32[2]{0}', space=sflag, size = 0x8, scoped, tag = 'scoped memory for tpu_custom_call.1']
    #allocation4 [shape = 's32[2]{0}', space=sflag, size = 0x8, scoped, tag = 'scoped memory for tpu_custom_call.1']
    #allocation5 [shape = 'u8[196608]{0}', space=vmem, size = 0x30000, scoped, tag = 'input window, operand 1, single buffered']
    #allocation6 [shape = 's32[1]{0}', space=sflag, size = 0x4, scoped, tag = 'scoped memory for tpu_custom_call.1']
    #allocation7 [shape = 'u8[65536]{0}', space=vmem, size = 0x10000, scoped, tag = 'input window, operand 3, single buffered']
    #allocation8 [shape = 'u8[8192]{0}', space=vmem, size = 0x2000, scoped, tag = 'output window, operand 0']
    %12 = vsyncpa [#allocation3], 0
    %s13 = scalar_lea.sflag [#allocation3], 1
    %14 = vsyncpa %s13, 0
    %15 = vsyncpa [#allocation6], 0
    %16 = vsyncpa [#allocation4], 0
    %s17 = scalar_lea.sflag [#allocation4], 1
    %18 = vsyncpa %s17, 0
    loop: start=0, step=1, limit=4
    $region2: #{tpu_custom_call.1} parent=1 // loop_pre_header
      _
    $region3: #{tpu_custom_call.1} parent=1 // loop_header
      %s20 = sphi 0, %s24
      %p21 = scmp.ge.s32.totalorder %s20, 4
      %s30 = sphi 0, %s32
      %s33 = sphi 0, %s30
      %s34 = sphi 0, %s33
      %s50 = sphi 0, %s34
      %s54 = sphi 0, %s54
      %s56 = sphi 0, %s54
      %s57 = sphi 0, %s56
      %s71 = sphi 0, %s57
      %s75 = sphi 0, %s75
      %s77 = sphi 0, %s75
      %s78 = sphi 0, %s77
      %s92 = sphi 0, %s78
      %s96 = sphi 0, %s96
      %s98 = sphi 0, %s96
      %s99 = sphi 0, %s98
      %s113 = sphi 0, %s99
      %s117 = sphi 0, %s117
      %s119 = sphi 0, %s117
      %s120 = sphi 0, %s119
      %s134 = sphi 0, %s120
      %s138 = sphi 0, %s138
      %s140 = sphi 0, %s138
      %s141 = sphi 0, %s140
      %s155 = sphi 0, %s141
      %s159 = sphi 0, %s159
      %s161 = sphi 0, %s159
      %s162 = sphi 0, %s161
      %s176 = sphi 0, %s162
      %s182 = sphi 0, %s184
      %s185 = sphi 0, %s182
      %s186 = sphi 0, %s185
      %s202 = sphi 0, %s186
    $region4: #{tpu_custom_call.1} parent=1 // loop_header_branch
      %23 = sbr.rel (%p21) target = $region8
    $region5: #{tpu_custom_call.1} parent=1 // loop_body
      %s25 = ssub.s32 %s20, 1
      %s26 = ssub.s32 %s20, 2
      %s27 = sadd.s32 %s20, 1
      %s28 = ssub.s32 %s20, %s27
      %p29 = scmp.eq.s32.totalorder %s28, 0
      %s31 = sadd.s32 %s30, 1
      %s32 = scalar_select %p29, %s30, %s31
      %p35 = pneg %p29
      %p36 = scmp.eq.s32.totalorder %s20, 1
      %p37 = por %p35, %p36
      %p38 = scmp.ne.s32.totalorder %s30, %s33
      %p39 = scmp.eq.s32.totalorder %s20, 0
      %p40 = por %p38, %p39
      %p41 = scmp.ne.s32.totalorder %s30, %s33
      %p42 = scmp.eq.s32.totalorder %s25, 1
      %p43 = por %p41, %p42
      %p44 = scmp.ne.s32.totalorder %s33, %s34
      %p45 = scmp.eq.s32.totalorder %s25, 0
      %p46 = por %p44, %p45
      %p47 = scmp.ne.s32.totalorder %s33, %s34
      %p48 = scmp.eq.s32.totalorder %s26, 1
      %p49 = por %p47, %p48
      %p51 = scmp.ne.s32.totalorder %s34, %s50
      %p52 = scmp.eq.s32.totalorder %s26, 0
      %p53 = por %p51, %p52
      %s55 = sadd.s32 %s54, 1
      %p58 = scmp.eq.s32.totalorder %s20, 1
      %p59 = scmp.ne.s32.totalorder %s54, %s56
      %p60 = scmp.eq.s32.totalorder %s20, 0
      %p61 = por %p59, %p60
      %p62 = scmp.ne.s32.totalorder %s54, %s56
      %p63 = scmp.eq.s32.totalorder %s25, 1
      %p64 = por %p62, %p63
      %p65 = scmp.ne.s32.totalorder %s56, %s57
      %p66 = scmp.eq.s32.totalorder %s25, 0
      %p67 = por %p65, %p66
      %p68 = scmp.ne.s32.totalorder %s56, %s57
      %p69 = scmp.eq.s32.totalorder %s26, 1
      %p70 = por %p68, %p69
      %p72 = scmp.ne.s32.totalorder %s57, %s71
      %p73 = scmp.eq.s32.totalorder %s26, 0
      %p74 = por %p72, %p73
      %s76 = sadd.s32 %s75, 1
      %p79 = scmp.eq.s32.totalorder %s20, 1
      %p80 = scmp.ne.s32.totalorder %s75, %s77
      %p81 = scmp.eq.s32.totalorder %s20, 0
      %p82 = por %p80, %p81
      %p83 = scmp.ne.s32.totalorder %s75, %s77
      %p84 = scmp.eq.s32.totalorder %s25, 1
      %p85 = por %p83, %p84
      %p86 = scmp.ne.s32.totalorder %s77, %s78
      %p87 = scmp.eq.s32.totalorder %s25, 0
      %p88 = por %p86, %p87
      %p89 = scmp.ne.s32.totalorder %s77, %s78
      %p90 = scmp.eq.s32.totalorder %s26, 1
      %p91 = por %p89, %p90
      %p93 = scmp.ne.s32.totalorder %s78, %s92
      %p94 = scmp.eq.s32.totalorder %s26, 0
      %p95 = por %p93, %p94
      %s97 = sadd.s32 %s96, 1
      %p100 = scmp.eq.s32.totalorder %s20, 1
      %p101 = scmp.ne.s32.totalorder %s96, %s98
      %p102 = scmp.eq.s32.totalorder %s20, 0
      %p103 = por %p101, %p102
      %p104 = scmp.ne.s32.totalorder %s96, %s98
      %p105 = scmp.eq.s32.totalorder %s25, 1
      %p106 = por %p104, %p105
      %p107 = scmp.ne.s32.totalorder %s98, %s99
      %p108 = scmp.eq.s32.totalorder %s25, 0
      %p109 = por %p107, %p108
      %p110 = scmp.ne.s32.totalorder %s98, %s99
      %p111 = scmp.eq.s32.totalorder %s26, 1
      %p112 = por %p110, %p111
      %p114 = scmp.ne.s32.totalorder %s99, %s113
      %p115 = scmp.eq.s32.totalorder %s26, 0
      %p116 = por %p114, %p115
      %s118 = sadd.s32 %s117, 1
      %p121 = scmp.eq.s32.totalorder %s20, 1
      %p122 = scmp.ne.s32.totalorder %s117, %s119
      %p123 = scmp.eq.s32.totalorder %s20, 0
      %p124 = por %p122, %p123
      %p125 = scmp.ne.s32.totalorder %s117, %s119
      %p126 = scmp.eq.s32.totalorder %s25, 1
      %p127 = por %p125, %p126
      %p128 = scmp.ne.s32.totalorder %s119, %s120
      %p129 = scmp.eq.s32.totalorder %s25, 0
      %p130 = por %p128, %p129
      %p131 = scmp.ne.s32.totalorder %s119, %s120
      %p132 = scmp.eq.s32.totalorder %s26, 1
      %p133 = por %p131, %p132
      %p135 = scmp.ne.s32.totalorder %s120, %s134
      %p136 = scmp.eq.s32.totalorder %s26, 0
      %p137 = por %p135, %p136
      %s139 = sadd.s32 %s138, 1
      %p142 = scmp.eq.s32.totalorder %s20, 1
      %p143 = scmp.ne.s32.totalorder %s138, %s140
      %p144 = scmp.eq.s32.totalorder %s20, 0
      %p145 = por %p143, %p144
      %p146 = scmp.ne.s32.totalorder %s138, %s140
      %p147 = scmp.eq.s32.totalorder %s25, 1
      %p148 = por %p146, %p147
      %p149 = scmp.ne.s32.totalorder %s140, %s141
      %p150 = scmp.eq.s32.totalorder %s25, 0
      %p151 = por %p149, %p150
      %p152 = scmp.ne.s32.totalorder %s140, %s141
      %p153 = scmp.eq.s32.totalorder %s26, 1
      %p154 = por %p152, %p153
      %p156 = scmp.ne.s32.totalorder %s141, %s155
      %p157 = scmp.eq.s32.totalorder %s26, 0
      %p158 = por %p156, %p157
      %s160 = sadd.s32 %s159, 1
      %p163 = scmp.eq.s32.totalorder %s20, 1
      %p164 = scmp.ne.s32.totalorder %s159, %s161
      %p165 = scmp.eq.s32.totalorder %s20, 0
      %p166 = por %p164, %p165
      %p167 = scmp.ne.s32.totalorder %s159, %s161
      %p168 = scmp.eq.s32.totalorder %s25, 1
      %p169 = por %p167, %p168
      %p170 = scmp.ne.s32.totalorder %s161, %s162
      %p171 = scmp.eq.s32.totalorder %s25, 0
      %p172 = por %p170, %p171
      %p173 = scmp.ne.s32.totalorder %s161, %s162
      %p174 = scmp.eq.s32.totalorder %s26, 1
      %p175 = por %p173, %p174
      %p177 = scmp.ne.s32.totalorder %s162, %s176
      %p178 = scmp.eq.s32.totalorder %s26, 0
      %p179 = por %p177, %p178
      %s180 = ssub.s32 %s20, %s27
      %p181 = scmp.eq.s32.totalorder %s180, 0
      %s183 = sadd.s32 %s182, 1
      %s184 = scalar_select %p181, %s182, %s183
      %p187 = pneg %p181
      %p188 = scmp.eq.s32.totalorder %s20, 1
      %p189 = por %p187, %p188
      %p190 = scmp.ne.s32.totalorder %s182, %s185
      %p191 = scmp.eq.s32.totalorder %s20, 0
      %p192 = por %p190, %p191
      %p193 = scmp.ne.s32.totalorder %s182, %s185
      %p194 = scmp.eq.s32.totalorder %s25, 1
      %p195 = por %p193, %p194
      %p196 = scmp.ne.s32.totalorder %s185, %s186
      %p197 = scmp.eq.s32.totalorder %s25, 0
      %p198 = por %p196, %p197
      %p199 = scmp.ne.s32.totalorder %s185, %s186
      %p200 = scmp.eq.s32.totalorder %s26, 1
      %p201 = por %p199, %p200
      %p203 = scmp.ne.s32.totalorder %s186, %s202
      %p204 = scmp.eq.s32.totalorder %s26, 0
      %p205 = por %p203, %p204
      %p206 = scmp.le.s32.totalorder 1, %s20
      %p207 = scmp.lt.s32.totalorder %s20, 3
      %p208 = pnand %p206, %p207
      %p209 = pneg %p208
      // Predicated region
      $region9: #{tpu_custom_call.1} parent=5 // pred_check
        _
      $region10: #{tpu_custom_call.1} parent=5 // pred_check_branch
        %211 = sbr.rel (%p208) target = $region12
      $region11: #{tpu_custom_call.1} parent=5 // pred_region
        %s212 = ssub.s32 %s20, 1
        // Predicated region
        $region13: #{tpu_custom_call.1} parent=11 // pred_check
          %p213 = pneg %p67
        $region14: #{tpu_custom_call.1} parent=11 // pred_check_branch
          %215 = sbr.rel (%p213) target = $region16
        $region15: #{tpu_custom_call.1} parent=11 // pred_region
          %s217 = ssub.s32 6144, 6144
          %218 = vsyncadd [#allocation6], %s217
          %s219 = sshll.u32 [#allocation5], 4
          %s220 = int_to_ptr.vmem [resolvable:$true] %s219
          %225 = dma.hbm_to_vmem [thread:$0]  %s1, 6144, %s220, [#allocation6], 384, 384, 24
        $region16: #{tpu_custom_call.1} parent=11 // pred_fallthru
          _
        // Predicated region
        $region17: #{tpu_custom_call.1} parent=11 // pred_check
          %p226 = pneg %p88
        $region18: #{tpu_custom_call.1} parent=11 // pred_check_branch
          %228 = sbr.rel (%p226) target = $region20
        $region19: #{tpu_custom_call.1} parent=11 // pred_region
          _
        $region20: #{tpu_custom_call.1} parent=11 // pred_fallthru
          _
        // Predicated region
        $region21: #{tpu_custom_call.1} parent=11 // pred_check
          %p229 = pneg %p109
        $region22: #{tpu_custom_call.1} parent=11 // pred_check_branch
          %231 = sbr.rel (%p229) target = $region24
        $region23: #{tpu_custom_call.1} parent=11 // pred_region
          %s233 = ssub.s32 2048, 2048
          %234 = vsyncadd [#allocation6], %s233
          %s235 = sshll.u32 [#allocation7], 4
          %s236 = int_to_ptr.vmem [resolvable:$true] %s235
          %241 = dma.hbm_to_vmem [thread:$0]  %s3, 2048, %s236, [#allocation6], 128, 128, 8
        $region24: #{tpu_custom_call.1} parent=11 // pred_fallthru
          _
        // Predicated region
        $region25: #{tpu_custom_call.1} parent=11 // pred_check
          %p242 = pneg %p130
        $region26: #{tpu_custom_call.1} parent=11 // pred_check_branch
          %244 = sbr.rel (%p242) target = $region28
        $region27: #{tpu_custom_call.1} parent=11 // pred_region
          _
        $region28: #{tpu_custom_call.1} parent=11 // pred_fallthru
          _
        // Predicated region
        $region29: #{tpu_custom_call.1} parent=11 // pred_check
          %p245 = pneg %p151
        $region30: #{tpu_custom_call.1} parent=11 // pred_check_branch
          %247 = sbr.rel (%p245) target = $region32
        $region31: #{tpu_custom_call.1} parent=11 // pred_region
          _
        $region32: #{tpu_custom_call.1} parent=11 // pred_fallthru
          _
        // Predicated region
        $region33: #{tpu_custom_call.1} parent=11 // pred_check
          %p248 = pneg %p172
        $region34: #{tpu_custom_call.1} parent=11 // pred_check_branch
          %250 = sbr.rel (%p248) target = $region36
        $region35: #{tpu_custom_call.1} parent=11 // pred_region
          _
        $region36: #{tpu_custom_call.1} parent=11 // pred_fallthru
          _
      $region12: #{tpu_custom_call.1} parent=5 // pred_fallthru
        _
      %p251 = scmp.lt.s32.totalorder %s20, 2
      // Predicated region
      $region37: #{tpu_custom_call.1} parent=5 // pred_check
        %p252 = pneg %p251
      $region38: #{tpu_custom_call.1} parent=5 // pred_check_branch
        %254 = sbr.rel (%p252) target = $region40
      $region39: #{tpu_custom_call.1} parent=5 // pred_region
        // Predicated region
        $region41: #{tpu_custom_call.1} parent=39 // pred_check
          %p255 = pneg %p40
        $region42: #{tpu_custom_call.1} parent=39 // pred_check_branch
          %257 = sbr.rel (%p255) target = $region44
        $region43: #{tpu_custom_call.1} parent=39 // pred_region
          %s258 = sand.u32 %s30, 1
          %s259 = scalar_lea.sflag [#allocation3], %s258
          %s260 = sand.u32 %s30, 1
          %s261 = smul.addr %s260, 8
          %s262 = scalar_lea.vmem [#allocation2], %s261
          %s264 = ssub.s32 128, 128
          %265 = vsyncadd %s259, %s264
          %s266 = smul.addr %s20, 128
          %s267 = scalar_lea.hbm %s0, %s266
          %s269 = sshll.u32 %s262, 4
          %s270 = int_to_ptr.vmem [resolvable:$true] %s269
          %272 = dma.hbm_to_vmem [thread:$0]  %s267, 128, %s270, %s259
        $region44: #{tpu_custom_call.1} parent=39 // pred_fallthru
          _
      $region40: #{tpu_custom_call.1} parent=5 // pred_fallthru
        _
      %p273 = scmp.le.s32.totalorder 1, %s20
      %p274 = scmp.lt.s32.totalorder %s20, 3
      %p275 = pnand %p273, %p274
      %p276 = pneg %p275
      // Predicated region
      $region45: #{tpu_custom_call.1} parent=5 // pred_check
        _
      $region46: #{tpu_custom_call.1} parent=5 // pred_check_branch
        %278 = sbr.rel (%p275) target = $region48
      $region47: #{tpu_custom_call.1} parent=5 // pred_region
        %s279 = ssub.s32 %s20, 1
        %s280 = sand.u32 %s33, 1
        %s281 = scalar_lea.sflag [#allocation3], %s280
        %s282 = sand.u32 %s33, 1
        %s283 = smul.addr %s282, 8
        %s284 = scalar_lea.vmem [#allocation2], %s283
        // Predicated region
        $region49: #{tpu_custom_call.1} parent=47 // pred_check
          %p285 = pneg %p46
        $region50: #{tpu_custom_call.1} parent=47 // pred_check_branch
          %287 = sbr.rel (%p285) target = $region52
        $region51: #{tpu_custom_call.1} parent=47 // pred_region
          %288 = dma.done %s281, 128
        $region52: #{tpu_custom_call.1} parent=47 // pred_fallthru
          _
        // Predicated region
        $region53: #{tpu_custom_call.1} parent=47 // pred_check
          %p289 = pneg %p67
        $region54: #{tpu_custom_call.1} parent=47 // pred_check_branch
          %291 = sbr.rel (%p289) target = $region56
        $region55: #{tpu_custom_call.1} parent=47 // pred_region
          %292 = dma.done [#allocation6], 6144
        $region56: #{tpu_custom_call.1} parent=47 // pred_fallthru
          _
        // Predicated region
        $region57: #{tpu_custom_call.1} parent=47 // pred_check
          %p293 = pneg %p109
        $region58: #{tpu_custom_call.1} parent=47 // pred_check_branch
          %295 = sbr.rel (%p293) target = $region60
        $region59: #{tpu_custom_call.1} parent=47 // pred_region
          %296 = dma.done [#allocation6], 2048
        $region60: #{tpu_custom_call.1} parent=47 // pred_fallthru
          _
        %s297 = sand.u32 %s33, 1
        %s298 = scalar_lea.sflag [#allocation3], %s297
        %s299 = sand.u32 %s33, 1
        %s300 = smul.addr %s299, 8
        %s301 = scalar_lea.vmem [#allocation2], %s300
        %p302 = pneg %p46
        %p303 = pneg %p43
        %p304 = pneg %p67
        %p305 = pneg %p64
        %p306 = pneg %p88
        %p307 = pneg %p85
        %p308 = pneg %p109
        %p309 = pneg %p106
        %p310 = pneg %p130
        %p311 = pneg %p127
        %p312 = pneg %p151
        %p313 = pneg %p148
        %p314 = pneg %p172
        %p315 = pneg %p169
        %p316 = pneg %p198
        %p317 = pneg %p195
        %s318 = sand.u32 %s185, 1
        %s319 = scalar_lea.sflag [#allocation4], %s318
        %s320 = sand.u32 %s185, 1
        %s321 = smul.addr %s320, 8
        %s322 = scalar_lea.vmem [#allocation8], %s321
        %v323 = vld [vmem:[%s284] sm:$0xff]
        %v324 = vld [vmem:[#allocation5] sm:$0xff]
        %v325 = vld [vmem:[#allocation5 + $0x8] sm:$0xff]
        %v326 = vld [vmem:[#allocation5 + $0x10] sm:$0xff]
        %v327 = vld [vmem:[#allocation5 + $0x18] sm:$0xff]
        %v328 = vld [vmem:[#allocation5 + $0x20] sm:$0xff]
        %v329 = vld [vmem:[#allocation5 + $0x28] sm:$0xff]
        %v330 = vld [vmem:[#allocation5 + $0x30] sm:$0xff]
        %v331 = vld [vmem:[#allocation5 + $0x38] sm:$0xff]
        %v332 = vld [vmem:[#allocation5 + $0x40] sm:$0xff]
        %v333 = vld [vmem:[#allocation5 + $0x48] sm:$0xff]
        %v334 = vld [vmem:[#allocation5 + $0x50] sm:$0xff]
        %v335 = vld [vmem:[#allocation5 + $0x58] sm:$0xff]
        %v336 = vld [vmem:[#allocation5 + $0x60] sm:$0xff]
        %v337 = vld [vmem:[#allocation5 + $0x68] sm:$0xff]
        %v338 = vld [vmem:[#allocation5 + $0x70] sm:$0xff]
        %v339 = vld [vmem:[#allocation5 + $0x78] sm:$0xff]
        %v340 = vld [vmem:[#allocation5 + $0x80] sm:$0xff]
        %v341 = vld [vmem:[#allocation5 + $0x88] sm:$0xff]
        %v342 = vld [vmem:[#allocation5 + $0x90] sm:$0xff]
        %v343 = vld [vmem:[#allocation5 + $0x98] sm:$0xff]
        %v344 = vld [vmem:[#allocation5 + $0xa0] sm:$0xff]
        %v345 = vld [vmem:[#allocation5 + $0xa8] sm:$0xff]
        %v346 = vld [vmem:[#allocation5 + $0xb0] sm:$0xff]
        %v347 = vld [vmem:[#allocation5 + $0xb8] sm:$0xff]
        %v348 = vld [vmem:[#allocation5 + $0xc0] sm:$0xff]
        %v349 = vld [vmem:[#allocation5 + $0xc8] sm:$0xff]
        %v350 = vld [vmem:[#allocation5 + $0xd0] sm:$0xff]
        %v351 = vld [vmem:[#allocation5 + $0xd8] sm:$0xff]
        %v352 = vld [vmem:[#allocation5 + $0xe0] sm:$0xff]
        %v353 = vld [vmem:[#allocation5 + $0xe8] sm:$0xff]
        %v354 = vld [vmem:[#allocation5 + $0xf0] sm:$0xff]
        %v355 = vld [vmem:[#allocation5 + $0xf8] sm:$0xff]
        %v356 = vld [vmem:[#allocation5 + $0x100] sm:$0xff]
        %v357 = vld [vmem:[#allocation5 + $0x108] sm:$0xff]
        %v358 = vld [vmem:[#allocation5 + $0x110] sm:$0xff]
        %v359 = vld [vmem:[#allocation5 + $0x118] sm:$0xff]
        %v360 = vld [vmem:[#allocation5 + $0x120] sm:$0xff]
        %v361 = vld [vmem:[#allocation5 + $0x128] sm:$0xff]
        %v362 = vld [vmem:[#allocation5 + $0x130] sm:$0xff]
        %v363 = vld [vmem:[#allocation5 + $0x138] sm:$0xff]
        %v364 = vld [vmem:[#allocation5 + $0x140] sm:$0xff]
        %v365 = vld [vmem:[#allocation5 + $0x148] sm:$0xff]
        %v366 = vld [vmem:[#allocation5 + $0x150] sm:$0xff]
        %v367 = vld [vmem:[#allocation5 + $0x158] sm:$0xff]
        %v368 = vld [vmem:[#allocation5 + $0x160] sm:$0xff]
        %v369 = vld [vmem:[#allocation5 + $0x168] sm:$0xff]
        %v370 = vld [vmem:[#allocation5 + $0x170] sm:$0xff]
        %v371 = vld [vmem:[#allocation5 + $0x178] sm:$0xff]
        %v372 = vld [vmem:[%s2] sm:$0x7]
        %v374 = vlaneseq
        %v375 = vshrl.u32 %v374, 7
        %v376 = vsub.s32 0, %v375
        %v377 = vrot.slane %v372, %v376
        %v378 = vlaneseq
        %v379 = vshrl.u32 %v378, 7
        %v380 = vsub.s32 1, %v379
        %v381 = vrot.slane %v372, %v380
        %v382 = vlaneseq
        %v383 = vshrl.u32 %v382, 7
        %v384 = vsub.s32 2, %v383
        %v385 = vrot.slane %v372, %v384
        %v389 = vand.u32 %v370, 4294901760
        %390 = vmatprep.subr.mxu0 %v389
        %v391 = vand.u32 %v369, 4294901760
        %392 = vmatpush1.msra.mxu0 %v391
        %v393 = vand.u32 %v367, 4294901760
        %394 = vmatprep.subr.mxu0 %v393
        %v395 = vand.u32 %v366, 4294901760
        %396 = vmatpush1.msra.mxu0 %v395
        %v397 = vand.u32 %v364, 4294901760
        %398 = vmatprep.subr.mxu0 %v397
        %v399 = vand.u32 %v363, 4294901760
        %400 = vmatpush1.msra.mxu0 %v399
        %v401 = vand.u32 %v361, 4294901760
        %402 = vmatprep.subr.mxu0 %v401
        %v403 = vand.u32 %v360, 4294901760
        %404 = vmatpush1.msra.mxu0 %v403
        %v405 = vand.u32 %v358, 4294901760
        %406 = vmatprep.subr.mxu0 %v405
        %v407 = vand.u32 %v357, 4294901760
        %408 = vmatpush1.msra.mxu0 %v407
        %v409 = vand.u32 %v355, 4294901760
        %410 = vmatprep.subr.mxu0 %v409
        %v411 = vand.u32 %v354, 4294901760
        %412 = vmatpush1.msra.mxu0 %v411
        %v413 = vand.u32 %v352, 4294901760
        %414 = vmatprep.subr.mxu0 %v413
        %v415 = vand.u32 %v351, 4294901760
        %416 = vmatpush1.msra.mxu0 %v415
        %v417 = vand.u32 %v349, 4294901760
        %418 = vmatprep.subr.mxu0 %v417
        %v419 = vand.u32 %v348, 4294901760
        %420 = vmatpush1.msra.mxu0 %v419
        %v421 = vand.u32 %v346, 4294901760
        %422 = vmatprep.subr.mxu0 %v421
        %v423 = vand.u32 %v345, 4294901760
        %424 = vmatpush1.msra.mxu0 %v423
        %v425 = vand.u32 %v343, 4294901760
        %426 = vmatprep.subr.mxu0 %v425
        %v427 = vand.u32 %v342, 4294901760
        %428 = vmatpush1.msra.mxu0 %v427
        %v429 = vand.u32 %v340, 4294901760
        %430 = vmatprep.subr.mxu0 %v429
        %v431 = vand.u32 %v339, 4294901760
        %432 = vmatpush1.msra.mxu0 %v431
        %v433 = vand.u32 %v337, 4294901760
        %434 = vmatprep.subr.mxu0 %v433
        %v435 = vand.u32 %v336, 4294901760
        %436 = vmatpush1.msra.mxu0 %v435
        %v437 = vand.u32 %v334, 4294901760
        %438 = vmatprep.subr.mxu0 %v437
        %v439 = vand.u32 %v333, 4294901760
        %440 = vmatpush1.msra.mxu0 %v439
        %v441 = vand.u32 %v331, 4294901760
        %442 = vmatprep.subr.mxu0 %v441
        %v443 = vand.u32 %v330, 4294901760
        %444 = vmatpush1.msra.mxu0 %v443
        %v445 = vand.u32 %v328, 4294901760
        %446 = vmatprep.subr.mxu0 %v445
        %v447 = vand.u32 %v327, 4294901760
        %448 = vmatpush1.msra.mxu0 %v447
        %v449 = vand.u32 %v325, 4294901760
        %450 = vmatprep.subr.mxu0 %v449
        %v451 = vand.u32 %v324, 4294901760
        %452 = vmatpush1.msra.mxu0 %v451
        %453 = vmatprep.subr.mxu0 0.0
        %454 = vmatpush2.msra.mxu0 0.0
        %455 = vmatprep.subr.mxu0 0.0
        %456 = vmatpush2.msra.mxu0 0.0
        %457 = vmatprep.subr.mxu0 0.0
        %458 = vmatpush2.msra.mxu0 0.0
        %459 = vmatprep.subr.mxu0 0.0
        %460 = vmatpush2.msra.mxu0 0.0
        %461 = vmatprep.subr.mxu0 0.0
        %462 = vmatpush2.msra.mxu0 0.0
        %463 = vmatprep.subr.mxu0 0.0
        %464 = vmatpush2.msra.mxu0 0.0
        %465 = vmatprep.subr.mxu0 0.0
        %466 = vmatpush2.msra.mxu0 0.0
        %467 = vmatprep.subr.mxu0 0.0
        %468 = vmatpush2.msra.mxu0 0.0
        %469 = vmatprep.subr.mxu0 0.0
        %470 = vmatpush2.msra.mxu0 0.0
        %471 = vmatprep.subr.mxu0 0.0
        %472 = vmatpush2.msra.mxu0 0.0
        %473 = vmatprep.subr.mxu0 0.0
        %474 = vmatpush2.msra.mxu0 0.0
        %475 = vmatprep.subr.mxu0 0.0
        %476 = vmatpush2.msra.mxu0 0.0
        %477 = vmatprep.subr.mxu0 0.0
        %478 = vmatpush2.msra.mxu0 0.0
        %479 = vmatprep.subr.mxu0 0.0
        %480 = vmatpush2.msra.mxu0 0.0
        %481 = vmatprep.subr.mxu0 0.0
        %482 = vmatpush2.msra.mxu0 0.0
        %483 = vmatprep.subr.mxu0 0.0
        %484 = vmatpush2.msra.mxu0 0.0
        %485 = vmatprep.mubr.f32.mxu0 0.0
        %v486 = vand.u32 %v323, 4294901760
        %v487 = vsub.f32 %v323, %v486
        %v488 = vand.u32 %v487, 4294901760
        %v489 = vsub.f32 %v487, %v488
        %v490 = vand.u32 %v489, 4294901760
        %491 = vmatmul.mubr.f32.gmra.mxu0 %v490
        %v492 = vpop.f32.mrf.mxu0
        %v493 = vadd.f32 %v377, %v492
        %v494 = vpop.f32.mrf.mxu0
        %v495 = vadd.f32 %v381, %v494
        %496 = vdwg.mxu0
        %v497 = vand.u32 %v370, 4294901760
        %v498 = vsub.f32 %v370, %v497
        %v499 = vand.u32 %v498, 4294901760
        %v500 = vsub.f32 %v498, %v499
        %v501 = vand.u32 %v500, 4294901760
        %502 = vmatprep.subr.mxu0 %v501
        %v503 = vand.u32 %v369, 4294901760
        %v504 = vsub.f32 %v369, %v503
        %v505 = vand.u32 %v504, 4294901760
        %v506 = vsub.f32 %v504, %v505
        %v507 = vand.u32 %v506, 4294901760
        %508 = vmatpush1.msra.mxu0 %v507
        %v509 = vand.u32 %v367, 4294901760
        %v510 = vsub.f32 %v367, %v509
        %v511 = vand.u32 %v510, 4294901760
        %v512 = vsub.f32 %v510, %v511
        %v513 = vand.u32 %v512, 4294901760
        %514 = vmatprep.subr.mxu0 %v513
        %v515 = vand.u32 %v366, 4294901760
        %v516 = vsub.f32 %v366, %v515
        %v517 = vand.u32 %v516, 4294901760
        %v518 = vsub.f32 %v516, %v517
        %v519 = vand.u32 %v518, 4294901760
        %520 = vmatpush1.msra.mxu0 %v519
        %v521 = vand.u32 %v364, 4294901760
        %v522 = vsub.f32 %v364, %v521
        %v523 = vand.u32 %v522, 4294901760
        %v524 = vsub.f32 %v522, %v523
        %v525 = vand.u32 %v524, 4294901760
        %526 = vmatprep.subr.mxu0 %v525
        %v527 = vand.u32 %v363, 4294901760
        %v528 = vsub.f32 %v363, %v527
        %v529 = vand.u32 %v528, 4294901760
        %v530 = vsub.f32 %v528, %v529
        %v531 = vand.u32 %v530, 4294901760
        %532 = vmatpush1.msra.mxu0 %v531
        %v533 = vand.u32 %v361, 4294901760
        %v534 = vsub.f32 %v361, %v533
        %v535 = vand.u32 %v534, 4294901760
        %v536 = vsub.f32 %v534, %v535
        %v537 = vand.u32 %v536, 4294901760
        %538 = vmatprep.subr.mxu0 %v537
        %v539 = vand.u32 %v360, 4294901760
        %v540 = vsub.f32 %v360, %v539
        %v541 = vand.u32 %v540, 4294901760
        %v542 = vsub.f32 %v540, %v541
        %v543 = vand.u32 %v542, 4294901760
        %544 = vmatpush1.msra.mxu0 %v543
        %v545 = vand.u32 %v358, 4294901760
        %v546 = vsub.f32 %v358, %v545
        %v547 = vand.u32 %v546, 4294901760
        %v548 = vsub.f32 %v546, %v547
        %v549 = vand.u32 %v548, 4294901760
        %550 = vmatprep.subr.mxu0 %v549
        %v551 = vand.u32 %v357, 4294901760
        %v552 = vsub.f32 %v357, %v551
        %v553 = vand.u32 %v552, 4294901760
        %v554 = vsub.f32 %v552, %v553
        %v555 = vand.u32 %v554, 4294901760
        %556 = vmatpush1.msra.mxu0 %v555
        %v557 = vand.u32 %v355, 4294901760
        %v558 = vsub.f32 %v355, %v557
        %v559 = vand.u32 %v558, 4294901760
        %v560 = vsub.f32 %v558, %v559
        %v561 = vand.u32 %v560, 4294901760
        %562 = vmatprep.subr.mxu0 %v561
        %v563 = vand.u32 %v354, 4294901760
        %v564 = vsub.f32 %v354, %v563
        %v565 = vand.u32 %v564, 4294901760
        %v566 = vsub.f32 %v564, %v565
        %v567 = vand.u32 %v566, 4294901760
        %568 = vmatpush1.msra.mxu0 %v567
        %v569 = vand.u32 %v352, 4294901760
        %v570 = vsub.f32 %v352, %v569
        %v571 = vand.u32 %v570, 4294901760
        %v572 = vsub.f32 %v570, %v571
        %v573 = vand.u32 %v572, 4294901760
        %574 = vmatprep.subr.mxu0 %v573
        %v575 = vand.u32 %v351, 4294901760
        %v576 = vsub.f32 %v351, %v575
        %v577 = vand.u32 %v576, 4294901760
        %v578 = vsub.f32 %v576, %v577
        %v579 = vand.u32 %v578, 4294901760
        %580 = vmatpush1.msra.mxu0 %v579
        %v581 = vand.u32 %v349, 4294901760
        %v582 = vsub.f32 %v349, %v581
        %v583 = vand.u32 %v582, 4294901760
        %v584 = vsub.f32 %v582, %v583
        %v585 = vand.u32 %v584, 4294901760
        %586 = vmatprep.subr.mxu0 %v585
        %v587 = vand.u32 %v348, 4294901760
        %v588 = vsub.f32 %v348, %v587
        %v589 = vand.u32 %v588, 4294901760
        %v590 = vsub.f32 %v588, %v589
        %v591 = vand.u32 %v590, 4294901760
        %592 = vmatpush1.msra.mxu0 %v591
        %v593 = vand.u32 %v346, 4294901760
        %v594 = vsub.f32 %v346, %v593
        %v595 = vand.u32 %v594, 4294901760
        %v596 = vsub.f32 %v594, %v595
        %v597 = vand.u32 %v596, 4294901760
        %598 = vmatprep.subr.mxu0 %v597
        %v599 = vand.u32 %v345, 4294901760
        %v600 = vsub.f32 %v345, %v599
        %v601 = vand.u32 %v600, 4294901760
        %v602 = vsub.f32 %v600, %v601
        %v603 = vand.u32 %v602, 4294901760
        %604 = vmatpush1.msra.mxu0 %v603
        %v605 = vand.u32 %v343, 4294901760
        %v606 = vsub.f32 %v343, %v605
        %v607 = vand.u32 %v606, 4294901760
        %v608 = vsub.f32 %v606, %v607
        %v609 = vand.u32 %v608, 4294901760
        %610 = vmatprep.subr.mxu0 %v609
        %v611 = vand.u32 %v342, 4294901760
        %v612 = vsub.f32 %v342, %v611
        %v613 = vand.u32 %v612, 4294901760
        %v614 = vsub.f32 %v612, %v613
        %v615 = vand.u32 %v614, 4294901760
        %616 = vmatpush1.msra.mxu0 %v615
        %v617 = vand.u32 %v340, 4294901760
        %v618 = vsub.f32 %v340, %v617
        %v619 = vand.u32 %v618, 4294901760
        %v620 = vsub.f32 %v618, %v619
        %v621 = vand.u32 %v620, 4294901760
        %622 = vmatprep.subr.mxu0 %v621
        %v623 = vand.u32 %v339, 4294901760
        %v624 = vsub.f32 %v339, %v623
        %v625 = vand.u32 %v624, 4294901760
        %v626 = vsub.f32 %v624, %v625
        %v627 = vand.u32 %v626, 4294901760
        %628 = vmatpush1.msra.mxu0 %v627
        %v629 = vand.u32 %v337, 4294901760
        %v630 = vsub.f32 %v337, %v629
        %v631 = vand.u32 %v630, 4294901760
        %v632 = vsub.f32 %v630, %v631
        %v633 = vand.u32 %v632, 4294901760
        %634 = vmatprep.subr.mxu0 %v633
        %v635 = vand.u32 %v336, 4294901760
        %v636 = vsub.f32 %v336, %v635
        %v637 = vand.u32 %v636, 4294901760
        %v638 = vsub.f32 %v636, %v637
        %v639 = vand.u32 %v638, 4294901760
        %640 = vmatpush1.msra.mxu0 %v639
        %v641 = vand.u32 %v334, 4294901760
        %v642 = vsub.f32 %v334, %v641
        %v643 = vand.u32 %v642, 4294901760
        %v644 = vsub.f32 %v642, %v643
        %v645 = vand.u32 %v644, 4294901760
        %646 = vmatprep.subr.mxu0 %v645
        %v647 = vand.u32 %v333, 4294901760
        %v648 = vsub.f32 %v333, %v647
        %v649 = vand.u32 %v648, 4294901760
        %v650 = vsub.f32 %v648, %v649
        %v651 = vand.u32 %v650, 4294901760
        %652 = vmatpush1.msra.mxu0 %v651
        %v653 = vand.u32 %v331, 4294901760
        %v654 = vsub.f32 %v331, %v653
        %v655 = vand.u32 %v654, 4294901760
        %v656 = vsub.f32 %v654, %v655
        %v657 = vand.u32 %v656, 4294901760
        %658 = vmatprep.subr.mxu0 %v657
        %v659 = vand.u32 %v330, 4294901760
        %v660 = vsub.f32 %v330, %v659
        %v661 = vand.u32 %v660, 4294901760
        %v662 = vsub.f32 %v660, %v661
        %v663 = vand.u32 %v662, 4294901760
        %664 = vmatpush1.msra.mxu0 %v663
        %v665 = vand.u32 %v328, 4294901760
        %v666 = vsub.f32 %v328, %v665
        %v667 = vand.u32 %v666, 4294901760
        %v668 = vsub.f32 %v666, %v667
        %v669 = vand.u32 %v668, 4294901760
        %670 = vmatprep.subr.mxu0 %v669
        %v671 = vand.u32 %v327, 4294901760
        %v672 = vsub.f32 %v327, %v671
        %v673 = vand.u32 %v672, 4294901760
        %v674 = vsub.f32 %v672, %v673
        %v675 = vand.u32 %v674, 4294901760
        %676 = vmatpush1.msra.mxu0 %v675
        %v677 = vand.u32 %v325, 4294901760
        %v678 = vsub.f32 %v325, %v677
        %v679 = vand.u32 %v678, 4294901760
        %v680 = vsub.f32 %v678, %v679
        %v681 = vand.u32 %v680, 4294901760
        %682 = vmatprep.subr.mxu0 %v681
        %v683 = vand.u32 %v324, 4294901760
        %v684 = vsub.f32 %v324, %v683
        %v685 = vand.u32 %v684, 4294901760
        %v686 = vsub.f32 %v684, %v685
        %v687 = vand.u32 %v686, 4294901760
        %688 = vmatpush1.msra.mxu0 %v687
        %689 = vmatprep.subr.mxu0 0.0
        %690 = vmatpush2.msra.mxu0 0.0
        %691 = vmatprep.subr.mxu0 0.0
        %692 = vmatpush2.msra.mxu0 0.0
        %693 = vmatprep.subr.mxu0 0.0
        %694 = vmatpush2.msra.mxu0 0.0
        %695 = vmatprep.subr.mxu0 0.0
        %696 = vmatpush2.msra.mxu0 0.0
        %697 = vmatprep.subr.mxu0 0.0
        %698 = vmatpush2.msra.mxu0 0.0
        %699 = vmatprep.subr.mxu0 0.0
        %700 = vmatpush2.msra.mxu0 0.0
        %701 = vmatprep.subr.mxu0 0.0
        %702 = vmatpush2.msra.mxu0 0.0
        %703 = vmatprep.subr.mxu0 0.0
        %704 = vmatpush2.msra.mxu0 0.0
        %705 = vmatprep.subr.mxu0 0.0
        %706 = vmatpush2.msra.mxu0 0.0
        %707 = vmatprep.subr.mxu0 0.0
        %708 = vmatpush2.msra.mxu0 0.0
        %709 = vmatprep.subr.mxu0 0.0
        %710 = vmatpush2.msra.mxu0 0.0
        %711 = vmatprep.subr.mxu0 0.0
        %712 = vmatpush2.msra.mxu0 0.0
        %713 = vmatprep.subr.mxu0 0.0
        %714 = vmatpush2.msra.mxu0 0.0
        %715 = vmatprep.subr.mxu0 0.0
        %716 = vmatpush2.msra.mxu0 0.0
        %717 = vmatprep.subr.mxu0 0.0
        %718 = vmatpush2.msra.mxu0 0.0
        %719 = vmatprep.subr.mxu0 0.0
        %720 = vmatpush2.msra.mxu0 0.0
        %721 = vmatprep.mubr.f32.mxu0 0.0
        %v722 = vand.u32 %v323, 4294901760
        %723 = vmatmul.mubr.f32.gmra.mxu0 %v722
        %v724 = vpop.f32.mrf.mxu0
        %v725 = vadd.f32 %v493, %v724
        %v726 = vpop.f32.mrf.mxu0
        %v727 = vadd.f32 %v495, %v726
        %728 = vdwg.mxu0
        %v729 = vand.u32 %v370, 4294901760
        %v730 = vsub.f32 %v370, %v729
        %731 = vmatprep.subr.mxu0 %v730
        %v732 = vand.u32 %v369, 4294901760
        %v733 = vsub.f32 %v369, %v732
        %734 = vmatpush1.msra.mxu0 %v733
        %v735 = vand.u32 %v367, 4294901760
        %v736 = vsub.f32 %v367, %v735
        %737 = vmatprep.subr.mxu0 %v736
        %v738 = vand.u32 %v366, 4294901760
        %v739 = vsub.f32 %v366, %v738
        %740 = vmatpush1.msra.mxu0 %v739
        %v741 = vand.u32 %v364, 4294901760
        %v742 = vsub.f32 %v364, %v741
        %743 = vmatprep.subr.mxu0 %v742
        %v744 = vand.u32 %v363, 4294901760
        %v745 = vsub.f32 %v363, %v744
        %746 = vmatpush1.msra.mxu0 %v745
        %v747 = vand.u32 %v361, 4294901760
        %v748 = vsub.f32 %v361, %v747
        %749 = vmatprep.subr.mxu0 %v748
        %v750 = vand.u32 %v360, 4294901760
        %v751 = vsub.f32 %v360, %v750
        %752 = vmatpush1.msra.mxu0 %v751
        %v753 = vand.u32 %v358, 4294901760
        %v754 = vsub.f32 %v358, %v753
        %755 = vmatprep.subr.mxu0 %v754
        %v756 = vand.u32 %v357, 4294901760
        %v757 = vsub.f32 %v357, %v756
        %758 = vmatpush1.msra.mxu0 %v757
        %v759 = vand.u32 %v355, 4294901760
        %v760 = vsub.f32 %v355, %v759
        %761 = vmatprep.subr.mxu0 %v760
        %v762 = vand.u32 %v354, 4294901760
        %v763 = vsub.f32 %v354, %v762
        %764 = vmatpush1.msra.mxu0 %v763
        %v765 = vand.u32 %v352, 4294901760
        %v766 = vsub.f32 %v352, %v765
        %767 = vmatprep.subr.mxu0 %v766
        %v768 = vand.u32 %v351, 4294901760
        %v769 = vsub.f32 %v351, %v768
        %770 = vmatpush1.msra.mxu0 %v769
        %v771 = vand.u32 %v349, 4294901760
        %v772 = vsub.f32 %v349, %v771
        %773 = vmatprep.subr.mxu0 %v772
        %v774 = vand.u32 %v348, 4294901760
        %v775 = vsub.f32 %v348, %v774
        %776 = vmatpush1.msra.mxu0 %v775
        %v777 = vand.u32 %v346, 4294901760
        %v778 = vsub.f32 %v346, %v777
        %779 = vmatprep.subr.mxu0 %v778
        %v780 = vand.u32 %v345, 4294901760
        %v781 = vsub.f32 %v345, %v780
        %782 = vmatpush1.msra.mxu0 %v781
        %v783 = vand.u32 %v343, 4294901760
        %v784 = vsub.f32 %v343, %v783
        %785 = vmatprep.subr.mxu0 %v784
        %v786 = vand.u32 %v342, 4294901760
        %v787 = vsub.f32 %v342, %v786
        %788 = vmatpush1.msra.mxu0 %v787
        %v789 = vand.u32 %v340, 4294901760
        %v790 = vsub.f32 %v340, %v789
        %791 = vmatprep.subr.mxu0 %v790
        %v792 = vand.u32 %v339, 4294901760
        %v793 = vsub.f32 %v339, %v792
        %794 = vmatpush1.msra.mxu0 %v793
        %v795 = vand.u32 %v337, 4294901760
        %v796 = vsub.f32 %v337, %v795
        %797 = vmatprep.subr.mxu0 %v796
        %v798 = vand.u32 %v336, 4294901760
        %v799 = vsub.f32 %v336, %v798
        %800 = vmatpush1.msra.mxu0 %v799
        %v801 = vand.u32 %v334, 4294901760
        %v802 = vsub.f32 %v334, %v801
        %803 = vmatprep.subr.mxu0 %v802
        %v804 = vand.u32 %v333, 4294901760
        %v805 = vsub.f32 %v333, %v804
        %806 = vmatpush1.msra.mxu0 %v805
        %v807 = vand.u32 %v331, 4294901760
        %v808 = vsub.f32 %v331, %v807
        %809 = vmatprep.subr.mxu0 %v808
        %v810 = vand.u32 %v330, 4294901760
        %v811 = vsub.f32 %v330, %v810
        %812 = vmatpush1.msra.mxu0 %v811
        %v813 = vand.u32 %v328, 4294901760
        %v814 = vsub.f32 %v328, %v813
        %815 = vmatprep.subr.mxu0 %v814
        %v816 = vand.u32 %v327, 4294901760
        %v817 = vsub.f32 %v327, %v816
        %818 = vmatpush1.msra.mxu0 %v817
        %v819 = vand.u32 %v325, 4294901760
        %v820 = vsub.f32 %v325, %v819
        %821 = vmatprep.subr.mxu0 %v820
        %v822 = vand.u32 %v324, 4294901760
        %v823 = vsub.f32 %v324, %v822
        %824 = vmatpush1.msra.mxu0 %v823
        %825 = vmatprep.subr.mxu0 0.0
        %826 = vmatpush2.msra.mxu0 0.0
        %827 = vmatprep.subr.mxu0 0.0
        %828 = vmatpush2.msra.mxu0 0.0
        %829 = vmatprep.subr.mxu0 0.0
        %830 = vmatpush2.msra.mxu0 0.0
        %831 = vmatprep.subr.mxu0 0.0
        %832 = vmatpush2.msra.mxu0 0.0
        %833 = vmatprep.subr.mxu0 0.0
        %834 = vmatpush2.msra.mxu0 0.0
        %835 = vmatprep.subr.mxu0 0.0
        %836 = vmatpush2.msra.mxu0 0.0
        %837 = vmatprep.subr.mxu0 0.0
        %838 = vmatpush2.msra.mxu0 0.0
        %839 = vmatprep.subr.mxu0 0.0
        %840 = vmatpush2.msra.mxu0 0.0
        %841 = vmatprep.subr.mxu0 0.0
        %842 = vmatpush2.msra.mxu0 0.0
        %843 = vmatprep.subr.mxu0 0.0
        %844 = vmatpush2.msra.mxu0 0.0
        %845 = vmatprep.subr.mxu0 0.0
        %846 = vmatpush2.msra.mxu0 0.0
        %847 = vmatprep.subr.mxu0 0.0
        %848 = vmatpush2.msra.mxu0 0.0
        %849 = vmatprep.subr.mxu0 0.0
        %850 = vmatpush2.msra.mxu0 0.0
        %851 = vmatprep.subr.mxu0 0.0
        %852 = vmatpush2.msra.mxu0 0.0
        %853 = vmatprep.subr.mxu0 0.0
        %854 = vmatpush2.msra.mxu0 0.0
        %855 = vmatprep.subr.mxu0 0.0
        %856 = vmatpush2.msra.mxu0 0.0
        %857 = vmatprep.mubr.f32.mxu0 0.0
        %v858 = vand.u32 %v323, 4294901760
        %v859 = vsub.f32 %v323, %v858
        %860 = vmatmul.mubr.f32.gmra.mxu0 %v859
        %v861 = vpop.f32.mrf.mxu0
        %v862 = vadd.f32 %v725, %v861
        %v863 = vpop.f32.mrf.mxu0
        %v864 = vadd.f32 %v727, %v863
        %865 = vdwg.mxu0
        %v866 = vand.u32 %v370, 4294901760
        %867 = vmatprep.subr.mxu0 %v866
        %v868 = vand.u32 %v369, 4294901760
        %869 = vmatpush1.msra.mxu0 %v868
        %v870 = vand.u32 %v367, 4294901760
        %871 = vmatprep.subr.mxu0 %v870
        %v872 = vand.u32 %v366, 4294901760
        %873 = vmatpush1.msra.mxu0 %v872
        %v874 = vand.u32 %v364, 4294901760
        %875 = vmatprep.subr.mxu0 %v874
        %v876 = vand.u32 %v363, 4294901760
        %877 = vmatpush1.msra.mxu0 %v876
        %v878 = vand.u32 %v361, 4294901760
        %879 = vmatprep.subr.mxu0 %v878
        %v880 = vand.u32 %v360, 4294901760
        %881 = vmatpush1.msra.mxu0 %v880
        %v882 = vand.u32 %v358, 4294901760
        %883 = vmatprep.subr.mxu0 %v882
        %v884 = vand.u32 %v357, 4294901760
        %885 = vmatpush1.msra.mxu0 %v884
        %v886 = vand.u32 %v355, 4294901760
        %887 = vmatprep.subr.mxu0 %v886
        %v888 = vand.u32 %v354, 4294901760
        %889 = vmatpush1.msra.mxu0 %v888
        %v890 = vand.u32 %v352, 4294901760
        %891 = vmatprep.subr.mxu0 %v890
        %v892 = vand.u32 %v351, 4294901760
        %893 = vmatpush1.msra.mxu0 %v892
        %v894 = vand.u32 %v349, 4294901760
        %895 = vmatprep.subr.mxu0 %v894
        %v896 = vand.u32 %v348, 4294901760
        %897 = vmatpush1.msra.mxu0 %v896
        %v898 = vand.u32 %v346, 4294901760
        %899 = vmatprep.subr.mxu0 %v898
        %v900 = vand.u32 %v345, 4294901760
        %901 = vmatpush1.msra.mxu0 %v900
        %v902 = vand.u32 %v343, 4294901760
        %903 = vmatprep.subr.mxu0 %v902
        %v904 = vand.u32 %v342, 4294901760
        %905 = vmatpush1.msra.mxu0 %v904
        %v906 = vand.u32 %v340, 4294901760
        %907 = vmatprep.subr.mxu0 %v906
        %v908 = vand.u32 %v339, 4294901760
        %909 = vmatpush1.msra.mxu0 %v908
        %v910 = vand.u32 %v337, 4294901760
        %911 = vmatprep.subr.mxu0 %v910
        %v912 = vand.u32 %v336, 4294901760
        %913 = vmatpush1.msra.mxu0 %v912
        %v914 = vand.u32 %v334, 4294901760
        %915 = vmatprep.subr.mxu0 %v914
        %v916 = vand.u32 %v333, 4294901760
        %917 = vmatpush1.msra.mxu0 %v916
        %v918 = vand.u32 %v331, 4294901760
        %919 = vmatprep.subr.mxu0 %v918
        %v920 = vand.u32 %v330, 4294901760
        %921 = vmatpush1.msra.mxu0 %v920
        %v922 = vand.u32 %v328, 4294901760
        %923 = vmatprep.subr.mxu0 %v922
        %v924 = vand.u32 %v327, 4294901760
        %925 = vmatpush1.msra.mxu0 %v924
        %v926 = vand.u32 %v325, 4294901760
        %927 = vmatprep.subr.mxu0 %v926
        %v928 = vand.u32 %v324, 4294901760
        %929 = vmatpush1.msra.mxu0 %v928
        %930 = vmatprep.subr.mxu0 0.0
        %931 = vmatpush2.msra.mxu0 0.0
        %932 = vmatprep.subr.mxu0 0.0
        %933 = vmatpush2.msra.mxu0 0.0
        %934 = vmatprep.subr.mxu0 0.0
        %935 = vmatpush2.msra.mxu0 0.0
        %936 = vmatprep.subr.mxu0 0.0
        %937 = vmatpush2.msra.mxu0 0.0
        %938 = vmatprep.subr.mxu0 0.0
        %939 = vmatpush2.msra.mxu0 0.0
        %940 = vmatprep.subr.mxu0 0.0
        %941 = vmatpush2.msra.mxu0 0.0
        %942 = vmatprep.subr.mxu0 0.0
        %943 = vmatpush2.msra.mxu0 0.0
        %944 = vmatprep.subr.mxu0 0.0
        %945 = vmatpush2.msra.mxu0 0.0
        %946 = vmatprep.subr.mxu0 0.0
        %947 = vmatpush2.msra.mxu0 0.0
        %948 = vmatprep.subr.mxu0 0.0
        %949 = vmatpush2.msra.mxu0 0.0
        %950 = vmatprep.subr.mxu0 0.0
        %951 = vmatpush2.msra.mxu0 0.0
        %952 = vmatprep.subr.mxu0 0.0
        %953 = vmatpush2.msra.mxu0 0.0
        %954 = vmatprep.subr.mxu0 0.0
        %955 = vmatpush2.msra.mxu0 0.0
        %956 = vmatprep.subr.mxu0 0.0
        %957 = vmatpush2.msra.mxu0 0.0
        %958 = vmatprep.subr.mxu0 0.0
        %959 = vmatpush2.msra.mxu0 0.0
        %960 = vmatprep.subr.mxu0 0.0
        %961 = vmatpush2.msra.mxu0 0.0
        %962 = vmatprep.mubr.f32.mxu0 0.0
        %v963 = vand.u32 %v323, 4294901760
        %v964 = vsub.f32 %v323, %v963
        %v965 = vand.u32 %v964, 4294901760
        %966 = vmatmul.mubr.f32.gmra.mxu0 %v965
        %v967 = vpop.f32.mrf.mxu0
        %v968 = vadd.f32 %v862, %v967
        %v969 = vpop.f32.mrf.mxu0
        %v970 = vadd.f32 %v864, %v969
        %971 = vdwg.mxu0
        %v972 = vand.u32 %v370, 4294901760
        %v973 = vsub.f32 %v370, %v972
        %v974 = vand.u32 %v973, 4294901760
        %975 = vmatprep.subr.mxu0 %v974
        %v976 = vand.u32 %v369, 4294901760
        %v977 = vsub.f32 %v369, %v976
        %v978 = vand.u32 %v977, 4294901760
        %979 = vmatpush1.msra.mxu0 %v978
        %v980 = vand.u32 %v367, 4294901760
        %v981 = vsub.f32 %v367, %v980
        %v982 = vand.u32 %v981, 4294901760
        %983 = vmatprep.subr.mxu0 %v982
        %v984 = vand.u32 %v366, 4294901760
        %v985 = vsub.f32 %v366, %v984
        %v986 = vand.u32 %v985, 4294901760
        %987 = vmatpush1.msra.mxu0 %v986
        %v988 = vand.u32 %v364, 4294901760
        %v989 = vsub.f32 %v364, %v988
        %v990 = vand.u32 %v989, 4294901760
        %991 = vmatprep.subr.mxu0 %v990
        %v992 = vand.u32 %v363, 4294901760
        %v993 = vsub.f32 %v363, %v992
        %v994 = vand.u32 %v993, 4294901760
        %995 = vmatpush1.msra.mxu0 %v994
        %v996 = vand.u32 %v361, 4294901760
        %v997 = vsub.f32 %v361, %v996
        %v998 = vand.u32 %v997, 4294901760
        %999 = vmatprep.subr.mxu0 %v998
        %v1000 = vand.u32 %v360, 4294901760
        %v1001 = vsub.f32 %v360, %v1000
        %v1002 = vand.u32 %v1001, 4294901760
        %1003 = vmatpush1.msra.mxu0 %v1002
        %v1004 = vand.u32 %v358, 4294901760
        %v1005 = vsub.f32 %v358, %v1004
        %v1006 = vand.u32 %v1005, 4294901760
        %1007 = vmatprep.subr.mxu0 %v1006
        %v1008 = vand.u32 %v357, 4294901760
        %v1009 = vsub.f32 %v357, %v1008
        %v1010 = vand.u32 %v1009, 4294901760
        %1011 = vmatpush1.msra.mxu0 %v1010
        %v1012 = vand.u32 %v355, 4294901760
        %v1013 = vsub.f32 %v355, %v1012
        %v1014 = vand.u32 %v1013, 4294901760
        %1015 = vmatprep.subr.mxu0 %v1014
        %v1016 = vand.u32 %v354, 4294901760
        %v1017 = vsub.f32 %v354, %v1016
        %v1018 = vand.u32 %v1017, 4294901760
        %1019 = vmatpush1.msra.mxu0 %v1018
        %v1020 = vand.u32 %v352, 4294901760
        %v1021 = vsub.f32 %v352, %v1020
        %v1022 = vand.u32 %v1021, 4294901760
        %1023 = vmatprep.subr.mxu0 %v1022
        %v1024 = vand.u32 %v351, 4294901760
        %v1025 = vsub.f32 %v351, %v1024
        %v1026 = vand.u32 %v1025, 4294901760
        %1027 = vmatpush1.msra.mxu0 %v1026
        %v1028 = vand.u32 %v349, 4294901760
        %v1029 = vsub.f32 %v349, %v1028
        %v1030 = vand.u32 %v1029, 4294901760
        %1031 = vmatprep.subr.mxu0 %v1030
        %v1032 = vand.u32 %v348, 4294901760
        %v1033 = vsub.f32 %v348, %v1032
        %v1034 = vand.u32 %v1033, 4294901760
        %1035 = vmatpush1.msra.mxu0 %v1034
        %v1036 = vand.u32 %v346, 4294901760
        %v1037 = vsub.f32 %v346, %v1036
        %v1038 = vand.u32 %v1037, 4294901760
        %1039 = vmatprep.subr.mxu0 %v1038
        %v1040 = vand.u32 %v345, 4294901760
        %v1041 = vsub.f32 %v345, %v1040
        %v1042 = vand.u32 %v1041, 4294901760
        %1043 = vmatpush1.msra.mxu0 %v1042
        %v1044 = vand.u32 %v343, 4294901760
        %v1045 = vsub.f32 %v343, %v1044
        %v1046 = vand.u32 %v1045, 4294901760
        %1047 = vmatprep.subr.mxu0 %v1046
        %v1048 = vand.u32 %v342, 4294901760
        %v1049 = vsub.f32 %v342, %v1048
        %v1050 = vand.u32 %v1049, 4294901760
        %1051 = vmatpush1.msra.mxu0 %v1050
        %v1052 = vand.u32 %v340, 4294901760
        %v1053 = vsub.f32 %v340, %v1052
        %v1054 = vand.u32 %v1053, 4294901760
        %1055 = vmatprep.subr.mxu0 %v1054
        %v1056 = vand.u32 %v339, 4294901760
        %v1057 = vsub.f32 %v339, %v1056
        %v1058 = vand.u32 %v1057, 4294901760
        %1059 = vmatpush1.msra.mxu0 %v1058
        %v1060 = vand.u32 %v337, 4294901760
        %v1061 = vsub.f32 %v337, %v1060
        %v1062 = vand.u32 %v1061, 4294901760
        %1063 = vmatprep.subr.mxu0 %v1062
        %v1064 = vand.u32 %v336, 4294901760
        %v1065 = vsub.f32 %v336, %v1064
        %v1066 = vand.u32 %v1065, 4294901760
        %1067 = vmatpush1.msra.mxu0 %v1066
        %v1068 = vand.u32 %v334, 4294901760
        %v1069 = vsub.f32 %v334, %v1068
        %v1070 = vand.u32 %v1069, 4294901760
        %1071 = vmatprep.subr.mxu0 %v1070
        %v1072 = vand.u32 %v333, 4294901760
        %v1073 = vsub.f32 %v333, %v1072
        %v1074 = vand.u32 %v1073, 4294901760
        %1075 = vmatpush1.msra.mxu0 %v1074
        %v1076 = vand.u32 %v331, 4294901760
        %v1077 = vsub.f32 %v331, %v1076
        %v1078 = vand.u32 %v1077, 4294901760
        %1079 = vmatprep.subr.mxu0 %v1078
        %v1080 = vand.u32 %v330, 4294901760
        %v1081 = vsub.f32 %v330, %v1080
        %v1082 = vand.u32 %v1081, 4294901760
        %1083 = vmatpush1.msra.mxu0 %v1082
        %v1084 = vand.u32 %v328, 4294901760
        %v1085 = vsub.f32 %v328, %v1084
        %v1086 = vand.u32 %v1085, 4294901760
        %1087 = vmatprep.subr.mxu0 %v1086
        %v1088 = vand.u32 %v327, 4294901760
        %v1089 = vsub.f32 %v327, %v1088
        %v1090 = vand.u32 %v1089, 4294901760
        %1091 = vmatpush1.msra.mxu0 %v1090
        %v1092 = vand.u32 %v325, 4294901760
        %v1093 = vsub.f32 %v325, %v1092
        %v1094 = vand.u32 %v1093, 4294901760
        %1095 = vmatprep.subr.mxu0 %v1094
        %v1096 = vand.u32 %v324, 4294901760
        %v1097 = vsub.f32 %v324, %v1096
        %v1098 = vand.u32 %v1097, 4294901760
        %1099 = vmatpush1.msra.mxu0 %v1098
        %1100 = vmatprep.subr.mxu0 0.0
        %1101 = vmatpush2.msra.mxu0 0.0
        %1102 = vmatprep.subr.mxu0 0.0
        %1103 = vmatpush2.msra.mxu0 0.0
        %1104 = vmatprep.subr.mxu0 0.0
        %1105 = vmatpush2.msra.mxu0 0.0
        %1106 = vmatprep.subr.mxu0 0.0
        %1107 = vmatpush2.msra.mxu0 0.0
        %1108 = vmatprep.subr.mxu0 0.0
        %1109 = vmatpush2.msra.mxu0 0.0
        %1110 = vmatprep.subr.mxu0 0.0
        %1111 = vmatpush2.msra.mxu0 0.0
        %1112 = vmatprep.subr.mxu0 0.0
        %1113 = vmatpush2.msra.mxu0 0.0
        %1114 = vmatprep.subr.mxu0 0.0
        %1115 = vmatpush2.msra.mxu0 0.0
        %1116 = vmatprep.subr.mxu0 0.0
        %1117 = vmatpush2.msra.mxu0 0.0
        %1118 = vmatprep.subr.mxu0 0.0
        %1119 = vmatpush2.msra.mxu0 0.0
        %1120 = vmatprep.subr.mxu0 0.0
        %1121 = vmatpush2.msra.mxu0 0.0
        %1122 = vmatprep.subr.mxu0 0.0
        %1123 = vmatpush2.msra.mxu0 0.0
        %1124 = vmatprep.subr.mxu0 0.0
        %1125 = vmatpush2.msra.mxu0 0.0
        %1126 = vmatprep.subr.mxu0 0.0
        %1127 = vmatpush2.msra.mxu0 0.0
        %1128 = vmatprep.subr.mxu0 0.0
        %1129 = vmatpush2.msra.mxu0 0.0
        %1130 = vmatprep.subr.mxu0 0.0
        %1131 = vmatpush2.msra.mxu0 0.0
        %1132 = vmatprep.mubr.f32.mxu0 0.0
        %v1133 = vand.u32 %v323, 4294901760
        %1134 = vmatmul.mubr.f32.gmra.mxu0 %v1133
        %v1135 = vpop.f32.mrf.mxu0
        %v1136 = vadd.f32 %v968, %v1135
        %v1137 = vpop.f32.mrf.mxu0
        %v1138 = vadd.f32 %v970, %v1137
        %1139 = vdwg.mxu0
        %v1140 = vand.u32 %v370, 4294901760
        %1141 = vmatprep.subr.mxu0 %v1140
        %v1142 = vand.u32 %v369, 4294901760
        %1143 = vmatpush1.msra.mxu0 %v1142
        %v1144 = vand.u32 %v367, 4294901760
        %1145 = vmatprep.subr.mxu0 %v1144
        %v1146 = vand.u32 %v366, 4294901760
        %1147 = vmatpush1.msra.mxu0 %v1146
        %v1148 = vand.u32 %v364, 4294901760
        %1149 = vmatprep.subr.mxu0 %v1148
        %v1150 = vand.u32 %v363, 4294901760
        %1151 = vmatpush1.msra.mxu0 %v1150
        %v1152 = vand.u32 %v361, 4294901760
        %1153 = vmatprep.subr.mxu0 %v1152
        %v1154 = vand.u32 %v360, 4294901760
        %1155 = vmatpush1.msra.mxu0 %v1154
        %v1156 = vand.u32 %v358, 4294901760
        %1157 = vmatprep.subr.mxu0 %v1156
        %v1158 = vand.u32 %v357, 4294901760
        %1159 = vmatpush1.msra.mxu0 %v1158
        %v1160 = vand.u32 %v355, 4294901760
        %1161 = vmatprep.subr.mxu0 %v1160
        %v1162 = vand.u32 %v354, 4294901760
        %1163 = vmatpush1.msra.mxu0 %v1162
        %v1164 = vand.u32 %v352, 4294901760
        %1165 = vmatprep.subr.mxu0 %v1164
        %v1166 = vand.u32 %v351, 4294901760
        %1167 = vmatpush1.msra.mxu0 %v1166
        %v1168 = vand.u32 %v349, 4294901760
        %1169 = vmatprep.subr.mxu0 %v1168
        %v1170 = vand.u32 %v348, 4294901760
        %1171 = vmatpush1.msra.mxu0 %v1170
        %v1172 = vand.u32 %v346, 4294901760
        %1173 = vmatprep.subr.mxu0 %v1172
        %v1174 = vand.u32 %v345, 4294901760
        %1175 = vmatpush1.msra.mxu0 %v1174
        %v1176 = vand.u32 %v343, 4294901760
        %1177 = vmatprep.subr.mxu0 %v1176
        %v1178 = vand.u32 %v342, 4294901760
        %1179 = vmatpush1.msra.mxu0 %v1178
        %v1180 = vand.u32 %v340, 4294901760
        %1181 = vmatprep.subr.mxu0 %v1180
        %v1182 = vand.u32 %v339, 4294901760
        %1183 = vmatpush1.msra.mxu0 %v1182
        %v1184 = vand.u32 %v337, 4294901760
        %1185 = vmatprep.subr.mxu0 %v1184
        %v1186 = vand.u32 %v336, 4294901760
        %1187 = vmatpush1.msra.mxu0 %v1186
        %v1188 = vand.u32 %v334, 4294901760
        %1189 = vmatprep.subr.mxu0 %v1188
        %v1190 = vand.u32 %v333, 4294901760
        %1191 = vmatpush1.msra.mxu0 %v1190
        %v1192 = vand.u32 %v331, 4294901760
        %1193 = vmatprep.subr.mxu0 %v1192
        %v1194 = vand.u32 %v330, 4294901760
        %1195 = vmatpush1.msra.mxu0 %v1194
        %v1196 = vand.u32 %v328, 4294901760
        %1197 = vmatprep.subr.mxu0 %v1196
        %v1198 = vand.u32 %v327, 4294901760
        %1199 = vmatpush1.msra.mxu0 %v1198
        %v1200 = vand.u32 %v325, 4294901760
        %1201 = vmatprep.subr.mxu0 %v1200
        %v1202 = vand.u32 %v324, 4294901760
        %1203 = vmatpush1.msra.mxu0 %v1202
        %1204 = vmatprep.subr.mxu0 0.0
        %1205 = vmatpush2.msra.mxu0 0.0
        %1206 = vmatprep.subr.mxu0 0.0
        %1207 = vmatpush2.msra.mxu0 0.0
        %1208 = vmatprep.subr.mxu0 0.0
        %1209 = vmatpush2.msra.mxu0 0.0
        %1210 = vmatprep.subr.mxu0 0.0
        %1211 = vmatpush2.msra.mxu0 0.0
        %1212 = vmatprep.subr.mxu0 0.0
        %1213 = vmatpush2.msra.mxu0 0.0
        %1214 = vmatprep.subr.mxu0 0.0
        %1215 = vmatpush2.msra.mxu0 0.0
        %1216 = vmatprep.subr.mxu0 0.0
        %1217 = vmatpush2.msra.mxu0 0.0
        %1218 = vmatprep.subr.mxu0 0.0
        %1219 = vmatpush2.msra.mxu0 0.0
        %1220 = vmatprep.subr.mxu0 0.0
        %1221 = vmatpush2.msra.mxu0 0.0
        %1222 = vmatprep.subr.mxu0 0.0
        %1223 = vmatpush2.msra.mxu0 0.0
        %1224 = vmatprep.subr.mxu0 0.0
        %1225 = vmatpush2.msra.mxu0 0.0
        %1226 = vmatprep.subr.mxu0 0.0
        %1227 = vmatpush2.msra.mxu0 0.0
        %1228 = vmatprep.subr.mxu0 0.0
        %1229 = vmatpush2.msra.mxu0 0.0
        %1230 = vmatprep.subr.mxu0 0.0
        %1231 = vmatpush2.msra.mxu0 0.0
        %1232 = vmatprep.subr.mxu0 0.0
        %1233 = vmatpush2.msra.mxu0 0.0
        %1234 = vmatprep.subr.mxu0 0.0
        %1235 = vmatpush2.msra.mxu0 0.0
        %1236 = vmatprep.mubr.f32.mxu0 0.0
        %v1237 = vand.u32 %v323, 4294901760
        %1238 = vmatmul.mubr.f32.gmra.mxu0 %v1237
        %v1239 = vpop.f32.mrf.mxu0
        %v1240 = vadd.f32 %v1136, %v1239
        %v1241 = vpop.f32.mrf.mxu0
        %v1242 = vadd.f32 %v1138, %v1241
        %1243 = vdwg.mxu0
        %1244 = vmatprep.subr.mxu0 0.0
        %v1245 = vand.u32 %v371, 4294901760
        %1246 = vmatpush1.msra.mxu0 %v1245
        %1247 = vmatprep.subr.mxu0 0.0
        %v1248 = vand.u32 %v368, 4294901760
        %1249 = vmatpush1.msra.mxu0 %v1248
        %1250 = vmatprep.subr.mxu0 0.0
        %v1251 = vand.u32 %v365, 4294901760
        %1252 = vmatpush1.msra.mxu0 %v1251
        %1253 = vmatprep.subr.mxu0 0.0
        %v1254 = vand.u32 %v362, 4294901760
        %1255 = vmatpush1.msra.mxu0 %v1254
        %1256 = vmatprep.subr.mxu0 0.0
        %v1257 = vand.u32 %v359, 4294901760
        %1258 = vmatpush1.msra.mxu0 %v1257
        %1259 = vmatprep.subr.mxu0 0.0
        %v1260 = vand.u32 %v356, 4294901760
        %1261 = vmatpush1.msra.mxu0 %v1260
        %1262 = vmatprep.subr.mxu0 0.0
        %v1263 = vand.u32 %v353, 4294901760
        %1264 = vmatpush1.msra.mxu0 %v1263
        %1265 = vmatprep.subr.mxu0 0.0
        %v1266 = vand.u32 %v350, 4294901760
        %1267 = vmatpush1.msra.mxu0 %v1266
        %1268 = vmatprep.subr.mxu0 0.0
        %v1269 = vand.u32 %v347, 4294901760
        %1270 = vmatpush1.msra.mxu0 %v1269
        %1271 = vmatprep.subr.mxu0 0.0
        %v1272 = vand.u32 %v344, 4294901760
        %1273 = vmatpush1.msra.mxu0 %v1272
        %1274 = vmatprep.subr.mxu0 0.0
        %v1275 = vand.u32 %v341, 4294901760
        %1276 = vmatpush1.msra.mxu0 %v1275
        %1277 = vmatprep.subr.mxu0 0.0
        %v1278 = vand.u32 %v338, 4294901760
        %1279 = vmatpush1.msra.mxu0 %v1278
        %1280 = vmatprep.subr.mxu0 0.0
        %v1281 = vand.u32 %v335, 4294901760
        %1282 = vmatpush1.msra.mxu0 %v1281
        %1283 = vmatprep.subr.mxu0 0.0
        %v1284 = vand.u32 %v332, 4294901760
        %1285 = vmatpush1.msra.mxu0 %v1284
        %1286 = vmatprep.subr.mxu0 0.0
        %v1287 = vand.u32 %v329, 4294901760
        %1288 = vmatpush1.msra.mxu0 %v1287
        %1289 = vmatprep.subr.mxu0 0.0
        %v1290 = vand.u32 %v326, 4294901760
        %1291 = vmatpush1.msra.mxu0 %v1290
        %1292 = vmatprep.subr.mxu0 0.0
        %1293 = vmatpush2.msra.mxu0 0.0
        %1294 = vmatprep.subr.mxu0 0.0
        %1295 = vmatpush2.msra.mxu0 0.0
        %1296 = vmatprep.subr.mxu0 0.0
        %1297 = vmatpush2.msra.mxu0 0.0
        %1298 = vmatprep.subr.mxu0 0.0
        %1299 = vmatpush2.msra.mxu0 0.0
        %1300 = vmatprep.subr.mxu0 0.0
        %1301 = vmatpush2.msra.mxu0 0.0
        %1302 = vmatprep.subr.mxu0 0.0
        %1303 = vmatpush2.msra.mxu0 0.0
        %1304 = vmatprep.subr.mxu0 0.0
        %1305 = vmatpush2.msra.mxu0 0.0
        %1306 = vmatprep.subr.mxu0 0.0
        %1307 = vmatpush2.msra.mxu0 0.0
        %1308 = vmatprep.subr.mxu0 0.0
        %1309 = vmatpush2.msra.mxu0 0.0
        %1310 = vmatprep.subr.mxu0 0.0
        %1311 = vmatpush2.msra.mxu0 0.0
        %1312 = vmatprep.subr.mxu0 0.0
        %1313 = vmatpush2.msra.mxu0 0.0
        %1314 = vmatprep.subr.mxu0 0.0
        %1315 = vmatpush2.msra.mxu0 0.0
        %1316 = vmatprep.subr.mxu0 0.0
        %1317 = vmatpush2.msra.mxu0 0.0
        %1318 = vmatprep.subr.mxu0 0.0
        %1319 = vmatpush2.msra.mxu0 0.0
        %1320 = vmatprep.subr.mxu0 0.0
        %1321 = vmatpush2.msra.mxu0 0.0
        %1322 = vmatprep.subr.mxu0 0.0
        %1323 = vmatpush2.msra.mxu0 0.0
        %1324 = vmatprep.mubr.f32.mxu0 0.0
        %v1325 = vand.u32 %v323, 4294901760
        %v1326 = vsub.f32 %v323, %v1325
        %v1327 = vand.u32 %v1326, 4294901760
        %v1328 = vsub.f32 %v1326, %v1327
        %v1329 = vand.u32 %v1328, 4294901760
        %1330 = vmatmul.mubr.f32.gmra.mxu0 %v1329
        %v1331 = vpop.f32.mrf.mxu0
        %v1332 = vadd.f32 %v385, %v1331
        %v1333 = vpop.f32.mrf.mxu0
        %1334 = vdwg.mxu0
        %1335 = vmatprep.subr.mxu0 0.0
        %v1336 = vand.u32 %v371, 4294901760
        %v1337 = vsub.f32 %v371, %v1336
        %v1338 = vand.u32 %v1337, 4294901760
        %v1339 = vsub.f32 %v1337, %v1338
        %v1340 = vand.u32 %v1339, 4294901760
        %1341 = vmatpush1.msra.mxu0 %v1340
        %1342 = vmatprep.subr.mxu0 0.0
        %v1343 = vand.u32 %v368, 4294901760
        %v1344 = vsub.f32 %v368, %v1343
        %v1345 = vand.u32 %v1344, 4294901760
        %v1346 = vsub.f32 %v1344, %v1345
        %v1347 = vand.u32 %v1346, 4294901760
        %1348 = vmatpush1.msra.mxu0 %v1347
        %1349 = vmatprep.subr.mxu0 0.0
        %v1350 = vand.u32 %v365, 4294901760
        %v1351 = vsub.f32 %v365, %v1350
        %v1352 = vand.u32 %v1351, 4294901760
        %v1353 = vsub.f32 %v1351, %v1352
        %v1354 = vand.u32 %v1353, 4294901760
        %1355 = vmatpush1.msra.mxu0 %v1354
        %1356 = vmatprep.subr.mxu0 0.0
        %v1357 = vand.u32 %v362, 4294901760
        %v1358 = vsub.f32 %v362, %v1357
        %v1359 = vand.u32 %v1358, 4294901760
        %v1360 = vsub.f32 %v1358, %v1359
        %v1361 = vand.u32 %v1360, 4294901760
        %1362 = vmatpush1.msra.mxu0 %v1361
        %1363 = vmatprep.subr.mxu0 0.0
        %v1364 = vand.u32 %v359, 4294901760
        %v1365 = vsub.f32 %v359, %v1364
        %v1366 = vand.u32 %v1365, 4294901760
        %v1367 = vsub.f32 %v1365, %v1366
        %v1368 = vand.u32 %v1367, 4294901760
        %1369 = vmatpush1.msra.mxu0 %v1368
        %1370 = vmatprep.subr.mxu0 0.0
        %v1371 = vand.u32 %v356, 4294901760
        %v1372 = vsub.f32 %v356, %v1371
        %v1373 = vand.u32 %v1372, 4294901760
        %v1374 = vsub.f32 %v1372, %v1373
        %v1375 = vand.u32 %v1374, 4294901760
        %1376 = vmatpush1.msra.mxu0 %v1375
        %1377 = vmatprep.subr.mxu0 0.0
        %v1378 = vand.u32 %v353, 4294901760
        %v1379 = vsub.f32 %v353, %v1378
        %v1380 = vand.u32 %v1379, 4294901760
        %v1381 = vsub.f32 %v1379, %v1380
        %v1382 = vand.u32 %v1381, 4294901760
        %1383 = vmatpush1.msra.mxu0 %v1382
        %1384 = vmatprep.subr.mxu0 0.0
        %v1385 = vand.u32 %v350, 4294901760
        %v1386 = vsub.f32 %v350, %v1385
        %v1387 = vand.u32 %v1386, 4294901760
        %v1388 = vsub.f32 %v1386, %v1387
        %v1389 = vand.u32 %v1388, 4294901760
        %1390 = vmatpush1.msra.mxu0 %v1389
        %1391 = vmatprep.subr.mxu0 0.0
        %v1392 = vand.u32 %v347, 4294901760
        %v1393 = vsub.f32 %v347, %v1392
        %v1394 = vand.u32 %v1393, 4294901760
        %v1395 = vsub.f32 %v1393, %v1394
        %v1396 = vand.u32 %v1395, 4294901760
        %1397 = vmatpush1.msra.mxu0 %v1396
        %1398 = vmatprep.subr.mxu0 0.0
        %v1399 = vand.u32 %v344, 4294901760
        %v1400 = vsub.f32 %v344, %v1399
        %v1401 = vand.u32 %v1400, 4294901760
        %v1402 = vsub.f32 %v1400, %v1401
        %v1403 = vand.u32 %v1402, 4294901760
        %1404 = vmatpush1.msra.mxu0 %v1403
        %1405 = vmatprep.subr.mxu0 0.0
        %v1406 = vand.u32 %v341, 4294901760
        %v1407 = vsub.f32 %v341, %v1406
        %v1408 = vand.u32 %v1407, 4294901760
        %v1409 = vsub.f32 %v1407, %v1408
        %v1410 = vand.u32 %v1409, 4294901760
        %1411 = vmatpush1.msra.mxu0 %v1410
        %1412 = vmatprep.subr.mxu0 0.0
        %v1413 = vand.u32 %v338, 4294901760
        %v1414 = vsub.f32 %v338, %v1413
        %v1415 = vand.u32 %v1414, 4294901760
        %v1416 = vsub.f32 %v1414, %v1415
        %v1417 = vand.u32 %v1416, 4294901760
        %1418 = vmatpush1.msra.mxu0 %v1417
        %1419 = vmatprep.subr.mxu0 0.0
        %v1420 = vand.u32 %v335, 4294901760
        %v1421 = vsub.f32 %v335, %v1420
        %v1422 = vand.u32 %v1421, 4294901760
        %v1423 = vsub.f32 %v1421, %v1422
        %v1424 = vand.u32 %v1423, 4294901760
        %1425 = vmatpush1.msra.mxu0 %v1424
        %1426 = vmatprep.subr.mxu0 0.0
        %v1427 = vand.u32 %v332, 4294901760
        %v1428 = vsub.f32 %v332, %v1427
        %v1429 = vand.u32 %v1428, 4294901760
        %v1430 = vsub.f32 %v1428, %v1429
        %v1431 = vand.u32 %v1430, 4294901760
        %1432 = vmatpush1.msra.mxu0 %v1431
        %1433 = vmatprep.subr.mxu0 0.0
        %v1434 = vand.u32 %v329, 4294901760
        %v1435 = vsub.f32 %v329, %v1434
        %v1436 = vand.u32 %v1435, 4294901760
        %v1437 = vsub.f32 %v1435, %v1436
        %v1438 = vand.u32 %v1437, 4294901760
        %1439 = vmatpush1.msra.mxu0 %v1438
        %1440 = vmatprep.subr.mxu0 0.0
        %v1441 = vand.u32 %v326, 4294901760
        %v1442 = vsub.f32 %v326, %v1441
        %v1443 = vand.u32 %v1442, 4294901760
        %v1444 = vsub.f32 %v1442, %v1443
        %v1445 = vand.u32 %v1444, 4294901760
        %1446 = vmatpush1.msra.mxu0 %v1445
        %1447 = vmatprep.subr.mxu0 0.0
        %1448 = vmatpush2.msra.mxu0 0.0
        %1449 = vmatprep.subr.mxu0 0.0
        %1450 = vmatpush2.msra.mxu0 0.0
        %1451 = vmatprep.subr.mxu0 0.0
        %1452 = vmatpush2.msra.mxu0 0.0
        %1453 = vmatprep.subr.mxu0 0.0
        %1454 = vmatpush2.msra.mxu0 0.0
        %1455 = vmatprep.subr.mxu0 0.0
        %1456 = vmatpush2.msra.mxu0 0.0
        %1457 = vmatprep.subr.mxu0 0.0
        %1458 = vmatpush2.msra.mxu0 0.0
        %1459 = vmatprep.subr.mxu0 0.0
        %1460 = vmatpush2.msra.mxu0 0.0
        %1461 = vmatprep.subr.mxu0 0.0
        %1462 = vmatpush2.msra.mxu0 0.0
        %1463 = vmatprep.subr.mxu0 0.0
        %1464 = vmatpush2.msra.mxu0 0.0
        %1465 = vmatprep.subr.mxu0 0.0
        %1466 = vmatpush2.msra.mxu0 0.0
        %1467 = vmatprep.subr.mxu0 0.0
        %1468 = vmatpush2.msra.mxu0 0.0
        %1469 = vmatprep.subr.mxu0 0.0
        %1470 = vmatpush2.msra.mxu0 0.0
        %1471 = vmatprep.subr.mxu0 0.0
        %1472 = vmatpush2.msra.mxu0 0.0
        %1473 = vmatprep.subr.mxu0 0.0
        %1474 = vmatpush2.msra.mxu0 0.0
        %1475 = vmatprep.subr.mxu0 0.0
        %1476 = vmatpush2.msra.mxu0 0.0
        %1477 = vmatprep.subr.mxu0 0.0
        %1478 = vmatpush2.msra.mxu0 0.0
        %1479 = vmatprep.mubr.f32.mxu0 0.0
        %v1480 = vand.u32 %v323, 4294901760
        %1481 = vmatmul.mubr.f32.gmra.mxu0 %v1480
        %v1482 = vpop.f32.mrf.mxu0
        %v1483 = vadd.f32 %v1332, %v1482
        %v1484 = vpop.f32.mrf.mxu0
        %1485 = vdwg.mxu0
        %1486 = vmatprep.subr.mxu0 0.0
        %v1487 = vand.u32 %v371, 4294901760
        %v1488 = vsub.f32 %v371, %v1487
        %1489 = vmatpush1.msra.mxu0 %v1488
        %1490 = vmatprep.subr.mxu0 0.0
        %v1491 = vand.u32 %v368, 4294901760
        %v1492 = vsub.f32 %v368, %v1491
        %1493 = vmatpush1.msra.mxu0 %v1492
        %1494 = vmatprep.subr.mxu0 0.0
        %v1495 = vand.u32 %v365, 4294901760
        %v1496 = vsub.f32 %v365, %v1495
        %1497 = vmatpush1.msra.mxu0 %v1496
        %1498 = vmatprep.subr.mxu0 0.0
        %v1499 = vand.u32 %v362, 4294901760
        %v1500 = vsub.f32 %v362, %v1499
        %1501 = vmatpush1.msra.mxu0 %v1500
        %1502 = vmatprep.subr.mxu0 0.0
        %v1503 = vand.u32 %v359, 4294901760
        %v1504 = vsub.f32 %v359, %v1503
        %1505 = vmatpush1.msra.mxu0 %v1504
        %1506 = vmatprep.subr.mxu0 0.0
        %v1507 = vand.u32 %v356, 4294901760
        %v1508 = vsub.f32 %v356, %v1507
        %1509 = vmatpush1.msra.mxu0 %v1508
        %1510 = vmatprep.subr.mxu0 0.0
        %v1511 = vand.u32 %v353, 4294901760
        %v1512 = vsub.f32 %v353, %v1511
        %1513 = vmatpush1.msra.mxu0 %v1512
        %1514 = vmatprep.subr.mxu0 0.0
        %v1515 = vand.u32 %v350, 4294901760
        %v1516 = vsub.f32 %v350, %v1515
        %1517 = vmatpush1.msra.mxu0 %v1516
        %1518 = vmatprep.subr.mxu0 0.0
        %v1519 = vand.u32 %v347, 4294901760
        %v1520 = vsub.f32 %v347, %v1519
        %1521 = vmatpush1.msra.mxu0 %v1520
        %1522 = vmatprep.subr.mxu0 0.0
        %v1523 = vand.u32 %v344, 4294901760
        %v1524 = vsub.f32 %v344, %v1523
        %1525 = vmatpush1.msra.mxu0 %v1524
        %1526 = vmatprep.subr.mxu0 0.0
        %v1527 = vand.u32 %v341, 4294901760
        %v1528 = vsub.f32 %v341, %v1527
        %1529 = vmatpush1.msra.mxu0 %v1528
        %1530 = vmatprep.subr.mxu0 0.0
        %v1531 = vand.u32 %v338, 4294901760
        %v1532 = vsub.f32 %v338, %v1531
        %1533 = vmatpush1.msra.mxu0 %v1532
        %1534 = vmatprep.subr.mxu0 0.0
        %v1535 = vand.u32 %v335, 4294901760
        %v1536 = vsub.f32 %v335, %v1535
        %1537 = vmatpush1.msra.mxu0 %v1536
        %1538 = vmatprep.subr.mxu0 0.0
        %v1539 = vand.u32 %v332, 4294901760
        %v1540 = vsub.f32 %v332, %v1539
        %1541 = vmatpush1.msra.mxu0 %v1540
        %1542 = vmatprep.subr.mxu0 0.0
        %v1543 = vand.u32 %v329, 4294901760
        %v1544 = vsub.f32 %v329, %v1543
        %1545 = vmatpush1.msra.mxu0 %v1544
        %1546 = vmatprep.subr.mxu0 0.0
        %v1547 = vand.u32 %v326, 4294901760
        %v1548 = vsub.f32 %v326, %v1547
        %1549 = vmatpush1.msra.mxu0 %v1548
        %1550 = vmatprep.subr.mxu0 0.0
        %1551 = vmatpush2.msra.mxu0 0.0
        %1552 = vmatprep.subr.mxu0 0.0
        %1553 = vmatpush2.msra.mxu0 0.0
        %1554 = vmatprep.subr.mxu0 0.0
        %1555 = vmatpush2.msra.mxu0 0.0
        %1556 = vmatprep.subr.mxu0 0.0
        %1557 = vmatpush2.msra.mxu0 0.0
        %1558 = vmatprep.subr.mxu0 0.0
        %1559 = vmatpush2.msra.mxu0 0.0
        %1560 = vmatprep.subr.mxu0 0.0
        %1561 = vmatpush2.msra.mxu0 0.0
        %1562 = vmatprep.subr.mxu0 0.0
        %1563 = vmatpush2.msra.mxu0 0.0
        %1564 = vmatprep.subr.mxu0 0.0
        %1565 = vmatpush2.msra.mxu0 0.0
        %1566 = vmatprep.subr.mxu0 0.0
        %1567 = vmatpush2.msra.mxu0 0.0
        %1568 = vmatprep.subr.mxu0 0.0
        %1569 = vmatpush2.msra.mxu0 0.0
        %1570 = vmatprep.subr.mxu0 0.0
        %1571 = vmatpush2.msra.mxu0 0.0
        %1572 = vmatprep.subr.mxu0 0.0
        %1573 = vmatpush2.msra.mxu0 0.0
        %1574 = vmatprep.subr.mxu0 0.0
        %1575 = vmatpush2.msra.mxu0 0.0
        %1576 = vmatprep.subr.mxu0 0.0
        %1577 = vmatpush2.msra.mxu0 0.0
        %1578 = vmatprep.subr.mxu0 0.0
        %1579 = vmatpush2.msra.mxu0 0.0
        %1580 = vmatprep.subr.mxu0 0.0
        %1581 = vmatpush2.msra.mxu0 0.0
        %1582 = vmatprep.mubr.f32.mxu0 0.0
        %v1583 = vand.u32 %v323, 4294901760
        %v1584 = vsub.f32 %v323, %v1583
        %1585 = vmatmul.mubr.f32.gmra.mxu0 %v1584
        %v1586 = vpop.f32.mrf.mxu0
        %v1587 = vadd.f32 %v1483, %v1586
        %v1588 = vpop.f32.mrf.mxu0
        %1589 = vdwg.mxu0
        %1590 = vmatprep.subr.mxu0 0.0
        %v1591 = vand.u32 %v371, 4294901760
        %1592 = vmatpush1.msra.mxu0 %v1591
        %1593 = vmatprep.subr.mxu0 0.0
        %v1594 = vand.u32 %v368, 4294901760
        %1595 = vmatpush1.msra.mxu0 %v1594
        %1596 = vmatprep.subr.mxu0 0.0
        %v1597 = vand.u32 %v365, 4294901760
        %1598 = vmatpush1.msra.mxu0 %v1597
        %1599 = vmatprep.subr.mxu0 0.0
        %v1600 = vand.u32 %v362, 4294901760
        %1601 = vmatpush1.msra.mxu0 %v1600
        %1602 = vmatprep.subr.mxu0 0.0
        %v1603 = vand.u32 %v359, 4294901760
        %1604 = vmatpush1.msra.mxu0 %v1603
        %1605 = vmatprep.subr.mxu0 0.0
        %v1606 = vand.u32 %v356, 4294901760
        %1607 = vmatpush1.msra.mxu0 %v1606
        %1608 = vmatprep.subr.mxu0 0.0
        %v1609 = vand.u32 %v353, 4294901760
        %1610 = vmatpush1.msra.mxu0 %v1609
        %1611 = vmatprep.subr.mxu0 0.0
        %v1612 = vand.u32 %v350, 4294901760
        %1613 = vmatpush1.msra.mxu0 %v1612
        %1614 = vmatprep.subr.mxu0 0.0
        %v1615 = vand.u32 %v347, 4294901760
        %1616 = vmatpush1.msra.mxu0 %v1615
        %1617 = vmatprep.subr.mxu0 0.0
        %v1618 = vand.u32 %v344, 4294901760
        %1619 = vmatpush1.msra.mxu0 %v1618
        %1620 = vmatprep.subr.mxu0 0.0
        %v1621 = vand.u32 %v341, 4294901760
        %1622 = vmatpush1.msra.mxu0 %v1621
        %1623 = vmatprep.subr.mxu0 0.0
        %v1624 = vand.u32 %v338, 4294901760
        %1625 = vmatpush1.msra.mxu0 %v1624
        %1626 = vmatprep.subr.mxu0 0.0
        %v1627 = vand.u32 %v335, 4294901760
        %1628 = vmatpush1.msra.mxu0 %v1627
        %1629 = vmatprep.subr.mxu0 0.0
        %v1630 = vand.u32 %v332, 4294901760
        %1631 = vmatpush1.msra.mxu0 %v1630
        %1632 = vmatprep.subr.mxu0 0.0
        %v1633 = vand.u32 %v329, 4294901760
        %1634 = vmatpush1.msra.mxu0 %v1633
        %1635 = vmatprep.subr.mxu0 0.0
        %v1636 = vand.u32 %v326, 4294901760
        %1637 = vmatpush1.msra.mxu0 %v1636
        %1638 = vmatprep.subr.mxu0 0.0
        %1639 = vmatpush2.msra.mxu0 0.0
        %1640 = vmatprep.subr.mxu0 0.0
        %1641 = vmatpush2.msra.mxu0 0.0
        %1642 = vmatprep.subr.mxu0 0.0
        %1643 = vmatpush2.msra.mxu0 0.0
        %1644 = vmatprep.subr.mxu0 0.0
        %1645 = vmatpush2.msra.mxu0 0.0
        %1646 = vmatprep.subr.mxu0 0.0
        %1647 = vmatpush2.msra.mxu0 0.0
        %1648 = vmatprep.subr.mxu0 0.0
        %1649 = vmatpush2.msra.mxu0 0.0
        %1650 = vmatprep.subr.mxu0 0.0
        %1651 = vmatpush2.msra.mxu0 0.0
        %1652 = vmatprep.subr.mxu0 0.0
        %1653 = vmatpush2.msra.mxu0 0.0
        %1654 = vmatprep.subr.mxu0 0.0
        %1655 = vmatpush2.msra.mxu0 0.0
        %1656 = vmatprep.subr.mxu0 0.0
        %1657 = vmatpush2.msra.mxu0 0.0
        %1658 = vmatprep.subr.mxu0 0.0
        %1659 = vmatpush2.msra.mxu0 0.0
        %1660 = vmatprep.subr.mxu0 0.0
        %1661 = vmatpush2.msra.mxu0 0.0
        %1662 = vmatprep.subr.mxu0 0.0
        %1663 = vmatpush2.msra.mxu0 0.0
        %1664 = vmatprep.subr.mxu0 0.0
        %1665 = vmatpush2.msra.mxu0 0.0
        %1666 = vmatprep.subr.mxu0 0.0
        %1667 = vmatpush2.msra.mxu0 0.0
        %1668 = vmatprep.subr.mxu0 0.0
        %1669 = vmatpush2.msra.mxu0 0.0
        %1670 = vmatprep.mubr.f32.mxu0 0.0
        %v1671 = vand.u32 %v323, 4294901760
        %v1672 = vsub.f32 %v323, %v1671
        %v1673 = vand.u32 %v1672, 4294901760
        %1674 = vmatmul.mubr.f32.gmra.mxu0 %v1673
        %v1675 = vpop.f32.mrf.mxu0
        %v1676 = vadd.f32 %v1587, %v1675
        %v1677 = vpop.f32.mrf.mxu0
        %1678 = vdwg.mxu0
        %1679 = vmatprep.subr.mxu0 0.0
        %v1680 = vand.u32 %v371, 4294901760
        %v1681 = vsub.f32 %v371, %v1680
        %v1682 = vand.u32 %v1681, 4294901760
        %1683 = vmatpush1.msra.mxu0 %v1682
        %1684 = vmatprep.subr.mxu0 0.0
        %v1685 = vand.u32 %v368, 4294901760
        %v1686 = vsub.f32 %v368, %v1685
        %v1687 = vand.u32 %v1686, 4294901760
        %1688 = vmatpush1.msra.mxu0 %v1687
        %1689 = vmatprep.subr.mxu0 0.0
        %v1690 = vand.u32 %v365, 4294901760
        %v1691 = vsub.f32 %v365, %v1690
        %v1692 = vand.u32 %v1691, 4294901760
        %1693 = vmatpush1.msra.mxu0 %v1692
        %1694 = vmatprep.subr.mxu0 0.0
        %v1695 = vand.u32 %v362, 4294901760
        %v1696 = vsub.f32 %v362, %v1695
        %v1697 = vand.u32 %v1696, 4294901760
        %1698 = vmatpush1.msra.mxu0 %v1697
        %1699 = vmatprep.subr.mxu0 0.0
        %v1700 = vand.u32 %v359, 4294901760
        %v1701 = vsub.f32 %v359, %v1700
        %v1702 = vand.u32 %v1701, 4294901760
        %1703 = vmatpush1.msra.mxu0 %v1702
        %1704 = vmatprep.subr.mxu0 0.0
        %v1705 = vand.u32 %v356, 4294901760
        %v1706 = vsub.f32 %v356, %v1705
        %v1707 = vand.u32 %v1706, 4294901760
        %1708 = vmatpush1.msra.mxu0 %v1707
        %1709 = vmatprep.subr.mxu0 0.0
        %v1710 = vand.u32 %v353, 4294901760
        %v1711 = vsub.f32 %v353, %v1710
        %v1712 = vand.u32 %v1711, 4294901760
        %1713 = vmatpush1.msra.mxu0 %v1712
        %1714 = vmatprep.subr.mxu0 0.0
        %v1715 = vand.u32 %v350, 4294901760
        %v1716 = vsub.f32 %v350, %v1715
        %v1717 = vand.u32 %v1716, 4294901760
        %1718 = vmatpush1.msra.mxu0 %v1717
        %1719 = vmatprep.subr.mxu0 0.0
        %v1720 = vand.u32 %v347, 4294901760
        %v1721 = vsub.f32 %v347, %v1720
        %v1722 = vand.u32 %v1721, 4294901760
        %1723 = vmatpush1.msra.mxu0 %v1722
        %1724 = vmatprep.subr.mxu0 0.0
        %v1725 = vand.u32 %v344, 4294901760
        %v1726 = vsub.f32 %v344, %v1725
        %v1727 = vand.u32 %v1726, 4294901760
        %1728 = vmatpush1.msra.mxu0 %v1727
        %1729 = vmatprep.subr.mxu0 0.0
        %v1730 = vand.u32 %v341, 4294901760
        %v1731 = vsub.f32 %v341, %v1730
        %v1732 = vand.u32 %v1731, 4294901760
        %1733 = vmatpush1.msra.mxu0 %v1732
        %1734 = vmatprep.subr.mxu0 0.0
        %v1735 = vand.u32 %v338, 4294901760
        %v1736 = vsub.f32 %v338, %v1735
        %v1737 = vand.u32 %v1736, 4294901760
        %1738 = vmatpush1.msra.mxu0 %v1737
        %1739 = vmatprep.subr.mxu0 0.0
        %v1740 = vand.u32 %v335, 4294901760
        %v1741 = vsub.f32 %v335, %v1740
        %v1742 = vand.u32 %v1741, 4294901760
        %1743 = vmatpush1.msra.mxu0 %v1742
        %1744 = vmatprep.subr.mxu0 0.0
        %v1745 = vand.u32 %v332, 4294901760
        %v1746 = vsub.f32 %v332, %v1745
        %v1747 = vand.u32 %v1746, 4294901760
        %1748 = vmatpush1.msra.mxu0 %v1747
        %1749 = vmatprep.subr.mxu0 0.0
        %v1750 = vand.u32 %v329, 4294901760
        %v1751 = vsub.f32 %v329, %v1750
        %v1752 = vand.u32 %v1751, 4294901760
        %1753 = vmatpush1.msra.mxu0 %v1752
        %1754 = vmatprep.subr.mxu0 0.0
        %v1755 = vand.u32 %v326, 4294901760
        %v1756 = vsub.f32 %v326, %v1755
        %v1757 = vand.u32 %v1756, 4294901760
        %1758 = vmatpush1.msra.mxu0 %v1757
        %1759 = vmatprep.subr.mxu0 0.0
        %1760 = vmatpush2.msra.mxu0 0.0
        %1761 = vmatprep.subr.mxu0 0.0
        %1762 = vmatpush2.msra.mxu0 0.0
        %1763 = vmatprep.subr.mxu0 0.0
        %1764 = vmatpush2.msra.mxu0 0.0
        %1765 = vmatprep.subr.mxu0 0.0
        %1766 = vmatpush2.msra.mxu0 0.0
        %1767 = vmatprep.subr.mxu0 0.0
        %1768 = vmatpush2.msra.mxu0 0.0
        %1769 = vmatprep.subr.mxu0 0.0
        %1770 = vmatpush2.msra.mxu0 0.0
        %1771 = vmatprep.subr.mxu0 0.0
        %1772 = vmatpush2.msra.mxu0 0.0
        %1773 = vmatprep.subr.mxu0 0.0
        %1774 = vmatpush2.msra.mxu0 0.0
        %1775 = vmatprep.subr.mxu0 0.0
        %1776 = vmatpush2.msra.mxu0 0.0
        %1777 = vmatprep.subr.mxu0 0.0
        %1778 = vmatpush2.msra.mxu0 0.0
        %1779 = vmatprep.subr.mxu0 0.0
        %1780 = vmatpush2.msra.mxu0 0.0
        %1781 = vmatprep.subr.mxu0 0.0
        %1782 = vmatpush2.msra.mxu0 0.0
        %1783 = vmatprep.subr.mxu0 0.0
        %1784 = vmatpush2.msra.mxu0 0.0
        %1785 = vmatprep.subr.mxu0 0.0
        %1786 = vmatpush2.msra.mxu0 0.0
        %1787 = vmatprep.subr.mxu0 0.0
        %1788 = vmatpush2.msra.mxu0 0.0
        %1789 = vmatprep.subr.mxu0 0.0
        %1790 = vmatpush2.msra.mxu0 0.0
        %1791 = vmatprep.mubr.f32.mxu0 0.0
        %v1792 = vand.u32 %v323, 4294901760
        %1793 = vmatmul.mubr.f32.gmra.mxu0 %v1792
        %v1794 = vpop.f32.mrf.mxu0
        %v1795 = vadd.f32 %v1676, %v1794
        %v1796 = vpop.f32.mrf.mxu0
        %1797 = vdwg.mxu0
        %1798 = vmatprep.subr.mxu0 0.0
        %v1799 = vand.u32 %v371, 4294901760
        %1800 = vmatpush1.msra.mxu0 %v1799
        %1801 = vmatprep.subr.mxu0 0.0
        %v1802 = vand.u32 %v368, 4294901760
        %1803 = vmatpush1.msra.mxu0 %v1802
        %1804 = vmatprep.subr.mxu0 0.0
        %v1805 = vand.u32 %v365, 4294901760
        %1806 = vmatpush1.msra.mxu0 %v1805
        %1807 = vmatprep.subr.mxu0 0.0
        %v1808 = vand.u32 %v362, 4294901760
        %1809 = vmatpush1.msra.mxu0 %v1808
        %1810 = vmatprep.subr.mxu0 0.0
        %v1811 = vand.u32 %v359, 4294901760
        %1812 = vmatpush1.msra.mxu0 %v1811
        %1813 = vmatprep.subr.mxu0 0.0
        %v1814 = vand.u32 %v356, 4294901760
        %1815 = vmatpush1.msra.mxu0 %v1814
        %1816 = vmatprep.subr.mxu0 0.0
        %v1817 = vand.u32 %v353, 4294901760
        %1818 = vmatpush1.msra.mxu0 %v1817
        %1819 = vmatprep.subr.mxu0 0.0
        %v1820 = vand.u32 %v350, 4294901760
        %1821 = vmatpush1.msra.mxu0 %v1820
        %1822 = vmatprep.subr.mxu0 0.0
        %v1823 = vand.u32 %v347, 4294901760
        %1824 = vmatpush1.msra.mxu0 %v1823
        %1825 = vmatprep.subr.mxu0 0.0
        %v1826 = vand.u32 %v344, 4294901760
        %1827 = vmatpush1.msra.mxu0 %v1826
        %1828 = vmatprep.subr.mxu0 0.0
        %v1829 = vand.u32 %v341, 4294901760
        %1830 = vmatpush1.msra.mxu0 %v1829
        %1831 = vmatprep.subr.mxu0 0.0
        %v1832 = vand.u32 %v338, 4294901760
        %1833 = vmatpush1.msra.mxu0 %v1832
        %1834 = vmatprep.subr.mxu0 0.0
        %v1835 = vand.u32 %v335, 4294901760
        %1836 = vmatpush1.msra.mxu0 %v1835
        %1837 = vmatprep.subr.mxu0 0.0
        %v1838 = vand.u32 %v332, 4294901760
        %1839 = vmatpush1.msra.mxu0 %v1838
        %1840 = vmatprep.subr.mxu0 0.0
        %v1841 = vand.u32 %v329, 4294901760
        %1842 = vmatpush1.msra.mxu0 %v1841
        %1843 = vmatprep.subr.mxu0 0.0
        %v1844 = vand.u32 %v326, 4294901760
        %1845 = vmatpush1.msra.mxu0 %v1844
        %1846 = vmatprep.subr.mxu0 0.0
        %1847 = vmatpush2.msra.mxu0 0.0
        %1848 = vmatprep.subr.mxu0 0.0
        %1849 = vmatpush2.msra.mxu0 0.0
        %1850 = vmatprep.subr.mxu0 0.0
        %1851 = vmatpush2.msra.mxu0 0.0
        %1852 = vmatprep.subr.mxu0 0.0
        %1853 = vmatpush2.msra.mxu0 0.0
        %1854 = vmatprep.subr.mxu0 0.0
        %1855 = vmatpush2.msra.mxu0 0.0
        %1856 = vmatprep.subr.mxu0 0.0
        %1857 = vmatpush2.msra.mxu0 0.0
        %1858 = vmatprep.subr.mxu0 0.0
        %1859 = vmatpush2.msra.mxu0 0.0
        %1860 = vmatprep.subr.mxu0 0.0
        %1861 = vmatpush2.msra.mxu0 0.0
        %1862 = vmatprep.subr.mxu0 0.0
        %1863 = vmatpush2.msra.mxu0 0.0
        %1864 = vmatprep.subr.mxu0 0.0
        %1865 = vmatpush2.msra.mxu0 0.0
        %1866 = vmatprep.subr.mxu0 0.0
        %1867 = vmatpush2.msra.mxu0 0.0
        %1868 = vmatprep.subr.mxu0 0.0
        %1869 = vmatpush2.msra.mxu0 0.0
        %1870 = vmatprep.subr.mxu0 0.0
        %1871 = vmatpush2.msra.mxu0 0.0
        %1872 = vmatprep.subr.mxu0 0.0
        %1873 = vmatpush2.msra.mxu0 0.0
        %1874 = vmatprep.subr.mxu0 0.0
        %1875 = vmatpush2.msra.mxu0 0.0
        %1876 = vmatprep.subr.mxu0 0.0
        %1877 = vmatpush2.msra.mxu0 0.0
        %1878 = vmatprep.mubr.f32.mxu0 0.0
        %v1879 = vand.u32 %v323, 4294901760
        %1880 = vmatmul.mubr.f32.gmra.mxu0 %v1879
        %v1881 = vpop.f32.mrf.mxu0
        %v1882 = vadd.f32 %v1795, %v1881
        %v1883 = vpop.f32.mrf.mxu0
        %1884 = vdwg.mxu0
        %v1885 = vmul.f32 %v1240, 0.17677669
        %1887 = vrot.lane.b32.xlu0 %v1885, 96
        %v1888 = vpop.permute.xlu0 %1887
        %1890 = vrot.lane.b32.xlu0 %v1885, 64
        %v1891 = vpop.permute.xlu0 %1890
        %1893 = vrot.lane.b32.xlu0 %v1885, 32
        %v1894 = vpop.permute.xlu0 %1893
        %v1896 = vcombine.low %v1885, %v1891
        %v1897 = vcombine.high %v1885, %v1891
        %v1899 = vunpack.c.l.s4 1983009808
        %v1900 = vunpack.c.0.s8 %v1899
        %v1901 = vlaneseq
        %v1902 = vshrl.u32 %v1901, 7
        %v1903 = vsub.s32 %v1900, %v1902
        %v1904 = vrot.slane %v1896, %v1903
        %v1906 = vunpack.c.l.s4 1983009808
        %v1907 = vunpack.c.0.s8 %v1906
        %v1908 = vlaneseq
        %v1909 = vshrl.u32 %v1908, 7
        %v1910 = vsub.s32 %v1907, %v1909
        %v1911 = vrot.slane %v1897, %v1910
        %v1912 = vcombine.low %v1888, %v1894
        %v1913 = vcombine.high %v1888, %v1894
        %v1915 = vunpack.c.l.s4 1983009808
        %v1916 = vunpack.c.0.s8 %v1915
        %v1917 = vlaneseq
        %v1918 = vshrl.u32 %v1917, 7
        %v1919 = vsub.s32 %v1916, %v1918
        %v1920 = vrot.slane %v1912, %v1919
        %v1922 = vunpack.c.l.s4 1983009808
        %v1923 = vunpack.c.0.s8 %v1922
        %v1924 = vlaneseq
        %v1925 = vshrl.u32 %v1924, 7
        %v1926 = vsub.s32 %v1923, %v1925
        %v1927 = vrot.slane %v1913, %v1926
        %v1928 = vcombine.low %v1904, %v1920
        %v1929 = vcombine.high %v1904, %v1920
        %v1931 = vunpack.c.l.s4 1934713408
        %v1932 = vunpack.c.0.s8 %v1931
        %v1933 = vlaneseq
        %v1934 = vshrl.u32 %v1933, 7
        %v1935 = vsub.s32 %v1932, %v1934
        %v1936 = vrot.slane %v1928, %v1935
        %v1938 = vunpack.c.l.s4 1934713408
        %v1939 = vunpack.c.0.s8 %v1938
        %v1940 = vlaneseq
        %v1941 = vshrl.u32 %v1940, 7
        %v1942 = vsub.s32 %v1939, %v1941
        %v1943 = vrot.slane %v1929, %v1942
        %v1944 = vcombine.low %v1911, %v1927
        %v1945 = vcombine.high %v1911, %v1927
        %v1947 = vunpack.c.l.s4 1934713408
        %v1948 = vunpack.c.0.s8 %v1947
        %v1949 = vlaneseq
        %v1950 = vshrl.u32 %v1949, 7
        %v1951 = vsub.s32 %v1948, %v1950
        %v1952 = vrot.slane %v1944, %v1951
        %v1954 = vunpack.c.l.s4 1934713408
        %v1955 = vunpack.c.0.s8 %v1954
        %v1956 = vlaneseq
        %v1957 = vshrl.u32 %v1956, 7
        %v1958 = vsub.s32 %v1955, %v1957
        %v1959 = vrot.slane %v1945, %v1958
        %v1960 = vcombine.high %v1936, 0.0
        %v1961 = vcombine.high %v1943, 0.0
        %v1962 = vcombine.high %v1952, 0.0
        %v1963 = vcombine.high %v1959, 0.0
        %v1964 = vcombine.low %v1936, %v1943
        %v1966 = vunpack.c.l.s4 1983009808
        %v1967 = vunpack.c.0.s8 %v1966
        %v1968 = vlaneseq
        %v1969 = vshrl.u32 %v1968, 7
        %v1970 = vsub.s32 %v1967, %v1969
        %v1971 = vrot.slane %v1964, %v1970
        %v1972 = vcombine.low %v1960, %v1961
        %v1974 = vunpack.c.l.s4 1983009808
        %v1975 = vunpack.c.0.s8 %v1974
        %v1976 = vlaneseq
        %v1977 = vshrl.u32 %v1976, 7
        %v1978 = vsub.s32 %v1975, %v1977
        %v1979 = vrot.slane %v1972, %v1978
        %v1980 = vcombine.low %v1952, %v1959
        %v1982 = vunpack.c.l.s4 1983009808
        %v1983 = vunpack.c.0.s8 %v1982
        %v1984 = vlaneseq
        %v1985 = vshrl.u32 %v1984, 7
        %v1986 = vsub.s32 %v1983, %v1985
        %v1987 = vrot.slane %v1980, %v1986
        %v1988 = vcombine.low %v1962, %v1963
        %v1990 = vunpack.c.l.s4 1983009808
        %v1991 = vunpack.c.0.s8 %v1990
        %v1992 = vlaneseq
        %v1993 = vshrl.u32 %v1992, 7
        %v1994 = vsub.s32 %v1991, %v1993
        %v1995 = vrot.slane %v1988, %v1994
        %v1996 = vcombine.low %v1971, %v1979
        %v1997 = vcombine.high %v1971, %v1979
        %v1999 = vunpack.c.l.s4 1934713408
        %v2000 = vunpack.c.0.s8 %v1999
        %v2001 = vlaneseq
        %v2002 = vshrl.u32 %v2001, 7
        %v2003 = vsub.s32 %v2000, %v2002
        %v2004 = vrot.slane %v1996, %v2003
        %v2006 = vunpack.c.l.s4 1934713408
        %v2007 = vunpack.c.0.s8 %v2006
        %v2008 = vlaneseq
        %v2009 = vshrl.u32 %v2008, 7
        %v2010 = vsub.s32 %v2007, %v2009
        %v2011 = vrot.slane %v1997, %v2010
        %v2012 = vcombine.low %v1987, %v1995
        %v2013 = vcombine.high %v1987, %v1995
        %v2015 = vunpack.c.l.s4 1934713408
        %v2016 = vunpack.c.0.s8 %v2015
        %v2017 = vlaneseq
        %v2018 = vshrl.u32 %v2017, 7
        %v2019 = vsub.s32 %v2016, %v2018
        %v2020 = vrot.slane %v2012, %v2019
        %v2022 = vunpack.c.l.s4 1934713408
        %v2023 = vunpack.c.0.s8 %v2022
        %v2024 = vlaneseq
        %v2025 = vshrl.u32 %v2024, 7
        %v2026 = vsub.s32 %v2023, %v2025
        %v2027 = vrot.slane %v2013, %v2026
        %v2028 = vcombine.low %v2004, %v2020
        %v2029 = vcombine.high %v2004, %v2020
        %v2030 = vcombine.low %v2011, %v2027
        %v2031 = vcombine.high %v2011, %v2027
        %2033 = vrot.lane.b32.xlu0 %v1242, 96
        %v2034 = vpop.permute.xlu0 %2033
        %2036 = vrot.lane.b32.xlu0 %v1242, 64
        %v2037 = vpop.permute.xlu0 %2036
        %2039 = vrot.lane.b32.xlu0 %v1242, 32
        %v2040 = vpop.permute.xlu0 %2039
        %v2042 = vcombine.low %v1242, %v2037
        %v2043 = vcombine.high %v1242, %v2037
        %v2045 = vunpack.c.l.s4 1983009808
        %v2046 = vunpack.c.0.s8 %v2045
        %v2047 = vlaneseq
        %v2048 = vshrl.u32 %v2047, 7
        %v2049 = vsub.s32 %v2046, %v2048
        %v2050 = vrot.slane %v2042, %v2049
        %v2052 = vunpack.c.l.s4 1983009808
        %v2053 = vunpack.c.0.s8 %v2052
        %v2054 = vlaneseq
        %v2055 = vshrl.u32 %v2054, 7
        %v2056 = vsub.s32 %v2053, %v2055
        %v2057 = vrot.slane %v2043, %v2056
        %v2058 = vcombine.low %v2034, %v2040
        %v2059 = vcombine.high %v2034, %v2040
        %v2061 = vunpack.c.l.s4 1983009808
        %v2062 = vunpack.c.0.s8 %v2061
        %v2063 = vlaneseq
        %v2064 = vshrl.u32 %v2063, 7
        %v2065 = vsub.s32 %v2062, %v2064
        %v2066 = vrot.slane %v2058, %v2065
        %v2068 = vunpack.c.l.s4 1983009808
        %v2069 = vunpack.c.0.s8 %v2068
        %v2070 = vlaneseq
        %v2071 = vshrl.u32 %v2070, 7
        %v2072 = vsub.s32 %v2069, %v2071
        %v2073 = vrot.slane %v2059, %v2072
        %v2074 = vcombine.low %v2050, %v2066
        %v2075 = vcombine.high %v2050, %v2066
        %v2077 = vunpack.c.l.s4 1934713408
        %v2078 = vunpack.c.0.s8 %v2077
        %v2079 = vlaneseq
        %v2080 = vshrl.u32 %v2079, 7
        %v2081 = vsub.s32 %v2078, %v2080
        %v2082 = vrot.slane %v2074, %v2081
        %v2084 = vunpack.c.l.s4 1934713408
        %v2085 = vunpack.c.0.s8 %v2084
        %v2086 = vlaneseq
        %v2087 = vshrl.u32 %v2086, 7
        %v2088 = vsub.s32 %v2085, %v2087
        %v2089 = vrot.slane %v2075, %v2088
        %v2090 = vcombine.low %v2057, %v2073
        %v2091 = vcombine.high %v2057, %v2073
        %v2093 = vunpack.c.l.s4 1934713408
        %v2094 = vunpack.c.0.s8 %v2093
        %v2095 = vlaneseq
        %v2096 = vshrl.u32 %v2095, 7
        %v2097 = vsub.s32 %v2094, %v2096
        %v2098 = vrot.slane %v2090, %v2097
        %v2100 = vunpack.c.l.s4 1934713408
        %v2101 = vunpack.c.0.s8 %v2100
        %v2102 = vlaneseq
        %v2103 = vshrl.u32 %v2102, 7
        %v2104 = vsub.s32 %v2101, %v2103
        %v2105 = vrot.slane %v2091, %v2104
        %v2106 = vcombine.high %v2082, 0.0
        %v2107 = vcombine.high %v2089, 0.0
        %v2108 = vcombine.high %v2098, 0.0
        %v2109 = vcombine.high %v2105, 0.0
        %v2110 = vcombine.low %v2082, %v2089
        %v2112 = vunpack.c.l.s4 1983009808
        %v2113 = vunpack.c.0.s8 %v2112
        %v2114 = vlaneseq
        %v2115 = vshrl.u32 %v2114, 7
        %v2116 = vsub.s32 %v2113, %v2115
        %v2117 = vrot.slane %v2110, %v2116
        %v2118 = vcombine.low %v2106, %v2107
        %v2120 = vunpack.c.l.s4 1983009808
        %v2121 = vunpack.c.0.s8 %v2120
        %v2122 = vlaneseq
        %v2123 = vshrl.u32 %v2122, 7
        %v2124 = vsub.s32 %v2121, %v2123
        %v2125 = vrot.slane %v2118, %v2124
        %v2126 = vcombine.low %v2098, %v2105
        %v2128 = vunpack.c.l.s4 1983009808
        %v2129 = vunpack.c.0.s8 %v2128
        %v2130 = vlaneseq
        %v2131 = vshrl.u32 %v2130, 7
        %v2132 = vsub.s32 %v2129, %v2131
        %v2133 = vrot.slane %v2126, %v2132
        %v2134 = vcombine.low %v2108, %v2109
        %v2136 = vunpack.c.l.s4 1983009808
        %v2137 = vunpack.c.0.s8 %v2136
        %v2138 = vlaneseq
        %v2139 = vshrl.u32 %v2138, 7
        %v2140 = vsub.s32 %v2137, %v2139
        %v2141 = vrot.slane %v2134, %v2140
        %v2142 = vcombine.low %v2117, %v2125
        %v2143 = vcombine.high %v2117, %v2125
        %v2145 = vunpack.c.l.s4 1934713408
        %v2146 = vunpack.c.0.s8 %v2145
        %v2147 = vlaneseq
        %v2148 = vshrl.u32 %v2147, 7
        %v2149 = vsub.s32 %v2146, %v2148
        %v2150 = vrot.slane %v2142, %v2149
        %v2152 = vunpack.c.l.s4 1934713408
        %v2153 = vunpack.c.0.s8 %v2152
        %v2154 = vlaneseq
        %v2155 = vshrl.u32 %v2154, 7
        %v2156 = vsub.s32 %v2153, %v2155
        %v2157 = vrot.slane %v2143, %v2156
        %v2158 = vcombine.low %v2133, %v2141
        %v2159 = vcombine.high %v2133, %v2141
        %v2161 = vunpack.c.l.s4 1934713408
        %v2162 = vunpack.c.0.s8 %v2161
        %v2163 = vlaneseq
        %v2164 = vshrl.u32 %v2163, 7
        %v2165 = vsub.s32 %v2162, %v2164
        %v2166 = vrot.slane %v2158, %v2165
        %v2168 = vunpack.c.l.s4 1934713408
        %v2169 = vunpack.c.0.s8 %v2168
        %v2170 = vlaneseq
        %v2171 = vshrl.u32 %v2170, 7
        %v2172 = vsub.s32 %v2169, %v2171
        %v2173 = vrot.slane %v2159, %v2172
        %v2174 = vcombine.low %v2150, %v2166
        %v2175 = vcombine.high %v2150, %v2166
        %v2176 = vcombine.low %v2157, %v2173
        %v2177 = vcombine.high %v2157, %v2173
        %2179 = vrot.lane.b32.xlu0 %v1882, 96
        %v2180 = vpop.permute.xlu0 %2179
        %2182 = vrot.lane.b32.xlu0 %v1882, 64
        %v2183 = vpop.permute.xlu0 %2182
        %2185 = vrot.lane.b32.xlu0 %v1882, 32
        %v2186 = vpop.permute.xlu0 %2185
        %v2188 = vcombine.low %v1882, %v2183
        %v2189 = vcombine.high %v1882, %v2183
        %v2191 = vunpack.c.l.s4 1983009808
        %v2192 = vunpack.c.0.s8 %v2191
        %v2193 = vlaneseq
        %v2194 = vshrl.u32 %v2193, 7
        %v2195 = vsub.s32 %v2192, %v2194
        %v2196 = vrot.slane %v2188, %v2195
        %v2198 = vunpack.c.l.s4 1983009808
        %v2199 = vunpack.c.0.s8 %v2198
        %v2200 = vlaneseq
        %v2201 = vshrl.u32 %v2200, 7
        %v2202 = vsub.s32 %v2199, %v2201
        %v2203 = vrot.slane %v2189, %v2202
        %v2204 = vcombine.low %v2180, %v2186
        %v2205 = vcombine.high %v2180, %v2186
        %v2207 = vunpack.c.l.s4 1983009808
        %v2208 = vunpack.c.0.s8 %v2207
        %v2209 = vlaneseq
        %v2210 = vshrl.u32 %v2209, 7
        %v2211 = vsub.s32 %v2208, %v2210
        %v2212 = vrot.slane %v2204, %v2211
        %v2214 = vunpack.c.l.s4 1983009808
        %v2215 = vunpack.c.0.s8 %v2214
        %v2216 = vlaneseq
        %v2217 = vshrl.u32 %v2216, 7
        %v2218 = vsub.s32 %v2215, %v2217
        %v2219 = vrot.slane %v2205, %v2218
        %v2220 = vcombine.low %v2196, %v2212
        %v2221 = vcombine.high %v2196, %v2212
        %v2223 = vunpack.c.l.s4 1934713408
        %v2224 = vunpack.c.0.s8 %v2223
        %v2225 = vlaneseq
        %v2226 = vshrl.u32 %v2225, 7
        %v2227 = vsub.s32 %v2224, %v2226
        %v2228 = vrot.slane %v2220, %v2227
        %v2230 = vunpack.c.l.s4 1934713408
        %v2231 = vunpack.c.0.s8 %v2230
        %v2232 = vlaneseq
        %v2233 = vshrl.u32 %v2232, 7
        %v2234 = vsub.s32 %v2231, %v2233
        %v2235 = vrot.slane %v2221, %v2234
        %v2236 = vcombine.low %v2203, %v2219
        %v2237 = vcombine.high %v2203, %v2219
        %v2239 = vunpack.c.l.s4 1934713408
        %v2240 = vunpack.c.0.s8 %v2239
        %v2241 = vlaneseq
        %v2242 = vshrl.u32 %v2241, 7
        %v2243 = vsub.s32 %v2240, %v2242
        %v2244 = vrot.slane %v2236, %v2243
        %v2246 = vunpack.c.l.s4 1934713408
        %v2247 = vunpack.c.0.s8 %v2246
        %v2248 = vlaneseq
        %v2249 = vshrl.u32 %v2248, 7
        %v2250 = vsub.s32 %v2247, %v2249
        %v2251 = vrot.slane %v2237, %v2250
        %v2252 = vcombine.high %v2228, 0.0
        %v2253 = vcombine.high %v2235, 0.0
        %v2254 = vcombine.high %v2244, 0.0
        %v2255 = vcombine.high %v2251, 0.0
        %v2256 = vcombine.low %v2228, %v2235
        %v2258 = vunpack.c.l.s4 1983009808
        %v2259 = vunpack.c.0.s8 %v2258
        %v2260 = vlaneseq
        %v2261 = vshrl.u32 %v2260, 7
        %v2262 = vsub.s32 %v2259, %v2261
        %v2263 = vrot.slane %v2256, %v2262
        %v2264 = vcombine.low %v2252, %v2253
        %v2266 = vunpack.c.l.s4 1983009808
        %v2267 = vunpack.c.0.s8 %v2266
        %v2268 = vlaneseq
        %v2269 = vshrl.u32 %v2268, 7
        %v2270 = vsub.s32 %v2267, %v2269
        %v2271 = vrot.slane %v2264, %v2270
        %v2272 = vcombine.low %v2244, %v2251
        %v2274 = vunpack.c.l.s4 1983009808
        %v2275 = vunpack.c.0.s8 %v2274
        %v2276 = vlaneseq
        %v2277 = vshrl.u32 %v2276, 7
        %v2278 = vsub.s32 %v2275, %v2277
        %v2279 = vrot.slane %v2272, %v2278
        %v2280 = vcombine.low %v2254, %v2255
        %v2282 = vunpack.c.l.s4 1983009808
        %v2283 = vunpack.c.0.s8 %v2282
        %v2284 = vlaneseq
        %v2285 = vshrl.u32 %v2284, 7
        %v2286 = vsub.s32 %v2283, %v2285
        %v2287 = vrot.slane %v2280, %v2286
        %v2288 = vcombine.low %v2263, %v2271
        %v2289 = vcombine.high %v2263, %v2271
        %v2291 = vunpack.c.l.s4 1934713408
        %v2292 = vunpack.c.0.s8 %v2291
        %v2293 = vlaneseq
        %v2294 = vshrl.u32 %v2293, 7
        %v2295 = vsub.s32 %v2292, %v2294
        %v2296 = vrot.slane %v2288, %v2295
        %v2298 = vunpack.c.l.s4 1934713408
        %v2299 = vunpack.c.0.s8 %v2298
        %v2300 = vlaneseq
        %v2301 = vshrl.u32 %v2300, 7
        %v2302 = vsub.s32 %v2299, %v2301
        %v2303 = vrot.slane %v2289, %v2302
        %v2304 = vcombine.low %v2279, %v2287
        %v2305 = vcombine.high %v2279, %v2287
        %v2307 = vunpack.c.l.s4 1934713408
        %v2308 = vunpack.c.0.s8 %v2307
        %v2309 = vlaneseq
        %v2310 = vshrl.u32 %v2309, 7
        %v2311 = vsub.s32 %v2308, %v2310
        %v2312 = vrot.slane %v2304, %v2311
        %v2314 = vunpack.c.l.s4 1934713408
        %v2315 = vunpack.c.0.s8 %v2314
        %v2316 = vlaneseq
        %v2317 = vshrl.u32 %v2316, 7
        %v2318 = vsub.s32 %v2315, %v2317
        %v2319 = vrot.slane %v2305, %v2318
        %v2320 = vcombine.low %v2296, %v2312
        %v2321 = vcombine.high %v2296, %v2312
        %v2322 = vcombine.low %v2303, %v2319
        %v2323 = vcombine.high %v2303, %v2319
        %vm2324 = vcmask 261120
        %v2326 = vsel %vm2324, %v2028, 0
        %v2329 = vsel %vm2324, %v2174, 0
        %2331 = vmatprep.subr.mxu0 0.0
        %2332 = vmatpush1.xpose.msra.mxu0 0.0
        %2333 = vmatprep.subr.mxu0 0.0
        %2334 = vmatpush1.xpose.msra.mxu0 0.0
        %2335 = vmatprep.subr.mxu0 0.0
        %2336 = vmatpush1.xpose.msra.mxu0 0.0
        %2337 = vmatprep.subr.mxu0 0.0
        %2338 = vmatpush1.xpose.msra.mxu0 0.0
        %2339 = vmatprep.subr.mxu0 0.0
        %2340 = vmatpush1.xpose.msra.mxu0 0.0
        %2341 = vmatprep.subr.mxu0 0.0
        %2342 = vmatpush1.xpose.msra.mxu0 0.0
        %2343 = vmatprep.subr.mxu0 0.0
        %2344 = vmatpush1.xpose.msra.mxu0 0.0
        %2345 = vmatprep.subr.mxu0 0.0
        %2346 = vmatpush1.xpose.msra.mxu0 0.0
        %2347 = vmatprep.subr.mxu0 0.0
        %2348 = vmatpush1.xpose.msra.mxu0 0.0
        %2349 = vmatprep.subr.mxu0 0.0
        %2350 = vmatpush1.xpose.msra.mxu0 0.0
        %2351 = vmatprep.subr.mxu0 0.0
        %2352 = vmatpush1.xpose.msra.mxu0 0.0
        %2353 = vmatprep.subr.mxu0 0.0
        %2354 = vmatpush1.xpose.msra.mxu0 0.0
        %2355 = vmatprep.subr.mxu0 0.0
        %2356 = vmatpush1.xpose.msra.mxu0 0.0
        %2357 = vmatprep.subr.mxu0 0.0
        %2358 = vmatpush1.xpose.msra.mxu0 0.0
        %2359 = vmatprep.subr.mxu0 0.0
        %2360 = vmatpush1.xpose.msra.mxu0 0.0
        %2361 = vmatprep.subr.mxu0 0.0
        %v2362 = vand.u32 %v2329, 4294901760
        %2363 = vmatpush1.xpose.msra.mxu0 %v2362
        %2364 = vmatprep.subr.mxu0 0.0
        %2365 = vmatpush2.xpose.msra.mxu0 0.0
        %2366 = vmatprep.subr.mxu0 0.0
        %2367 = vmatpush2.xpose.msra.mxu0 0.0
        %2368 = vmatprep.subr.mxu0 0.0
        %2369 = vmatpush2.xpose.msra.mxu0 0.0
        %2370 = vmatprep.subr.mxu0 0.0
        %2371 = vmatpush2.xpose.msra.mxu0 0.0
        %2372 = vmatprep.subr.mxu0 0.0
        %2373 = vmatpush2.xpose.msra.mxu0 0.0
        %2374 = vmatprep.subr.mxu0 0.0
        %2375 = vmatpush2.xpose.msra.mxu0 0.0
        %2376 = vmatprep.subr.mxu0 0.0
        %2377 = vmatpush2.xpose.msra.mxu0 0.0
        %2378 = vmatprep.subr.mxu0 0.0
        %2379 = vmatpush2.xpose.msra.mxu0 0.0
        %2380 = vmatprep.subr.mxu0 0.0
        %2381 = vmatpush2.xpose.msra.mxu0 0.0
        %2382 = vmatprep.subr.mxu0 0.0
        %2383 = vmatpush2.xpose.msra.mxu0 0.0
        %2384 = vmatprep.subr.mxu0 0.0
        %2385 = vmatpush2.xpose.msra.mxu0 0.0
        %2386 = vmatprep.subr.mxu0 0.0
        %2387 = vmatpush2.xpose.msra.mxu0 0.0
        %2388 = vmatprep.subr.mxu0 0.0
        %2389 = vmatpush2.xpose.msra.mxu0 0.0
        %2390 = vmatprep.subr.mxu0 0.0
        %2391 = vmatpush2.xpose.msra.mxu0 0.0
        %2392 = vmatprep.subr.mxu0 0.0
        %2393 = vmatpush2.xpose.msra.mxu0 0.0
        %2394 = vmatprep.subr.mxu0 0.0
        %2395 = vmatpush2.xpose.msra.mxu0 0.0
        %2396 = vmatprep.mubr.f32.mxu0 0.0
        %v2397 = vand.u32 %v2326, 4294901760
        %v2398 = vsub.f32 %v2326, %v2397
        %v2399 = vand.u32 %v2398, 4294901760
        %v2400 = vsub.f32 %v2398, %v2399
        %v2401 = vand.u32 %v2400, 4294901760
        %2402 = vmatmul.mubr.f32.gmra.mxu0 %v2401
        %v2403 = vpop.f32.mrf.mxu0
        %v2404 = vadd.f32 0.0, %v2403
        %v2405 = vpop.f32.mrf.mxu0
        %2406 = vdwg.mxu0
        %2407 = vmatprep.subr.mxu0 0.0
        %2408 = vmatpush1.xpose.msra.mxu0 0.0
        %2409 = vmatprep.subr.mxu0 0.0
        %2410 = vmatpush1.xpose.msra.mxu0 0.0
        %2411 = vmatprep.subr.mxu0 0.0
        %2412 = vmatpush1.xpose.msra.mxu0 0.0
        %2413 = vmatprep.subr.mxu0 0.0
        %2414 = vmatpush1.xpose.msra.mxu0 0.0
        %2415 = vmatprep.subr.mxu0 0.0
        %2416 = vmatpush1.xpose.msra.mxu0 0.0
        %2417 = vmatprep.subr.mxu0 0.0
        %2418 = vmatpush1.xpose.msra.mxu0 0.0
        %2419 = vmatprep.subr.mxu0 0.0
        %2420 = vmatpush1.xpose.msra.mxu0 0.0
        %2421 = vmatprep.subr.mxu0 0.0
        %2422 = vmatpush1.xpose.msra.mxu0 0.0
        %2423 = vmatprep.subr.mxu0 0.0
        %2424 = vmatpush1.xpose.msra.mxu0 0.0
        %2425 = vmatprep.subr.mxu0 0.0
        %2426 = vmatpush1.xpose.msra.mxu0 0.0
        %2427 = vmatprep.subr.mxu0 0.0
        %2428 = vmatpush1.xpose.msra.mxu0 0.0
        %2429 = vmatprep.subr.mxu0 0.0
        %2430 = vmatpush1.xpose.msra.mxu0 0.0
        %2431 = vmatprep.subr.mxu0 0.0
        %2432 = vmatpush1.xpose.msra.mxu0 0.0
        %2433 = vmatprep.subr.mxu0 0.0
        %2434 = vmatpush1.xpose.msra.mxu0 0.0
        %2435 = vmatprep.subr.mxu0 0.0
        %2436 = vmatpush1.xpose.msra.mxu0 0.0
        %2437 = vmatprep.subr.mxu0 0.0
        %v2438 = vand.u32 %v2329, 4294901760
        %v2439 = vsub.f32 %v2329, %v2438
        %v2440 = vand.u32 %v2439, 4294901760
        %v2441 = vsub.f32 %v2439, %v2440
        %v2442 = vand.u32 %v2441, 4294901760
        %2443 = vmatpush1.xpose.msra.mxu0 %v2442
        %2444 = vmatprep.subr.mxu0 0.0
        %2445 = vmatpush2.xpose.msra.mxu0 0.0
        %2446 = vmatprep.subr.mxu0 0.0
        %2447 = vmatpush2.xpose.msra.mxu0 0.0
        %2448 = vmatprep.subr.mxu0 0.0
        %2449 = vmatpush2.xpose.msra.mxu0 0.0
        %2450 = vmatprep.subr.mxu0 0.0
        %2451 = vmatpush2.xpose.msra.mxu0 0.0
        %2452 = vmatprep.subr.mxu0 0.0
        %2453 = vmatpush2.xpose.msra.mxu0 0.0
        %2454 = vmatprep.subr.mxu0 0.0
        %2455 = vmatpush2.xpose.msra.mxu0 0.0
        %2456 = vmatprep.subr.mxu0 0.0
        %2457 = vmatpush2.xpose.msra.mxu0 0.0
        %2458 = vmatprep.subr.mxu0 0.0
        %2459 = vmatpush2.xpose.msra.mxu0 0.0
        %2460 = vmatprep.subr.mxu0 0.0
        %2461 = vmatpush2.xpose.msra.mxu0 0.0
        %2462 = vmatprep.subr.mxu0 0.0
        %2463 = vmatpush2.xpose.msra.mxu0 0.0
        %2464 = vmatprep.subr.mxu0 0.0
        %2465 = vmatpush2.xpose.msra.mxu0 0.0
        %2466 = vmatprep.subr.mxu0 0.0
        %2467 = vmatpush2.xpose.msra.mxu0 0.0
        %2468 = vmatprep.subr.mxu0 0.0
        %2469 = vmatpush2.xpose.msra.mxu0 0.0
        %2470 = vmatprep.subr.mxu0 0.0
        %2471 = vmatpush2.xpose.msra.mxu0 0.0
        %2472 = vmatprep.subr.mxu0 0.0
        %2473 = vmatpush2.xpose.msra.mxu0 0.0
        %2474 = vmatprep.subr.mxu0 0.0
        %2475 = vmatpush2.xpose.msra.mxu0 0.0
        %2476 = vmatprep.mubr.f32.mxu0 0.0
        %v2477 = vand.u32 %v2326, 4294901760
        %2478 = vmatmul.mubr.f32.gmra.mxu0 %v2477
        %v2479 = vpop.f32.mrf.mxu0
        %v2480 = vadd.f32 %v2404, %v2479
        %v2481 = vpop.f32.mrf.mxu0
        %2482 = vdwg.mxu0
        %2483 = vmatprep.subr.mxu0 0.0
        %2484 = vmatpush1.xpose.msra.mxu0 0.0
        %2485 = vmatprep.subr.mxu0 0.0
        %2486 = vmatpush1.xpose.msra.mxu0 0.0
        %2487 = vmatprep.subr.mxu0 0.0
        %2488 = vmatpush1.xpose.msra.mxu0 0.0
        %2489 = vmatprep.subr.mxu0 0.0
        %2490 = vmatpush1.xpose.msra.mxu0 0.0
        %2491 = vmatprep.subr.mxu0 0.0
        %2492 = vmatpush1.xpose.msra.mxu0 0.0
        %2493 = vmatprep.subr.mxu0 0.0
        %2494 = vmatpush1.xpose.msra.mxu0 0.0
        %2495 = vmatprep.subr.mxu0 0.0
        %2496 = vmatpush1.xpose.msra.mxu0 0.0
        %2497 = vmatprep.subr.mxu0 0.0
        %2498 = vmatpush1.xpose.msra.mxu0 0.0
        %2499 = vmatprep.subr.mxu0 0.0
        %2500 = vmatpush1.xpose.msra.mxu0 0.0
        %2501 = vmatprep.subr.mxu0 0.0
        %2502 = vmatpush1.xpose.msra.mxu0 0.0
        %2503 = vmatprep.subr.mxu0 0.0
        %2504 = vmatpush1.xpose.msra.mxu0 0.0
        %2505 = vmatprep.subr.mxu0 0.0
        %2506 = vmatpush1.xpose.msra.mxu0 0.0
        %2507 = vmatprep.subr.mxu0 0.0
        %2508 = vmatpush1.xpose.msra.mxu0 0.0
        %2509 = vmatprep.subr.mxu0 0.0
        %2510 = vmatpush1.xpose.msra.mxu0 0.0
        %2511 = vmatprep.subr.mxu0 0.0
        %2512 = vmatpush1.xpose.msra.mxu0 0.0
        %2513 = vmatprep.subr.mxu0 0.0
        %v2514 = vand.u32 %v2329, 4294901760
        %v2515 = vsub.f32 %v2329, %v2514
        %2516 = vmatpush1.xpose.msra.mxu0 %v2515
        %2517 = vmatprep.subr.mxu0 0.0
        %2518 = vmatpush2.xpose.msra.mxu0 0.0
        %2519 = vmatprep.subr.mxu0 0.0
        %2520 = vmatpush2.xpose.msra.mxu0 0.0
        %2521 = vmatprep.subr.mxu0 0.0
        %2522 = vmatpush2.xpose.msra.mxu0 0.0
        %2523 = vmatprep.subr.mxu0 0.0
        %2524 = vmatpush2.xpose.msra.mxu0 0.0
        %2525 = vmatprep.subr.mxu0 0.0
        %2526 = vmatpush2.xpose.msra.mxu0 0.0
        %2527 = vmatprep.subr.mxu0 0.0
        %2528 = vmatpush2.xpose.msra.mxu0 0.0
        %2529 = vmatprep.subr.mxu0 0.0
        %2530 = vmatpush2.xpose.msra.mxu0 0.0
        %2531 = vmatprep.subr.mxu0 0.0
        %2532 = vmatpush2.xpose.msra.mxu0 0.0
        %2533 = vmatprep.subr.mxu0 0.0
        %2534 = vmatpush2.xpose.msra.mxu0 0.0
        %2535 = vmatprep.subr.mxu0 0.0
        %2536 = vmatpush2.xpose.msra.mxu0 0.0
        %2537 = vmatprep.subr.mxu0 0.0
        %2538 = vmatpush2.xpose.msra.mxu0 0.0
        %2539 = vmatprep.subr.mxu0 0.0
        %2540 = vmatpush2.xpose.msra.mxu0 0.0
        %2541 = vmatprep.subr.mxu0 0.0
        %2542 = vmatpush2.xpose.msra.mxu0 0.0
        %2543 = vmatprep.subr.mxu0 0.0
        %2544 = vmatpush2.xpose.msra.mxu0 0.0
        %2545 = vmatprep.subr.mxu0 0.0
        %2546 = vmatpush2.xpose.msra.mxu0 0.0
        %2547 = vmatprep.subr.mxu0 0.0
        %2548 = vmatpush2.xpose.msra.mxu0 0.0
        %2549 = vmatprep.mubr.f32.mxu0 0.0
        %v2550 = vand.u32 %v2326, 4294901760
        %v2551 = vsub.f32 %v2326, %v2550
        %2552 = vmatmul.mubr.f32.gmra.mxu0 %v2551
        %v2553 = vpop.f32.mrf.mxu0
        %v2554 = vadd.f32 %v2480, %v2553
        %v2555 = vpop.f32.mrf.mxu0
        %2556 = vdwg.mxu0
        %2557 = vmatprep.subr.mxu0 0.0
        %2558 = vmatpush1.xpose.msra.mxu0 0.0
        %2559 = vmatprep.subr.mxu0 0.0
        %2560 = vmatpush1.xpose.msra.mxu0 0.0
        %2561 = vmatprep.subr.mxu0 0.0
        %2562 = vmatpush1.xpose.msra.mxu0 0.0
        %2563 = vmatprep.subr.mxu0 0.0
        %2564 = vmatpush1.xpose.msra.mxu0 0.0
        %2565 = vmatprep.subr.mxu0 0.0
        %2566 = vmatpush1.xpose.msra.mxu0 0.0
        %2567 = vmatprep.subr.mxu0 0.0
        %2568 = vmatpush1.xpose.msra.mxu0 0.0
        %2569 = vmatprep.subr.mxu0 0.0
        %2570 = vmatpush1.xpose.msra.mxu0 0.0
        %2571 = vmatprep.subr.mxu0 0.0
        %2572 = vmatpush1.xpose.msra.mxu0 0.0
        %2573 = vmatprep.subr.mxu0 0.0
        %2574 = vmatpush1.xpose.msra.mxu0 0.0
        %2575 = vmatprep.subr.mxu0 0.0
        %2576 = vmatpush1.xpose.msra.mxu0 0.0
        %2577 = vmatprep.subr.mxu0 0.0
        %2578 = vmatpush1.xpose.msra.mxu0 0.0
        %2579 = vmatprep.subr.mxu0 0.0
        %2580 = vmatpush1.xpose.msra.mxu0 0.0
        %2581 = vmatprep.subr.mxu0 0.0
        %2582 = vmatpush1.xpose.msra.mxu0 0.0
        %2583 = vmatprep.subr.mxu0 0.0
        %2584 = vmatpush1.xpose.msra.mxu0 0.0
        %2585 = vmatprep.subr.mxu0 0.0
        %2586 = vmatpush1.xpose.msra.mxu0 0.0
        %2587 = vmatprep.subr.mxu0 0.0
        %v2588 = vand.u32 %v2329, 4294901760
        %2589 = vmatpush1.xpose.msra.mxu0 %v2588
        %2590 = vmatprep.subr.mxu0 0.0
        %2591 = vmatpush2.xpose.msra.mxu0 0.0
        %2592 = vmatprep.subr.mxu0 0.0
        %2593 = vmatpush2.xpose.msra.mxu0 0.0
        %2594 = vmatprep.subr.mxu0 0.0
        %2595 = vmatpush2.xpose.msra.mxu0 0.0
        %2596 = vmatprep.subr.mxu0 0.0
        %2597 = vmatpush2.xpose.msra.mxu0 0.0
        %2598 = vmatprep.subr.mxu0 0.0
        %2599 = vmatpush2.xpose.msra.mxu0 0.0
        %2600 = vmatprep.subr.mxu0 0.0
        %2601 = vmatpush2.xpose.msra.mxu0 0.0
        %2602 = vmatprep.subr.mxu0 0.0
        %2603 = vmatpush2.xpose.msra.mxu0 0.0
        %2604 = vmatprep.subr.mxu0 0.0
        %2605 = vmatpush2.xpose.msra.mxu0 0.0
        %2606 = vmatprep.subr.mxu0 0.0
        %2607 = vmatpush2.xpose.msra.mxu0 0.0
        %2608 = vmatprep.subr.mxu0 0.0
        %2609 = vmatpush2.xpose.msra.mxu0 0.0
        %2610 = vmatprep.subr.mxu0 0.0
        %2611 = vmatpush2.xpose.msra.mxu0 0.0
        %2612 = vmatprep.subr.mxu0 0.0
        %2613 = vmatpush2.xpose.msra.mxu0 0.0
        %2614 = vmatprep.subr.mxu0 0.0
        %2615 = vmatpush2.xpose.msra.mxu0 0.0
        %2616 = vmatprep.subr.mxu0 0.0
        %2617 = vmatpush2.xpose.msra.mxu0 0.0
        %2618 = vmatprep.subr.mxu0 0.0
        %2619 = vmatpush2.xpose.msra.mxu0 0.0
        %2620 = vmatprep.subr.mxu0 0.0
        %2621 = vmatpush2.xpose.msra.mxu0 0.0
        %2622 = vmatprep.mubr.f32.mxu0 0.0
        %v2623 = vand.u32 %v2326, 4294901760
        %v2624 = vsub.f32 %v2326, %v2623
        %v2625 = vand.u32 %v2624, 4294901760
        %2626 = vmatmul.mubr.f32.gmra.mxu0 %v2625
        %v2627 = vpop.f32.mrf.mxu0
        %v2628 = vadd.f32 %v2554, %v2627
        %v2629 = vpop.f32.mrf.mxu0
        %2630 = vdwg.mxu0
        %2631 = vmatprep.subr.mxu0 0.0
        %2632 = vmatpush1.xpose.msra.mxu0 0.0
        %2633 = vmatprep.subr.mxu0 0.0
        %2634 = vmatpush1.xpose.msra.mxu0 0.0
        %2635 = vmatprep.subr.mxu0 0.0
        %2636 = vmatpush1.xpose.msra.mxu0 0.0
        %2637 = vmatprep.subr.mxu0 0.0
        %2638 = vmatpush1.xpose.msra.mxu0 0.0
        %2639 = vmatprep.subr.mxu0 0.0
        %2640 = vmatpush1.xpose.msra.mxu0 0.0
        %2641 = vmatprep.subr.mxu0 0.0
        %2642 = vmatpush1.xpose.msra.mxu0 0.0
        %2643 = vmatprep.subr.mxu0 0.0
        %2644 = vmatpush1.xpose.msra.mxu0 0.0
        %2645 = vmatprep.subr.mxu0 0.0
        %2646 = vmatpush1.xpose.msra.mxu0 0.0
        %2647 = vmatprep.subr.mxu0 0.0
        %2648 = vmatpush1.xpose.msra.mxu0 0.0
        %2649 = vmatprep.subr.mxu0 0.0
        %2650 = vmatpush1.xpose.msra.mxu0 0.0
        %2651 = vmatprep.subr.mxu0 0.0
        %2652 = vmatpush1.xpose.msra.mxu0 0.0
        %2653 = vmatprep.subr.mxu0 0.0
        %2654 = vmatpush1.xpose.msra.mxu0 0.0
        %2655 = vmatprep.subr.mxu0 0.0
        %2656 = vmatpush1.xpose.msra.mxu0 0.0
        %2657 = vmatprep.subr.mxu0 0.0
        %2658 = vmatpush1.xpose.msra.mxu0 0.0
        %2659 = vmatprep.subr.mxu0 0.0
        %2660 = vmatpush1.xpose.msra.mxu0 0.0
        %2661 = vmatprep.subr.mxu0 0.0
        %v2662 = vand.u32 %v2329, 4294901760
        %v2663 = vsub.f32 %v2329, %v2662
        %v2664 = vand.u32 %v2663, 4294901760
        %2665 = vmatpush1.xpose.msra.mxu0 %v2664
        %2666 = vmatprep.subr.mxu0 0.0
        %2667 = vmatpush2.xpose.msra.mxu0 0.0
        %2668 = vmatprep.subr.mxu0 0.0
        %2669 = vmatpush2.xpose.msra.mxu0 0.0
        %2670 = vmatprep.subr.mxu0 0.0
        %2671 = vmatpush2.xpose.msra.mxu0 0.0
        %2672 = vmatprep.subr.mxu0 0.0
        %2673 = vmatpush2.xpose.msra.mxu0 0.0
        %2674 = vmatprep.subr.mxu0 0.0
        %2675 = vmatpush2.xpose.msra.mxu0 0.0
        %2676 = vmatprep.subr.mxu0 0.0
        %2677 = vmatpush2.xpose.msra.mxu0 0.0
        %2678 = vmatprep.subr.mxu0 0.0
        %2679 = vmatpush2.xpose.msra.mxu0 0.0
        %2680 = vmatprep.subr.mxu0 0.0
        %2681 = vmatpush2.xpose.msra.mxu0 0.0
        %2682 = vmatprep.subr.mxu0 0.0
        %2683 = vmatpush2.xpose.msra.mxu0 0.0
        %2684 = vmatprep.subr.mxu0 0.0
        %2685 = vmatpush2.xpose.msra.mxu0 0.0
        %2686 = vmatprep.subr.mxu0 0.0
        %2687 = vmatpush2.xpose.msra.mxu0 0.0
        %2688 = vmatprep.subr.mxu0 0.0
        %2689 = vmatpush2.xpose.msra.mxu0 0.0
        %2690 = vmatprep.subr.mxu0 0.0
        %2691 = vmatpush2.xpose.msra.mxu0 0.0
        %2692 = vmatprep.subr.mxu0 0.0
        %2693 = vmatpush2.xpose.msra.mxu0 0.0
        %2694 = vmatprep.subr.mxu0 0.0
        %2695 = vmatpush2.xpose.msra.mxu0 0.0
        %2696 = vmatprep.subr.mxu0 0.0
        %2697 = vmatpush2.xpose.msra.mxu0 0.0
        %2698 = vmatprep.mubr.f32.mxu0 0.0
        %v2699 = vand.u32 %v2326, 4294901760
        %2700 = vmatmul.mubr.f32.gmra.mxu0 %v2699
        %v2701 = vpop.f32.mrf.mxu0
        %v2702 = vadd.f32 %v2628, %v2701
        %v2703 = vpop.f32.mrf.mxu0
        %2704 = vdwg.mxu0
        %2705 = vmatprep.subr.mxu0 0.0
        %2706 = vmatpush1.xpose.msra.mxu0 0.0
        %2707 = vmatprep.subr.mxu0 0.0
        %2708 = vmatpush1.xpose.msra.mxu0 0.0
        %2709 = vmatprep.subr.mxu0 0.0
        %2710 = vmatpush1.xpose.msra.mxu0 0.0
        %2711 = vmatprep.subr.mxu0 0.0
        %2712 = vmatpush1.xpose.msra.mxu0 0.0
        %2713 = vmatprep.subr.mxu0 0.0
        %2714 = vmatpush1.xpose.msra.mxu0 0.0
        %2715 = vmatprep.subr.mxu0 0.0
        %2716 = vmatpush1.xpose.msra.mxu0 0.0
        %2717 = vmatprep.subr.mxu0 0.0
        %2718 = vmatpush1.xpose.msra.mxu0 0.0
        %2719 = vmatprep.subr.mxu0 0.0
        %2720 = vmatpush1.xpose.msra.mxu0 0.0
        %2721 = vmatprep.subr.mxu0 0.0
        %2722 = vmatpush1.xpose.msra.mxu0 0.0
        %2723 = vmatprep.subr.mxu0 0.0
        %2724 = vmatpush1.xpose.msra.mxu0 0.0
        %2725 = vmatprep.subr.mxu0 0.0
        %2726 = vmatpush1.xpose.msra.mxu0 0.0
        %2727 = vmatprep.subr.mxu0 0.0
        %2728 = vmatpush1.xpose.msra.mxu0 0.0
        %2729 = vmatprep.subr.mxu0 0.0
        %2730 = vmatpush1.xpose.msra.mxu0 0.0
        %2731 = vmatprep.subr.mxu0 0.0
        %2732 = vmatpush1.xpose.msra.mxu0 0.0
        %2733 = vmatprep.subr.mxu0 0.0
        %2734 = vmatpush1.xpose.msra.mxu0 0.0
        %2735 = vmatprep.subr.mxu0 0.0
        %v2736 = vand.u32 %v2329, 4294901760
        %2737 = vmatpush1.xpose.msra.mxu0 %v2736
        %2738 = vmatprep.subr.mxu0 0.0
        %2739 = vmatpush2.xpose.msra.mxu0 0.0
        %2740 = vmatprep.subr.mxu0 0.0
        %2741 = vmatpush2.xpose.msra.mxu0 0.0
        %2742 = vmatprep.subr.mxu0 0.0
        %2743 = vmatpush2.xpose.msra.mxu0 0.0
        %2744 = vmatprep.subr.mxu0 0.0
        %2745 = vmatpush2.xpose.msra.mxu0 0.0
        %2746 = vmatprep.subr.mxu0 0.0
        %2747 = vmatpush2.xpose.msra.mxu0 0.0
        %2748 = vmatprep.subr.mxu0 0.0
        %2749 = vmatpush2.xpose.msra.mxu0 0.0
        %2750 = vmatprep.subr.mxu0 0.0
        %2751 = vmatpush2.xpose.msra.mxu0 0.0
        %2752 = vmatprep.subr.mxu0 0.0
        %2753 = vmatpush2.xpose.msra.mxu0 0.0
        %2754 = vmatprep.subr.mxu0 0.0
        %2755 = vmatpush2.xpose.msra.mxu0 0.0
        %2756 = vmatprep.subr.mxu0 0.0
        %2757 = vmatpush2.xpose.msra.mxu0 0.0
        %2758 = vmatprep.subr.mxu0 0.0
        %2759 = vmatpush2.xpose.msra.mxu0 0.0
        %2760 = vmatprep.subr.mxu0 0.0
        %2761 = vmatpush2.xpose.msra.mxu0 0.0
        %2762 = vmatprep.subr.mxu0 0.0
        %2763 = vmatpush2.xpose.msra.mxu0 0.0
        %2764 = vmatprep.subr.mxu0 0.0
        %2765 = vmatpush2.xpose.msra.mxu0 0.0
        %2766 = vmatprep.subr.mxu0 0.0
        %2767 = vmatpush2.xpose.msra.mxu0 0.0
        %2768 = vmatprep.subr.mxu0 0.0
        %2769 = vmatpush2.xpose.msra.mxu0 0.0
        %2770 = vmatprep.mubr.f32.mxu0 0.0
        %v2771 = vand.u32 %v2326, 4294901760
        %2772 = vmatmul.mubr.f32.gmra.mxu0 %v2771
        %v2773 = vpop.f32.mrf.mxu0
        %v2774 = vadd.f32 %v2702, %v2773
        %v2775 = vpop.f32.mrf.mxu0
        %2776 = vdwg.mxu0
        %v2778 = vsel %vm2324, %v2029, 0
        %v2781 = vsel %vm2324, %v2175, 0
        %2783 = vmatprep.subr.mxu0 0.0
        %2784 = vmatpush1.xpose.msra.mxu0 0.0
        %2785 = vmatprep.subr.mxu0 0.0
        %2786 = vmatpush1.xpose.msra.mxu0 0.0
        %2787 = vmatprep.subr.mxu0 0.0
        %2788 = vmatpush1.xpose.msra.mxu0 0.0
        %2789 = vmatprep.subr.mxu0 0.0
        %2790 = vmatpush1.xpose.msra.mxu0 0.0
        %2791 = vmatprep.subr.mxu0 0.0
        %2792 = vmatpush1.xpose.msra.mxu0 0.0
        %2793 = vmatprep.subr.mxu0 0.0
        %2794 = vmatpush1.xpose.msra.mxu0 0.0
        %2795 = vmatprep.subr.mxu0 0.0
        %2796 = vmatpush1.xpose.msra.mxu0 0.0
        %2797 = vmatprep.subr.mxu0 0.0
        %2798 = vmatpush1.xpose.msra.mxu0 0.0
        %2799 = vmatprep.subr.mxu0 0.0
        %2800 = vmatpush1.xpose.msra.mxu0 0.0
        %2801 = vmatprep.subr.mxu0 0.0
        %2802 = vmatpush1.xpose.msra.mxu0 0.0
        %2803 = vmatprep.subr.mxu0 0.0
        %2804 = vmatpush1.xpose.msra.mxu0 0.0
        %2805 = vmatprep.subr.mxu0 0.0
        %2806 = vmatpush1.xpose.msra.mxu0 0.0
        %2807 = vmatprep.subr.mxu0 0.0
        %2808 = vmatpush1.xpose.msra.mxu0 0.0
        %2809 = vmatprep.subr.mxu0 0.0
        %2810 = vmatpush1.xpose.msra.mxu0 0.0
        %2811 = vmatprep.subr.mxu0 0.0
        %2812 = vmatpush1.xpose.msra.mxu0 0.0
        %2813 = vmatprep.subr.mxu0 0.0
        %v2814 = vand.u32 %v2781, 4294901760
        %2815 = vmatpush1.xpose.msra.mxu0 %v2814
        %2816 = vmatprep.subr.mxu0 0.0
        %2817 = vmatpush2.xpose.msra.mxu0 0.0
        %2818 = vmatprep.subr.mxu0 0.0
        %2819 = vmatpush2.xpose.msra.mxu0 0.0
        %2820 = vmatprep.subr.mxu0 0.0
        %2821 = vmatpush2.xpose.msra.mxu0 0.0
        %2822 = vmatprep.subr.mxu0 0.0
        %2823 = vmatpush2.xpose.msra.mxu0 0.0
        %2824 = vmatprep.subr.mxu0 0.0
        %2825 = vmatpush2.xpose.msra.mxu0 0.0
        %2826 = vmatprep.subr.mxu0 0.0
        %2827 = vmatpush2.xpose.msra.mxu0 0.0
        %2828 = vmatprep.subr.mxu0 0.0
        %2829 = vmatpush2.xpose.msra.mxu0 0.0
        %2830 = vmatprep.subr.mxu0 0.0
        %2831 = vmatpush2.xpose.msra.mxu0 0.0
        %2832 = vmatprep.subr.mxu0 0.0
        %2833 = vmatpush2.xpose.msra.mxu0 0.0
        %2834 = vmatprep.subr.mxu0 0.0
        %2835 = vmatpush2.xpose.msra.mxu0 0.0
        %2836 = vmatprep.subr.mxu0 0.0
        %2837 = vmatpush2.xpose.msra.mxu0 0.0
        %2838 = vmatprep.subr.mxu0 0.0
        %2839 = vmatpush2.xpose.msra.mxu0 0.0
        %2840 = vmatprep.subr.mxu0 0.0
        %2841 = vmatpush2.xpose.msra.mxu0 0.0
        %2842 = vmatprep.subr.mxu0 0.0
        %2843 = vmatpush2.xpose.msra.mxu0 0.0
        %2844 = vmatprep.subr.mxu0 0.0
        %2845 = vmatpush2.xpose.msra.mxu0 0.0
        %2846 = vmatprep.subr.mxu0 0.0
        %2847 = vmatpush2.xpose.msra.mxu0 0.0
        %2848 = vmatprep.mubr.f32.mxu0 0.0
        %v2849 = vand.u32 %v2778, 4294901760
        %v2850 = vsub.f32 %v2778, %v2849
        %v2851 = vand.u32 %v2850, 4294901760
        %v2852 = vsub.f32 %v2850, %v2851
        %v2853 = vand.u32 %v2852, 4294901760
        %2854 = vmatmul.mubr.f32.gmra.mxu0 %v2853
        %v2855 = vpop.f32.mrf.mxu0
        %v2856 = vadd.f32 0.0, %v2855
        %v2857 = vpop.f32.mrf.mxu0
        %2858 = vdwg.mxu0
        %2859 = vmatprep.subr.mxu0 0.0
        %2860 = vmatpush1.xpose.msra.mxu0 0.0
        %2861 = vmatprep.subr.mxu0 0.0
        %2862 = vmatpush1.xpose.msra.mxu0 0.0
        %2863 = vmatprep.subr.mxu0 0.0
        %2864 = vmatpush1.xpose.msra.mxu0 0.0
        %2865 = vmatprep.subr.mxu0 0.0
        %2866 = vmatpush1.xpose.msra.mxu0 0.0
        %2867 = vmatprep.subr.mxu0 0.0
        %2868 = vmatpush1.xpose.msra.mxu0 0.0
        %2869 = vmatprep.subr.mxu0 0.0
        %2870 = vmatpush1.xpose.msra.mxu0 0.0
        %2871 = vmatprep.subr.mxu0 0.0
        %2872 = vmatpush1.xpose.msra.mxu0 0.0
        %2873 = vmatprep.subr.mxu0 0.0
        %2874 = vmatpush1.xpose.msra.mxu0 0.0
        %2875 = vmatprep.subr.mxu0 0.0
        %2876 = vmatpush1.xpose.msra.mxu0 0.0
        %2877 = vmatprep.subr.mxu0 0.0
        %2878 = vmatpush1.xpose.msra.mxu0 0.0
        %2879 = vmatprep.subr.mxu0 0.0
        %2880 = vmatpush1.xpose.msra.mxu0 0.0
        %2881 = vmatprep.subr.mxu0 0.0
        %2882 = vmatpush1.xpose.msra.mxu0 0.0
        %2883 = vmatprep.subr.mxu0 0.0
        %2884 = vmatpush1.xpose.msra.mxu0 0.0
        %2885 = vmatprep.subr.mxu0 0.0
        %2886 = vmatpush1.xpose.msra.mxu0 0.0
        %2887 = vmatprep.subr.mxu0 0.0
        %2888 = vmatpush1.xpose.msra.mxu0 0.0
        %2889 = vmatprep.subr.mxu0 0.0
        %v2890 = vand.u32 %v2781, 4294901760
        %v2891 = vsub.f32 %v2781, %v2890
        %v2892 = vand.u32 %v2891, 4294901760
        %v2893 = vsub.f32 %v2891, %v2892
        %v2894 = vand.u32 %v2893, 4294901760
        %2895 = vmatpush1.xpose.msra.mxu0 %v2894
        %2896 = vmatprep.subr.mxu0 0.0
        %2897 = vmatpush2.xpose.msra.mxu0 0.0
        %2898 = vmatprep.subr.mxu0 0.0
        %2899 = vmatpush2.xpose.msra.mxu0 0.0
        %2900 = vmatprep.subr.mxu0 0.0
        %2901 = vmatpush2.xpose.msra.mxu0 0.0
        %2902 = vmatprep.subr.mxu0 0.0
        %2903 = vmatpush2.xpose.msra.mxu0 0.0
        %2904 = vmatprep.subr.mxu0 0.0
        %2905 = vmatpush2.xpose.msra.mxu0 0.0
        %2906 = vmatprep.subr.mxu0 0.0
        %2907 = vmatpush2.xpose.msra.mxu0 0.0
        %2908 = vmatprep.subr.mxu0 0.0
        %2909 = vmatpush2.xpose.msra.mxu0 0.0
        %2910 = vmatprep.subr.mxu0 0.0
        %2911 = vmatpush2.xpose.msra.mxu0 0.0
        %2912 = vmatprep.subr.mxu0 0.0
        %2913 = vmatpush2.xpose.msra.mxu0 0.0
        %2914 = vmatprep.subr.mxu0 0.0
        %2915 = vmatpush2.xpose.msra.mxu0 0.0
        %2916 = vmatprep.subr.mxu0 0.0
        %2917 = vmatpush2.xpose.msra.mxu0 0.0
        %2918 = vmatprep.subr.mxu0 0.0
        %2919 = vmatpush2.xpose.msra.mxu0 0.0
        %2920 = vmatprep.subr.mxu0 0.0
        %2921 = vmatpush2.xpose.msra.mxu0 0.0
        %2922 = vmatprep.subr.mxu0 0.0
        %2923 = vmatpush2.xpose.msra.mxu0 0.0
        %2924 = vmatprep.subr.mxu0 0.0
        %2925 = vmatpush2.xpose.msra.mxu0 0.0
        %2926 = vmatprep.subr.mxu0 0.0
        %2927 = vmatpush2.xpose.msra.mxu0 0.0
        %2928 = vmatprep.mubr.f32.mxu0 0.0
        %v2929 = vand.u32 %v2778, 4294901760
        %2930 = vmatmul.mubr.f32.gmra.mxu0 %v2929
        %v2931 = vpop.f32.mrf.mxu0
        %v2932 = vadd.f32 %v2856, %v2931
        %v2933 = vpop.f32.mrf.mxu0
        %2934 = vdwg.mxu0
        %2935 = vmatprep.subr.mxu0 0.0
        %2936 = vmatpush1.xpose.msra.mxu0 0.0
        %2937 = vmatprep.subr.mxu0 0.0
        %2938 = vmatpush1.xpose.msra.mxu0 0.0
        %2939 = vmatprep.subr.mxu0 0.0
        %2940 = vmatpush1.xpose.msra.mxu0 0.0
        %2941 = vmatprep.subr.mxu0 0.0
        %2942 = vmatpush1.xpose.msra.mxu0 0.0
        %2943 = vmatprep.subr.mxu0 0.0
        %2944 = vmatpush1.xpose.msra.mxu0 0.0
        %2945 = vmatprep.subr.mxu0 0.0
        %2946 = vmatpush1.xpose.msra.mxu0 0.0
        %2947 = vmatprep.subr.mxu0 0.0
        %2948 = vmatpush1.xpose.msra.mxu0 0.0
        %2949 = vmatprep.subr.mxu0 0.0
        %2950 = vmatpush1.xpose.msra.mxu0 0.0
        %2951 = vmatprep.subr.mxu0 0.0
        %2952 = vmatpush1.xpose.msra.mxu0 0.0
        %2953 = vmatprep.subr.mxu0 0.0
        %2954 = vmatpush1.xpose.msra.mxu0 0.0
        %2955 = vmatprep.subr.mxu0 0.0
        %2956 = vmatpush1.xpose.msra.mxu0 0.0
        %2957 = vmatprep.subr.mxu0 0.0
        %2958 = vmatpush1.xpose.msra.mxu0 0.0
        %2959 = vmatprep.subr.mxu0 0.0
        %2960 = vmatpush1.xpose.msra.mxu0 0.0
        %2961 = vmatprep.subr.mxu0 0.0
        %2962 = vmatpush1.xpose.msra.mxu0 0.0
        %2963 = vmatprep.subr.mxu0 0.0
        %2964 = vmatpush1.xpose.msra.mxu0 0.0
        %2965 = vmatprep.subr.mxu0 0.0
        %v2966 = vand.u32 %v2781, 4294901760
        %v2967 = vsub.f32 %v2781, %v2966
        %2968 = vmatpush1.xpose.msra.mxu0 %v2967
        %2969 = vmatprep.subr.mxu0 0.0
        %2970 = vmatpush2.xpose.msra.mxu0 0.0
        %2971 = vmatprep.subr.mxu0 0.0
        %2972 = vmatpush2.xpose.msra.mxu0 0.0
        %2973 = vmatprep.subr.mxu0 0.0
        %2974 = vmatpush2.xpose.msra.mxu0 0.0
        %2975 = vmatprep.subr.mxu0 0.0
        %2976 = vmatpush2.xpose.msra.mxu0 0.0
        %2977 = vmatprep.subr.mxu0 0.0
        %2978 = vmatpush2.xpose.msra.mxu0 0.0
        %2979 = vmatprep.subr.mxu0 0.0
        %2980 = vmatpush2.xpose.msra.mxu0 0.0
        %2981 = vmatprep.subr.mxu0 0.0
        %2982 = vmatpush2.xpose.msra.mxu0 0.0
        %2983 = vmatprep.subr.mxu0 0.0
        %2984 = vmatpush2.xpose.msra.mxu0 0.0
        %2985 = vmatprep.subr.mxu0 0.0
        %2986 = vmatpush2.xpose.msra.mxu0 0.0
        %2987 = vmatprep.subr.mxu0 0.0
        %2988 = vmatpush2.xpose.msra.mxu0 0.0
        %2989 = vmatprep.subr.mxu0 0.0
        %2990 = vmatpush2.xpose.msra.mxu0 0.0
        %2991 = vmatprep.subr.mxu0 0.0
        %2992 = vmatpush2.xpose.msra.mxu0 0.0
        %2993 = vmatprep.subr.mxu0 0.0
        %2994 = vmatpush2.xpose.msra.mxu0 0.0
        %2995 = vmatprep.subr.mxu0 0.0
        %2996 = vmatpush2.xpose.msra.mxu0 0.0
        %2997 = vmatprep.subr.mxu0 0.0
        %2998 = vmatpush2.xpose.msra.mxu0 0.0
        %2999 = vmatprep.subr.mxu0 0.0
        %3000 = vmatpush2.xpose.msra.mxu0 0.0
        %3001 = vmatprep.mubr.f32.mxu0 0.0
        %v3002 = vand.u32 %v2778, 4294901760
        %v3003 = vsub.f32 %v2778, %v3002
        %3004 = vmatmul.mubr.f32.gmra.mxu0 %v3003
        %v3005 = vpop.f32.mrf.mxu0
        %v3006 = vadd.f32 %v2932, %v3005
        %v3007 = vpop.f32.mrf.mxu0
        %3008 = vdwg.mxu0
        %3009 = vmatprep.subr.mxu0 0.0
        %3010 = vmatpush1.xpose.msra.mxu0 0.0
        %3011 = vmatprep.subr.mxu0 0.0
        %3012 = vmatpush1.xpose.msra.mxu0 0.0
        %3013 = vmatprep.subr.mxu0 0.0
        %3014 = vmatpush1.xpose.msra.mxu0 0.0
        %3015 = vmatprep.subr.mxu0 0.0
        %3016 = vmatpush1.xpose.msra.mxu0 0.0
        %3017 = vmatprep.subr.mxu0 0.0
        %3018 = vmatpush1.xpose.msra.mxu0 0.0
        %3019 = vmatprep.subr.mxu0 0.0
        %3020 = vmatpush1.xpose.msra.mxu0 0.0
        %3021 = vmatprep.subr.mxu0 0.0
        %3022 = vmatpush1.xpose.msra.mxu0 0.0
        %3023 = vmatprep.subr.mxu0 0.0
        %3024 = vmatpush1.xpose.msra.mxu0 0.0
        %3025 = vmatprep.subr.mxu0 0.0
        %3026 = vmatpush1.xpose.msra.mxu0 0.0
        %3027 = vmatprep.subr.mxu0 0.0
        %3028 = vmatpush1.xpose.msra.mxu0 0.0
        %3029 = vmatprep.subr.mxu0 0.0
        %3030 = vmatpush1.xpose.msra.mxu0 0.0
        %3031 = vmatprep.subr.mxu0 0.0
        %3032 = vmatpush1.xpose.msra.mxu0 0.0
        %3033 = vmatprep.subr.mxu0 0.0
        %3034 = vmatpush1.xpose.msra.mxu0 0.0
        %3035 = vmatprep.subr.mxu0 0.0
        %3036 = vmatpush1.xpose.msra.mxu0 0.0
        %3037 = vmatprep.subr.mxu0 0.0
        %3038 = vmatpush1.xpose.msra.mxu0 0.0
        %3039 = vmatprep.subr.mxu0 0.0
        %v3040 = vand.u32 %v2781, 4294901760
        %3041 = vmatpush1.xpose.msra.mxu0 %v3040
        %3042 = vmatprep.subr.mxu0 0.0
        %3043 = vmatpush2.xpose.msra.mxu0 0.0
        %3044 = vmatprep.subr.mxu0 0.0
        %3045 = vmatpush2.xpose.msra.mxu0 0.0
        %3046 = vmatprep.subr.mxu0 0.0
        %3047 = vmatpush2.xpose.msra.mxu0 0.0
        %3048 = vmatprep.subr.mxu0 0.0
        %3049 = vmatpush2.xpose.msra.mxu0 0.0
        %3050 = vmatprep.subr.mxu0 0.0
        %3051 = vmatpush2.xpose.msra.mxu0 0.0
        %3052 = vmatprep.subr.mxu0 0.0
        %3053 = vmatpush2.xpose.msra.mxu0 0.0
        %3054 = vmatprep.subr.mxu0 0.0
        %3055 = vmatpush2.xpose.msra.mxu0 0.0
        %3056 = vmatprep.subr.mxu0 0.0
        %3057 = vmatpush2.xpose.msra.mxu0 0.0
        %3058 = vmatprep.subr.mxu0 0.0
        %3059 = vmatpush2.xpose.msra.mxu0 0.0
        %3060 = vmatprep.subr.mxu0 0.0
        %3061 = vmatpush2.xpose.msra.mxu0 0.0
        %3062 = vmatprep.subr.mxu0 0.0
        %3063 = vmatpush2.xpose.msra.mxu0 0.0
        %3064 = vmatprep.subr.mxu0 0.0
        %3065 = vmatpush2.xpose.msra.mxu0 0.0
        %3066 = vmatprep.subr.mxu0 0.0
        %3067 = vmatpush2.xpose.msra.mxu0 0.0
        %3068 = vmatprep.subr.mxu0 0.0
        %3069 = vmatpush2.xpose.msra.mxu0 0.0
        %3070 = vmatprep.subr.mxu0 0.0
        %3071 = vmatpush2.xpose.msra.mxu0 0.0
        %3072 = vmatprep.subr.mxu0 0.0
        %3073 = vmatpush2.xpose.msra.mxu0 0.0
        %3074 = vmatprep.mubr.f32.mxu0 0.0
        %v3075 = vand.u32 %v2778, 4294901760
        %v3076 = vsub.f32 %v2778, %v3075
        %v3077 = vand.u32 %v3076, 4294901760
        %3078 = vmatmul.mubr.f32.gmra.mxu0 %v3077
        %v3079 = vpop.f32.mrf.mxu0
        %v3080 = vadd.f32 %v3006, %v3079
        %v3081 = vpop.f32.mrf.mxu0
        %3082 = vdwg.mxu0
        %3083 = vmatprep.subr.mxu0 0.0
        %3084 = vmatpush1.xpose.msra.mxu0 0.0
        %3085 = vmatprep.subr.mxu0 0.0
        %3086 = vmatpush1.xpose.msra.mxu0 0.0
        %3087 = vmatprep.subr.mxu0 0.0
        %3088 = vmatpush1.xpose.msra.mxu0 0.0
        %3089 = vmatprep.subr.mxu0 0.0
        %3090 = vmatpush1.xpose.msra.mxu0 0.0
        %3091 = vmatprep.subr.mxu0 0.0
        %3092 = vmatpush1.xpose.msra.mxu0 0.0
        %3093 = vmatprep.subr.mxu0 0.0
        %3094 = vmatpush1.xpose.msra.mxu0 0.0
        %3095 = vmatprep.subr.mxu0 0.0
        %3096 = vmatpush1.xpose.msra.mxu0 0.0
        %3097 = vmatprep.subr.mxu0 0.0
        %3098 = vmatpush1.xpose.msra.mxu0 0.0
        %3099 = vmatprep.subr.mxu0 0.0
        %3100 = vmatpush1.xpose.msra.mxu0 0.0
        %3101 = vmatprep.subr.mxu0 0.0
        %3102 = vmatpush1.xpose.msra.mxu0 0.0
        %3103 = vmatprep.subr.mxu0 0.0
        %3104 = vmatpush1.xpose.msra.mxu0 0.0
        %3105 = vmatprep.subr.mxu0 0.0
        %3106 = vmatpush1.xpose.msra.mxu0 0.0
        %3107 = vmatprep.subr.mxu0 0.0
        %3108 = vmatpush1.xpose.msra.mxu0 0.0
        %3109 = vmatprep.subr.mxu0 0.0
        %3110 = vmatpush1.xpose.msra.mxu0 0.0
        %3111 = vmatprep.subr.mxu0 0.0
        %3112 = vmatpush1.xpose.msra.mxu0 0.0
        %3113 = vmatprep.subr.mxu0 0.0
        %v3114 = vand.u32 %v2781, 4294901760
        %v3115 = vsub.f32 %v2781, %v3114
        %v3116 = vand.u32 %v3115, 4294901760
        %3117 = vmatpush1.xpose.msra.mxu0 %v3116
        %3118 = vmatprep.subr.mxu0 0.0
        %3119 = vmatpush2.xpose.msra.mxu0 0.0
        %3120 = vmatprep.subr.mxu0 0.0
        %3121 = vmatpush2.xpose.msra.mxu0 0.0
        %3122 = vmatprep.subr.mxu0 0.0
        %3123 = vmatpush2.xpose.msra.mxu0 0.0
        %3124 = vmatprep.subr.mxu0 0.0
        %3125 = vmatpush2.xpose.msra.mxu0 0.0
        %3126 = vmatprep.subr.mxu0 0.0
        %3127 = vmatpush2.xpose.msra.mxu0 0.0
        %3128 = vmatprep.subr.mxu0 0.0
        %3129 = vmatpush2.xpose.msra.mxu0 0.0
        %3130 = vmatprep.subr.mxu0 0.0
        %3131 = vmatpush2.xpose.msra.mxu0 0.0
        %3132 = vmatprep.subr.mxu0 0.0
        %3133 = vmatpush2.xpose.msra.mxu0 0.0
        %3134 = vmatprep.subr.mxu0 0.0
        %3135 = vmatpush2.xpose.msra.mxu0 0.0
        %3136 = vmatprep.subr.mxu0 0.0
        %3137 = vmatpush2.xpose.msra.mxu0 0.0
        %3138 = vmatprep.subr.mxu0 0.0
        %3139 = vmatpush2.xpose.msra.mxu0 0.0
        %3140 = vmatprep.subr.mxu0 0.0
        %3141 = vmatpush2.xpose.msra.mxu0 0.0
        %3142 = vmatprep.subr.mxu0 0.0
        %3143 = vmatpush2.xpose.msra.mxu0 0.0
        %3144 = vmatprep.subr.mxu0 0.0
        %3145 = vmatpush2.xpose.msra.mxu0 0.0
        %3146 = vmatprep.subr.mxu0 0.0
        %3147 = vmatpush2.xpose.msra.mxu0 0.0
        %3148 = vmatprep.subr.mxu0 0.0
        %3149 = vmatpush2.xpose.msra.mxu0 0.0
        %3150 = vmatprep.mubr.f32.mxu0 0.0
        %v3151 = vand.u32 %v2778, 4294901760
        %3152 = vmatmul.mubr.f32.gmra.mxu0 %v3151
        %v3153 = vpop.f32.mrf.mxu0
        %v3154 = vadd.f32 %v3080, %v3153
        %v3155 = vpop.f32.mrf.mxu0
        %3156 = vdwg.mxu0
        %3157 = vmatprep.subr.mxu0 0.0
        %3158 = vmatpush1.xpose.msra.mxu0 0.0
        %3159 = vmatprep.subr.mxu0 0.0
        %3160 = vmatpush1.xpose.msra.mxu0 0.0
        %3161 = vmatprep.subr.mxu0 0.0
        %3162 = vmatpush1.xpose.msra.mxu0 0.0
        %3163 = vmatprep.subr.mxu0 0.0
        %3164 = vmatpush1.xpose.msra.mxu0 0.0
        %3165 = vmatprep.subr.mxu0 0.0
        %3166 = vmatpush1.xpose.msra.mxu0 0.0
        %3167 = vmatprep.subr.mxu0 0.0
        %3168 = vmatpush1.xpose.msra.mxu0 0.0
        %3169 = vmatprep.subr.mxu0 0.0
        %3170 = vmatpush1.xpose.msra.mxu0 0.0
        %3171 = vmatprep.subr.mxu0 0.0
        %3172 = vmatpush1.xpose.msra.mxu0 0.0
        %3173 = vmatprep.subr.mxu0 0.0
        %3174 = vmatpush1.xpose.msra.mxu0 0.0
        %3175 = vmatprep.subr.mxu0 0.0
        %3176 = vmatpush1.xpose.msra.mxu0 0.0
        %3177 = vmatprep.subr.mxu0 0.0
        %3178 = vmatpush1.xpose.msra.mxu0 0.0
        %3179 = vmatprep.subr.mxu0 0.0
        %3180 = vmatpush1.xpose.msra.mxu0 0.0
        %3181 = vmatprep.subr.mxu0 0.0
        %3182 = vmatpush1.xpose.msra.mxu0 0.0
        %3183 = vmatprep.subr.mxu0 0.0
        %3184 = vmatpush1.xpose.msra.mxu0 0.0
        %3185 = vmatprep.subr.mxu0 0.0
        %3186 = vmatpush1.xpose.msra.mxu0 0.0
        %3187 = vmatprep.subr.mxu0 0.0
        %v3188 = vand.u32 %v2781, 4294901760
        %3189 = vmatpush1.xpose.msra.mxu0 %v3188
        %3190 = vmatprep.subr.mxu0 0.0
        %3191 = vmatpush2.xpose.msra.mxu0 0.0
        %3192 = vmatprep.subr.mxu0 0.0
        %3193 = vmatpush2.xpose.msra.mxu0 0.0
        %3194 = vmatprep.subr.mxu0 0.0
        %3195 = vmatpush2.xpose.msra.mxu0 0.0
        %3196 = vmatprep.subr.mxu0 0.0
        %3197 = vmatpush2.xpose.msra.mxu0 0.0
        %3198 = vmatprep.subr.mxu0 0.0
        %3199 = vmatpush2.xpose.msra.mxu0 0.0
        %3200 = vmatprep.subr.mxu0 0.0
        %3201 = vmatpush2.xpose.msra.mxu0 0.0
        %3202 = vmatprep.subr.mxu0 0.0
        %3203 = vmatpush2.xpose.msra.mxu0 0.0
        %3204 = vmatprep.subr.mxu0 0.0
        %3205 = vmatpush2.xpose.msra.mxu0 0.0
        %3206 = vmatprep.subr.mxu0 0.0
        %3207 = vmatpush2.xpose.msra.mxu0 0.0
        %3208 = vmatprep.subr.mxu0 0.0
        %3209 = vmatpush2.xpose.msra.mxu0 0.0
        %3210 = vmatprep.subr.mxu0 0.0
        %3211 = vmatpush2.xpose.msra.mxu0 0.0
        %3212 = vmatprep.subr.mxu0 0.0
        %3213 = vmatpush2.xpose.msra.mxu0 0.0
        %3214 = vmatprep.subr.mxu0 0.0
        %3215 = vmatpush2.xpose.msra.mxu0 0.0
        %3216 = vmatprep.subr.mxu0 0.0
        %3217 = vmatpush2.xpose.msra.mxu0 0.0
        %3218 = vmatprep.subr.mxu0 0.0
        %3219 = vmatpush2.xpose.msra.mxu0 0.0
        %3220 = vmatprep.subr.mxu0 0.0
        %3221 = vmatpush2.xpose.msra.mxu0 0.0
        %3222 = vmatprep.mubr.f32.mxu0 0.0
        %v3223 = vand.u32 %v2778, 4294901760
        %3224 = vmatmul.mubr.f32.gmra.mxu0 %v3223
        %v3225 = vpop.f32.mrf.mxu0
        %v3226 = vadd.f32 %v3154, %v3225
        %v3227 = vpop.f32.mrf.mxu0
        %3228 = vdwg.mxu0
        %v3230 = vsel %vm2324, %v2030, 0
        %v3233 = vsel %vm2324, %v2176, 0
        %3235 = vmatprep.subr.mxu0 0.0
        %3236 = vmatpush1.xpose.msra.mxu0 0.0
        %3237 = vmatprep.subr.mxu0 0.0
        %3238 = vmatpush1.xpose.msra.mxu0 0.0
        %3239 = vmatprep.subr.mxu0 0.0
        %3240 = vmatpush1.xpose.msra.mxu0 0.0
        %3241 = vmatprep.subr.mxu0 0.0
        %3242 = vmatpush1.xpose.msra.mxu0 0.0
        %3243 = vmatprep.subr.mxu0 0.0
        %3244 = vmatpush1.xpose.msra.mxu0 0.0
        %3245 = vmatprep.subr.mxu0 0.0
        %3246 = vmatpush1.xpose.msra.mxu0 0.0
        %3247 = vmatprep.subr.mxu0 0.0
        %3248 = vmatpush1.xpose.msra.mxu0 0.0
        %3249 = vmatprep.subr.mxu0 0.0
        %3250 = vmatpush1.xpose.msra.mxu0 0.0
        %3251 = vmatprep.subr.mxu0 0.0
        %3252 = vmatpush1.xpose.msra.mxu0 0.0
        %3253 = vmatprep.subr.mxu0 0.0
        %3254 = vmatpush1.xpose.msra.mxu0 0.0
        %3255 = vmatprep.subr.mxu0 0.0
        %3256 = vmatpush1.xpose.msra.mxu0 0.0
        %3257 = vmatprep.subr.mxu0 0.0
        %3258 = vmatpush1.xpose.msra.mxu0 0.0
        %3259 = vmatprep.subr.mxu0 0.0
        %3260 = vmatpush1.xpose.msra.mxu0 0.0
        %3261 = vmatprep.subr.mxu0 0.0
        %3262 = vmatpush1.xpose.msra.mxu0 0.0
        %3263 = vmatprep.subr.mxu0 0.0
        %3264 = vmatpush1.xpose.msra.mxu0 0.0
        %3265 = vmatprep.subr.mxu0 0.0
        %v3266 = vand.u32 %v3233, 4294901760
        %3267 = vmatpush1.xpose.msra.mxu0 %v3266
        %3268 = vmatprep.subr.mxu0 0.0
        %3269 = vmatpush2.xpose.msra.mxu0 0.0
        %3270 = vmatprep.subr.mxu0 0.0
        %3271 = vmatpush2.xpose.msra.mxu0 0.0
        %3272 = vmatprep.subr.mxu0 0.0
        %3273 = vmatpush2.xpose.msra.mxu0 0.0
        %3274 = vmatprep.subr.mxu0 0.0
        %3275 = vmatpush2.xpose.msra.mxu0 0.0
        %3276 = vmatprep.subr.mxu0 0.0
        %3277 = vmatpush2.xpose.msra.mxu0 0.0
        %3278 = vmatprep.subr.mxu0 0.0
        %3279 = vmatpush2.xpose.msra.mxu0 0.0
        %3280 = vmatprep.subr.mxu0 0.0
        %3281 = vmatpush2.xpose.msra.mxu0 0.0
        %3282 = vmatprep.subr.mxu0 0.0
        %3283 = vmatpush2.xpose.msra.mxu0 0.0
        %3284 = vmatprep.subr.mxu0 0.0
        %3285 = vmatpush2.xpose.msra.mxu0 0.0
        %3286 = vmatprep.subr.mxu0 0.0
        %3287 = vmatpush2.xpose.msra.mxu0 0.0
        %3288 = vmatprep.subr.mxu0 0.0
        %3289 = vmatpush2.xpose.msra.mxu0 0.0
        %3290 = vmatprep.subr.mxu0 0.0
        %3291 = vmatpush2.xpose.msra.mxu0 0.0
        %3292 = vmatprep.subr.mxu0 0.0
        %3293 = vmatpush2.xpose.msra.mxu0 0.0
        %3294 = vmatprep.subr.mxu0 0.0
        %3295 = vmatpush2.xpose.msra.mxu0 0.0
        %3296 = vmatprep.subr.mxu0 0.0
        %3297 = vmatpush2.xpose.msra.mxu0 0.0
        %3298 = vmatprep.subr.mxu0 0.0
        %3299 = vmatpush2.xpose.msra.mxu0 0.0
        %3300 = vmatprep.mubr.f32.mxu0 0.0
        %v3301 = vand.u32 %v3230, 4294901760
        %v3302 = vsub.f32 %v3230, %v3301
        %v3303 = vand.u32 %v3302, 4294901760
        %v3304 = vsub.f32 %v3302, %v3303
        %v3305 = vand.u32 %v3304, 4294901760
        %3306 = vmatmul.mubr.f32.gmra.mxu0 %v3305
        %v3307 = vpop.f32.mrf.mxu0
        %v3308 = vadd.f32 0.0, %v3307
        %v3309 = vpop.f32.mrf.mxu0
        %3310 = vdwg.mxu0
        %3311 = vmatprep.subr.mxu0 0.0
        %3312 = vmatpush1.xpose.msra.mxu0 0.0
        %3313 = vmatprep.subr.mxu0 0.0
        %3314 = vmatpush1.xpose.msra.mxu0 0.0
        %3315 = vmatprep.subr.mxu0 0.0
        %3316 = vmatpush1.xpose.msra.mxu0 0.0
        %3317 = vmatprep.subr.mxu0 0.0
        %3318 = vmatpush1.xpose.msra.mxu0 0.0
        %3319 = vmatprep.subr.mxu0 0.0
        %3320 = vmatpush1.xpose.msra.mxu0 0.0
        %3321 = vmatprep.subr.mxu0 0.0
        %3322 = vmatpush1.xpose.msra.mxu0 0.0
        %3323 = vmatprep.subr.mxu0 0.0
        %3324 = vmatpush1.xpose.msra.mxu0 0.0
        %3325 = vmatprep.subr.mxu0 0.0
        %3326 = vmatpush1.xpose.msra.mxu0 0.0
        %3327 = vmatprep.subr.mxu0 0.0
        %3328 = vmatpush1.xpose.msra.mxu0 0.0
        %3329 = vmatprep.subr.mxu0 0.0
        %3330 = vmatpush1.xpose.msra.mxu0 0.0
        %3331 = vmatprep.subr.mxu0 0.0
        %3332 = vmatpush1.xpose.msra.mxu0 0.0
        %3333 = vmatprep.subr.mxu0 0.0
        %3334 = vmatpush1.xpose.msra.mxu0 0.0
        %3335 = vmatprep.subr.mxu0 0.0
        %3336 = vmatpush1.xpose.msra.mxu0 0.0
        %3337 = vmatprep.subr.mxu0 0.0
        %3338 = vmatpush1.xpose.msra.mxu0 0.0
        %3339 = vmatprep.subr.mxu0 0.0
        %3340 = vmatpush1.xpose.msra.mxu0 0.0
        %3341 = vmatprep.subr.mxu0 0.0
        %v3342 = vand.u32 %v3233, 4294901760
        %v3343 = vsub.f32 %v3233, %v3342
        %v3344 = vand.u32 %v3343, 4294901760
        %v3345 = vsub.f32 %v3343, %v3344
        %v3346 = vand.u32 %v3345, 4294901760
        %3347 = vmatpush1.xpose.msra.mxu0 %v3346
        %3348 = vmatprep.subr.mxu0 0.0
        %3349 = vmatpush2.xpose.msra.mxu0 0.0
        %3350 = vmatprep.subr.mxu0 0.0
        %3351 = vmatpush2.xpose.msra.mxu0 0.0
        %3352 = vmatprep.subr.mxu0 0.0
        %3353 = vmatpush2.xpose.msra.mxu0 0.0
        %3354 = vmatprep.subr.mxu0 0.0
        %3355 = vmatpush2.xpose.msra.mxu0 0.0
        %3356 = vmatprep.subr.mxu0 0.0
        %3357 = vmatpush2.xpose.msra.mxu0 0.0
        %3358 = vmatprep.subr.mxu0 0.0
        %3359 = vmatpush2.xpose.msra.mxu0 0.0
        %3360 = vmatprep.subr.mxu0 0.0
        %3361 = vmatpush2.xpose.msra.mxu0 0.0
        %3362 = vmatprep.subr.mxu0 0.0
        %3363 = vmatpush2.xpose.msra.mxu0 0.0
        %3364 = vmatprep.subr.mxu0 0.0
        %3365 = vmatpush2.xpose.msra.mxu0 0.0
        %3366 = vmatprep.subr.mxu0 0.0
        %3367 = vmatpush2.xpose.msra.mxu0 0.0
        %3368 = vmatprep.subr.mxu0 0.0
        %3369 = vmatpush2.xpose.msra.mxu0 0.0
        %3370 = vmatprep.subr.mxu0 0.0
        %3371 = vmatpush2.xpose.msra.mxu0 0.0
        %3372 = vmatprep.subr.mxu0 0.0
        %3373 = vmatpush2.xpose.msra.mxu0 0.0
        %3374 = vmatprep.subr.mxu0 0.0
        %3375 = vmatpush2.xpose.msra.mxu0 0.0
        %3376 = vmatprep.subr.mxu0 0.0
        %3377 = vmatpush2.xpose.msra.mxu0 0.0
        %3378 = vmatprep.subr.mxu0 0.0
        %3379 = vmatpush2.xpose.msra.mxu0 0.0
        %3380 = vmatprep.mubr.f32.mxu0 0.0
        %v3381 = vand.u32 %v3230, 4294901760
        %3382 = vmatmul.mubr.f32.gmra.mxu0 %v3381
        %v3383 = vpop.f32.mrf.mxu0
        %v3384 = vadd.f32 %v3308, %v3383
        %v3385 = vpop.f32.mrf.mxu0
        %3386 = vdwg.mxu0
        %3387 = vmatprep.subr.mxu0 0.0
        %3388 = vmatpush1.xpose.msra.mxu0 0.0
        %3389 = vmatprep.subr.mxu0 0.0
        %3390 = vmatpush1.xpose.msra.mxu0 0.0
        %3391 = vmatprep.subr.mxu0 0.0
        %3392 = vmatpush1.xpose.msra.mxu0 0.0
        %3393 = vmatprep.subr.mxu0 0.0
        %3394 = vmatpush1.xpose.msra.mxu0 0.0
        %3395 = vmatprep.subr.mxu0 0.0
        %3396 = vmatpush1.xpose.msra.mxu0 0.0
        %3397 = vmatprep.subr.mxu0 0.0
        %3398 = vmatpush1.xpose.msra.mxu0 0.0
        %3399 = vmatprep.subr.mxu0 0.0
        %3400 = vmatpush1.xpose.msra.mxu0 0.0
        %3401 = vmatprep.subr.mxu0 0.0
        %3402 = vmatpush1.xpose.msra.mxu0 0.0
        %3403 = vmatprep.subr.mxu0 0.0
        %3404 = vmatpush1.xpose.msra.mxu0 0.0
        %3405 = vmatprep.subr.mxu0 0.0
        %3406 = vmatpush1.xpose.msra.mxu0 0.0
        %3407 = vmatprep.subr.mxu0 0.0
        %3408 = vmatpush1.xpose.msra.mxu0 0.0
        %3409 = vmatprep.subr.mxu0 0.0
        %3410 = vmatpush1.xpose.msra.mxu0 0.0
        %3411 = vmatprep.subr.mxu0 0.0
        %3412 = vmatpush1.xpose.msra.mxu0 0.0
        %3413 = vmatprep.subr.mxu0 0.0
        %3414 = vmatpush1.xpose.msra.mxu0 0.0
        %3415 = vmatprep.subr.mxu0 0.0
        %3416 = vmatpush1.xpose.msra.mxu0 0.0
        %3417 = vmatprep.subr.mxu0 0.0
        %v3418 = vand.u32 %v3233, 4294901760
        %v3419 = vsub.f32 %v3233, %v3418
        %3420 = vmatpush1.xpose.msra.mxu0 %v3419
        %3421 = vmatprep.subr.mxu0 0.0
        %3422 = vmatpush2.xpose.msra.mxu0 0.0
        %3423 = vmatprep.subr.mxu0 0.0
        %3424 = vmatpush2.xpose.msra.mxu0 0.0
        %3425 = vmatprep.subr.mxu0 0.0
        %3426 = vmatpush2.xpose.msra.mxu0 0.0
        %3427 = vmatprep.subr.mxu0 0.0
        %3428 = vmatpush2.xpose.msra.mxu0 0.0
        %3429 = vmatprep.subr.mxu0 0.0
        %3430 = vmatpush2.xpose.msra.mxu0 0.0
        %3431 = vmatprep.subr.mxu0 0.0
        %3432 = vmatpush2.xpose.msra.mxu0 0.0
        %3433 = vmatprep.subr.mxu0 0.0
        %3434 = vmatpush2.xpose.msra.mxu0 0.0
        %3435 = vmatprep.subr.mxu0 0.0
        %3436 = vmatpush2.xpose.msra.mxu0 0.0
        %3437 = vmatprep.subr.mxu0 0.0
        %3438 = vmatpush2.xpose.msra.mxu0 0.0
        %3439 = vmatprep.subr.mxu0 0.0
        %3440 = vmatpush2.xpose.msra.mxu0 0.0
        %3441 = vmatprep.subr.mxu0 0.0
        %3442 = vmatpush2.xpose.msra.mxu0 0.0
        %3443 = vmatprep.subr.mxu0 0.0
        %3444 = vmatpush2.xpose.msra.mxu0 0.0
        %3445 = vmatprep.subr.mxu0 0.0
        %3446 = vmatpush2.xpose.msra.mxu0 0.0
        %3447 = vmatprep.subr.mxu0 0.0
        %3448 = vmatpush2.xpose.msra.mxu0 0.0
        %3449 = vmatprep.subr.mxu0 0.0
        %3450 = vmatpush2.xpose.msra.mxu0 0.0
        %3451 = vmatprep.subr.mxu0 0.0
        %3452 = vmatpush2.xpose.msra.mxu0 0.0
        %3453 = vmatprep.mubr.f32.mxu0 0.0
        %v3454 = vand.u32 %v3230, 4294901760
        %v3455 = vsub.f32 %v3230, %v3454
        %3456 = vmatmul.mubr.f32.gmra.mxu0 %v3455
        %v3457 = vpop.f32.mrf.mxu0
        %v3458 = vadd.f32 %v3384, %v3457
        %v3459 = vpop.f32.mrf.mxu0
        %3460 = vdwg.mxu0
        %3461 = vmatprep.subr.mxu0 0.0
        %3462 = vmatpush1.xpose.msra.mxu0 0.0
        %3463 = vmatprep.subr.mxu0 0.0
        %3464 = vmatpush1.xpose.msra.mxu0 0.0
        %3465 = vmatprep.subr.mxu0 0.0
        %3466 = vmatpush1.xpose.msra.mxu0 0.0
        %3467 = vmatprep.subr.mxu0 0.0
        %3468 = vmatpush1.xpose.msra.mxu0 0.0
        %3469 = vmatprep.subr.mxu0 0.0
        %3470 = vmatpush1.xpose.msra.mxu0 0.0
        %3471 = vmatprep.subr.mxu0 0.0
        %3472 = vmatpush1.xpose.msra.mxu0 0.0
        %3473 = vmatprep.subr.mxu0 0.0
        %3474 = vmatpush1.xpose.msra.mxu0 0.0
        %3475 = vmatprep.subr.mxu0 0.0
        %3476 = vmatpush1.xpose.msra.mxu0 0.0
        %3477 = vmatprep.subr.mxu0 0.0
        %3478 = vmatpush1.xpose.msra.mxu0 0.0
        %3479 = vmatprep.subr.mxu0 0.0
        %3480 = vmatpush1.xpose.msra.mxu0 0.0
        %3481 = vmatprep.subr.mxu0 0.0
        %3482 = vmatpush1.xpose.msra.mxu0 0.0
        %3483 = vmatprep.subr.mxu0 0.0
        %3484 = vmatpush1.xpose.msra.mxu0 0.0
        %3485 = vmatprep.subr.mxu0 0.0
        %3486 = vmatpush1.xpose.msra.mxu0 0.0
        %3487 = vmatprep.subr.mxu0 0.0
        %3488 = vmatpush1.xpose.msra.mxu0 0.0
        %3489 = vmatprep.subr.mxu0 0.0
        %3490 = vmatpush1.xpose.msra.mxu0 0.0
        %3491 = vmatprep.subr.mxu0 0.0
        %v3492 = vand.u32 %v3233, 4294901760
        %3493 = vmatpush1.xpose.msra.mxu0 %v3492
        %3494 = vmatprep.subr.mxu0 0.0
        %3495 = vmatpush2.xpose.msra.mxu0 0.0
        %3496 = vmatprep.subr.mxu0 0.0
        %3497 = vmatpush2.xpose.msra.mxu0 0.0
        %3498 = vmatprep.subr.mxu0 0.0
        %3499 = vmatpush2.xpose.msra.mxu0 0.0
        %3500 = vmatprep.subr.mxu0 0.0
        %3501 = vmatpush2.xpose.msra.mxu0 0.0
        %3502 = vmatprep.subr.mxu0 0.0
        %3503 = vmatpush2.xpose.msra.mxu0 0.0
        %3504 = vmatprep.subr.mxu0 0.0
        %3505 = vmatpush2.xpose.msra.mxu0 0.0
        %3506 = vmatprep.subr.mxu0 0.0
        %3507 = vmatpush2.xpose.msra.mxu0 0.0
        %3508 = vmatprep.subr.mxu0 0.0
        %3509 = vmatpush2.xpose.msra.mxu0 0.0
        %3510 = vmatprep.subr.mxu0 0.0
        %3511 = vmatpush2.xpose.msra.mxu0 0.0
        %3512 = vmatprep.subr.mxu0 0.0
        %3513 = vmatpush2.xpose.msra.mxu0 0.0
        %3514 = vmatprep.subr.mxu0 0.0
        %3515 = vmatpush2.xpose.msra.mxu0 0.0
        %3516 = vmatprep.subr.mxu0 0.0
        %3517 = vmatpush2.xpose.msra.mxu0 0.0
        %3518 = vmatprep.subr.mxu0 0.0
        %3519 = vmatpush2.xpose.msra.mxu0 0.0
        %3520 = vmatprep.subr.mxu0 0.0
        %3521 = vmatpush2.xpose.msra.mxu0 0.0
        %3522 = vmatprep.subr.mxu0 0.0
        %3523 = vmatpush2.xpose.msra.mxu0 0.0
        %3524 = vmatprep.subr.mxu0 0.0
        %3525 = vmatpush2.xpose.msra.mxu0 0.0
        %3526 = vmatprep.mubr.f32.mxu0 0.0
        %v3527 = vand.u32 %v3230, 4294901760
        %v3528 = vsub.f32 %v3230, %v3527
        %v3529 = vand.u32 %v3528, 4294901760
        %3530 = vmatmul.mubr.f32.gmra.mxu0 %v3529
        %v3531 = vpop.f32.mrf.mxu0
        %v3532 = vadd.f32 %v3458, %v3531
        %v3533 = vpop.f32.mrf.mxu0
        %3534 = vdwg.mxu0
        %3535 = vmatprep.subr.mxu0 0.0
        %3536 = vmatpush1.xpose.msra.mxu0 0.0
        %3537 = vmatprep.subr.mxu0 0.0
        %3538 = vmatpush1.xpose.msra.mxu0 0.0
        %3539 = vmatprep.subr.mxu0 0.0
        %3540 = vmatpush1.xpose.msra.mxu0 0.0
        %3541 = vmatprep.subr.mxu0 0.0
        %3542 = vmatpush1.xpose.msra.mxu0 0.0
        %3543 = vmatprep.subr.mxu0 0.0
        %3544 = vmatpush1.xpose.msra.mxu0 0.0
        %3545 = vmatprep.subr.mxu0 0.0
        %3546 = vmatpush1.xpose.msra.mxu0 0.0
        %3547 = vmatprep.subr.mxu0 0.0
        %3548 = vmatpush1.xpose.msra.mxu0 0.0
        %3549 = vmatprep.subr.mxu0 0.0
        %3550 = vmatpush1.xpose.msra.mxu0 0.0
        %3551 = vmatprep.subr.mxu0 0.0
        %3552 = vmatpush1.xpose.msra.mxu0 0.0
        %3553 = vmatprep.subr.mxu0 0.0
        %3554 = vmatpush1.xpose.msra.mxu0 0.0
        %3555 = vmatprep.subr.mxu0 0.0
        %3556 = vmatpush1.xpose.msra.mxu0 0.0
        %3557 = vmatprep.subr.mxu0 0.0
        %3558 = vmatpush1.xpose.msra.mxu0 0.0
        %3559 = vmatprep.subr.mxu0 0.0
        %3560 = vmatpush1.xpose.msra.mxu0 0.0
        %3561 = vmatprep.subr.mxu0 0.0
        %3562 = vmatpush1.xpose.msra.mxu0 0.0
        %3563 = vmatprep.subr.mxu0 0.0
        %3564 = vmatpush1.xpose.msra.mxu0 0.0
        %3565 = vmatprep.subr.mxu0 0.0
        %v3566 = vand.u32 %v3233, 4294901760
        %v3567 = vsub.f32 %v3233, %v3566
        %v3568 = vand.u32 %v3567, 4294901760
        %3569 = vmatpush1.xpose.msra.mxu0 %v3568
        %3570 = vmatprep.subr.mxu0 0.0
        %3571 = vmatpush2.xpose.msra.mxu0 0.0
        %3572 = vmatprep.subr.mxu0 0.0
        %3573 = vmatpush2.xpose.msra.mxu0 0.0
        %3574 = vmatprep.subr.mxu0 0.0
        %3575 = vmatpush2.xpose.msra.mxu0 0.0
        %3576 = vmatprep.subr.mxu0 0.0
        %3577 = vmatpush2.xpose.msra.mxu0 0.0
        %3578 = vmatprep.subr.mxu0 0.0
        %3579 = vmatpush2.xpose.msra.mxu0 0.0
        %3580 = vmatprep.subr.mxu0 0.0
        %3581 = vmatpush2.xpose.msra.mxu0 0.0
        %3582 = vmatprep.subr.mxu0 0.0
        %3583 = vmatpush2.xpose.msra.mxu0 0.0
        %3584 = vmatprep.subr.mxu0 0.0
        %3585 = vmatpush2.xpose.msra.mxu0 0.0
        %3586 = vmatprep.subr.mxu0 0.0
        %3587 = vmatpush2.xpose.msra.mxu0 0.0
        %3588 = vmatprep.subr.mxu0 0.0
        %3589 = vmatpush2.xpose.msra.mxu0 0.0
        %3590 = vmatprep.subr.mxu0 0.0
        %3591 = vmatpush2.xpose.msra.mxu0 0.0
        %3592 = vmatprep.subr.mxu0 0.0
        %3593 = vmatpush2.xpose.msra.mxu0 0.0
        %3594 = vmatprep.subr.mxu0 0.0
        %3595 = vmatpush2.xpose.msra.mxu0 0.0
        %3596 = vmatprep.subr.mxu0 0.0
        %3597 = vmatpush2.xpose.msra.mxu0 0.0
        %3598 = vmatprep.subr.mxu0 0.0
        %3599 = vmatpush2.xpose.msra.mxu0 0.0
        %3600 = vmatprep.subr.mxu0 0.0
        %3601 = vmatpush2.xpose.msra.mxu0 0.0
        %3602 = vmatprep.mubr.f32.mxu0 0.0
        %v3603 = vand.u32 %v3230, 4294901760
        %3604 = vmatmul.mubr.f32.gmra.mxu0 %v3603
        %v3605 = vpop.f32.mrf.mxu0
        %v3606 = vadd.f32 %v3532, %v3605
        %v3607 = vpop.f32.mrf.mxu0
        %3608 = vdwg.mxu0
        %3609 = vmatprep.subr.mxu0 0.0
        %3610 = vmatpush1.xpose.msra.mxu0 0.0
        %3611 = vmatprep.subr.mxu0 0.0
        %3612 = vmatpush1.xpose.msra.mxu0 0.0
        %3613 = vmatprep.subr.mxu0 0.0
        %3614 = vmatpush1.xpose.msra.mxu0 0.0
        %3615 = vmatprep.subr.mxu0 0.0
        %3616 = vmatpush1.xpose.msra.mxu0 0.0
        %3617 = vmatprep.subr.mxu0 0.0
        %3618 = vmatpush1.xpose.msra.mxu0 0.0
        %3619 = vmatprep.subr.mxu0 0.0
        %3620 = vmatpush1.xpose.msra.mxu0 0.0
        %3621 = vmatprep.subr.mxu0 0.0
        %3622 = vmatpush1.xpose.msra.mxu0 0.0
        %3623 = vmatprep.subr.mxu0 0.0
        %3624 = vmatpush1.xpose.msra.mxu0 0.0
        %3625 = vmatprep.subr.mxu0 0.0
        %3626 = vmatpush1.xpose.msra.mxu0 0.0
        %3627 = vmatprep.subr.mxu0 0.0
        %3628 = vmatpush1.xpose.msra.mxu0 0.0
        %3629 = vmatprep.subr.mxu0 0.0
        %3630 = vmatpush1.xpose.msra.mxu0 0.0
        %3631 = vmatprep.subr.mxu0 0.0
        %3632 = vmatpush1.xpose.msra.mxu0 0.0
        %3633 = vmatprep.subr.mxu0 0.0
        %3634 = vmatpush1.xpose.msra.mxu0 0.0
        %3635 = vmatprep.subr.mxu0 0.0
        %3636 = vmatpush1.xpose.msra.mxu0 0.0
        %3637 = vmatprep.subr.mxu0 0.0
        %3638 = vmatpush1.xpose.msra.mxu0 0.0
        %3639 = vmatprep.subr.mxu0 0.0
        %v3640 = vand.u32 %v3233, 4294901760
        %3641 = vmatpush1.xpose.msra.mxu0 %v3640
        %3642 = vmatprep.subr.mxu0 0.0
        %3643 = vmatpush2.xpose.msra.mxu0 0.0
        %3644 = vmatprep.subr.mxu0 0.0
        %3645 = vmatpush2.xpose.msra.mxu0 0.0
        %3646 = vmatprep.subr.mxu0 0.0
        %3647 = vmatpush2.xpose.msra.mxu0 0.0
        %3648 = vmatprep.subr.mxu0 0.0
        %3649 = vmatpush2.xpose.msra.mxu0 0.0
        %3650 = vmatprep.subr.mxu0 0.0
        %3651 = vmatpush2.xpose.msra.mxu0 0.0
        %3652 = vmatprep.subr.mxu0 0.0
        %3653 = vmatpush2.xpose.msra.mxu0 0.0
        %3654 = vmatprep.subr.mxu0 0.0
        %3655 = vmatpush2.xpose.msra.mxu0 0.0
        %3656 = vmatprep.subr.mxu0 0.0
        %3657 = vmatpush2.xpose.msra.mxu0 0.0
        %3658 = vmatprep.subr.mxu0 0.0
        %3659 = vmatpush2.xpose.msra.mxu0 0.0
        %3660 = vmatprep.subr.mxu0 0.0
        %3661 = vmatpush2.xpose.msra.mxu0 0.0
        %3662 = vmatprep.subr.mxu0 0.0
        %3663 = vmatpush2.xpose.msra.mxu0 0.0
        %3664 = vmatprep.subr.mxu0 0.0
        %3665 = vmatpush2.xpose.msra.mxu0 0.0
        %3666 = vmatprep.subr.mxu0 0.0
        %3667 = vmatpush2.xpose.msra.mxu0 0.0
        %3668 = vmatprep.subr.mxu0 0.0
        %3669 = vmatpush2.xpose.msra.mxu0 0.0
        %3670 = vmatprep.subr.mxu0 0.0
        %3671 = vmatpush2.xpose.msra.mxu0 0.0
        %3672 = vmatprep.subr.mxu0 0.0
        %3673 = vmatpush2.xpose.msra.mxu0 0.0
        %3674 = vmatprep.mubr.f32.mxu0 0.0
        %v3675 = vand.u32 %v3230, 4294901760
        %3676 = vmatmul.mubr.f32.gmra.mxu0 %v3675
        %v3677 = vpop.f32.mrf.mxu0
        %v3678 = vadd.f32 %v3606, %v3677
        %v3679 = vpop.f32.mrf.mxu0
        %3680 = vdwg.mxu0
        %v3682 = vsel %vm2324, %v2031, 0
        %v3685 = vsel %vm2324, %v2177, 0
        %3687 = vmatprep.subr.mxu0 0.0
        %3688 = vmatpush1.xpose.msra.mxu0 0.0
        %3689 = vmatprep.subr.mxu0 0.0
        %3690 = vmatpush1.xpose.msra.mxu0 0.0
        %3691 = vmatprep.subr.mxu0 0.0
        %3692 = vmatpush1.xpose.msra.mxu0 0.0
        %3693 = vmatprep.subr.mxu0 0.0
        %3694 = vmatpush1.xpose.msra.mxu0 0.0
        %3695 = vmatprep.subr.mxu0 0.0
        %3696 = vmatpush1.xpose.msra.mxu0 0.0
        %3697 = vmatprep.subr.mxu0 0.0
        %3698 = vmatpush1.xpose.msra.mxu0 0.0
        %3699 = vmatprep.subr.mxu0 0.0
        %3700 = vmatpush1.xpose.msra.mxu0 0.0
        %3701 = vmatprep.subr.mxu0 0.0
        %3702 = vmatpush1.xpose.msra.mxu0 0.0
        %3703 = vmatprep.subr.mxu0 0.0
        %3704 = vmatpush1.xpose.msra.mxu0 0.0
        %3705 = vmatprep.subr.mxu0 0.0
        %3706 = vmatpush1.xpose.msra.mxu0 0.0
        %3707 = vmatprep.subr.mxu0 0.0
        %3708 = vmatpush1.xpose.msra.mxu0 0.0
        %3709 = vmatprep.subr.mxu0 0.0
        %3710 = vmatpush1.xpose.msra.mxu0 0.0
        %3711 = vmatprep.subr.mxu0 0.0
        %3712 = vmatpush1.xpose.msra.mxu0 0.0
        %3713 = vmatprep.subr.mxu0 0.0
        %3714 = vmatpush1.xpose.msra.mxu0 0.0
        %3715 = vmatprep.subr.mxu0 0.0
        %3716 = vmatpush1.xpose.msra.mxu0 0.0
        %3717 = vmatprep.subr.mxu0 0.0
        %v3718 = vand.u32 %v3685, 4294901760
        %3719 = vmatpush1.xpose.msra.mxu0 %v3718
        %3720 = vmatprep.subr.mxu0 0.0
        %3721 = vmatpush2.xpose.msra.mxu0 0.0
        %3722 = vmatprep.subr.mxu0 0.0
        %3723 = vmatpush2.xpose.msra.mxu0 0.0
        %3724 = vmatprep.subr.mxu0 0.0
        %3725 = vmatpush2.xpose.msra.mxu0 0.0
        %3726 = vmatprep.subr.mxu0 0.0
        %3727 = vmatpush2.xpose.msra.mxu0 0.0
        %3728 = vmatprep.subr.mxu0 0.0
        %3729 = vmatpush2.xpose.msra.mxu0 0.0
        %3730 = vmatprep.subr.mxu0 0.0
        %3731 = vmatpush2.xpose.msra.mxu0 0.0
        %3732 = vmatprep.subr.mxu0 0.0
        %3733 = vmatpush2.xpose.msra.mxu0 0.0
        %3734 = vmatprep.subr.mxu0 0.0
        %3735 = vmatpush2.xpose.msra.mxu0 0.0
        %3736 = vmatprep.subr.mxu0 0.0
        %3737 = vmatpush2.xpose.msra.mxu0 0.0
        %3738 = vmatprep.subr.mxu0 0.0
        %3739 = vmatpush2.xpose.msra.mxu0 0.0
        %3740 = vmatprep.subr.mxu0 0.0
        %3741 = vmatpush2.xpose.msra.mxu0 0.0
        %3742 = vmatprep.subr.mxu0 0.0
        %3743 = vmatpush2.xpose.msra.mxu0 0.0
        %3744 = vmatprep.subr.mxu0 0.0
        %3745 = vmatpush2.xpose.msra.mxu0 0.0
        %3746 = vmatprep.subr.mxu0 0.0
        %3747 = vmatpush2.xpose.msra.mxu0 0.0
        %3748 = vmatprep.subr.mxu0 0.0
        %3749 = vmatpush2.xpose.msra.mxu0 0.0
        %3750 = vmatprep.subr.mxu0 0.0
        %3751 = vmatpush2.xpose.msra.mxu0 0.0
        %3752 = vmatprep.mubr.f32.mxu0 0.0
        %v3753 = vand.u32 %v3682, 4294901760
        %v3754 = vsub.f32 %v3682, %v3753
        %v3755 = vand.u32 %v3754, 4294901760
        %v3756 = vsub.f32 %v3754, %v3755
        %v3757 = vand.u32 %v3756, 4294901760
        %3758 = vmatmul.mubr.f32.gmra.mxu0 %v3757
        %v3759 = vpop.f32.mrf.mxu0
        %v3760 = vadd.f32 0.0, %v3759
        %v3761 = vpop.f32.mrf.mxu0
        %3762 = vdwg.mxu0
        %3763 = vmatprep.subr.mxu0 0.0
        %3764 = vmatpush1.xpose.msra.mxu0 0.0
        %3765 = vmatprep.subr.mxu0 0.0
        %3766 = vmatpush1.xpose.msra.mxu0 0.0
        %3767 = vmatprep.subr.mxu0 0.0
        %3768 = vmatpush1.xpose.msra.mxu0 0.0
        %3769 = vmatprep.subr.mxu0 0.0
        %3770 = vmatpush1.xpose.msra.mxu0 0.0
        %3771 = vmatprep.subr.mxu0 0.0
        %3772 = vmatpush1.xpose.msra.mxu0 0.0
        %3773 = vmatprep.subr.mxu0 0.0
        %3774 = vmatpush1.xpose.msra.mxu0 0.0
        %3775 = vmatprep.subr.mxu0 0.0
        %3776 = vmatpush1.xpose.msra.mxu0 0.0
        %3777 = vmatprep.subr.mxu0 0.0
        %3778 = vmatpush1.xpose.msra.mxu0 0.0
        %3779 = vmatprep.subr.mxu0 0.0
        %3780 = vmatpush1.xpose.msra.mxu0 0.0
        %3781 = vmatprep.subr.mxu0 0.0
        %3782 = vmatpush1.xpose.msra.mxu0 0.0
        %3783 = vmatprep.subr.mxu0 0.0
        %3784 = vmatpush1.xpose.msra.mxu0 0.0
        %3785 = vmatprep.subr.mxu0 0.0
        %3786 = vmatpush1.xpose.msra.mxu0 0.0
        %3787 = vmatprep.subr.mxu0 0.0
        %3788 = vmatpush1.xpose.msra.mxu0 0.0
        %3789 = vmatprep.subr.mxu0 0.0
        %3790 = vmatpush1.xpose.msra.mxu0 0.0
        %3791 = vmatprep.subr.mxu0 0.0
        %3792 = vmatpush1.xpose.msra.mxu0 0.0
        %3793 = vmatprep.subr.mxu0 0.0
        %v3794 = vand.u32 %v3685, 4294901760
        %v3795 = vsub.f32 %v3685, %v3794
        %v3796 = vand.u32 %v3795, 4294901760
        %v3797 = vsub.f32 %v3795, %v3796
        %v3798 = vand.u32 %v3797, 4294901760
        %3799 = vmatpush1.xpose.msra.mxu0 %v3798
        %3800 = vmatprep.subr.mxu0 0.0
        %3801 = vmatpush2.xpose.msra.mxu0 0.0
        %3802 = vmatprep.subr.mxu0 0.0
        %3803 = vmatpush2.xpose.msra.mxu0 0.0
        %3804 = vmatprep.subr.mxu0 0.0
        %3805 = vmatpush2.xpose.msra.mxu0 0.0
        %3806 = vmatprep.subr.mxu0 0.0
        %3807 = vmatpush2.xpose.msra.mxu0 0.0
        %3808 = vmatprep.subr.mxu0 0.0
        %3809 = vmatpush2.xpose.msra.mxu0 0.0
        %3810 = vmatprep.subr.mxu0 0.0
        %3811 = vmatpush2.xpose.msra.mxu0 0.0
        %3812 = vmatprep.subr.mxu0 0.0
        %3813 = vmatpush2.xpose.msra.mxu0 0.0
        %3814 = vmatprep.subr.mxu0 0.0
        %3815 = vmatpush2.xpose.msra.mxu0 0.0
        %3816 = vmatprep.subr.mxu0 0.0
        %3817 = vmatpush2.xpose.msra.mxu0 0.0
        %3818 = vmatprep.subr.mxu0 0.0
        %3819 = vmatpush2.xpose.msra.mxu0 0.0
        %3820 = vmatprep.subr.mxu0 0.0
        %3821 = vmatpush2.xpose.msra.mxu0 0.0
        %3822 = vmatprep.subr.mxu0 0.0
        %3823 = vmatpush2.xpose.msra.mxu0 0.0
        %3824 = vmatprep.subr.mxu0 0.0
        %3825 = vmatpush2.xpose.msra.mxu0 0.0
        %3826 = vmatprep.subr.mxu0 0.0
        %3827 = vmatpush2.xpose.msra.mxu0 0.0
        %3828 = vmatprep.subr.mxu0 0.0
        %3829 = vmatpush2.xpose.msra.mxu0 0.0
        %3830 = vmatprep.subr.mxu0 0.0
        %3831 = vmatpush2.xpose.msra.mxu0 0.0
        %3832 = vmatprep.mubr.f32.mxu0 0.0
        %v3833 = vand.u32 %v3682, 4294901760
        %3834 = vmatmul.mubr.f32.gmra.mxu0 %v3833
        %v3835 = vpop.f32.mrf.mxu0
        %v3836 = vadd.f32 %v3760, %v3835
        %v3837 = vpop.f32.mrf.mxu0
        %3838 = vdwg.mxu0
        %3839 = vmatprep.subr.mxu0 0.0
        %3840 = vmatpush1.xpose.msra.mxu0 0.0
        %3841 = vmatprep.subr.mxu0 0.0
        %3842 = vmatpush1.xpose.msra.mxu0 0.0
        %3843 = vmatprep.subr.mxu0 0.0
        %3844 = vmatpush1.xpose.msra.mxu0 0.0
        %3845 = vmatprep.subr.mxu0 0.0
        %3846 = vmatpush1.xpose.msra.mxu0 0.0
        %3847 = vmatprep.subr.mxu0 0.0
        %3848 = vmatpush1.xpose.msra.mxu0 0.0
        %3849 = vmatprep.subr.mxu0 0.0
        %3850 = vmatpush1.xpose.msra.mxu0 0.0
        %3851 = vmatprep.subr.mxu0 0.0
        %3852 = vmatpush1.xpose.msra.mxu0 0.0
        %3853 = vmatprep.subr.mxu0 0.0
        %3854 = vmatpush1.xpose.msra.mxu0 0.0
        %3855 = vmatprep.subr.mxu0 0.0
        %3856 = vmatpush1.xpose.msra.mxu0 0.0
        %3857 = vmatprep.subr.mxu0 0.0
        %3858 = vmatpush1.xpose.msra.mxu0 0.0
        %3859 = vmatprep.subr.mxu0 0.0
        %3860 = vmatpush1.xpose.msra.mxu0 0.0
        %3861 = vmatprep.subr.mxu0 0.0
        %3862 = vmatpush1.xpose.msra.mxu0 0.0
        %3863 = vmatprep.subr.mxu0 0.0
        %3864 = vmatpush1.xpose.msra.mxu0 0.0
        %3865 = vmatprep.subr.mxu0 0.0
        %3866 = vmatpush1.xpose.msra.mxu0 0.0
        %3867 = vmatprep.subr.mxu0 0.0
        %3868 = vmatpush1.xpose.msra.mxu0 0.0
        %3869 = vmatprep.subr.mxu0 0.0
        %v3870 = vand.u32 %v3685, 4294901760
        %v3871 = vsub.f32 %v3685, %v3870
        %3872 = vmatpush1.xpose.msra.mxu0 %v3871
        %3873 = vmatprep.subr.mxu0 0.0
        %3874 = vmatpush2.xpose.msra.mxu0 0.0
        %3875 = vmatprep.subr.mxu0 0.0
        %3876 = vmatpush2.xpose.msra.mxu0 0.0
        %3877 = vmatprep.subr.mxu0 0.0
        %3878 = vmatpush2.xpose.msra.mxu0 0.0
        %3879 = vmatprep.subr.mxu0 0.0
        %3880 = vmatpush2.xpose.msra.mxu0 0.0
        %3881 = vmatprep.subr.mxu0 0.0
        %3882 = vmatpush2.xpose.msra.mxu0 0.0
        %3883 = vmatprep.subr.mxu0 0.0
        %3884 = vmatpush2.xpose.msra.mxu0 0.0
        %3885 = vmatprep.subr.mxu0 0.0
        %3886 = vmatpush2.xpose.msra.mxu0 0.0
        %3887 = vmatprep.subr.mxu0 0.0
        %3888 = vmatpush2.xpose.msra.mxu0 0.0
        %3889 = vmatprep.subr.mxu0 0.0
        %3890 = vmatpush2.xpose.msra.mxu0 0.0
        %3891 = vmatprep.subr.mxu0 0.0
        %3892 = vmatpush2.xpose.msra.mxu0 0.0
        %3893 = vmatprep.subr.mxu0 0.0
        %3894 = vmatpush2.xpose.msra.mxu0 0.0
        %3895 = vmatprep.subr.mxu0 0.0
        %3896 = vmatpush2.xpose.msra.mxu0 0.0
        %3897 = vmatprep.subr.mxu0 0.0
        %3898 = vmatpush2.xpose.msra.mxu0 0.0
        %3899 = vmatprep.subr.mxu0 0.0
        %3900 = vmatpush2.xpose.msra.mxu0 0.0
        %3901 = vmatprep.subr.mxu0 0.0
        %3902 = vmatpush2.xpose.msra.mxu0 0.0
        %3903 = vmatprep.subr.mxu0 0.0
        %3904 = vmatpush2.xpose.msra.mxu0 0.0
        %3905 = vmatprep.mubr.f32.mxu0 0.0
        %v3906 = vand.u32 %v3682, 4294901760
        %v3907 = vsub.f32 %v3682, %v3906
        %3908 = vmatmul.mubr.f32.gmra.mxu0 %v3907
        %v3909 = vpop.f32.mrf.mxu0
        %v3910 = vadd.f32 %v3836, %v3909
        %v3911 = vpop.f32.mrf.mxu0
        %3912 = vdwg.mxu0
        %3913 = vmatprep.subr.mxu0 0.0
        %3914 = vmatpush1.xpose.msra.mxu0 0.0
        %3915 = vmatprep.subr.mxu0 0.0
        %3916 = vmatpush1.xpose.msra.mxu0 0.0
        %3917 = vmatprep.subr.mxu0 0.0
        %3918 = vmatpush1.xpose.msra.mxu0 0.0
        %3919 = vmatprep.subr.mxu0 0.0
        %3920 = vmatpush1.xpose.msra.mxu0 0.0
        %3921 = vmatprep.subr.mxu0 0.0
        %3922 = vmatpush1.xpose.msra.mxu0 0.0
        %3923 = vmatprep.subr.mxu0 0.0
        %3924 = vmatpush1.xpose.msra.mxu0 0.0
        %3925 = vmatprep.subr.mxu0 0.0
        %3926 = vmatpush1.xpose.msra.mxu0 0.0
        %3927 = vmatprep.subr.mxu0 0.0
        %3928 = vmatpush1.xpose.msra.mxu0 0.0
        %3929 = vmatprep.subr.mxu0 0.0
        %3930 = vmatpush1.xpose.msra.mxu0 0.0
        %3931 = vmatprep.subr.mxu0 0.0
        %3932 = vmatpush1.xpose.msra.mxu0 0.0
        %3933 = vmatprep.subr.mxu0 0.0
        %3934 = vmatpush1.xpose.msra.mxu0 0.0
        %3935 = vmatprep.subr.mxu0 0.0
        %3936 = vmatpush1.xpose.msra.mxu0 0.0
        %3937 = vmatprep.subr.mxu0 0.0
        %3938 = vmatpush1.xpose.msra.mxu0 0.0
        %3939 = vmatprep.subr.mxu0 0.0
        %3940 = vmatpush1.xpose.msra.mxu0 0.0
        %3941 = vmatprep.subr.mxu0 0.0
        %3942 = vmatpush1.xpose.msra.mxu0 0.0
        %3943 = vmatprep.subr.mxu0 0.0
        %v3944 = vand.u32 %v3685, 4294901760
        %3945 = vmatpush1.xpose.msra.mxu0 %v3944
        %3946 = vmatprep.subr.mxu0 0.0
        %3947 = vmatpush2.xpose.msra.mxu0 0.0
        %3948 = vmatprep.subr.mxu0 0.0
        %3949 = vmatpush2.xpose.msra.mxu0 0.0
        %3950 = vmatprep.subr.mxu0 0.0
        %3951 = vmatpush2.xpose.msra.mxu0 0.0
        %3952 = vmatprep.subr.mxu0 0.0
        %3953 = vmatpush2.xpose.msra.mxu0 0.0
        %3954 = vmatprep.subr.mxu0 0.0
        %3955 = vmatpush2.xpose.msra.mxu0 0.0
        %3956 = vmatprep.subr.mxu0 0.0
        %3957 = vmatpush2.xpose.msra.mxu0 0.0
        %3958 = vmatprep.subr.mxu0 0.0
        %3959 = vmatpush2.xpose.msra.mxu0 0.0
        %3960 = vmatprep.subr.mxu0 0.0
        %3961 = vmatpush2.xpose.msra.mxu0 0.0
        %3962 = vmatprep.subr.mxu0 0.0
        %3963 = vmatpush2.xpose.msra.mxu0 0.0
        %3964 = vmatprep.subr.mxu0 0.0
        %3965 = vmatpush2.xpose.msra.mxu0 0.0
        %3966 = vmatprep.subr.mxu0 0.0
        %3967 = vmatpush2.xpose.msra.mxu0 0.0
        %3968 = vmatprep.subr.mxu0 0.0
        %3969 = vmatpush2.xpose.msra.mxu0 0.0
        %3970 = vmatprep.subr.mxu0 0.0
        %3971 = vmatpush2.xpose.msra.mxu0 0.0
        %3972 = vmatprep.subr.mxu0 0.0
        %3973 = vmatpush2.xpose.msra.mxu0 0.0
        %3974 = vmatprep.subr.mxu0 0.0
        %3975 = vmatpush2.xpose.msra.mxu0 0.0
        %3976 = vmatprep.subr.mxu0 0.0
        %3977 = vmatpush2.xpose.msra.mxu0 0.0
        %3978 = vmatprep.mubr.f32.mxu0 0.0
        %v3979 = vand.u32 %v3682, 4294901760
        %v3980 = vsub.f32 %v3682, %v3979
        %v3981 = vand.u32 %v3980, 4294901760
        %3982 = vmatmul.mubr.f32.gmra.mxu0 %v3981
        %v3983 = vpop.f32.mrf.mxu0
        %v3984 = vadd.f32 %v3910, %v3983
        %v3985 = vpop.f32.mrf.mxu0
        %3986 = vdwg.mxu0
        %3987 = vmatprep.subr.mxu0 0.0
        %3988 = vmatpush1.xpose.msra.mxu0 0.0
        %3989 = vmatprep.subr.mxu0 0.0
        %3990 = vmatpush1.xpose.msra.mxu0 0.0
        %3991 = vmatprep.subr.mxu0 0.0
        %3992 = vmatpush1.xpose.msra.mxu0 0.0
        %3993 = vmatprep.subr.mxu0 0.0
        %3994 = vmatpush1.xpose.msra.mxu0 0.0
        %3995 = vmatprep.subr.mxu0 0.0
        %3996 = vmatpush1.xpose.msra.mxu0 0.0
        %3997 = vmatprep.subr.mxu0 0.0
        %3998 = vmatpush1.xpose.msra.mxu0 0.0
        %3999 = vmatprep.subr.mxu0 0.0
        %4000 = vmatpush1.xpose.msra.mxu0 0.0
        %4001 = vmatprep.subr.mxu0 0.0
        %4002 = vmatpush1.xpose.msra.mxu0 0.0
        %4003 = vmatprep.subr.mxu0 0.0
        %4004 = vmatpush1.xpose.msra.mxu0 0.0
        %4005 = vmatprep.subr.mxu0 0.0
        %4006 = vmatpush1.xpose.msra.mxu0 0.0
        %4007 = vmatprep.subr.mxu0 0.0
        %4008 = vmatpush1.xpose.msra.mxu0 0.0
        %4009 = vmatprep.subr.mxu0 0.0
        %4010 = vmatpush1.xpose.msra.mxu0 0.0
        %4011 = vmatprep.subr.mxu0 0.0
        %4012 = vmatpush1.xpose.msra.mxu0 0.0
        %4013 = vmatprep.subr.mxu0 0.0
        %4014 = vmatpush1.xpose.msra.mxu0 0.0
        %4015 = vmatprep.subr.mxu0 0.0
        %4016 = vmatpush1.xpose.msra.mxu0 0.0
        %4017 = vmatprep.subr.mxu0 0.0
        %v4018 = vand.u32 %v3685, 4294901760
        %v4019 = vsub.f32 %v3685, %v4018
        %v4020 = vand.u32 %v4019, 4294901760
        %4021 = vmatpush1.xpose.msra.mxu0 %v4020
        %4022 = vmatprep.subr.mxu0 0.0
        %4023 = vmatpush2.xpose.msra.mxu0 0.0
        %4024 = vmatprep.subr.mxu0 0.0
        %4025 = vmatpush2.xpose.msra.mxu0 0.0
        %4026 = vmatprep.subr.mxu0 0.0
        %4027 = vmatpush2.xpose.msra.mxu0 0.0
        %4028 = vmatprep.subr.mxu0 0.0
        %4029 = vmatpush2.xpose.msra.mxu0 0.0
        %4030 = vmatprep.subr.mxu0 0.0
        %4031 = vmatpush2.xpose.msra.mxu0 0.0
        %4032 = vmatprep.subr.mxu0 0.0
        %4033 = vmatpush2.xpose.msra.mxu0 0.0
        %4034 = vmatprep.subr.mxu0 0.0
        %4035 = vmatpush2.xpose.msra.mxu0 0.0
        %4036 = vmatprep.subr.mxu0 0.0
        %4037 = vmatpush2.xpose.msra.mxu0 0.0
        %4038 = vmatprep.subr.mxu0 0.0
        %4039 = vmatpush2.xpose.msra.mxu0 0.0
        %4040 = vmatprep.subr.mxu0 0.0
        %4041 = vmatpush2.xpose.msra.mxu0 0.0
        %4042 = vmatprep.subr.mxu0 0.0
        %4043 = vmatpush2.xpose.msra.mxu0 0.0
        %4044 = vmatprep.subr.mxu0 0.0
        %4045 = vmatpush2.xpose.msra.mxu0 0.0
        %4046 = vmatprep.subr.mxu0 0.0
        %4047 = vmatpush2.xpose.msra.mxu0 0.0
        %4048 = vmatprep.subr.mxu0 0.0
        %4049 = vmatpush2.xpose.msra.mxu0 0.0
        %4050 = vmatprep.subr.mxu0 0.0
        %4051 = vmatpush2.xpose.msra.mxu0 0.0
        %4052 = vmatprep.subr.mxu0 0.0
        %4053 = vmatpush2.xpose.msra.mxu0 0.0
        %4054 = vmatprep.mubr.f32.mxu0 0.0
        %v4055 = vand.u32 %v3682, 4294901760
        %4056 = vmatmul.mubr.f32.gmra.mxu0 %v4055
        %v4057 = vpop.f32.mrf.mxu0
        %v4058 = vadd.f32 %v3984, %v4057
        %v4059 = vpop.f32.mrf.mxu0
        %4060 = vdwg.mxu0
        %4061 = vmatprep.subr.mxu0 0.0
        %4062 = vmatpush1.xpose.msra.mxu0 0.0
        %4063 = vmatprep.subr.mxu0 0.0
        %4064 = vmatpush1.xpose.msra.mxu0 0.0
        %4065 = vmatprep.subr.mxu0 0.0
        %4066 = vmatpush1.xpose.msra.mxu0 0.0
        %4067 = vmatprep.subr.mxu0 0.0
        %4068 = vmatpush1.xpose.msra.mxu0 0.0
        %4069 = vmatprep.subr.mxu0 0.0
        %4070 = vmatpush1.xpose.msra.mxu0 0.0
        %4071 = vmatprep.subr.mxu0 0.0
        %4072 = vmatpush1.xpose.msra.mxu0 0.0
        %4073 = vmatprep.subr.mxu0 0.0
        %4074 = vmatpush1.xpose.msra.mxu0 0.0
        %4075 = vmatprep.subr.mxu0 0.0
        %4076 = vmatpush1.xpose.msra.mxu0 0.0
        %4077 = vmatprep.subr.mxu0 0.0
        %4078 = vmatpush1.xpose.msra.mxu0 0.0
        %4079 = vmatprep.subr.mxu0 0.0
        %4080 = vmatpush1.xpose.msra.mxu0 0.0
        %4081 = vmatprep.subr.mxu0 0.0
        %4082 = vmatpush1.xpose.msra.mxu0 0.0
        %4083 = vmatprep.subr.mxu0 0.0
        %4084 = vmatpush1.xpose.msra.mxu0 0.0
        %4085 = vmatprep.subr.mxu0 0.0
        %4086 = vmatpush1.xpose.msra.mxu0 0.0
        %4087 = vmatprep.subr.mxu0 0.0
        %4088 = vmatpush1.xpose.msra.mxu0 0.0
        %4089 = vmatprep.subr.mxu0 0.0
        %4090 = vmatpush1.xpose.msra.mxu0 0.0
        %4091 = vmatprep.subr.mxu0 0.0
        %v4092 = vand.u32 %v3685, 4294901760
        %4093 = vmatpush1.xpose.msra.mxu0 %v4092
        %4094 = vmatprep.subr.mxu0 0.0
        %4095 = vmatpush2.xpose.msra.mxu0 0.0
        %4096 = vmatprep.subr.mxu0 0.0
        %4097 = vmatpush2.xpose.msra.mxu0 0.0
        %4098 = vmatprep.subr.mxu0 0.0
        %4099 = vmatpush2.xpose.msra.mxu0 0.0
        %4100 = vmatprep.subr.mxu0 0.0
        %4101 = vmatpush2.xpose.msra.mxu0 0.0
        %4102 = vmatprep.subr.mxu0 0.0
        %4103 = vmatpush2.xpose.msra.mxu0 0.0
        %4104 = vmatprep.subr.mxu0 0.0
        %4105 = vmatpush2.xpose.msra.mxu0 0.0
        %4106 = vmatprep.subr.mxu0 0.0
        %4107 = vmatpush2.xpose.msra.mxu0 0.0
        %4108 = vmatprep.subr.mxu0 0.0
        %4109 = vmatpush2.xpose.msra.mxu0 0.0
        %4110 = vmatprep.subr.mxu0 0.0
        %4111 = vmatpush2.xpose.msra.mxu0 0.0
        %4112 = vmatprep.subr.mxu0 0.0
        %4113 = vmatpush2.xpose.msra.mxu0 0.0
        %4114 = vmatprep.subr.mxu0 0.0
        %4115 = vmatpush2.xpose.msra.mxu0 0.0
        %4116 = vmatprep.subr.mxu0 0.0
        %4117 = vmatpush2.xpose.msra.mxu0 0.0
        %4118 = vmatprep.subr.mxu0 0.0
        %4119 = vmatpush2.xpose.msra.mxu0 0.0
        %4120 = vmatprep.subr.mxu0 0.0
        %4121 = vmatpush2.xpose.msra.mxu0 0.0
        %4122 = vmatprep.subr.mxu0 0.0
        %4123 = vmatpush2.xpose.msra.mxu0 0.0
        %4124 = vmatprep.subr.mxu0 0.0
        %4125 = vmatpush2.xpose.msra.mxu0 0.0
        %4126 = vmatprep.mubr.f32.mxu0 0.0
        %v4127 = vand.u32 %v3682, 4294901760
        %4128 = vmatmul.mubr.f32.gmra.mxu0 %v4127
        %v4129 = vpop.f32.mrf.mxu0
        %v4130 = vadd.f32 %v4058, %v4129
        %v4131 = vpop.f32.mrf.mxu0
        %4132 = vdwg.mxu0
        %vm4133 = vcmask 64512
        %v4134 = vsel %vm4133, %v2774, -inf
        %4135 = vmax.xlane.f32.xlu0 %v4134
        %v4136 = vpop.xlane.xlu0 %4135
        %v4137 = vsel %vm4133, %v3226, -inf
        %4138 = vmax.xlane.f32.xlu0 %v4137
        %v4139 = vpop.xlane.xlu0 %4138
        %v4140 = vsel %vm4133, %v3678, -inf
        %4141 = vmax.xlane.f32.xlu0 %v4140
        %v4142 = vpop.xlane.xlu0 %4141
        %v4143 = vsel %vm4133, %v4130, -inf
        %4144 = vmax.xlane.f32.xlu0 %v4143
        %v4145 = vpop.xlane.xlu0 %4144
        %v4146 = vsub.f32 %v2774, %v4136
        %v4147 = vsub.f32 %v3226, %v4139
        %v4148 = vsub.f32 %v3678, %v4142
        %v4149 = vsub.f32 %v4130, %v4145
        %v4150 = vmul.f32 %v4146, 1.442695
        %v4151 = vpow.pop %v4150
        %v4152 = vmul.f32 %v4147, 1.442695
        %v4153 = vpow.pop %v4152
        %v4154 = vmul.f32 %v4148, 1.442695
        %v4155 = vpow.pop %v4154
        %v4156 = vmul.f32 %v4149, 1.442695
        %v4157 = vpow.pop %v4156
        %v4158 = vsel %vm4133, %v4151, 0.0
        %4159 = vadd.xlane.f32.xlu0 %v4158
        %v4160 = vpop.xlane.xlu0 %4159
        %v4161 = vsel %vm4133, %v4153, 0.0
        %4162 = vadd.xlane.f32.xlu0 %v4161
        %v4163 = vpop.xlane.xlu0 %4162
        %v4164 = vsel %vm4133, %v4155, 0.0
        %4165 = vadd.xlane.f32.xlu0 %v4164
        %v4166 = vpop.xlane.xlu0 %4165
        %v4167 = vsel %vm4133, %v4157, 0.0
        %4168 = vadd.xlane.f32.xlu0 %v4167
        %v4169 = vpop.xlane.xlu0 %4168
        %v4170 = vrcp.pop %v4160
        %v4171 = vmul.f32 %v4151, %v4170
        %v4172 = vrcp.pop %v4163
        %v4173 = vmul.f32 %v4153, %v4172
        %v4174 = vrcp.pop %v4166
        %v4175 = vmul.f32 %v4155, %v4174
        %v4176 = vrcp.pop %v4169
        %v4177 = vmul.f32 %v4157, %v4176
        %v4179 = vsel %vm4133, %v4171, 0
        %4181 = vmatprep.subr.mxu0 0.0
        %4182 = vmatpush1.msra.mxu0 0.0
        %4183 = vmatprep.subr.mxu0 0.0
        %4184 = vmatpush1.msra.mxu0 0.0
        %4185 = vmatprep.subr.mxu0 0.0
        %4186 = vmatpush1.msra.mxu0 0.0
        %4187 = vmatprep.subr.mxu0 0.0
        %4188 = vmatpush1.msra.mxu0 0.0
        %4189 = vmatprep.subr.mxu0 0.0
        %4190 = vmatpush1.msra.mxu0 0.0
        %4191 = vmatprep.subr.mxu0 0.0
        %4192 = vmatpush1.msra.mxu0 0.0
        %4193 = vmatprep.subr.mxu0 0.0
        %4194 = vmatpush1.msra.mxu0 0.0
        %4195 = vmatprep.subr.mxu0 0.0
        %4196 = vmatpush1.msra.mxu0 0.0
        %4197 = vmatprep.subr.mxu0 0.0
        %4198 = vmatpush1.msra.mxu0 0.0
        %4199 = vmatprep.subr.mxu0 0.0
        %4200 = vmatpush1.msra.mxu0 0.0
        %4201 = vmatprep.subr.mxu0 0.0
        %4202 = vmatpush1.msra.mxu0 0.0
        %4203 = vmatprep.subr.mxu0 0.0
        %4204 = vmatpush1.msra.mxu0 0.0
        %4205 = vmatprep.subr.mxu0 0.0
        %4206 = vmatpush1.msra.mxu0 0.0
        %4207 = vmatprep.subr.mxu0 0.0
        %4208 = vmatpush1.msra.mxu0 0.0
        %4209 = vmatprep.subr.mxu0 0.0
        %4210 = vmatpush1.msra.mxu0 0.0
        %4211 = vmatprep.subr.mxu0 0.0
        %v4212 = vand.u32 %v2320, 4294901760
        %4213 = vmatpush1.msra.mxu0 %v4212
        %4214 = vmatprep.subr.mxu0 0.0
        %4215 = vmatpush2.msra.mxu0 0.0
        %4216 = vmatprep.subr.mxu0 0.0
        %4217 = vmatpush2.msra.mxu0 0.0
        %4218 = vmatprep.subr.mxu0 0.0
        %4219 = vmatpush2.msra.mxu0 0.0
        %4220 = vmatprep.subr.mxu0 0.0
        %4221 = vmatpush2.msra.mxu0 0.0
        %4222 = vmatprep.subr.mxu0 0.0
        %4223 = vmatpush2.msra.mxu0 0.0
        %4224 = vmatprep.subr.mxu0 0.0
        %4225 = vmatpush2.msra.mxu0 0.0
        %4226 = vmatprep.subr.mxu0 0.0
        %4227 = vmatpush2.msra.mxu0 0.0
        %4228 = vmatprep.subr.mxu0 0.0
        %4229 = vmatpush2.msra.mxu0 0.0
        %4230 = vmatprep.subr.mxu0 0.0
        %4231 = vmatpush2.msra.mxu0 0.0
        %4232 = vmatprep.subr.mxu0 0.0
        %4233 = vmatpush2.msra.mxu0 0.0
        %4234 = vmatprep.subr.mxu0 0.0
        %4235 = vmatpush2.msra.mxu0 0.0
        %4236 = vmatprep.subr.mxu0 0.0
        %4237 = vmatpush2.msra.mxu0 0.0
        %4238 = vmatprep.subr.mxu0 0.0
        %4239 = vmatpush2.msra.mxu0 0.0
        %4240 = vmatprep.subr.mxu0 0.0
        %4241 = vmatpush2.msra.mxu0 0.0
        %4242 = vmatprep.subr.mxu0 0.0
        %4243 = vmatpush2.msra.mxu0 0.0
        %4244 = vmatprep.subr.mxu0 0.0
        %4245 = vmatpush2.msra.mxu0 0.0
        %4246 = vmatprep.mubr.f32.mxu0 0.0
        %v4247 = vand.u32 %v4179, 4294901760
        %v4248 = vsub.f32 %v4179, %v4247
        %v4249 = vand.u32 %v4248, 4294901760
        %v4250 = vsub.f32 %v4248, %v4249
        %v4251 = vand.u32 %v4250, 4294901760
        %4252 = vmatmul.mubr.f32.gmra.mxu0 %v4251
        %v4253 = vpop.f32.mrf.mxu0
        %v4254 = vadd.f32 0.0, %v4253
        %v4255 = vpop.f32.mrf.mxu0
        %4256 = vdwg.mxu0
        %4257 = vmatprep.subr.mxu0 0.0
        %4258 = vmatpush1.msra.mxu0 0.0
        %4259 = vmatprep.subr.mxu0 0.0
        %4260 = vmatpush1.msra.mxu0 0.0
        %4261 = vmatprep.subr.mxu0 0.0
        %4262 = vmatpush1.msra.mxu0 0.0
        %4263 = vmatprep.subr.mxu0 0.0
        %4264 = vmatpush1.msra.mxu0 0.0
        %4265 = vmatprep.subr.mxu0 0.0
        %4266 = vmatpush1.msra.mxu0 0.0
        %4267 = vmatprep.subr.mxu0 0.0
        %4268 = vmatpush1.msra.mxu0 0.0
        %4269 = vmatprep.subr.mxu0 0.0
        %4270 = vmatpush1.msra.mxu0 0.0
        %4271 = vmatprep.subr.mxu0 0.0
        %4272 = vmatpush1.msra.mxu0 0.0
        %4273 = vmatprep.subr.mxu0 0.0
        %4274 = vmatpush1.msra.mxu0 0.0
        %4275 = vmatprep.subr.mxu0 0.0
        %4276 = vmatpush1.msra.mxu0 0.0
        %4277 = vmatprep.subr.mxu0 0.0
        %4278 = vmatpush1.msra.mxu0 0.0
        %4279 = vmatprep.subr.mxu0 0.0
        %4280 = vmatpush1.msra.mxu0 0.0
        %4281 = vmatprep.subr.mxu0 0.0
        %4282 = vmatpush1.msra.mxu0 0.0
        %4283 = vmatprep.subr.mxu0 0.0
        %4284 = vmatpush1.msra.mxu0 0.0
        %4285 = vmatprep.subr.mxu0 0.0
        %4286 = vmatpush1.msra.mxu0 0.0
        %4287 = vmatprep.subr.mxu0 0.0
        %v4288 = vand.u32 %v2320, 4294901760
        %v4289 = vsub.f32 %v2320, %v4288
        %v4290 = vand.u32 %v4289, 4294901760
        %v4291 = vsub.f32 %v4289, %v4290
        %v4292 = vand.u32 %v4291, 4294901760
        %4293 = vmatpush1.msra.mxu0 %v4292
        %4294 = vmatprep.subr.mxu0 0.0
        %4295 = vmatpush2.msra.mxu0 0.0
        %4296 = vmatprep.subr.mxu0 0.0
        %4297 = vmatpush2.msra.mxu0 0.0
        %4298 = vmatprep.subr.mxu0 0.0
        %4299 = vmatpush2.msra.mxu0 0.0
        %4300 = vmatprep.subr.mxu0 0.0
        %4301 = vmatpush2.msra.mxu0 0.0
        %4302 = vmatprep.subr.mxu0 0.0
        %4303 = vmatpush2.msra.mxu0 0.0
        %4304 = vmatprep.subr.mxu0 0.0
        %4305 = vmatpush2.msra.mxu0 0.0
        %4306 = vmatprep.subr.mxu0 0.0
        %4307 = vmatpush2.msra.mxu0 0.0
        %4308 = vmatprep.subr.mxu0 0.0
        %4309 = vmatpush2.msra.mxu0 0.0
        %4310 = vmatprep.subr.mxu0 0.0
        %4311 = vmatpush2.msra.mxu0 0.0
        %4312 = vmatprep.subr.mxu0 0.0
        %4313 = vmatpush2.msra.mxu0 0.0
        %4314 = vmatprep.subr.mxu0 0.0
        %4315 = vmatpush2.msra.mxu0 0.0
        %4316 = vmatprep.subr.mxu0 0.0
        %4317 = vmatpush2.msra.mxu0 0.0
        %4318 = vmatprep.subr.mxu0 0.0
        %4319 = vmatpush2.msra.mxu0 0.0
        %4320 = vmatprep.subr.mxu0 0.0
        %4321 = vmatpush2.msra.mxu0 0.0
        %4322 = vmatprep.subr.mxu0 0.0
        %4323 = vmatpush2.msra.mxu0 0.0
        %4324 = vmatprep.subr.mxu0 0.0
        %4325 = vmatpush2.msra.mxu0 0.0
        %4326 = vmatprep.mubr.f32.mxu0 0.0
        %v4327 = vand.u32 %v4179, 4294901760
        %4328 = vmatmul.mubr.f32.gmra.mxu0 %v4327
        %v4329 = vpop.f32.mrf.mxu0
        %v4330 = vadd.f32 %v4254, %v4329
        %v4331 = vpop.f32.mrf.mxu0
        %4332 = vdwg.mxu0
        %4333 = vmatprep.subr.mxu0 0.0
        %4334 = vmatpush1.msra.mxu0 0.0
        %4335 = vmatprep.subr.mxu0 0.0
        %4336 = vmatpush1.msra.mxu0 0.0
        %4337 = vmatprep.subr.mxu0 0.0
        %4338 = vmatpush1.msra.mxu0 0.0
        %4339 = vmatprep.subr.mxu0 0.0
        %4340 = vmatpush1.msra.mxu0 0.0
        %4341 = vmatprep.subr.mxu0 0.0
        %4342 = vmatpush1.msra.mxu0 0.0
        %4343 = vmatprep.subr.mxu0 0.0
        %4344 = vmatpush1.msra.mxu0 0.0
        %4345 = vmatprep.subr.mxu0 0.0
        %4346 = vmatpush1.msra.mxu0 0.0
        %4347 = vmatprep.subr.mxu0 0.0
        %4348 = vmatpush1.msra.mxu0 0.0
        %4349 = vmatprep.subr.mxu0 0.0
        %4350 = vmatpush1.msra.mxu0 0.0
        %4351 = vmatprep.subr.mxu0 0.0
        %4352 = vmatpush1.msra.mxu0 0.0
        %4353 = vmatprep.subr.mxu0 0.0
        %4354 = vmatpush1.msra.mxu0 0.0
        %4355 = vmatprep.subr.mxu0 0.0
        %4356 = vmatpush1.msra.mxu0 0.0
        %4357 = vmatprep.subr.mxu0 0.0
        %4358 = vmatpush1.msra.mxu0 0.0
        %4359 = vmatprep.subr.mxu0 0.0
        %4360 = vmatpush1.msra.mxu0 0.0
        %4361 = vmatprep.subr.mxu0 0.0
        %4362 = vmatpush1.msra.mxu0 0.0
        %4363 = vmatprep.subr.mxu0 0.0
        %v4364 = vand.u32 %v2320, 4294901760
        %v4365 = vsub.f32 %v2320, %v4364
        %4366 = vmatpush1.msra.mxu0 %v4365
        %4367 = vmatprep.subr.mxu0 0.0
        %4368 = vmatpush2.msra.mxu0 0.0
        %4369 = vmatprep.subr.mxu0 0.0
        %4370 = vmatpush2.msra.mxu0 0.0
        %4371 = vmatprep.subr.mxu0 0.0
        %4372 = vmatpush2.msra.mxu0 0.0
        %4373 = vmatprep.subr.mxu0 0.0
        %4374 = vmatpush2.msra.mxu0 0.0
        %4375 = vmatprep.subr.mxu0 0.0
        %4376 = vmatpush2.msra.mxu0 0.0
        %4377 = vmatprep.subr.mxu0 0.0
        %4378 = vmatpush2.msra.mxu0 0.0
        %4379 = vmatprep.subr.mxu0 0.0
        %4380 = vmatpush2.msra.mxu0 0.0
        %4381 = vmatprep.subr.mxu0 0.0
        %4382 = vmatpush2.msra.mxu0 0.0
        %4383 = vmatprep.subr.mxu0 0.0
        %4384 = vmatpush2.msra.mxu0 0.0
        %4385 = vmatprep.subr.mxu0 0.0
        %4386 = vmatpush2.msra.mxu0 0.0
        %4387 = vmatprep.subr.mxu0 0.0
        %4388 = vmatpush2.msra.mxu0 0.0
        %4389 = vmatprep.subr.mxu0 0.0
        %4390 = vmatpush2.msra.mxu0 0.0
        %4391 = vmatprep.subr.mxu0 0.0
        %4392 = vmatpush2.msra.mxu0 0.0
        %4393 = vmatprep.subr.mxu0 0.0
        %4394 = vmatpush2.msra.mxu0 0.0
        %4395 = vmatprep.subr.mxu0 0.0
        %4396 = vmatpush2.msra.mxu0 0.0
        %4397 = vmatprep.subr.mxu0 0.0
        %4398 = vmatpush2.msra.mxu0 0.0
        %4399 = vmatprep.mubr.f32.mxu0 0.0
        %v4400 = vand.u32 %v4179, 4294901760
        %v4401 = vsub.f32 %v4179, %v4400
        %4402 = vmatmul.mubr.f32.gmra.mxu0 %v4401
        %v4403 = vpop.f32.mrf.mxu0
        %v4404 = vadd.f32 %v4330, %v4403
        %v4405 = vpop.f32.mrf.mxu0
        %4406 = vdwg.mxu0
        %4407 = vmatprep.subr.mxu0 0.0
        %4408 = vmatpush1.msra.mxu0 0.0
        %4409 = vmatprep.subr.mxu0 0.0
        %4410 = vmatpush1.msra.mxu0 0.0
        %4411 = vmatprep.subr.mxu0 0.0
        %4412 = vmatpush1.msra.mxu0 0.0
        %4413 = vmatprep.subr.mxu0 0.0
        %4414 = vmatpush1.msra.mxu0 0.0
        %4415 = vmatprep.subr.mxu0 0.0
        %4416 = vmatpush1.msra.mxu0 0.0
        %4417 = vmatprep.subr.mxu0 0.0
        %4418 = vmatpush1.msra.mxu0 0.0
        %4419 = vmatprep.subr.mxu0 0.0
        %4420 = vmatpush1.msra.mxu0 0.0
        %4421 = vmatprep.subr.mxu0 0.0
        %4422 = vmatpush1.msra.mxu0 0.0
        %4423 = vmatprep.subr.mxu0 0.0
        %4424 = vmatpush1.msra.mxu0 0.0
        %4425 = vmatprep.subr.mxu0 0.0
        %4426 = vmatpush1.msra.mxu0 0.0
        %4427 = vmatprep.subr.mxu0 0.0
        %4428 = vmatpush1.msra.mxu0 0.0
        %4429 = vmatprep.subr.mxu0 0.0
        %4430 = vmatpush1.msra.mxu0 0.0
        %4431 = vmatprep.subr.mxu0 0.0
        %4432 = vmatpush1.msra.mxu0 0.0
        %4433 = vmatprep.subr.mxu0 0.0
        %4434 = vmatpush1.msra.mxu0 0.0
        %4435 = vmatprep.subr.mxu0 0.0
        %4436 = vmatpush1.msra.mxu0 0.0
        %4437 = vmatprep.subr.mxu0 0.0
        %v4438 = vand.u32 %v2320, 4294901760
        %4439 = vmatpush1.msra.mxu0 %v4438
        %4440 = vmatprep.subr.mxu0 0.0
        %4441 = vmatpush2.msra.mxu0 0.0
        %4442 = vmatprep.subr.mxu0 0.0
        %4443 = vmatpush2.msra.mxu0 0.0
        %4444 = vmatprep.subr.mxu0 0.0
        %4445 = vmatpush2.msra.mxu0 0.0
        %4446 = vmatprep.subr.mxu0 0.0
        %4447 = vmatpush2.msra.mxu0 0.0
        %4448 = vmatprep.subr.mxu0 0.0
        %4449 = vmatpush2.msra.mxu0 0.0
        %4450 = vmatprep.subr.mxu0 0.0
        %4451 = vmatpush2.msra.mxu0 0.0
        %4452 = vmatprep.subr.mxu0 0.0
        %4453 = vmatpush2.msra.mxu0 0.0
        %4454 = vmatprep.subr.mxu0 0.0
        %4455 = vmatpush2.msra.mxu0 0.0
        %4456 = vmatprep.subr.mxu0 0.0
        %4457 = vmatpush2.msra.mxu0 0.0
        %4458 = vmatprep.subr.mxu0 0.0
        %4459 = vmatpush2.msra.mxu0 0.0
        %4460 = vmatprep.subr.mxu0 0.0
        %4461 = vmatpush2.msra.mxu0 0.0
        %4462 = vmatprep.subr.mxu0 0.0
        %4463 = vmatpush2.msra.mxu0 0.0
        %4464 = vmatprep.subr.mxu0 0.0
        %4465 = vmatpush2.msra.mxu0 0.0
        %4466 = vmatprep.subr.mxu0 0.0
        %4467 = vmatpush2.msra.mxu0 0.0
        %4468 = vmatprep.subr.mxu0 0.0
        %4469 = vmatpush2.msra.mxu0 0.0
        %4470 = vmatprep.subr.mxu0 0.0
        %4471 = vmatpush2.msra.mxu0 0.0
        %4472 = vmatprep.mubr.f32.mxu0 0.0
        %v4473 = vand.u32 %v4179, 4294901760
        %v4474 = vsub.f32 %v4179, %v4473
        %v4475 = vand.u32 %v4474, 4294901760
        %4476 = vmatmul.mubr.f32.gmra.mxu0 %v4475
        %v4477 = vpop.f32.mrf.mxu0
        %v4478 = vadd.f32 %v4404, %v4477
        %v4479 = vpop.f32.mrf.mxu0
        %4480 = vdwg.mxu0
        %4481 = vmatprep.subr.mxu0 0.0
        %4482 = vmatpush1.msra.mxu0 0.0
        %4483 = vmatprep.subr.mxu0 0.0
        %4484 = vmatpush1.msra.mxu0 0.0
        %4485 = vmatprep.subr.mxu0 0.0
        %4486 = vmatpush1.msra.mxu0 0.0
        %4487 = vmatprep.subr.mxu0 0.0
        %4488 = vmatpush1.msra.mxu0 0.0
        %4489 = vmatprep.subr.mxu0 0.0
        %4490 = vmatpush1.msra.mxu0 0.0
        %4491 = vmatprep.subr.mxu0 0.0
        %4492 = vmatpush1.msra.mxu0 0.0
        %4493 = vmatprep.subr.mxu0 0.0
        %4494 = vmatpush1.msra.mxu0 0.0
        %4495 = vmatprep.subr.mxu0 0.0
        %4496 = vmatpush1.msra.mxu0 0.0
        %4497 = vmatprep.subr.mxu0 0.0
        %4498 = vmatpush1.msra.mxu0 0.0
        %4499 = vmatprep.subr.mxu0 0.0
        %4500 = vmatpush1.msra.mxu0 0.0
        %4501 = vmatprep.subr.mxu0 0.0
        %4502 = vmatpush1.msra.mxu0 0.0
        %4503 = vmatprep.subr.mxu0 0.0
        %4504 = vmatpush1.msra.mxu0 0.0
        %4505 = vmatprep.subr.mxu0 0.0
        %4506 = vmatpush1.msra.mxu0 0.0
        %4507 = vmatprep.subr.mxu0 0.0
        %4508 = vmatpush1.msra.mxu0 0.0
        %4509 = vmatprep.subr.mxu0 0.0
        %4510 = vmatpush1.msra.mxu0 0.0
        %4511 = vmatprep.subr.mxu0 0.0
        %v4512 = vand.u32 %v2320, 4294901760
        %v4513 = vsub.f32 %v2320, %v4512
        %v4514 = vand.u32 %v4513, 4294901760
        %4515 = vmatpush1.msra.mxu0 %v4514
        %4516 = vmatprep.subr.mxu0 0.0
        %4517 = vmatpush2.msra.mxu0 0.0
        %4518 = vmatprep.subr.mxu0 0.0
        %4519 = vmatpush2.msra.mxu0 0.0
        %4520 = vmatprep.subr.mxu0 0.0
        %4521 = vmatpush2.msra.mxu0 0.0
        %4522 = vmatprep.subr.mxu0 0.0
        %4523 = vmatpush2.msra.mxu0 0.0
        %4524 = vmatprep.subr.mxu0 0.0
        %4525 = vmatpush2.msra.mxu0 0.0
        %4526 = vmatprep.subr.mxu0 0.0
        %4527 = vmatpush2.msra.mxu0 0.0
        %4528 = vmatprep.subr.mxu0 0.0
        %4529 = vmatpush2.msra.mxu0 0.0
        %4530 = vmatprep.subr.mxu0 0.0
        %4531 = vmatpush2.msra.mxu0 0.0
        %4532 = vmatprep.subr.mxu0 0.0
        %4533 = vmatpush2.msra.mxu0 0.0
        %4534 = vmatprep.subr.mxu0 0.0
        %4535 = vmatpush2.msra.mxu0 0.0
        %4536 = vmatprep.subr.mxu0 0.0
        %4537 = vmatpush2.msra.mxu0 0.0
        %4538 = vmatprep.subr.mxu0 0.0
        %4539 = vmatpush2.msra.mxu0 0.0
        %4540 = vmatprep.subr.mxu0 0.0
        %4541 = vmatpush2.msra.mxu0 0.0
        %4542 = vmatprep.subr.mxu0 0.0
        %4543 = vmatpush2.msra.mxu0 0.0
        %4544 = vmatprep.subr.mxu0 0.0
        %4545 = vmatpush2.msra.mxu0 0.0
        %4546 = vmatprep.subr.mxu0 0.0
        %4547 = vmatpush2.msra.mxu0 0.0
        %4548 = vmatprep.mubr.f32.mxu0 0.0
        %v4549 = vand.u32 %v4179, 4294901760
        %4550 = vmatmul.mubr.f32.gmra.mxu0 %v4549
        %v4551 = vpop.f32.mrf.mxu0
        %v4552 = vadd.f32 %v4478, %v4551
        %v4553 = vpop.f32.mrf.mxu0
        %4554 = vdwg.mxu0
        %4555 = vmatprep.subr.mxu0 0.0
        %4556 = vmatpush1.msra.mxu0 0.0
        %4557 = vmatprep.subr.mxu0 0.0
        %4558 = vmatpush1.msra.mxu0 0.0
        %4559 = vmatprep.subr.mxu0 0.0
        %4560 = vmatpush1.msra.mxu0 0.0
        %4561 = vmatprep.subr.mxu0 0.0
        %4562 = vmatpush1.msra.mxu0 0.0
        %4563 = vmatprep.subr.mxu0 0.0
        %4564 = vmatpush1.msra.mxu0 0.0
        %4565 = vmatprep.subr.mxu0 0.0
        %4566 = vmatpush1.msra.mxu0 0.0
        %4567 = vmatprep.subr.mxu0 0.0
        %4568 = vmatpush1.msra.mxu0 0.0
        %4569 = vmatprep.subr.mxu0 0.0
        %4570 = vmatpush1.msra.mxu0 0.0
        %4571 = vmatprep.subr.mxu0 0.0
        %4572 = vmatpush1.msra.mxu0 0.0
        %4573 = vmatprep.subr.mxu0 0.0
        %4574 = vmatpush1.msra.mxu0 0.0
        %4575 = vmatprep.subr.mxu0 0.0
        %4576 = vmatpush1.msra.mxu0 0.0
        %4577 = vmatprep.subr.mxu0 0.0
        %4578 = vmatpush1.msra.mxu0 0.0
        %4579 = vmatprep.subr.mxu0 0.0
        %4580 = vmatpush1.msra.mxu0 0.0
        %4581 = vmatprep.subr.mxu0 0.0
        %4582 = vmatpush1.msra.mxu0 0.0
        %4583 = vmatprep.subr.mxu0 0.0
        %4584 = vmatpush1.msra.mxu0 0.0
        %4585 = vmatprep.subr.mxu0 0.0
        %v4586 = vand.u32 %v2320, 4294901760
        %4587 = vmatpush1.msra.mxu0 %v4586
        %4588 = vmatprep.subr.mxu0 0.0
        %4589 = vmatpush2.msra.mxu0 0.0
        %4590 = vmatprep.subr.mxu0 0.0
        %4591 = vmatpush2.msra.mxu0 0.0
        %4592 = vmatprep.subr.mxu0 0.0
        %4593 = vmatpush2.msra.mxu0 0.0
        %4594 = vmatprep.subr.mxu0 0.0
        %4595 = vmatpush2.msra.mxu0 0.0
        %4596 = vmatprep.subr.mxu0 0.0
        %4597 = vmatpush2.msra.mxu0 0.0
        %4598 = vmatprep.subr.mxu0 0.0
        %4599 = vmatpush2.msra.mxu0 0.0
        %4600 = vmatprep.subr.mxu0 0.0
        %4601 = vmatpush2.msra.mxu0 0.0
        %4602 = vmatprep.subr.mxu0 0.0
        %4603 = vmatpush2.msra.mxu0 0.0
        %4604 = vmatprep.subr.mxu0 0.0
        %4605 = vmatpush2.msra.mxu0 0.0
        %4606 = vmatprep.subr.mxu0 0.0
        %4607 = vmatpush2.msra.mxu0 0.0
        %4608 = vmatprep.subr.mxu0 0.0
        %4609 = vmatpush2.msra.mxu0 0.0
        %4610 = vmatprep.subr.mxu0 0.0
        %4611 = vmatpush2.msra.mxu0 0.0
        %4612 = vmatprep.subr.mxu0 0.0
        %4613 = vmatpush2.msra.mxu0 0.0
        %4614 = vmatprep.subr.mxu0 0.0
        %4615 = vmatpush2.msra.mxu0 0.0
        %4616 = vmatprep.subr.mxu0 0.0
        %4617 = vmatpush2.msra.mxu0 0.0
        %4618 = vmatprep.subr.mxu0 0.0
        %4619 = vmatpush2.msra.mxu0 0.0
        %4620 = vmatprep.mubr.f32.mxu0 0.0
        %v4621 = vand.u32 %v4179, 4294901760
        %4622 = vmatmul.mubr.f32.gmra.mxu0 %v4621
        %v4623 = vpop.f32.mrf.mxu0
        %v4624 = vadd.f32 %v4552, %v4623
        %v4625 = vpop.f32.mrf.mxu0
        %4626 = vdwg.mxu0
        %v4628 = vsel %vm4133, %v4173, 0
        %4630 = vmatprep.subr.mxu0 0.0
        %4631 = vmatpush1.msra.mxu0 0.0
        %4632 = vmatprep.subr.mxu0 0.0
        %4633 = vmatpush1.msra.mxu0 0.0
        %4634 = vmatprep.subr.mxu0 0.0
        %4635 = vmatpush1.msra.mxu0 0.0
        %4636 = vmatprep.subr.mxu0 0.0
        %4637 = vmatpush1.msra.mxu0 0.0
        %4638 = vmatprep.subr.mxu0 0.0
        %4639 = vmatpush1.msra.mxu0 0.0
        %4640 = vmatprep.subr.mxu0 0.0
        %4641 = vmatpush1.msra.mxu0 0.0
        %4642 = vmatprep.subr.mxu0 0.0
        %4643 = vmatpush1.msra.mxu0 0.0
        %4644 = vmatprep.subr.mxu0 0.0
        %4645 = vmatpush1.msra.mxu0 0.0
        %4646 = vmatprep.subr.mxu0 0.0
        %4647 = vmatpush1.msra.mxu0 0.0
        %4648 = vmatprep.subr.mxu0 0.0
        %4649 = vmatpush1.msra.mxu0 0.0
        %4650 = vmatprep.subr.mxu0 0.0
        %4651 = vmatpush1.msra.mxu0 0.0
        %4652 = vmatprep.subr.mxu0 0.0
        %4653 = vmatpush1.msra.mxu0 0.0
        %4654 = vmatprep.subr.mxu0 0.0
        %4655 = vmatpush1.msra.mxu0 0.0
        %4656 = vmatprep.subr.mxu0 0.0
        %4657 = vmatpush1.msra.mxu0 0.0
        %4658 = vmatprep.subr.mxu0 0.0
        %4659 = vmatpush1.msra.mxu0 0.0
        %4660 = vmatprep.subr.mxu0 0.0
        %v4661 = vand.u32 %v2321, 4294901760
        %4662 = vmatpush1.msra.mxu0 %v4661
        %4663 = vmatprep.subr.mxu0 0.0
        %4664 = vmatpush2.msra.mxu0 0.0
        %4665 = vmatprep.subr.mxu0 0.0
        %4666 = vmatpush2.msra.mxu0 0.0
        %4667 = vmatprep.subr.mxu0 0.0
        %4668 = vmatpush2.msra.mxu0 0.0
        %4669 = vmatprep.subr.mxu0 0.0
        %4670 = vmatpush2.msra.mxu0 0.0
        %4671 = vmatprep.subr.mxu0 0.0
        %4672 = vmatpush2.msra.mxu0 0.0
        %4673 = vmatprep.subr.mxu0 0.0
        %4674 = vmatpush2.msra.mxu0 0.0
        %4675 = vmatprep.subr.mxu0 0.0
        %4676 = vmatpush2.msra.mxu0 0.0
        %4677 = vmatprep.subr.mxu0 0.0
        %4678 = vmatpush2.msra.mxu0 0.0
        %4679 = vmatprep.subr.mxu0 0.0
        %4680 = vmatpush2.msra.mxu0 0.0
        %4681 = vmatprep.subr.mxu0 0.0
        %4682 = vmatpush2.msra.mxu0 0.0
        %4683 = vmatprep.subr.mxu0 0.0
        %4684 = vmatpush2.msra.mxu0 0.0
        %4685 = vmatprep.subr.mxu0 0.0
        %4686 = vmatpush2.msra.mxu0 0.0
        %4687 = vmatprep.subr.mxu0 0.0
        %4688 = vmatpush2.msra.mxu0 0.0
        %4689 = vmatprep.subr.mxu0 0.0
        %4690 = vmatpush2.msra.mxu0 0.0
        %4691 = vmatprep.subr.mxu0 0.0
        %4692 = vmatpush2.msra.mxu0 0.0
        %4693 = vmatprep.subr.mxu0 0.0
        %4694 = vmatpush2.msra.mxu0 0.0
        %4695 = vmatprep.mubr.f32.mxu0 0.0
        %v4696 = vand.u32 %v4628, 4294901760
        %v4697 = vsub.f32 %v4628, %v4696
        %v4698 = vand.u32 %v4697, 4294901760
        %v4699 = vsub.f32 %v4697, %v4698
        %v4700 = vand.u32 %v4699, 4294901760
        %4701 = vmatmul.mubr.f32.gmra.mxu0 %v4700
        %v4702 = vpop.f32.mrf.mxu0
        %v4703 = vadd.f32 0.0, %v4702
        %v4704 = vpop.f32.mrf.mxu0
        %4705 = vdwg.mxu0
        %4706 = vmatprep.subr.mxu0 0.0
        %4707 = vmatpush1.msra.mxu0 0.0
        %4708 = vmatprep.subr.mxu0 0.0
        %4709 = vmatpush1.msra.mxu0 0.0
        %4710 = vmatprep.subr.mxu0 0.0
        %4711 = vmatpush1.msra.mxu0 0.0
        %4712 = vmatprep.subr.mxu0 0.0
        %4713 = vmatpush1.msra.mxu0 0.0
        %4714 = vmatprep.subr.mxu0 0.0
        %4715 = vmatpush1.msra.mxu0 0.0
        %4716 = vmatprep.subr.mxu0 0.0
        %4717 = vmatpush1.msra.mxu0 0.0
        %4718 = vmatprep.subr.mxu0 0.0
        %4719 = vmatpush1.msra.mxu0 0.0
        %4720 = vmatprep.subr.mxu0 0.0
        %4721 = vmatpush1.msra.mxu0 0.0
        %4722 = vmatprep.subr.mxu0 0.0
        %4723 = vmatpush1.msra.mxu0 0.0
        %4724 = vmatprep.subr.mxu0 0.0
        %4725 = vmatpush1.msra.mxu0 0.0
        %4726 = vmatprep.subr.mxu0 0.0
        %4727 = vmatpush1.msra.mxu0 0.0
        %4728 = vmatprep.subr.mxu0 0.0
        %4729 = vmatpush1.msra.mxu0 0.0
        %4730 = vmatprep.subr.mxu0 0.0
        %4731 = vmatpush1.msra.mxu0 0.0
        %4732 = vmatprep.subr.mxu0 0.0
        %4733 = vmatpush1.msra.mxu0 0.0
        %4734 = vmatprep.subr.mxu0 0.0
        %4735 = vmatpush1.msra.mxu0 0.0
        %4736 = vmatprep.subr.mxu0 0.0
        %v4737 = vand.u32 %v2321, 4294901760
        %v4738 = vsub.f32 %v2321, %v4737
        %v4739 = vand.u32 %v4738, 4294901760
        %v4740 = vsub.f32 %v4738, %v4739
        %v4741 = vand.u32 %v4740, 4294901760
        %4742 = vmatpush1.msra.mxu0 %v4741
        %4743 = vmatprep.subr.mxu0 0.0
        %4744 = vmatpush2.msra.mxu0 0.0
        %4745 = vmatprep.subr.mxu0 0.0
        %4746 = vmatpush2.msra.mxu0 0.0
        %4747 = vmatprep.subr.mxu0 0.0
        %4748 = vmatpush2.msra.mxu0 0.0
        %4749 = vmatprep.subr.mxu0 0.0
        %4750 = vmatpush2.msra.mxu0 0.0
        %4751 = vmatprep.subr.mxu0 0.0
        %4752 = vmatpush2.msra.mxu0 0.0
        %4753 = vmatprep.subr.mxu0 0.0
        %4754 = vmatpush2.msra.mxu0 0.0
        %4755 = vmatprep.subr.mxu0 0.0
        %4756 = vmatpush2.msra.mxu0 0.0
        %4757 = vmatprep.subr.mxu0 0.0
        %4758 = vmatpush2.msra.mxu0 0.0
        %4759 = vmatprep.subr.mxu0 0.0
        %4760 = vmatpush2.msra.mxu0 0.0
        %4761 = vmatprep.subr.mxu0 0.0
        %4762 = vmatpush2.msra.mxu0 0.0
        %4763 = vmatprep.subr.mxu0 0.0
        %4764 = vmatpush2.msra.mxu0 0.0
        %4765 = vmatprep.subr.mxu0 0.0
        %4766 = vmatpush2.msra.mxu0 0.0
        %4767 = vmatprep.subr.mxu0 0.0
        %4768 = vmatpush2.msra.mxu0 0.0
        %4769 = vmatprep.subr.mxu0 0.0
        %4770 = vmatpush2.msra.mxu0 0.0
        %4771 = vmatprep.subr.mxu0 0.0
        %4772 = vmatpush2.msra.mxu0 0.0
        %4773 = vmatprep.subr.mxu0 0.0
        %4774 = vmatpush2.msra.mxu0 0.0
        %4775 = vmatprep.mubr.f32.mxu0 0.0
        %v4776 = vand.u32 %v4628, 4294901760
        %4777 = vmatmul.mubr.f32.gmra.mxu0 %v4776
        %v4778 = vpop.f32.mrf.mxu0
        %v4779 = vadd.f32 %v4703, %v4778
        %v4780 = vpop.f32.mrf.mxu0
        %4781 = vdwg.mxu0
        %4782 = vmatprep.subr.mxu0 0.0
        %4783 = vmatpush1.msra.mxu0 0.0
        %4784 = vmatprep.subr.mxu0 0.0
        %4785 = vmatpush1.msra.mxu0 0.0
        %4786 = vmatprep.subr.mxu0 0.0
        %4787 = vmatpush1.msra.mxu0 0.0
        %4788 = vmatprep.subr.mxu0 0.0
        %4789 = vmatpush1.msra.mxu0 0.0
        %4790 = vmatprep.subr.mxu0 0.0
        %4791 = vmatpush1.msra.mxu0 0.0
        %4792 = vmatprep.subr.mxu0 0.0
        %4793 = vmatpush1.msra.mxu0 0.0
        %4794 = vmatprep.subr.mxu0 0.0
        %4795 = vmatpush1.msra.mxu0 0.0
        %4796 = vmatprep.subr.mxu0 0.0
        %4797 = vmatpush1.msra.mxu0 0.0
        %4798 = vmatprep.subr.mxu0 0.0
        %4799 = vmatpush1.msra.mxu0 0.0
        %4800 = vmatprep.subr.mxu0 0.0
        %4801 = vmatpush1.msra.mxu0 0.0
        %4802 = vmatprep.subr.mxu0 0.0
        %4803 = vmatpush1.msra.mxu0 0.0
        %4804 = vmatprep.subr.mxu0 0.0
        %4805 = vmatpush1.msra.mxu0 0.0
        %4806 = vmatprep.subr.mxu0 0.0
        %4807 = vmatpush1.msra.mxu0 0.0
        %4808 = vmatprep.subr.mxu0 0.0
        %4809 = vmatpush1.msra.mxu0 0.0
        %4810 = vmatprep.subr.mxu0 0.0
        %4811 = vmatpush1.msra.mxu0 0.0
        %4812 = vmatprep.subr.mxu0 0.0
        %v4813 = vand.u32 %v2321, 4294901760
        %v4814 = vsub.f32 %v2321, %v4813
        %4815 = vmatpush1.msra.mxu0 %v4814
        %4816 = vmatprep.subr.mxu0 0.0
        %4817 = vmatpush2.msra.mxu0 0.0
        %4818 = vmatprep.subr.mxu0 0.0
        %4819 = vmatpush2.msra.mxu0 0.0
        %4820 = vmatprep.subr.mxu0 0.0
        %4821 = vmatpush2.msra.mxu0 0.0
        %4822 = vmatprep.subr.mxu0 0.0
        %4823 = vmatpush2.msra.mxu0 0.0
        %4824 = vmatprep.subr.mxu0 0.0
        %4825 = vmatpush2.msra.mxu0 0.0
        %4826 = vmatprep.subr.mxu0 0.0
        %4827 = vmatpush2.msra.mxu0 0.0
        %4828 = vmatprep.subr.mxu0 0.0
        %4829 = vmatpush2.msra.mxu0 0.0
        %4830 = vmatprep.subr.mxu0 0.0
        %4831 = vmatpush2.msra.mxu0 0.0
        %4832 = vmatprep.subr.mxu0 0.0
        %4833 = vmatpush2.msra.mxu0 0.0
        %4834 = vmatprep.subr.mxu0 0.0
        %4835 = vmatpush2.msra.mxu0 0.0
        %4836 = vmatprep.subr.mxu0 0.0
        %4837 = vmatpush2.msra.mxu0 0.0
        %4838 = vmatprep.subr.mxu0 0.0
        %4839 = vmatpush2.msra.mxu0 0.0
        %4840 = vmatprep.subr.mxu0 0.0
        %4841 = vmatpush2.msra.mxu0 0.0
        %4842 = vmatprep.subr.mxu0 0.0
        %4843 = vmatpush2.msra.mxu0 0.0
        %4844 = vmatprep.subr.mxu0 0.0
        %4845 = vmatpush2.msra.mxu0 0.0
        %4846 = vmatprep.subr.mxu0 0.0
        %4847 = vmatpush2.msra.mxu0 0.0
        %4848 = vmatprep.mubr.f32.mxu0 0.0
        %v4849 = vand.u32 %v4628, 4294901760
        %v4850 = vsub.f32 %v4628, %v4849
        %4851 = vmatmul.mubr.f32.gmra.mxu0 %v4850
        %v4852 = vpop.f32.mrf.mxu0
        %v4853 = vadd.f32 %v4779, %v4852
        %v4854 = vpop.f32.mrf.mxu0
        %4855 = vdwg.mxu0
        %4856 = vmatprep.subr.mxu0 0.0
        %4857 = vmatpush1.msra.mxu0 0.0
        %4858 = vmatprep.subr.mxu0 0.0
        %4859 = vmatpush1.msra.mxu0 0.0
        %4860 = vmatprep.subr.mxu0 0.0
        %4861 = vmatpush1.msra.mxu0 0.0
        %4862 = vmatprep.subr.mxu0 0.0
        %4863 = vmatpush1.msra.mxu0 0.0
        %4864 = vmatprep.subr.mxu0 0.0
        %4865 = vmatpush1.msra.mxu0 0.0
        %4866 = vmatprep.subr.mxu0 0.0
        %4867 = vmatpush1.msra.mxu0 0.0
        %4868 = vmatprep.subr.mxu0 0.0
        %4869 = vmatpush1.msra.mxu0 0.0
        %4870 = vmatprep.subr.mxu0 0.0
        %4871 = vmatpush1.msra.mxu0 0.0
        %4872 = vmatprep.subr.mxu0 0.0
        %4873 = vmatpush1.msra.mxu0 0.0
        %4874 = vmatprep.subr.mxu0 0.0
        %4875 = vmatpush1.msra.mxu0 0.0
        %4876 = vmatprep.subr.mxu0 0.0
        %4877 = vmatpush1.msra.mxu0 0.0
        %4878 = vmatprep.subr.mxu0 0.0
        %4879 = vmatpush1.msra.mxu0 0.0
        %4880 = vmatprep.subr.mxu0 0.0
        %4881 = vmatpush1.msra.mxu0 0.0
        %4882 = vmatprep.subr.mxu0 0.0
        %4883 = vmatpush1.msra.mxu0 0.0
        %4884 = vmatprep.subr.mxu0 0.0
        %4885 = vmatpush1.msra.mxu0 0.0
        %4886 = vmatprep.subr.mxu0 0.0
        %v4887 = vand.u32 %v2321, 4294901760
        %4888 = vmatpush1.msra.mxu0 %v4887
        %4889 = vmatprep.subr.mxu0 0.0
        %4890 = vmatpush2.msra.mxu0 0.0
        %4891 = vmatprep.subr.mxu0 0.0
        %4892 = vmatpush2.msra.mxu0 0.0
        %4893 = vmatprep.subr.mxu0 0.0
        %4894 = vmatpush2.msra.mxu0 0.0
        %4895 = vmatprep.subr.mxu0 0.0
        %4896 = vmatpush2.msra.mxu0 0.0
        %4897 = vmatprep.subr.mxu0 0.0
        %4898 = vmatpush2.msra.mxu0 0.0
        %4899 = vmatprep.subr.mxu0 0.0
        %4900 = vmatpush2.msra.mxu0 0.0
        %4901 = vmatprep.subr.mxu0 0.0
        %4902 = vmatpush2.msra.mxu0 0.0
        %4903 = vmatprep.subr.mxu0 0.0
        %4904 = vmatpush2.msra.mxu0 0.0
        %4905 = vmatprep.subr.mxu0 0.0
        %4906 = vmatpush2.msra.mxu0 0.0
        %4907 = vmatprep.subr.mxu0 0.0
        %4908 = vmatpush2.msra.mxu0 0.0
        %4909 = vmatprep.subr.mxu0 0.0
        %4910 = vmatpush2.msra.mxu0 0.0
        %4911 = vmatprep.subr.mxu0 0.0
        %4912 = vmatpush2.msra.mxu0 0.0
        %4913 = vmatprep.subr.mxu0 0.0
        %4914 = vmatpush2.msra.mxu0 0.0
        %4915 = vmatprep.subr.mxu0 0.0
        %4916 = vmatpush2.msra.mxu0 0.0
        %4917 = vmatprep.subr.mxu0 0.0
        %4918 = vmatpush2.msra.mxu0 0.0
        %4919 = vmatprep.subr.mxu0 0.0
        %4920 = vmatpush2.msra.mxu0 0.0
        %4921 = vmatprep.mubr.f32.mxu0 0.0
        %v4922 = vand.u32 %v4628, 4294901760
        %v4923 = vsub.f32 %v4628, %v4922
        %v4924 = vand.u32 %v4923, 4294901760
        %4925 = vmatmul.mubr.f32.gmra.mxu0 %v4924
        %v4926 = vpop.f32.mrf.mxu0
        %v4927 = vadd.f32 %v4853, %v4926
        %v4928 = vpop.f32.mrf.mxu0
        %4929 = vdwg.mxu0
        %4930 = vmatprep.subr.mxu0 0.0
        %4931 = vmatpush1.msra.mxu0 0.0
        %4932 = vmatprep.subr.mxu0 0.0
        %4933 = vmatpush1.msra.mxu0 0.0
        %4934 = vmatprep.subr.mxu0 0.0
        %4935 = vmatpush1.msra.mxu0 0.0
        %4936 = vmatprep.subr.mxu0 0.0
        %4937 = vmatpush1.msra.mxu0 0.0
        %4938 = vmatprep.subr.mxu0 0.0
        %4939 = vmatpush1.msra.mxu0 0.0
        %4940 = vmatprep.subr.mxu0 0.0
        %4941 = vmatpush1.msra.mxu0 0.0
        %4942 = vmatprep.subr.mxu0 0.0
        %4943 = vmatpush1.msra.mxu0 0.0
        %4944 = vmatprep.subr.mxu0 0.0
        %4945 = vmatpush1.msra.mxu0 0.0
        %4946 = vmatprep.subr.mxu0 0.0
        %4947 = vmatpush1.msra.mxu0 0.0
        %4948 = vmatprep.subr.mxu0 0.0
        %4949 = vmatpush1.msra.mxu0 0.0
        %4950 = vmatprep.subr.mxu0 0.0
        %4951 = vmatpush1.msra.mxu0 0.0
        %4952 = vmatprep.subr.mxu0 0.0
        %4953 = vmatpush1.msra.mxu0 0.0
        %4954 = vmatprep.subr.mxu0 0.0
        %4955 = vmatpush1.msra.mxu0 0.0
        %4956 = vmatprep.subr.mxu0 0.0
        %4957 = vmatpush1.msra.mxu0 0.0
        %4958 = vmatprep.subr.mxu0 0.0
        %4959 = vmatpush1.msra.mxu0 0.0
        %4960 = vmatprep.subr.mxu0 0.0
        %v4961 = vand.u32 %v2321, 4294901760
        %v4962 = vsub.f32 %v2321, %v4961
        %v4963 = vand.u32 %v4962, 4294901760
        %4964 = vmatpush1.msra.mxu0 %v4963
        %4965 = vmatprep.subr.mxu0 0.0
        %4966 = vmatpush2.msra.mxu0 0.0
        %4967 = vmatprep.subr.mxu0 0.0
        %4968 = vmatpush2.msra.mxu0 0.0
        %4969 = vmatprep.subr.mxu0 0.0
        %4970 = vmatpush2.msra.mxu0 0.0
        %4971 = vmatprep.subr.mxu0 0.0
        %4972 = vmatpush2.msra.mxu0 0.0
        %4973 = vmatprep.subr.mxu0 0.0
        %4974 = vmatpush2.msra.mxu0 0.0
        %4975 = vmatprep.subr.mxu0 0.0
        %4976 = vmatpush2.msra.mxu0 0.0
        %4977 = vmatprep.subr.mxu0 0.0
        %4978 = vmatpush2.msra.mxu0 0.0
        %4979 = vmatprep.subr.mxu0 0.0
        %4980 = vmatpush2.msra.mxu0 0.0
        %4981 = vmatprep.subr.mxu0 0.0
        %4982 = vmatpush2.msra.mxu0 0.0
        %4983 = vmatprep.subr.mxu0 0.0
        %4984 = vmatpush2.msra.mxu0 0.0
        %4985 = vmatprep.subr.mxu0 0.0
        %4986 = vmatpush2.msra.mxu0 0.0
        %4987 = vmatprep.subr.mxu0 0.0
        %4988 = vmatpush2.msra.mxu0 0.0
        %4989 = vmatprep.subr.mxu0 0.0
        %4990 = vmatpush2.msra.mxu0 0.0
        %4991 = vmatprep.subr.mxu0 0.0
        %4992 = vmatpush2.msra.mxu0 0.0
        %4993 = vmatprep.subr.mxu0 0.0
        %4994 = vmatpush2.msra.mxu0 0.0
        %4995 = vmatprep.subr.mxu0 0.0
        %4996 = vmatpush2.msra.mxu0 0.0
        %4997 = vmatprep.mubr.f32.mxu0 0.0
        %v4998 = vand.u32 %v4628, 4294901760
        %4999 = vmatmul.mubr.f32.gmra.mxu0 %v4998
        %v5000 = vpop.f32.mrf.mxu0
        %v5001 = vadd.f32 %v4927, %v5000
        %v5002 = vpop.f32.mrf.mxu0
        %5003 = vdwg.mxu0
        %5004 = vmatprep.subr.mxu0 0.0
        %5005 = vmatpush1.msra.mxu0 0.0
        %5006 = vmatprep.subr.mxu0 0.0
        %5007 = vmatpush1.msra.mxu0 0.0
        %5008 = vmatprep.subr.mxu0 0.0
        %5009 = vmatpush1.msra.mxu0 0.0
        %5010 = vmatprep.subr.mxu0 0.0
        %5011 = vmatpush1.msra.mxu0 0.0
        %5012 = vmatprep.subr.mxu0 0.0
        %5013 = vmatpush1.msra.mxu0 0.0
        %5014 = vmatprep.subr.mxu0 0.0
        %5015 = vmatpush1.msra.mxu0 0.0
        %5016 = vmatprep.subr.mxu0 0.0
        %5017 = vmatpush1.msra.mxu0 0.0
        %5018 = vmatprep.subr.mxu0 0.0
        %5019 = vmatpush1.msra.mxu0 0.0
        %5020 = vmatprep.subr.mxu0 0.0
        %5021 = vmatpush1.msra.mxu0 0.0
        %5022 = vmatprep.subr.mxu0 0.0
        %5023 = vmatpush1.msra.mxu0 0.0
        %5024 = vmatprep.subr.mxu0 0.0
        %5025 = vmatpush1.msra.mxu0 0.0
        %5026 = vmatprep.subr.mxu0 0.0
        %5027 = vmatpush1.msra.mxu0 0.0
        %5028 = vmatprep.subr.mxu0 0.0
        %5029 = vmatpush1.msra.mxu0 0.0
        %5030 = vmatprep.subr.mxu0 0.0
        %5031 = vmatpush1.msra.mxu0 0.0
        %5032 = vmatprep.subr.mxu0 0.0
        %5033 = vmatpush1.msra.mxu0 0.0
        %5034 = vmatprep.subr.mxu0 0.0
        %v5035 = vand.u32 %v2321, 4294901760
        %5036 = vmatpush1.msra.mxu0 %v5035
        %5037 = vmatprep.subr.mxu0 0.0
        %5038 = vmatpush2.msra.mxu0 0.0
        %5039 = vmatprep.subr.mxu0 0.0
        %5040 = vmatpush2.msra.mxu0 0.0
        %5041 = vmatprep.subr.mxu0 0.0
        %5042 = vmatpush2.msra.mxu0 0.0
        %5043 = vmatprep.subr.mxu0 0.0
        %5044 = vmatpush2.msra.mxu0 0.0
        %5045 = vmatprep.subr.mxu0 0.0
        %5046 = vmatpush2.msra.mxu0 0.0
        %5047 = vmatprep.subr.mxu0 0.0
        %5048 = vmatpush2.msra.mxu0 0.0
        %5049 = vmatprep.subr.mxu0 0.0
        %5050 = vmatpush2.msra.mxu0 0.0
        %5051 = vmatprep.subr.mxu0 0.0
        %5052 = vmatpush2.msra.mxu0 0.0
        %5053 = vmatprep.subr.mxu0 0.0
        %5054 = vmatpush2.msra.mxu0 0.0
        %5055 = vmatprep.subr.mxu0 0.0
        %5056 = vmatpush2.msra.mxu0 0.0
        %5057 = vmatprep.subr.mxu0 0.0
        %5058 = vmatpush2.msra.mxu0 0.0
        %5059 = vmatprep.subr.mxu0 0.0
        %5060 = vmatpush2.msra.mxu0 0.0
        %5061 = vmatprep.subr.mxu0 0.0
        %5062 = vmatpush2.msra.mxu0 0.0
        %5063 = vmatprep.subr.mxu0 0.0
        %5064 = vmatpush2.msra.mxu0 0.0
        %5065 = vmatprep.subr.mxu0 0.0
        %5066 = vmatpush2.msra.mxu0 0.0
        %5067 = vmatprep.subr.mxu0 0.0
        %5068 = vmatpush2.msra.mxu0 0.0
        %5069 = vmatprep.mubr.f32.mxu0 0.0
        %v5070 = vand.u32 %v4628, 4294901760
        %5071 = vmatmul.mubr.f32.gmra.mxu0 %v5070
        %v5072 = vpop.f32.mrf.mxu0
        %v5073 = vadd.f32 %v5001, %v5072
        %v5074 = vpop.f32.mrf.mxu0
        %5075 = vdwg.mxu0
        %v5077 = vsel %vm4133, %v4175, 0
        %5079 = vmatprep.subr.mxu0 0.0
        %5080 = vmatpush1.msra.mxu0 0.0
        %5081 = vmatprep.subr.mxu0 0.0
        %5082 = vmatpush1.msra.mxu0 0.0
        %5083 = vmatprep.subr.mxu0 0.0
        %5084 = vmatpush1.msra.mxu0 0.0
        %5085 = vmatprep.subr.mxu0 0.0
        %5086 = vmatpush1.msra.mxu0 0.0
        %5087 = vmatprep.subr.mxu0 0.0
        %5088 = vmatpush1.msra.mxu0 0.0
        %5089 = vmatprep.subr.mxu0 0.0
        %5090 = vmatpush1.msra.mxu0 0.0
        %5091 = vmatprep.subr.mxu0 0.0
        %5092 = vmatpush1.msra.mxu0 0.0
        %5093 = vmatprep.subr.mxu0 0.0
        %5094 = vmatpush1.msra.mxu0 0.0
        %5095 = vmatprep.subr.mxu0 0.0
        %5096 = vmatpush1.msra.mxu0 0.0
        %5097 = vmatprep.subr.mxu0 0.0
        %5098 = vmatpush1.msra.mxu0 0.0
        %5099 = vmatprep.subr.mxu0 0.0
        %5100 = vmatpush1.msra.mxu0 0.0
        %5101 = vmatprep.subr.mxu0 0.0
        %5102 = vmatpush1.msra.mxu0 0.0
        %5103 = vmatprep.subr.mxu0 0.0
        %5104 = vmatpush1.msra.mxu0 0.0
        %5105 = vmatprep.subr.mxu0 0.0
        %5106 = vmatpush1.msra.mxu0 0.0
        %5107 = vmatprep.subr.mxu0 0.0
        %5108 = vmatpush1.msra.mxu0 0.0
        %5109 = vmatprep.subr.mxu0 0.0
        %v5110 = vand.u32 %v2322, 4294901760
        %5111 = vmatpush1.msra.mxu0 %v5110
        %5112 = vmatprep.subr.mxu0 0.0
        %5113 = vmatpush2.msra.mxu0 0.0
        %5114 = vmatprep.subr.mxu0 0.0
        %5115 = vmatpush2.msra.mxu0 0.0
        %5116 = vmatprep.subr.mxu0 0.0
        %5117 = vmatpush2.msra.mxu0 0.0
        %5118 = vmatprep.subr.mxu0 0.0
        %5119 = vmatpush2.msra.mxu0 0.0
        %5120 = vmatprep.subr.mxu0 0.0
        %5121 = vmatpush2.msra.mxu0 0.0
        %5122 = vmatprep.subr.mxu0 0.0
        %5123 = vmatpush2.msra.mxu0 0.0
        %5124 = vmatprep.subr.mxu0 0.0
        %5125 = vmatpush2.msra.mxu0 0.0
        %5126 = vmatprep.subr.mxu0 0.0
        %5127 = vmatpush2.msra.mxu0 0.0
        %5128 = vmatprep.subr.mxu0 0.0
        %5129 = vmatpush2.msra.mxu0 0.0
        %5130 = vmatprep.subr.mxu0 0.0
        %5131 = vmatpush2.msra.mxu0 0.0
        %5132 = vmatprep.subr.mxu0 0.0
        %5133 = vmatpush2.msra.mxu0 0.0
        %5134 = vmatprep.subr.mxu0 0.0
        %5135 = vmatpush2.msra.mxu0 0.0
        %5136 = vmatprep.subr.mxu0 0.0
        %5137 = vmatpush2.msra.mxu0 0.0
        %5138 = vmatprep.subr.mxu0 0.0
        %5139 = vmatpush2.msra.mxu0 0.0
        %5140 = vmatprep.subr.mxu0 0.0
        %5141 = vmatpush2.msra.mxu0 0.0
        %5142 = vmatprep.subr.mxu0 0.0
        %5143 = vmatpush2.msra.mxu0 0.0
        %5144 = vmatprep.mubr.f32.mxu0 0.0
        %v5145 = vand.u32 %v5077, 4294901760
        %v5146 = vsub.f32 %v5077, %v5145
        %v5147 = vand.u32 %v5146, 4294901760
        %v5148 = vsub.f32 %v5146, %v5147
        %v5149 = vand.u32 %v5148, 4294901760
        %5150 = vmatmul.mubr.f32.gmra.mxu0 %v5149
        %v5151 = vpop.f32.mrf.mxu0
        %v5152 = vadd.f32 0.0, %v5151
        %v5153 = vpop.f32.mrf.mxu0
        %5154 = vdwg.mxu0
        %5155 = vmatprep.subr.mxu0 0.0
        %5156 = vmatpush1.msra.mxu0 0.0
        %5157 = vmatprep.subr.mxu0 0.0
        %5158 = vmatpush1.msra.mxu0 0.0
        %5159 = vmatprep.subr.mxu0 0.0
        %5160 = vmatpush1.msra.mxu0 0.0
        %5161 = vmatprep.subr.mxu0 0.0
        %5162 = vmatpush1.msra.mxu0 0.0
        %5163 = vmatprep.subr.mxu0 0.0
        %5164 = vmatpush1.msra.mxu0 0.0
        %5165 = vmatprep.subr.mxu0 0.0
        %5166 = vmatpush1.msra.mxu0 0.0
        %5167 = vmatprep.subr.mxu0 0.0
        %5168 = vmatpush1.msra.mxu0 0.0
        %5169 = vmatprep.subr.mxu0 0.0
        %5170 = vmatpush1.msra.mxu0 0.0
        %5171 = vmatprep.subr.mxu0 0.0
        %5172 = vmatpush1.msra.mxu0 0.0
        %5173 = vmatprep.subr.mxu0 0.0
        %5174 = vmatpush1.msra.mxu0 0.0
        %5175 = vmatprep.subr.mxu0 0.0
        %5176 = vmatpush1.msra.mxu0 0.0
        %5177 = vmatprep.subr.mxu0 0.0
        %5178 = vmatpush1.msra.mxu0 0.0
        %5179 = vmatprep.subr.mxu0 0.0
        %5180 = vmatpush1.msra.mxu0 0.0
        %5181 = vmatprep.subr.mxu0 0.0
        %5182 = vmatpush1.msra.mxu0 0.0
        %5183 = vmatprep.subr.mxu0 0.0
        %5184 = vmatpush1.msra.mxu0 0.0
        %5185 = vmatprep.subr.mxu0 0.0
        %v5186 = vand.u32 %v2322, 4294901760
        %v5187 = vsub.f32 %v2322, %v5186
        %v5188 = vand.u32 %v5187, 4294901760
        %v5189 = vsub.f32 %v5187, %v5188
        %v5190 = vand.u32 %v5189, 4294901760
        %5191 = vmatpush1.msra.mxu0 %v5190
        %5192 = vmatprep.subr.mxu0 0.0
        %5193 = vmatpush2.msra.mxu0 0.0
        %5194 = vmatprep.subr.mxu0 0.0
        %5195 = vmatpush2.msra.mxu0 0.0
        %5196 = vmatprep.subr.mxu0 0.0
        %5197 = vmatpush2.msra.mxu0 0.0
        %5198 = vmatprep.subr.mxu0 0.0
        %5199 = vmatpush2.msra.mxu0 0.0
        %5200 = vmatprep.subr.mxu0 0.0
        %5201 = vmatpush2.msra.mxu0 0.0
        %5202 = vmatprep.subr.mxu0 0.0
        %5203 = vmatpush2.msra.mxu0 0.0
        %5204 = vmatprep.subr.mxu0 0.0
        %5205 = vmatpush2.msra.mxu0 0.0
        %5206 = vmatprep.subr.mxu0 0.0
        %5207 = vmatpush2.msra.mxu0 0.0
        %5208 = vmatprep.subr.mxu0 0.0
        %5209 = vmatpush2.msra.mxu0 0.0
        %5210 = vmatprep.subr.mxu0 0.0
        %5211 = vmatpush2.msra.mxu0 0.0
        %5212 = vmatprep.subr.mxu0 0.0
        %5213 = vmatpush2.msra.mxu0 0.0
        %5214 = vmatprep.subr.mxu0 0.0
        %5215 = vmatpush2.msra.mxu0 0.0
        %5216 = vmatprep.subr.mxu0 0.0
        %5217 = vmatpush2.msra.mxu0 0.0
        %5218 = vmatprep.subr.mxu0 0.0
        %5219 = vmatpush2.msra.mxu0 0.0
        %5220 = vmatprep.subr.mxu0 0.0
        %5221 = vmatpush2.msra.mxu0 0.0
        %5222 = vmatprep.subr.mxu0 0.0
        %5223 = vmatpush2.msra.mxu0 0.0
        %5224 = vmatprep.mubr.f32.mxu0 0.0
        %v5225 = vand.u32 %v5077, 4294901760
        %5226 = vmatmul.mubr.f32.gmra.mxu0 %v5225
        %v5227 = vpop.f32.mrf.mxu0
        %v5228 = vadd.f32 %v5152, %v5227
        %v5229 = vpop.f32.mrf.mxu0
        %5230 = vdwg.mxu0
        %5231 = vmatprep.subr.mxu0 0.0
        %5232 = vmatpush1.msra.mxu0 0.0
        %5233 = vmatprep.subr.mxu0 0.0
        %5234 = vmatpush1.msra.mxu0 0.0
        %5235 = vmatprep.subr.mxu0 0.0
        %5236 = vmatpush1.msra.mxu0 0.0
        %5237 = vmatprep.subr.mxu0 0.0
        %5238 = vmatpush1.msra.mxu0 0.0
        %5239 = vmatprep.subr.mxu0 0.0
        %5240 = vmatpush1.msra.mxu0 0.0
        %5241 = vmatprep.subr.mxu0 0.0
        %5242 = vmatpush1.msra.mxu0 0.0
        %5243 = vmatprep.subr.mxu0 0.0
        %5244 = vmatpush1.msra.mxu0 0.0
        %5245 = vmatprep.subr.mxu0 0.0
        %5246 = vmatpush1.msra.mxu0 0.0
        %5247 = vmatprep.subr.mxu0 0.0
        %5248 = vmatpush1.msra.mxu0 0.0
        %5249 = vmatprep.subr.mxu0 0.0
        %5250 = vmatpush1.msra.mxu0 0.0
        %5251 = vmatprep.subr.mxu0 0.0
        %5252 = vmatpush1.msra.mxu0 0.0
        %5253 = vmatprep.subr.mxu0 0.0
        %5254 = vmatpush1.msra.mxu0 0.0
        %5255 = vmatprep.subr.mxu0 0.0
        %5256 = vmatpush1.msra.mxu0 0.0
        %5257 = vmatprep.subr.mxu0 0.0
        %5258 = vmatpush1.msra.mxu0 0.0
        %5259 = vmatprep.subr.mxu0 0.0
        %5260 = vmatpush1.msra.mxu0 0.0
        %5261 = vmatprep.subr.mxu0 0.0
        %v5262 = vand.u32 %v2322, 4294901760
        %v5263 = vsub.f32 %v2322, %v5262
        %5264 = vmatpush1.msra.mxu0 %v5263
        %5265 = vmatprep.subr.mxu0 0.0
        %5266 = vmatpush2.msra.mxu0 0.0
        %5267 = vmatprep.subr.mxu0 0.0
        %5268 = vmatpush2.msra.mxu0 0.0
        %5269 = vmatprep.subr.mxu0 0.0
        %5270 = vmatpush2.msra.mxu0 0.0
        %5271 = vmatprep.subr.mxu0 0.0
        %5272 = vmatpush2.msra.mxu0 0.0
        %5273 = vmatprep.subr.mxu0 0.0
        %5274 = vmatpush2.msra.mxu0 0.0
        %5275 = vmatprep.subr.mxu0 0.0
        %5276 = vmatpush2.msra.mxu0 0.0
        %5277 = vmatprep.subr.mxu0 0.0
        %5278 = vmatpush2.msra.mxu0 0.0
        %5279 = vmatprep.subr.mxu0 0.0
        %5280 = vmatpush2.msra.mxu0 0.0
        %5281 = vmatprep.subr.mxu0 0.0
        %5282 = vmatpush2.msra.mxu0 0.0
        %5283 = vmatprep.subr.mxu0 0.0
        %5284 = vmatpush2.msra.mxu0 0.0
        %5285 = vmatprep.subr.mxu0 0.0
        %5286 = vmatpush2.msra.mxu0 0.0
        %5287 = vmatprep.subr.mxu0 0.0
        %5288 = vmatpush2.msra.mxu0 0.0
        %5289 = vmatprep.subr.mxu0 0.0
        %5290 = vmatpush2.msra.mxu0 0.0
        %5291 = vmatprep.subr.mxu0 0.0
        %5292 = vmatpush2.msra.mxu0 0.0
        %5293 = vmatprep.subr.mxu0 0.0
        %5294 = vmatpush2.msra.mxu0 0.0
        %5295 = vmatprep.subr.mxu0 0.0
        %5296 = vmatpush2.msra.mxu0 0.0
        %5297 = vmatprep.mubr.f32.mxu0 0.0
        %v5298 = vand.u32 %v5077, 4294901760
        %v5299 = vsub.f32 %v5077, %v5298
        %5300 = vmatmul.mubr.f32.gmra.mxu0 %v5299
        %v5301 = vpop.f32.mrf.mxu0
        %v5302 = vadd.f32 %v5228, %v5301
        %v5303 = vpop.f32.mrf.mxu0
        %5304 = vdwg.mxu0
        %5305 = vmatprep.subr.mxu0 0.0
        %5306 = vmatpush1.msra.mxu0 0.0
        %5307 = vmatprep.subr.mxu0 0.0
        %5308 = vmatpush1.msra.mxu0 0.0
        %5309 = vmatprep.subr.mxu0 0.0
        %5310 = vmatpush1.msra.mxu0 0.0
        %5311 = vmatprep.subr.mxu0 0.0
        %5312 = vmatpush1.msra.mxu0 0.0
        %5313 = vmatprep.subr.mxu0 0.0
        %5314 = vmatpush1.msra.mxu0 0.0
        %5315 = vmatprep.subr.mxu0 0.0
        %5316 = vmatpush1.msra.mxu0 0.0
        %5317 = vmatprep.subr.mxu0 0.0
        %5318 = vmatpush1.msra.mxu0 0.0
        %5319 = vmatprep.subr.mxu0 0.0
        %5320 = vmatpush1.msra.mxu0 0.0
        %5321 = vmatprep.subr.mxu0 0.0
        %5322 = vmatpush1.msra.mxu0 0.0
        %5323 = vmatprep.subr.mxu0 0.0
        %5324 = vmatpush1.msra.mxu0 0.0
        %5325 = vmatprep.subr.mxu0 0.0
        %5326 = vmatpush1.msra.mxu0 0.0
        %5327 = vmatprep.subr.mxu0 0.0
        %5328 = vmatpush1.msra.mxu0 0.0
        %5329 = vmatprep.subr.mxu0 0.0
        %5330 = vmatpush1.msra.mxu0 0.0
        %5331 = vmatprep.subr.mxu0 0.0
        %5332 = vmatpush1.msra.mxu0 0.0
        %5333 = vmatprep.subr.mxu0 0.0
        %5334 = vmatpush1.msra.mxu0 0.0
        %5335 = vmatprep.subr.mxu0 0.0
        %v5336 = vand.u32 %v2322, 4294901760
        %5337 = vmatpush1.msra.mxu0 %v5336
        %5338 = vmatprep.subr.mxu0 0.0
        %5339 = vmatpush2.msra.mxu0 0.0
        %5340 = vmatprep.subr.mxu0 0.0
        %5341 = vmatpush2.msra.mxu0 0.0
        %5342 = vmatprep.subr.mxu0 0.0
        %5343 = vmatpush2.msra.mxu0 0.0
        %5344 = vmatprep.subr.mxu0 0.0
        %5345 = vmatpush2.msra.mxu0 0.0
        %5346 = vmatprep.subr.mxu0 0.0
        %5347 = vmatpush2.msra.mxu0 0.0
        %5348 = vmatprep.subr.mxu0 0.0
        %5349 = vmatpush2.msra.mxu0 0.0
        %5350 = vmatprep.subr.mxu0 0.0
        %5351 = vmatpush2.msra.mxu0 0.0
        %5352 = vmatprep.subr.mxu0 0.0
        %5353 = vmatpush2.msra.mxu0 0.0
        %5354 = vmatprep.subr.mxu0 0.0
        %5355 = vmatpush2.msra.mxu0 0.0
        %5356 = vmatprep.subr.mxu0 0.0
        %5357 = vmatpush2.msra.mxu0 0.0
        %5358 = vmatprep.subr.mxu0 0.0
        %5359 = vmatpush2.msra.mxu0 0.0
        %5360 = vmatprep.subr.mxu0 0.0
        %5361 = vmatpush2.msra.mxu0 0.0
        %5362 = vmatprep.subr.mxu0 0.0
        %5363 = vmatpush2.msra.mxu0 0.0
        %5364 = vmatprep.subr.mxu0 0.0
        %5365 = vmatpush2.msra.mxu0 0.0
        %5366 = vmatprep.subr.mxu0 0.0
        %5367 = vmatpush2.msra.mxu0 0.0
        %5368 = vmatprep.subr.mxu0 0.0
        %5369 = vmatpush2.msra.mxu0 0.0
        %5370 = vmatprep.mubr.f32.mxu0 0.0
        %v5371 = vand.u32 %v5077, 4294901760
        %v5372 = vsub.f32 %v5077, %v5371
        %v5373 = vand.u32 %v5372, 4294901760
        %5374 = vmatmul.mubr.f32.gmra.mxu0 %v5373
        %v5375 = vpop.f32.mrf.mxu0
        %v5376 = vadd.f32 %v5302, %v5375
        %v5377 = vpop.f32.mrf.mxu0
        %5378 = vdwg.mxu0
        %5379 = vmatprep.subr.mxu0 0.0
        %5380 = vmatpush1.msra.mxu0 0.0
        %5381 = vmatprep.subr.mxu0 0.0
        %5382 = vmatpush1.msra.mxu0 0.0
        %5383 = vmatprep.subr.mxu0 0.0
        %5384 = vmatpush1.msra.mxu0 0.0
        %5385 = vmatprep.subr.mxu0 0.0
        %5386 = vmatpush1.msra.mxu0 0.0
        %5387 = vmatprep.subr.mxu0 0.0
        %5388 = vmatpush1.msra.mxu0 0.0
        %5389 = vmatprep.subr.mxu0 0.0
        %5390 = vmatpush1.msra.mxu0 0.0
        %5391 = vmatprep.subr.mxu0 0.0
        %5392 = vmatpush1.msra.mxu0 0.0
        %5393 = vmatprep.subr.mxu0 0.0
        %5394 = vmatpush1.msra.mxu0 0.0
        %5395 = vmatprep.subr.mxu0 0.0
        %5396 = vmatpush1.msra.mxu0 0.0
        %5397 = vmatprep.subr.mxu0 0.0
        %5398 = vmatpush1.msra.mxu0 0.0
        %5399 = vmatprep.subr.mxu0 0.0
        %5400 = vmatpush1.msra.mxu0 0.0
        %5401 = vmatprep.subr.mxu0 0.0
        %5402 = vmatpush1.msra.mxu0 0.0
        %5403 = vmatprep.subr.mxu0 0.0
        %5404 = vmatpush1.msra.mxu0 0.0
        %5405 = vmatprep.subr.mxu0 0.0
        %5406 = vmatpush1.msra.mxu0 0.0
        %5407 = vmatprep.subr.mxu0 0.0
        %5408 = vmatpush1.msra.mxu0 0.0
        %5409 = vmatprep.subr.mxu0 0.0
        %v5410 = vand.u32 %v2322, 4294901760
        %v5411 = vsub.f32 %v2322, %v5410
        %v5412 = vand.u32 %v5411, 4294901760
        %5413 = vmatpush1.msra.mxu0 %v5412
        %5414 = vmatprep.subr.mxu0 0.0
        %5415 = vmatpush2.msra.mxu0 0.0
        %5416 = vmatprep.subr.mxu0 0.0
        %5417 = vmatpush2.msra.mxu0 0.0
        %5418 = vmatprep.subr.mxu0 0.0
        %5419 = vmatpush2.msra.mxu0 0.0
        %5420 = vmatprep.subr.mxu0 0.0
        %5421 = vmatpush2.msra.mxu0 0.0
        %5422 = vmatprep.subr.mxu0 0.0
        %5423 = vmatpush2.msra.mxu0 0.0
        %5424 = vmatprep.subr.mxu0 0.0
        %5425 = vmatpush2.msra.mxu0 0.0
        %5426 = vmatprep.subr.mxu0 0.0
        %5427 = vmatpush2.msra.mxu0 0.0
        %5428 = vmatprep.subr.mxu0 0.0
        %5429 = vmatpush2.msra.mxu0 0.0
        %5430 = vmatprep.subr.mxu0 0.0
        %5431 = vmatpush2.msra.mxu0 0.0
        %5432 = vmatprep.subr.mxu0 0.0
        %5433 = vmatpush2.msra.mxu0 0.0
        %5434 = vmatprep.subr.mxu0 0.0
        %5435 = vmatpush2.msra.mxu0 0.0
        %5436 = vmatprep.subr.mxu0 0.0
        %5437 = vmatpush2.msra.mxu0 0.0
        %5438 = vmatprep.subr.mxu0 0.0
        %5439 = vmatpush2.msra.mxu0 0.0
        %5440 = vmatprep.subr.mxu0 0.0
        %5441 = vmatpush2.msra.mxu0 0.0
        %5442 = vmatprep.subr.mxu0 0.0
        %5443 = vmatpush2.msra.mxu0 0.0
        %5444 = vmatprep.subr.mxu0 0.0
        %5445 = vmatpush2.msra.mxu0 0.0
        %5446 = vmatprep.mubr.f32.mxu0 0.0
        %v5447 = vand.u32 %v5077, 4294901760
        %5448 = vmatmul.mubr.f32.gmra.mxu0 %v5447
        %v5449 = vpop.f32.mrf.mxu0
        %v5450 = vadd.f32 %v5376, %v5449
        %v5451 = vpop.f32.mrf.mxu0
        %5452 = vdwg.mxu0
        %5453 = vmatprep.subr.mxu0 0.0
        %5454 = vmatpush1.msra.mxu0 0.0
        %5455 = vmatprep.subr.mxu0 0.0
        %5456 = vmatpush1.msra.mxu0 0.0
        %5457 = vmatprep.subr.mxu0 0.0
        %5458 = vmatpush1.msra.mxu0 0.0
        %5459 = vmatprep.subr.mxu0 0.0
        %5460 = vmatpush1.msra.mxu0 0.0
        %5461 = vmatprep.subr.mxu0 0.0
        %5462 = vmatpush1.msra.mxu0 0.0
        %5463 = vmatprep.subr.mxu0 0.0
        %5464 = vmatpush1.msra.mxu0 0.0
        %5465 = vmatprep.subr.mxu0 0.0
        %5466 = vmatpush1.msra.mxu0 0.0
        %5467 = vmatprep.subr.mxu0 0.0
        %5468 = vmatpush1.msra.mxu0 0.0
        %5469 = vmatprep.subr.mxu0 0.0
        %5470 = vmatpush1.msra.mxu0 0.0
        %5471 = vmatprep.subr.mxu0 0.0
        %5472 = vmatpush1.msra.mxu0 0.0
        %5473 = vmatprep.subr.mxu0 0.0
        %5474 = vmatpush1.msra.mxu0 0.0
        %5475 = vmatprep.subr.mxu0 0.0
        %5476 = vmatpush1.msra.mxu0 0.0
        %5477 = vmatprep.subr.mxu0 0.0
        %5478 = vmatpush1.msra.mxu0 0.0
        %5479 = vmatprep.subr.mxu0 0.0
        %5480 = vmatpush1.msra.mxu0 0.0
        %5481 = vmatprep.subr.mxu0 0.0
        %5482 = vmatpush1.msra.mxu0 0.0
        %5483 = vmatprep.subr.mxu0 0.0
        %v5484 = vand.u32 %v2322, 4294901760
        %5485 = vmatpush1.msra.mxu0 %v5484
        %5486 = vmatprep.subr.mxu0 0.0
        %5487 = vmatpush2.msra.mxu0 0.0
        %5488 = vmatprep.subr.mxu0 0.0
        %5489 = vmatpush2.msra.mxu0 0.0
        %5490 = vmatprep.subr.mxu0 0.0
        %5491 = vmatpush2.msra.mxu0 0.0
        %5492 = vmatprep.subr.mxu0 0.0
        %5493 = vmatpush2.msra.mxu0 0.0
        %5494 = vmatprep.subr.mxu0 0.0
        %5495 = vmatpush2.msra.mxu0 0.0
        %5496 = vmatprep.subr.mxu0 0.0
        %5497 = vmatpush2.msra.mxu0 0.0
        %5498 = vmatprep.subr.mxu0 0.0
        %5499 = vmatpush2.msra.mxu0 0.0
        %5500 = vmatprep.subr.mxu0 0.0
        %5501 = vmatpush2.msra.mxu0 0.0
        %5502 = vmatprep.subr.mxu0 0.0
        %5503 = vmatpush2.msra.mxu0 0.0
        %5504 = vmatprep.subr.mxu0 0.0
        %5505 = vmatpush2.msra.mxu0 0.0
        %5506 = vmatprep.subr.mxu0 0.0
        %5507 = vmatpush2.msra.mxu0 0.0
        %5508 = vmatprep.subr.mxu0 0.0
        %5509 = vmatpush2.msra.mxu0 0.0
        %5510 = vmatprep.subr.mxu0 0.0
        %5511 = vmatpush2.msra.mxu0 0.0
        %5512 = vmatprep.subr.mxu0 0.0
        %5513 = vmatpush2.msra.mxu0 0.0
        %5514 = vmatprep.subr.mxu0 0.0
        %5515 = vmatpush2.msra.mxu0 0.0
        %5516 = vmatprep.subr.mxu0 0.0
        %5517 = vmatpush2.msra.mxu0 0.0
        %5518 = vmatprep.mubr.f32.mxu0 0.0
        %v5519 = vand.u32 %v5077, 4294901760
        %5520 = vmatmul.mubr.f32.gmra.mxu0 %v5519
        %v5521 = vpop.f32.mrf.mxu0
        %v5522 = vadd.f32 %v5450, %v5521
        %v5523 = vpop.f32.mrf.mxu0
        %5524 = vdwg.mxu0
        %v5526 = vsel %vm4133, %v4177, 0
        %5528 = vmatprep.subr.mxu0 0.0
        %5529 = vmatpush1.msra.mxu0 0.0
        %5530 = vmatprep.subr.mxu0 0.0
        %5531 = vmatpush1.msra.mxu0 0.0
        %5532 = vmatprep.subr.mxu0 0.0
        %5533 = vmatpush1.msra.mxu0 0.0
        %5534 = vmatprep.subr.mxu0 0.0
        %5535 = vmatpush1.msra.mxu0 0.0
        %5536 = vmatprep.subr.mxu0 0.0
        %5537 = vmatpush1.msra.mxu0 0.0
        %5538 = vmatprep.subr.mxu0 0.0
        %5539 = vmatpush1.msra.mxu0 0.0
        %5540 = vmatprep.subr.mxu0 0.0
        %5541 = vmatpush1.msra.mxu0 0.0
        %5542 = vmatprep.subr.mxu0 0.0
        %5543 = vmatpush1.msra.mxu0 0.0
        %5544 = vmatprep.subr.mxu0 0.0
        %5545 = vmatpush1.msra.mxu0 0.0
        %5546 = vmatprep.subr.mxu0 0.0
        %5547 = vmatpush1.msra.mxu0 0.0
        %5548 = vmatprep.subr.mxu0 0.0
        %5549 = vmatpush1.msra.mxu0 0.0
        %5550 = vmatprep.subr.mxu0 0.0
        %5551 = vmatpush1.msra.mxu0 0.0
        %5552 = vmatprep.subr.mxu0 0.0
        %5553 = vmatpush1.msra.mxu0 0.0
        %5554 = vmatprep.subr.mxu0 0.0
        %5555 = vmatpush1.msra.mxu0 0.0
        %5556 = vmatprep.subr.mxu0 0.0
        %5557 = vmatpush1.msra.mxu0 0.0
        %5558 = vmatprep.subr.mxu0 0.0
        %v5559 = vand.u32 %v2323, 4294901760
        %5560 = vmatpush1.msra.mxu0 %v5559
        %5561 = vmatprep.subr.mxu0 0.0
        %5562 = vmatpush2.msra.mxu0 0.0
        %5563 = vmatprep.subr.mxu0 0.0
        %5564 = vmatpush2.msra.mxu0 0.0
        %5565 = vmatprep.subr.mxu0 0.0
        %5566 = vmatpush2.msra.mxu0 0.0
        %5567 = vmatprep.subr.mxu0 0.0
        %5568 = vmatpush2.msra.mxu0 0.0
        %5569 = vmatprep.subr.mxu0 0.0
        %5570 = vmatpush2.msra.mxu0 0.0
        %5571 = vmatprep.subr.mxu0 0.0
        %5572 = vmatpush2.msra.mxu0 0.0
        %5573 = vmatprep.subr.mxu0 0.0
        %5574 = vmatpush2.msra.mxu0 0.0
        %5575 = vmatprep.subr.mxu0 0.0
        %5576 = vmatpush2.msra.mxu0 0.0
        %5577 = vmatprep.subr.mxu0 0.0
        %5578 = vmatpush2.msra.mxu0 0.0
        %5579 = vmatprep.subr.mxu0 0.0
        %5580 = vmatpush2.msra.mxu0 0.0
        %5581 = vmatprep.subr.mxu0 0.0
        %5582 = vmatpush2.msra.mxu0 0.0
        %5583 = vmatprep.subr.mxu0 0.0
        %5584 = vmatpush2.msra.mxu0 0.0
        %5585 = vmatprep.subr.mxu0 0.0
        %5586 = vmatpush2.msra.mxu0 0.0
        %5587 = vmatprep.subr.mxu0 0.0
        %5588 = vmatpush2.msra.mxu0 0.0
        %5589 = vmatprep.subr.mxu0 0.0
        %5590 = vmatpush2.msra.mxu0 0.0
        %5591 = vmatprep.subr.mxu0 0.0
        %5592 = vmatpush2.msra.mxu0 0.0
        %5593 = vmatprep.mubr.f32.mxu0 0.0
        %v5594 = vand.u32 %v5526, 4294901760
        %v5595 = vsub.f32 %v5526, %v5594
        %v5596 = vand.u32 %v5595, 4294901760
        %v5597 = vsub.f32 %v5595, %v5596
        %v5598 = vand.u32 %v5597, 4294901760
        %5599 = vmatmul.mubr.f32.gmra.mxu0 %v5598
        %v5600 = vpop.f32.mrf.mxu0
        %v5601 = vadd.f32 0.0, %v5600
        %v5602 = vpop.f32.mrf.mxu0
        %5603 = vdwg.mxu0
        %5604 = vmatprep.subr.mxu0 0.0
        %5605 = vmatpush1.msra.mxu0 0.0
        %5606 = vmatprep.subr.mxu0 0.0
        %5607 = vmatpush1.msra.mxu0 0.0
        %5608 = vmatprep.subr.mxu0 0.0
        %5609 = vmatpush1.msra.mxu0 0.0
        %5610 = vmatprep.subr.mxu0 0.0
        %5611 = vmatpush1.msra.mxu0 0.0
        %5612 = vmatprep.subr.mxu0 0.0
        %5613 = vmatpush1.msra.mxu0 0.0
        %5614 = vmatprep.subr.mxu0 0.0
        %5615 = vmatpush1.msra.mxu0 0.0
        %5616 = vmatprep.subr.mxu0 0.0
        %5617 = vmatpush1.msra.mxu0 0.0
        %5618 = vmatprep.subr.mxu0 0.0
        %5619 = vmatpush1.msra.mxu0 0.0
        %5620 = vmatprep.subr.mxu0 0.0
        %5621 = vmatpush1.msra.mxu0 0.0
        %5622 = vmatprep.subr.mxu0 0.0
        %5623 = vmatpush1.msra.mxu0 0.0
        %5624 = vmatprep.subr.mxu0 0.0
        %5625 = vmatpush1.msra.mxu0 0.0
        %5626 = vmatprep.subr.mxu0 0.0
        %5627 = vmatpush1.msra.mxu0 0.0
        %5628 = vmatprep.subr.mxu0 0.0
        %5629 = vmatpush1.msra.mxu0 0.0
        %5630 = vmatprep.subr.mxu0 0.0
        %5631 = vmatpush1.msra.mxu0 0.0
        %5632 = vmatprep.subr.mxu0 0.0
        %5633 = vmatpush1.msra.mxu0 0.0
        %5634 = vmatprep.subr.mxu0 0.0
        %v5635 = vand.u32 %v2323, 4294901760
        %v5636 = vsub.f32 %v2323, %v5635
        %v5637 = vand.u32 %v5636, 4294901760
        %v5638 = vsub.f32 %v5636, %v5637
        %v5639 = vand.u32 %v5638, 4294901760
        %5640 = vmatpush1.msra.mxu0 %v5639
        %5641 = vmatprep.subr.mxu0 0.0
        %5642 = vmatpush2.msra.mxu0 0.0
        %5643 = vmatprep.subr.mxu0 0.0
        %5644 = vmatpush2.msra.mxu0 0.0
        %5645 = vmatprep.subr.mxu0 0.0
        %5646 = vmatpush2.msra.mxu0 0.0
        %5647 = vmatprep.subr.mxu0 0.0
        %5648 = vmatpush2.msra.mxu0 0.0
        %5649 = vmatprep.subr.mxu0 0.0
        %5650 = vmatpush2.msra.mxu0 0.0
        %5651 = vmatprep.subr.mxu0 0.0
        %5652 = vmatpush2.msra.mxu0 0.0
        %5653 = vmatprep.subr.mxu0 0.0
        %5654 = vmatpush2.msra.mxu0 0.0
        %5655 = vmatprep.subr.mxu0 0.0
        %5656 = vmatpush2.msra.mxu0 0.0
        %5657 = vmatprep.subr.mxu0 0.0
        %5658 = vmatpush2.msra.mxu0 0.0
        %5659 = vmatprep.subr.mxu0 0.0
        %5660 = vmatpush2.msra.mxu0 0.0
        %5661 = vmatprep.subr.mxu0 0.0
        %5662 = vmatpush2.msra.mxu0 0.0
        %5663 = vmatprep.subr.mxu0 0.0
        %5664 = vmatpush2.msra.mxu0 0.0
        %5665 = vmatprep.subr.mxu0 0.0
        %5666 = vmatpush2.msra.mxu0 0.0
        %5667 = vmatprep.subr.mxu0 0.0
        %5668 = vmatpush2.msra.mxu0 0.0
        %5669 = vmatprep.subr.mxu0 0.0
        %5670 = vmatpush2.msra.mxu0 0.0
        %5671 = vmatprep.subr.mxu0 0.0
        %5672 = vmatpush2.msra.mxu0 0.0
        %5673 = vmatprep.mubr.f32.mxu0 0.0
        %v5674 = vand.u32 %v5526, 4294901760
        %5675 = vmatmul.mubr.f32.gmra.mxu0 %v5674
        %v5676 = vpop.f32.mrf.mxu0
        %v5677 = vadd.f32 %v5601, %v5676
        %v5678 = vpop.f32.mrf.mxu0
        %5679 = vdwg.mxu0
        %5680 = vmatprep.subr.mxu0 0.0
        %5681 = vmatpush1.msra.mxu0 0.0
        %5682 = vmatprep.subr.mxu0 0.0
        %5683 = vmatpush1.msra.mxu0 0.0
        %5684 = vmatprep.subr.mxu0 0.0
        %5685 = vmatpush1.msra.mxu0 0.0
        %5686 = vmatprep.subr.mxu0 0.0
        %5687 = vmatpush1.msra.mxu0 0.0
        %5688 = vmatprep.subr.mxu0 0.0
        %5689 = vmatpush1.msra.mxu0 0.0
        %5690 = vmatprep.subr.mxu0 0.0
        %5691 = vmatpush1.msra.mxu0 0.0
        %5692 = vmatprep.subr.mxu0 0.0
        %5693 = vmatpush1.msra.mxu0 0.0
        %5694 = vmatprep.subr.mxu0 0.0
        %5695 = vmatpush1.msra.mxu0 0.0
        %5696 = vmatprep.subr.mxu0 0.0
        %5697 = vmatpush1.msra.mxu0 0.0
        %5698 = vmatprep.subr.mxu0 0.0
        %5699 = vmatpush1.msra.mxu0 0.0
        %5700 = vmatprep.subr.mxu0 0.0
        %5701 = vmatpush1.msra.mxu0 0.0
        %5702 = vmatprep.subr.mxu0 0.0
        %5703 = vmatpush1.msra.mxu0 0.0
        %5704 = vmatprep.subr.mxu0 0.0
        %5705 = vmatpush1.msra.mxu0 0.0
        %5706 = vmatprep.subr.mxu0 0.0
        %5707 = vmatpush1.msra.mxu0 0.0
        %5708 = vmatprep.subr.mxu0 0.0
        %5709 = vmatpush1.msra.mxu0 0.0
        %5710 = vmatprep.subr.mxu0 0.0
        %v5711 = vand.u32 %v2323, 4294901760
        %v5712 = vsub.f32 %v2323, %v5711
        %5713 = vmatpush1.msra.mxu0 %v5712
        %5714 = vmatprep.subr.mxu0 0.0
        %5715 = vmatpush2.msra.mxu0 0.0
        %5716 = vmatprep.subr.mxu0 0.0
        %5717 = vmatpush2.msra.mxu0 0.0
        %5718 = vmatprep.subr.mxu0 0.0
        %5719 = vmatpush2.msra.mxu0 0.0
        %5720 = vmatprep.subr.mxu0 0.0
        %5721 = vmatpush2.msra.mxu0 0.0
        %5722 = vmatprep.subr.mxu0 0.0
        %5723 = vmatpush2.msra.mxu0 0.0
        %5724 = vmatprep.subr.mxu0 0.0
        %5725 = vmatpush2.msra.mxu0 0.0
        %5726 = vmatprep.subr.mxu0 0.0
        %5727 = vmatpush2.msra.mxu0 0.0
        %5728 = vmatprep.subr.mxu0 0.0
        %5729 = vmatpush2.msra.mxu0 0.0
        %5730 = vmatprep.subr.mxu0 0.0
        %5731 = vmatpush2.msra.mxu0 0.0
        %5732 = vmatprep.subr.mxu0 0.0
        %5733 = vmatpush2.msra.mxu0 0.0
        %5734 = vmatprep.subr.mxu0 0.0
        %5735 = vmatpush2.msra.mxu0 0.0
        %5736 = vmatprep.subr.mxu0 0.0
        %5737 = vmatpush2.msra.mxu0 0.0
        %5738 = vmatprep.subr.mxu0 0.0
        %5739 = vmatpush2.msra.mxu0 0.0
        %5740 = vmatprep.subr.mxu0 0.0
        %5741 = vmatpush2.msra.mxu0 0.0
        %5742 = vmatprep.subr.mxu0 0.0
        %5743 = vmatpush2.msra.mxu0 0.0
        %5744 = vmatprep.subr.mxu0 0.0
        %5745 = vmatpush2.msra.mxu0 0.0
        %5746 = vmatprep.mubr.f32.mxu0 0.0
        %v5747 = vand.u32 %v5526, 4294901760
        %v5748 = vsub.f32 %v5526, %v5747
        %5749 = vmatmul.mubr.f32.gmra.mxu0 %v5748
        %v5750 = vpop.f32.mrf.mxu0
        %v5751 = vadd.f32 %v5677, %v5750
        %v5752 = vpop.f32.mrf.mxu0
        %5753 = vdwg.mxu0
        %5754 = vmatprep.subr.mxu0 0.0
        %5755 = vmatpush1.msra.mxu0 0.0
        %5756 = vmatprep.subr.mxu0 0.0
        %5757 = vmatpush1.msra.mxu0 0.0
        %5758 = vmatprep.subr.mxu0 0.0
        %5759 = vmatpush1.msra.mxu0 0.0
        %5760 = vmatprep.subr.mxu0 0.0
        %5761 = vmatpush1.msra.mxu0 0.0
        %5762 = vmatprep.subr.mxu0 0.0
        %5763 = vmatpush1.msra.mxu0 0.0
        %5764 = vmatprep.subr.mxu0 0.0
        %5765 = vmatpush1.msra.mxu0 0.0
        %5766 = vmatprep.subr.mxu0 0.0
        %5767 = vmatpush1.msra.mxu0 0.0
        %5768 = vmatprep.subr.mxu0 0.0
        %5769 = vmatpush1.msra.mxu0 0.0
        %5770 = vmatprep.subr.mxu0 0.0
        %5771 = vmatpush1.msra.mxu0 0.0
        %5772 = vmatprep.subr.mxu0 0.0
        %5773 = vmatpush1.msra.mxu0 0.0
        %5774 = vmatprep.subr.mxu0 0.0
        %5775 = vmatpush1.msra.mxu0 0.0
        %5776 = vmatprep.subr.mxu0 0.0
        %5777 = vmatpush1.msra.mxu0 0.0
        %5778 = vmatprep.subr.mxu0 0.0
        %5779 = vmatpush1.msra.mxu0 0.0
        %5780 = vmatprep.subr.mxu0 0.0
        %5781 = vmatpush1.msra.mxu0 0.0
        %5782 = vmatprep.subr.mxu0 0.0
        %5783 = vmatpush1.msra.mxu0 0.0
        %5784 = vmatprep.subr.mxu0 0.0
        %v5785 = vand.u32 %v2323, 4294901760
        %5786 = vmatpush1.msra.mxu0 %v5785
        %5787 = vmatprep.subr.mxu0 0.0
        %5788 = vmatpush2.msra.mxu0 0.0
        %5789 = vmatprep.subr.mxu0 0.0
        %5790 = vmatpush2.msra.mxu0 0.0
        %5791 = vmatprep.subr.mxu0 0.0
        %5792 = vmatpush2.msra.mxu0 0.0
        %5793 = vmatprep.subr.mxu0 0.0
        %5794 = vmatpush2.msra.mxu0 0.0
        %5795 = vmatprep.subr.mxu0 0.0
        %5796 = vmatpush2.msra.mxu0 0.0
        %5797 = vmatprep.subr.mxu0 0.0
        %5798 = vmatpush2.msra.mxu0 0.0
        %5799 = vmatprep.subr.mxu0 0.0
        %5800 = vmatpush2.msra.mxu0 0.0
        %5801 = vmatprep.subr.mxu0 0.0
        %5802 = vmatpush2.msra.mxu0 0.0
        %5803 = vmatprep.subr.mxu0 0.0
        %5804 = vmatpush2.msra.mxu0 0.0
        %5805 = vmatprep.subr.mxu0 0.0
        %5806 = vmatpush2.msra.mxu0 0.0
        %5807 = vmatprep.subr.mxu0 0.0
        %5808 = vmatpush2.msra.mxu0 0.0
        %5809 = vmatprep.subr.mxu0 0.0
        %5810 = vmatpush2.msra.mxu0 0.0
        %5811 = vmatprep.subr.mxu0 0.0
        %5812 = vmatpush2.msra.mxu0 0.0
        %5813 = vmatprep.subr.mxu0 0.0
        %5814 = vmatpush2.msra.mxu0 0.0
        %5815 = vmatprep.subr.mxu0 0.0
        %5816 = vmatpush2.msra.mxu0 0.0
        %5817 = vmatprep.subr.mxu0 0.0
        %5818 = vmatpush2.msra.mxu0 0.0
        %5819 = vmatprep.mubr.f32.mxu0 0.0
        %v5820 = vand.u32 %v5526, 4294901760
        %v5821 = vsub.f32 %v5526, %v5820
        %v5822 = vand.u32 %v5821, 4294901760
        %5823 = vmatmul.mubr.f32.gmra.mxu0 %v5822
        %v5824 = vpop.f32.mrf.mxu0
        %v5825 = vadd.f32 %v5751, %v5824
        %v5826 = vpop.f32.mrf.mxu0
        %5827 = vdwg.mxu0
        %5828 = vmatprep.subr.mxu0 0.0
        %5829 = vmatpush1.msra.mxu0 0.0
        %5830 = vmatprep.subr.mxu0 0.0
        %5831 = vmatpush1.msra.mxu0 0.0
        %5832 = vmatprep.subr.mxu0 0.0
        %5833 = vmatpush1.msra.mxu0 0.0
        %5834 = vmatprep.subr.mxu0 0.0
        %5835 = vmatpush1.msra.mxu0 0.0
        %5836 = vmatprep.subr.mxu0 0.0
        %5837 = vmatpush1.msra.mxu0 0.0
        %5838 = vmatprep.subr.mxu0 0.0
        %5839 = vmatpush1.msra.mxu0 0.0
        %5840 = vmatprep.subr.mxu0 0.0
        %5841 = vmatpush1.msra.mxu0 0.0
        %5842 = vmatprep.subr.mxu0 0.0
        %5843 = vmatpush1.msra.mxu0 0.0
        %5844 = vmatprep.subr.mxu0 0.0
        %5845 = vmatpush1.msra.mxu0 0.0
        %5846 = vmatprep.subr.mxu0 0.0
        %5847 = vmatpush1.msra.mxu0 0.0
        %5848 = vmatprep.subr.mxu0 0.0
        %5849 = vmatpush1.msra.mxu0 0.0
        %5850 = vmatprep.subr.mxu0 0.0
        %5851 = vmatpush1.msra.mxu0 0.0
        %5852 = vmatprep.subr.mxu0 0.0
        %5853 = vmatpush1.msra.mxu0 0.0
        %5854 = vmatprep.subr.mxu0 0.0
        %5855 = vmatpush1.msra.mxu0 0.0
        %5856 = vmatprep.subr.mxu0 0.0
        %5857 = vmatpush1.msra.mxu0 0.0
        %5858 = vmatprep.subr.mxu0 0.0
        %v5859 = vand.u32 %v2323, 4294901760
        %v5860 = vsub.f32 %v2323, %v5859
        %v5861 = vand.u32 %v5860, 4294901760
        %5862 = vmatpush1.msra.mxu0 %v5861
        %5863 = vmatprep.subr.mxu0 0.0
        %5864 = vmatpush2.msra.mxu0 0.0
        %5865 = vmatprep.subr.mxu0 0.0
        %5866 = vmatpush2.msra.mxu0 0.0
        %5867 = vmatprep.subr.mxu0 0.0
        %5868 = vmatpush2.msra.mxu0 0.0
        %5869 = vmatprep.subr.mxu0 0.0
        %5870 = vmatpush2.msra.mxu0 0.0
        %5871 = vmatprep.subr.mxu0 0.0
        %5872 = vmatpush2.msra.mxu0 0.0
        %5873 = vmatprep.subr.mxu0 0.0
        %5874 = vmatpush2.msra.mxu0 0.0
        %5875 = vmatprep.subr.mxu0 0.0
        %5876 = vmatpush2.msra.mxu0 0.0
        %5877 = vmatprep.subr.mxu0 0.0
        %5878 = vmatpush2.msra.mxu0 0.0
        %5879 = vmatprep.subr.mxu0 0.0
        %5880 = vmatpush2.msra.mxu0 0.0
        %5881 = vmatprep.subr.mxu0 0.0
        %5882 = vmatpush2.msra.mxu0 0.0
        %5883 = vmatprep.subr.mxu0 0.0
        %5884 = vmatpush2.msra.mxu0 0.0
        %5885 = vmatprep.subr.mxu0 0.0
        %5886 = vmatpush2.msra.mxu0 0.0
        %5887 = vmatprep.subr.mxu0 0.0
        %5888 = vmatpush2.msra.mxu0 0.0
        %5889 = vmatprep.subr.mxu0 0.0
        %5890 = vmatpush2.msra.mxu0 0.0
        %5891 = vmatprep.subr.mxu0 0.0
        %5892 = vmatpush2.msra.mxu0 0.0
        %5893 = vmatprep.subr.mxu0 0.0
        %5894 = vmatpush2.msra.mxu0 0.0
        %5895 = vmatprep.mubr.f32.mxu0 0.0
        %v5896 = vand.u32 %v5526, 4294901760
        %5897 = vmatmul.mubr.f32.gmra.mxu0 %v5896
        %v5898 = vpop.f32.mrf.mxu0
        %v5899 = vadd.f32 %v5825, %v5898
        %v5900 = vpop.f32.mrf.mxu0
        %5901 = vdwg.mxu0
        %5902 = vmatprep.subr.mxu0 0.0
        %5903 = vmatpush1.msra.mxu0 0.0
        %5904 = vmatprep.subr.mxu0 0.0
        %5905 = vmatpush1.msra.mxu0 0.0
        %5906 = vmatprep.subr.mxu0 0.0
        %5907 = vmatpush1.msra.mxu0 0.0
        %5908 = vmatprep.subr.mxu0 0.0
        %5909 = vmatpush1.msra.mxu0 0.0
        %5910 = vmatprep.subr.mxu0 0.0
        %5911 = vmatpush1.msra.mxu0 0.0
        %5912 = vmatprep.subr.mxu0 0.0
        %5913 = vmatpush1.msra.mxu0 0.0
        %5914 = vmatprep.subr.mxu0 0.0
        %5915 = vmatpush1.msra.mxu0 0.0
        %5916 = vmatprep.subr.mxu0 0.0
        %5917 = vmatpush1.msra.mxu0 0.0
        %5918 = vmatprep.subr.mxu0 0.0
        %5919 = vmatpush1.msra.mxu0 0.0
        %5920 = vmatprep.subr.mxu0 0.0
        %5921 = vmatpush1.msra.mxu0 0.0
        %5922 = vmatprep.subr.mxu0 0.0
        %5923 = vmatpush1.msra.mxu0 0.0
        %5924 = vmatprep.subr.mxu0 0.0
        %5925 = vmatpush1.msra.mxu0 0.0
        %5926 = vmatprep.subr.mxu0 0.0
        %5927 = vmatpush1.msra.mxu0 0.0
        %5928 = vmatprep.subr.mxu0 0.0
        %5929 = vmatpush1.msra.mxu0 0.0
        %5930 = vmatprep.subr.mxu0 0.0
        %5931 = vmatpush1.msra.mxu0 0.0
        %5932 = vmatprep.subr.mxu0 0.0
        %v5933 = vand.u32 %v2323, 4294901760
        %5934 = vmatpush1.msra.mxu0 %v5933
        %5935 = vmatprep.subr.mxu0 0.0
        %5936 = vmatpush2.msra.mxu0 0.0
        %5937 = vmatprep.subr.mxu0 0.0
        %5938 = vmatpush2.msra.mxu0 0.0
        %5939 = vmatprep.subr.mxu0 0.0
        %5940 = vmatpush2.msra.mxu0 0.0
        %5941 = vmatprep.subr.mxu0 0.0
        %5942 = vmatpush2.msra.mxu0 0.0
        %5943 = vmatprep.subr.mxu0 0.0
        %5944 = vmatpush2.msra.mxu0 0.0
        %5945 = vmatprep.subr.mxu0 0.0
        %5946 = vmatpush2.msra.mxu0 0.0
        %5947 = vmatprep.subr.mxu0 0.0
        %5948 = vmatpush2.msra.mxu0 0.0
        %5949 = vmatprep.subr.mxu0 0.0
        %5950 = vmatpush2.msra.mxu0 0.0
        %5951 = vmatprep.subr.mxu0 0.0
        %5952 = vmatpush2.msra.mxu0 0.0
        %5953 = vmatprep.subr.mxu0 0.0
        %5954 = vmatpush2.msra.mxu0 0.0
        %5955 = vmatprep.subr.mxu0 0.0
        %5956 = vmatpush2.msra.mxu0 0.0
        %5957 = vmatprep.subr.mxu0 0.0
        %5958 = vmatpush2.msra.mxu0 0.0
        %5959 = vmatprep.subr.mxu0 0.0
        %5960 = vmatpush2.msra.mxu0 0.0
        %5961 = vmatprep.subr.mxu0 0.0
        %5962 = vmatpush2.msra.mxu0 0.0
        %5963 = vmatprep.subr.mxu0 0.0
        %5964 = vmatpush2.msra.mxu0 0.0
        %5965 = vmatprep.subr.mxu0 0.0
        %5966 = vmatpush2.msra.mxu0 0.0
        %5967 = vmatprep.mubr.f32.mxu0 0.0
        %v5968 = vand.u32 %v5526, 4294901760
        %5969 = vmatmul.mubr.f32.gmra.mxu0 %v5968
        %v5970 = vpop.f32.mrf.mxu0
        %v5971 = vadd.f32 %v5899, %v5970
        %v5972 = vpop.f32.mrf.mxu0
        %5973 = vdwg.mxu0
        %5975 = vrot.lane.b32.xlu0 %v5073, 32
        %v5976 = vpop.permute.xlu0 %5975
        %5979 = vrot.lane.b32.xlu0 %v5522, 64
        %v5980 = vpop.permute.xlu0 %5979
        %5983 = vrot.lane.b32.xlu0 %v5971, 96
        %v5984 = vpop.permute.xlu0 %5983
        %v5986 = vsel %vm2324, %v4624, %v5976
        %vm5987 = vcmask 523264
        %v5988 = vsel %vm5987, %v5986, %v5980
        %vm5989 = vcmask 785408
        %v5990 = vsel %vm5989, %v5988, %v5984
        %v5991 = vld [vmem:[#allocation7] sm:$0xff]
        %v5992 = vld [vmem:[#allocation7 + $0x8] sm:$0xff]
        %v5993 = vld [vmem:[#allocation7 + $0x10] sm:$0xff]
        %v5994 = vld [vmem:[#allocation7 + $0x18] sm:$0xff]
        %v5995 = vld [vmem:[#allocation7 + $0x20] sm:$0xff]
        %v5996 = vld [vmem:[#allocation7 + $0x28] sm:$0xff]
        %v5997 = vld [vmem:[#allocation7 + $0x30] sm:$0xff]
        %v5998 = vld [vmem:[#allocation7 + $0x38] sm:$0xff]
        %v5999 = vld [vmem:[#allocation7 + $0x40] sm:$0xff]
        %v6000 = vld [vmem:[#allocation7 + $0x48] sm:$0xff]
        %v6001 = vld [vmem:[#allocation7 + $0x50] sm:$0xff]
        %v6002 = vld [vmem:[#allocation7 + $0x58] sm:$0xff]
        %v6003 = vld [vmem:[#allocation7 + $0x60] sm:$0xff]
        %v6004 = vld [vmem:[#allocation7 + $0x68] sm:$0xff]
        %v6005 = vld [vmem:[#allocation7 + $0x70] sm:$0xff]
        %v6006 = vld [vmem:[#allocation7 + $0x78] sm:$0xff]
        %v6007 = vld [vmem:[%s4] sm:$0x1]
        %v6009 = vlaneseq
        %v6010 = vshrl.u32 %v6009, 7
        %v6011 = vsub.s32 0, %v6010
        %v6012 = vrot.slane %v6007, %v6011
        %6014 = vmatprep.subr.mxu0 0.0
        %v6015 = vand.u32 %v6006, 4294901760
        %6016 = vmatpush1.msra.mxu0 %v6015
        %6017 = vmatprep.subr.mxu0 0.0
        %v6018 = vand.u32 %v6005, 4294901760
        %6019 = vmatpush1.msra.mxu0 %v6018
        %6020 = vmatprep.subr.mxu0 0.0
        %v6021 = vand.u32 %v6004, 4294901760
        %6022 = vmatpush1.msra.mxu0 %v6021
        %6023 = vmatprep.subr.mxu0 0.0
        %v6024 = vand.u32 %v6003, 4294901760
        %6025 = vmatpush1.msra.mxu0 %v6024
        %6026 = vmatprep.subr.mxu0 0.0
        %v6027 = vand.u32 %v6002, 4294901760
        %6028 = vmatpush1.msra.mxu0 %v6027
        %6029 = vmatprep.subr.mxu0 0.0
        %v6030 = vand.u32 %v6001, 4294901760
        %6031 = vmatpush1.msra.mxu0 %v6030
        %6032 = vmatprep.subr.mxu0 0.0
        %v6033 = vand.u32 %v6000, 4294901760
        %6034 = vmatpush1.msra.mxu0 %v6033
        %6035 = vmatprep.subr.mxu0 0.0
        %v6036 = vand.u32 %v5999, 4294901760
        %6037 = vmatpush1.msra.mxu0 %v6036
        %6038 = vmatprep.subr.mxu0 0.0
        %v6039 = vand.u32 %v5998, 4294901760
        %6040 = vmatpush1.msra.mxu0 %v6039
        %6041 = vmatprep.subr.mxu0 0.0
        %v6042 = vand.u32 %v5997, 4294901760
        %6043 = vmatpush1.msra.mxu0 %v6042
        %6044 = vmatprep.subr.mxu0 0.0
        %v6045 = vand.u32 %v5996, 4294901760
        %6046 = vmatpush1.msra.mxu0 %v6045
        %6047 = vmatprep.subr.mxu0 0.0
        %v6048 = vand.u32 %v5995, 4294901760
        %6049 = vmatpush1.msra.mxu0 %v6048
        %6050 = vmatprep.subr.mxu0 0.0
        %v6051 = vand.u32 %v5994, 4294901760
        %6052 = vmatpush1.msra.mxu0 %v6051
        %6053 = vmatprep.subr.mxu0 0.0
        %v6054 = vand.u32 %v5993, 4294901760
        %6055 = vmatpush1.msra.mxu0 %v6054
        %6056 = vmatprep.subr.mxu0 0.0
        %v6057 = vand.u32 %v5992, 4294901760
        %6058 = vmatpush1.msra.mxu0 %v6057
        %6059 = vmatprep.subr.mxu0 0.0
        %v6060 = vand.u32 %v5991, 4294901760
        %6061 = vmatpush1.msra.mxu0 %v6060
        %6062 = vmatprep.subr.mxu0 0.0
        %6063 = vmatpush2.msra.mxu0 0.0
        %6064 = vmatprep.subr.mxu0 0.0
        %6065 = vmatpush2.msra.mxu0 0.0
        %6066 = vmatprep.subr.mxu0 0.0
        %6067 = vmatpush2.msra.mxu0 0.0
        %6068 = vmatprep.subr.mxu0 0.0
        %6069 = vmatpush2.msra.mxu0 0.0
        %6070 = vmatprep.subr.mxu0 0.0
        %6071 = vmatpush2.msra.mxu0 0.0
        %6072 = vmatprep.subr.mxu0 0.0
        %6073 = vmatpush2.msra.mxu0 0.0
        %6074 = vmatprep.subr.mxu0 0.0
        %6075 = vmatpush2.msra.mxu0 0.0
        %6076 = vmatprep.subr.mxu0 0.0
        %6077 = vmatpush2.msra.mxu0 0.0
        %6078 = vmatprep.subr.mxu0 0.0
        %6079 = vmatpush2.msra.mxu0 0.0
        %6080 = vmatprep.subr.mxu0 0.0
        %6081 = vmatpush2.msra.mxu0 0.0
        %6082 = vmatprep.subr.mxu0 0.0
        %6083 = vmatpush2.msra.mxu0 0.0
        %6084 = vmatprep.subr.mxu0 0.0
        %6085 = vmatpush2.msra.mxu0 0.0
        %6086 = vmatprep.subr.mxu0 0.0
        %6087 = vmatpush2.msra.mxu0 0.0
        %6088 = vmatprep.subr.mxu0 0.0
        %6089 = vmatpush2.msra.mxu0 0.0
        %6090 = vmatprep.subr.mxu0 0.0
        %6091 = vmatpush2.msra.mxu0 0.0
        %6092 = vmatprep.subr.mxu0 0.0
        %6093 = vmatpush2.msra.mxu0 0.0
        %6094 = vmatprep.mubr.f32.mxu0 0.0
        %v6095 = vand.u32 %v5990, 4294901760
        %v6096 = vsub.f32 %v5990, %v6095
        %v6097 = vand.u32 %v6096, 4294901760
        %v6098 = vsub.f32 %v6096, %v6097
        %v6099 = vand.u32 %v6098, 4294901760
        %6100 = vmatmul.mubr.f32.gmra.mxu0 %v6099
        %v6101 = vpop.f32.mrf.mxu0
        %v6102 = vadd.f32 %v6012, %v6101
        %v6103 = vpop.f32.mrf.mxu0
        %6104 = vdwg.mxu0
        %6105 = vmatprep.subr.mxu0 0.0
        %v6106 = vand.u32 %v6006, 4294901760
        %v6107 = vsub.f32 %v6006, %v6106
        %v6108 = vand.u32 %v6107, 4294901760
        %v6109 = vsub.f32 %v6107, %v6108
        %v6110 = vand.u32 %v6109, 4294901760
        %6111 = vmatpush1.msra.mxu0 %v6110
        %6112 = vmatprep.subr.mxu0 0.0
        %v6113 = vand.u32 %v6005, 4294901760
        %v6114 = vsub.f32 %v6005, %v6113
        %v6115 = vand.u32 %v6114, 4294901760
        %v6116 = vsub.f32 %v6114, %v6115
        %v6117 = vand.u32 %v6116, 4294901760
        %6118 = vmatpush1.msra.mxu0 %v6117
        %6119 = vmatprep.subr.mxu0 0.0
        %v6120 = vand.u32 %v6004, 4294901760
        %v6121 = vsub.f32 %v6004, %v6120
        %v6122 = vand.u32 %v6121, 4294901760
        %v6123 = vsub.f32 %v6121, %v6122
        %v6124 = vand.u32 %v6123, 4294901760
        %6125 = vmatpush1.msra.mxu0 %v6124
        %6126 = vmatprep.subr.mxu0 0.0
        %v6127 = vand.u32 %v6003, 4294901760
        %v6128 = vsub.f32 %v6003, %v6127
        %v6129 = vand.u32 %v6128, 4294901760
        %v6130 = vsub.f32 %v6128, %v6129
        %v6131 = vand.u32 %v6130, 4294901760
        %6132 = vmatpush1.msra.mxu0 %v6131
        %6133 = vmatprep.subr.mxu0 0.0
        %v6134 = vand.u32 %v6002, 4294901760
        %v6135 = vsub.f32 %v6002, %v6134
        %v6136 = vand.u32 %v6135, 4294901760
        %v6137 = vsub.f32 %v6135, %v6136
        %v6138 = vand.u32 %v6137, 4294901760
        %6139 = vmatpush1.msra.mxu0 %v6138
        %6140 = vmatprep.subr.mxu0 0.0
        %v6141 = vand.u32 %v6001, 4294901760
        %v6142 = vsub.f32 %v6001, %v6141
        %v6143 = vand.u32 %v6142, 4294901760
        %v6144 = vsub.f32 %v6142, %v6143
        %v6145 = vand.u32 %v6144, 4294901760
        %6146 = vmatpush1.msra.mxu0 %v6145
        %6147 = vmatprep.subr.mxu0 0.0
        %v6148 = vand.u32 %v6000, 4294901760
        %v6149 = vsub.f32 %v6000, %v6148
        %v6150 = vand.u32 %v6149, 4294901760
        %v6151 = vsub.f32 %v6149, %v6150
        %v6152 = vand.u32 %v6151, 4294901760
        %6153 = vmatpush1.msra.mxu0 %v6152
        %6154 = vmatprep.subr.mxu0 0.0
        %v6155 = vand.u32 %v5999, 4294901760
        %v6156 = vsub.f32 %v5999, %v6155
        %v6157 = vand.u32 %v6156, 4294901760
        %v6158 = vsub.f32 %v6156, %v6157
        %v6159 = vand.u32 %v6158, 4294901760
        %6160 = vmatpush1.msra.mxu0 %v6159
        %6161 = vmatprep.subr.mxu0 0.0
        %v6162 = vand.u32 %v5998, 4294901760
        %v6163 = vsub.f32 %v5998, %v6162
        %v6164 = vand.u32 %v6163, 4294901760
        %v6165 = vsub.f32 %v6163, %v6164
        %v6166 = vand.u32 %v6165, 4294901760
        %6167 = vmatpush1.msra.mxu0 %v6166
        %6168 = vmatprep.subr.mxu0 0.0
        %v6169 = vand.u32 %v5997, 4294901760
        %v6170 = vsub.f32 %v5997, %v6169
        %v6171 = vand.u32 %v6170, 4294901760
        %v6172 = vsub.f32 %v6170, %v6171
        %v6173 = vand.u32 %v6172, 4294901760
        %6174 = vmatpush1.msra.mxu0 %v6173
        %6175 = vmatprep.subr.mxu0 0.0
        %v6176 = vand.u32 %v5996, 4294901760
        %v6177 = vsub.f32 %v5996, %v6176
        %v6178 = vand.u32 %v6177, 4294901760
        %v6179 = vsub.f32 %v6177, %v6178
        %v6180 = vand.u32 %v6179, 4294901760
        %6181 = vmatpush1.msra.mxu0 %v6180
        %6182 = vmatprep.subr.mxu0 0.0
        %v6183 = vand.u32 %v5995, 4294901760
        %v6184 = vsub.f32 %v5995, %v6183
        %v6185 = vand.u32 %v6184, 4294901760
        %v6186 = vsub.f32 %v6184, %v6185
        %v6187 = vand.u32 %v6186, 4294901760
        %6188 = vmatpush1.msra.mxu0 %v6187
        %6189 = vmatprep.subr.mxu0 0.0
        %v6190 = vand.u32 %v5994, 4294901760
        %v6191 = vsub.f32 %v5994, %v6190
        %v6192 = vand.u32 %v6191, 4294901760
        %v6193 = vsub.f32 %v6191, %v6192
        %v6194 = vand.u32 %v6193, 4294901760
        %6195 = vmatpush1.msra.mxu0 %v6194
        %6196 = vmatprep.subr.mxu0 0.0
        %v6197 = vand.u32 %v5993, 4294901760
        %v6198 = vsub.f32 %v5993, %v6197
        %v6199 = vand.u32 %v6198, 4294901760
        %v6200 = vsub.f32 %v6198, %v6199
        %v6201 = vand.u32 %v6200, 4294901760
        %6202 = vmatpush1.msra.mxu0 %v6201
        %6203 = vmatprep.subr.mxu0 0.0
        %v6204 = vand.u32 %v5992, 4294901760
        %v6205 = vsub.f32 %v5992, %v6204
        %v6206 = vand.u32 %v6205, 4294901760
        %v6207 = vsub.f32 %v6205, %v6206
        %v6208 = vand.u32 %v6207, 4294901760
        %6209 = vmatpush1.msra.mxu0 %v6208
        %6210 = vmatprep.subr.mxu0 0.0
        %v6211 = vand.u32 %v5991, 4294901760
        %v6212 = vsub.f32 %v5991, %v6211
        %v6213 = vand.u32 %v6212, 4294901760
        %v6214 = vsub.f32 %v6212, %v6213
        %v6215 = vand.u32 %v6214, 4294901760
        %6216 = vmatpush1.msra.mxu0 %v6215
        %6217 = vmatprep.subr.mxu0 0.0
        %6218 = vmatpush2.msra.mxu0 0.0
        %6219 = vmatprep.subr.mxu0 0.0
        %6220 = vmatpush2.msra.mxu0 0.0
        %6221 = vmatprep.subr.mxu0 0.0
        %6222 = vmatpush2.msra.mxu0 0.0
        %6223 = vmatprep.subr.mxu0 0.0
        %6224 = vmatpush2.msra.mxu0 0.0
        %6225 = vmatprep.subr.mxu0 0.0
        %6226 = vmatpush2.msra.mxu0 0.0
        %6227 = vmatprep.subr.mxu0 0.0
        %6228 = vmatpush2.msra.mxu0 0.0
        %6229 = vmatprep.subr.mxu0 0.0
        %6230 = vmatpush2.msra.mxu0 0.0
        %6231 = vmatprep.subr.mxu0 0.0
        %6232 = vmatpush2.msra.mxu0 0.0
        %6233 = vmatprep.subr.mxu0 0.0
        %6234 = vmatpush2.msra.mxu0 0.0
        %6235 = vmatprep.subr.mxu0 0.0
        %6236 = vmatpush2.msra.mxu0 0.0
        %6237 = vmatprep.subr.mxu0 0.0
        %6238 = vmatpush2.msra.mxu0 0.0
        %6239 = vmatprep.subr.mxu0 0.0
        %6240 = vmatpush2.msra.mxu0 0.0
        %6241 = vmatprep.subr.mxu0 0.0
        %6242 = vmatpush2.msra.mxu0 0.0
        %6243 = vmatprep.subr.mxu0 0.0
        %6244 = vmatpush2.msra.mxu0 0.0
        %6245 = vmatprep.subr.mxu0 0.0
        %6246 = vmatpush2.msra.mxu0 0.0
        %6247 = vmatprep.subr.mxu0 0.0
        %6248 = vmatpush2.msra.mxu0 0.0
        %6249 = vmatprep.mubr.f32.mxu0 0.0
        %v6250 = vand.u32 %v5990, 4294901760
        %6251 = vmatmul.mubr.f32.gmra.mxu0 %v6250
        %v6252 = vpop.f32.mrf.mxu0
        %v6253 = vadd.f32 %v6102, %v6252
        %v6254 = vpop.f32.mrf.mxu0
        %6255 = vdwg.mxu0
        %6256 = vmatprep.subr.mxu0 0.0
        %v6257 = vand.u32 %v6006, 4294901760
        %v6258 = vsub.f32 %v6006, %v6257
        %6259 = vmatpush1.msra.mxu0 %v6258
        %6260 = vmatprep.subr.mxu0 0.0
        %v6261 = vand.u32 %v6005, 4294901760
        %v6262 = vsub.f32 %v6005, %v6261
        %6263 = vmatpush1.msra.mxu0 %v6262
        %6264 = vmatprep.subr.mxu0 0.0
        %v6265 = vand.u32 %v6004, 4294901760
        %v6266 = vsub.f32 %v6004, %v6265
        %6267 = vmatpush1.msra.mxu0 %v6266
        %6268 = vmatprep.subr.mxu0 0.0
        %v6269 = vand.u32 %v6003, 4294901760
        %v6270 = vsub.f32 %v6003, %v6269
        %6271 = vmatpush1.msra.mxu0 %v6270
        %6272 = vmatprep.subr.mxu0 0.0
        %v6273 = vand.u32 %v6002, 4294901760
        %v6274 = vsub.f32 %v6002, %v6273
        %6275 = vmatpush1.msra.mxu0 %v6274
        %6276 = vmatprep.subr.mxu0 0.0
        %v6277 = vand.u32 %v6001, 4294901760
        %v6278 = vsub.f32 %v6001, %v6277
        %6279 = vmatpush1.msra.mxu0 %v6278
        %6280 = vmatprep.subr.mxu0 0.0
        %v6281 = vand.u32 %v6000, 4294901760
        %v6282 = vsub.f32 %v6000, %v6281
        %6283 = vmatpush1.msra.mxu0 %v6282
        %6284 = vmatprep.subr.mxu0 0.0
        %v6285 = vand.u32 %v5999, 4294901760
        %v6286 = vsub.f32 %v5999, %v6285
        %6287 = vmatpush1.msra.mxu0 %v6286
        %6288 = vmatprep.subr.mxu0 0.0
        %v6289 = vand.u32 %v5998, 4294901760
        %v6290 = vsub.f32 %v5998, %v6289
        %6291 = vmatpush1.msra.mxu0 %v6290
        %6292 = vmatprep.subr.mxu0 0.0
        %v6293 = vand.u32 %v5997, 4294901760
        %v6294 = vsub.f32 %v5997, %v6293
        %6295 = vmatpush1.msra.mxu0 %v6294
        %6296 = vmatprep.subr.mxu0 0.0
        %v6297 = vand.u32 %v5996, 4294901760
        %v6298 = vsub.f32 %v5996, %v6297
        %6299 = vmatpush1.msra.mxu0 %v6298
        %6300 = vmatprep.subr.mxu0 0.0
        %v6301 = vand.u32 %v5995, 4294901760
        %v6302 = vsub.f32 %v5995, %v6301
        %6303 = vmatpush1.msra.mxu0 %v6302
        %6304 = vmatprep.subr.mxu0 0.0
        %v6305 = vand.u32 %v5994, 4294901760
        %v6306 = vsub.f32 %v5994, %v6305
        %6307 = vmatpush1.msra.mxu0 %v6306
        %6308 = vmatprep.subr.mxu0 0.0
        %v6309 = vand.u32 %v5993, 4294901760
        %v6310 = vsub.f32 %v5993, %v6309
        %6311 = vmatpush1.msra.mxu0 %v6310
        %6312 = vmatprep.subr.mxu0 0.0
        %v6313 = vand.u32 %v5992, 4294901760
        %v6314 = vsub.f32 %v5992, %v6313
        %6315 = vmatpush1.msra.mxu0 %v6314
        %6316 = vmatprep.subr.mxu0 0.0
        %v6317 = vand.u32 %v5991, 4294901760
        %v6318 = vsub.f32 %v5991, %v6317
        %6319 = vmatpush1.msra.mxu0 %v6318
        %6320 = vmatprep.subr.mxu0 0.0
        %6321 = vmatpush2.msra.mxu0 0.0
        %6322 = vmatprep.subr.mxu0 0.0
        %6323 = vmatpush2.msra.mxu0 0.0
        %6324 = vmatprep.subr.mxu0 0.0
        %6325 = vmatpush2.msra.mxu0 0.0
        %6326 = vmatprep.subr.mxu0 0.0
        %6327 = vmatpush2.msra.mxu0 0.0
        %6328 = vmatprep.subr.mxu0 0.0
        %6329 = vmatpush2.msra.mxu0 0.0
        %6330 = vmatprep.subr.mxu0 0.0
        %6331 = vmatpush2.msra.mxu0 0.0
        %6332 = vmatprep.subr.mxu0 0.0
        %6333 = vmatpush2.msra.mxu0 0.0
        %6334 = vmatprep.subr.mxu0 0.0
        %6335 = vmatpush2.msra.mxu0 0.0
        %6336 = vmatprep.subr.mxu0 0.0
        %6337 = vmatpush2.msra.mxu0 0.0
        %6338 = vmatprep.subr.mxu0 0.0
        %6339 = vmatpush2.msra.mxu0 0.0
        %6340 = vmatprep.subr.mxu0 0.0
        %6341 = vmatpush2.msra.mxu0 0.0
        %6342 = vmatprep.subr.mxu0 0.0
        %6343 = vmatpush2.msra.mxu0 0.0
        %6344 = vmatprep.subr.mxu0 0.0
        %6345 = vmatpush2.msra.mxu0 0.0
        %6346 = vmatprep.subr.mxu0 0.0
        %6347 = vmatpush2.msra.mxu0 0.0
        %6348 = vmatprep.subr.mxu0 0.0
        %6349 = vmatpush2.msra.mxu0 0.0
        %6350 = vmatprep.subr.mxu0 0.0
        %6351 = vmatpush2.msra.mxu0 0.0
        %6352 = vmatprep.mubr.f32.mxu0 0.0
        %v6353 = vand.u32 %v5990, 4294901760
        %v6354 = vsub.f32 %v5990, %v6353
        %6355 = vmatmul.mubr.f32.gmra.mxu0 %v6354
        %v6356 = vpop.f32.mrf.mxu0
        %v6357 = vadd.f32 %v6253, %v6356
        %v6358 = vpop.f32.mrf.mxu0
        %6359 = vdwg.mxu0
        %6360 = vmatprep.subr.mxu0 0.0
        %v6361 = vand.u32 %v6006, 4294901760
        %6362 = vmatpush1.msra.mxu0 %v6361
        %6363 = vmatprep.subr.mxu0 0.0
        %v6364 = vand.u32 %v6005, 4294901760
        %6365 = vmatpush1.msra.mxu0 %v6364
        %6366 = vmatprep.subr.mxu0 0.0
        %v6367 = vand.u32 %v6004, 4294901760
        %6368 = vmatpush1.msra.mxu0 %v6367
        %6369 = vmatprep.subr.mxu0 0.0
        %v6370 = vand.u32 %v6003, 4294901760
        %6371 = vmatpush1.msra.mxu0 %v6370
        %6372 = vmatprep.subr.mxu0 0.0
        %v6373 = vand.u32 %v6002, 4294901760
        %6374 = vmatpush1.msra.mxu0 %v6373
        %6375 = vmatprep.subr.mxu0 0.0
        %v6376 = vand.u32 %v6001, 4294901760
        %6377 = vmatpush1.msra.mxu0 %v6376
        %6378 = vmatprep.subr.mxu0 0.0
        %v6379 = vand.u32 %v6000, 4294901760
        %6380 = vmatpush1.msra.mxu0 %v6379
        %6381 = vmatprep.subr.mxu0 0.0
        %v6382 = vand.u32 %v5999, 4294901760
        %6383 = vmatpush1.msra.mxu0 %v6382
        %6384 = vmatprep.subr.mxu0 0.0
        %v6385 = vand.u32 %v5998, 4294901760
        %6386 = vmatpush1.msra.mxu0 %v6385
        %6387 = vmatprep.subr.mxu0 0.0
        %v6388 = vand.u32 %v5997, 4294901760
        %6389 = vmatpush1.msra.mxu0 %v6388
        %6390 = vmatprep.subr.mxu0 0.0
        %v6391 = vand.u32 %v5996, 4294901760
        %6392 = vmatpush1.msra.mxu0 %v6391
        %6393 = vmatprep.subr.mxu0 0.0
        %v6394 = vand.u32 %v5995, 4294901760
        %6395 = vmatpush1.msra.mxu0 %v6394
        %6396 = vmatprep.subr.mxu0 0.0
        %v6397 = vand.u32 %v5994, 4294901760
        %6398 = vmatpush1.msra.mxu0 %v6397
        %6399 = vmatprep.subr.mxu0 0.0
        %v6400 = vand.u32 %v5993, 4294901760
        %6401 = vmatpush1.msra.mxu0 %v6400
        %6402 = vmatprep.subr.mxu0 0.0
        %v6403 = vand.u32 %v5992, 4294901760
        %6404 = vmatpush1.msra.mxu0 %v6403
        %6405 = vmatprep.subr.mxu0 0.0
        %v6406 = vand.u32 %v5991, 4294901760
        %6407 = vmatpush1.msra.mxu0 %v6406
        %6408 = vmatprep.subr.mxu0 0.0
        %6409 = vmatpush2.msra.mxu0 0.0
        %6410 = vmatprep.subr.mxu0 0.0
        %6411 = vmatpush2.msra.mxu0 0.0
        %6412 = vmatprep.subr.mxu0 0.0
        %6413 = vmatpush2.msra.mxu0 0.0
        %6414 = vmatprep.subr.mxu0 0.0
        %6415 = vmatpush2.msra.mxu0 0.0
        %6416 = vmatprep.subr.mxu0 0.0
        %6417 = vmatpush2.msra.mxu0 0.0
        %6418 = vmatprep.subr.mxu0 0.0
        %6419 = vmatpush2.msra.mxu0 0.0
        %6420 = vmatprep.subr.mxu0 0.0
        %6421 = vmatpush2.msra.mxu0 0.0
        %6422 = vmatprep.subr.mxu0 0.0
        %6423 = vmatpush2.msra.mxu0 0.0
        %6424 = vmatprep.subr.mxu0 0.0
        %6425 = vmatpush2.msra.mxu0 0.0
        %6426 = vmatprep.subr.mxu0 0.0
        %6427 = vmatpush2.msra.mxu0 0.0
        %6428 = vmatprep.subr.mxu0 0.0
        %6429 = vmatpush2.msra.mxu0 0.0
        %6430 = vmatprep.subr.mxu0 0.0
        %6431 = vmatpush2.msra.mxu0 0.0
        %6432 = vmatprep.subr.mxu0 0.0
        %6433 = vmatpush2.msra.mxu0 0.0
        %6434 = vmatprep.subr.mxu0 0.0
        %6435 = vmatpush2.msra.mxu0 0.0
        %6436 = vmatprep.subr.mxu0 0.0
        %6437 = vmatpush2.msra.mxu0 0.0
        %6438 = vmatprep.subr.mxu0 0.0
        %6439 = vmatpush2.msra.mxu0 0.0
        %6440 = vmatprep.mubr.f32.mxu0 0.0
        %v6441 = vand.u32 %v5990, 4294901760
        %v6442 = vsub.f32 %v5990, %v6441
        %v6443 = vand.u32 %v6442, 4294901760
        %6444 = vmatmul.mubr.f32.gmra.mxu0 %v6443
        %v6445 = vpop.f32.mrf.mxu0
        %v6446 = vadd.f32 %v6357, %v6445
        %v6447 = vpop.f32.mrf.mxu0
        %6448 = vdwg.mxu0
        %6449 = vmatprep.subr.mxu0 0.0
        %v6450 = vand.u32 %v6006, 4294901760
        %v6451 = vsub.f32 %v6006, %v6450
        %v6452 = vand.u32 %v6451, 4294901760
        %6453 = vmatpush1.msra.mxu0 %v6452
        %6454 = vmatprep.subr.mxu0 0.0
        %v6455 = vand.u32 %v6005, 4294901760
        %v6456 = vsub.f32 %v6005, %v6455
        %v6457 = vand.u32 %v6456, 4294901760
        %6458 = vmatpush1.msra.mxu0 %v6457
        %6459 = vmatprep.subr.mxu0 0.0
        %v6460 = vand.u32 %v6004, 4294901760
        %v6461 = vsub.f32 %v6004, %v6460
        %v6462 = vand.u32 %v6461, 4294901760
        %6463 = vmatpush1.msra.mxu0 %v6462
        %6464 = vmatprep.subr.mxu0 0.0
        %v6465 = vand.u32 %v6003, 4294901760
        %v6466 = vsub.f32 %v6003, %v6465
        %v6467 = vand.u32 %v6466, 4294901760
        %6468 = vmatpush1.msra.mxu0 %v6467
        %6469 = vmatprep.subr.mxu0 0.0
        %v6470 = vand.u32 %v6002, 4294901760
        %v6471 = vsub.f32 %v6002, %v6470
        %v6472 = vand.u32 %v6471, 4294901760
        %6473 = vmatpush1.msra.mxu0 %v6472
        %6474 = vmatprep.subr.mxu0 0.0
        %v6475 = vand.u32 %v6001, 4294901760
        %v6476 = vsub.f32 %v6001, %v6475
        %v6477 = vand.u32 %v6476, 4294901760
        %6478 = vmatpush1.msra.mxu0 %v6477
        %6479 = vmatprep.subr.mxu0 0.0
        %v6480 = vand.u32 %v6000, 4294901760
        %v6481 = vsub.f32 %v6000, %v6480
        %v6482 = vand.u32 %v6481, 4294901760
        %6483 = vmatpush1.msra.mxu0 %v6482
        %6484 = vmatprep.subr.mxu0 0.0
        %v6485 = vand.u32 %v5999, 4294901760
        %v6486 = vsub.f32 %v5999, %v6485
        %v6487 = vand.u32 %v6486, 4294901760
        %6488 = vmatpush1.msra.mxu0 %v6487
        %6489 = vmatprep.subr.mxu0 0.0
        %v6490 = vand.u32 %v5998, 4294901760
        %v6491 = vsub.f32 %v5998, %v6490
        %v6492 = vand.u32 %v6491, 4294901760
        %6493 = vmatpush1.msra.mxu0 %v6492
        %6494 = vmatprep.subr.mxu0 0.0
        %v6495 = vand.u32 %v5997, 4294901760
        %v6496 = vsub.f32 %v5997, %v6495
        %v6497 = vand.u32 %v6496, 4294901760
        %6498 = vmatpush1.msra.mxu0 %v6497
        %6499 = vmatprep.subr.mxu0 0.0
        %v6500 = vand.u32 %v5996, 4294901760
        %v6501 = vsub.f32 %v5996, %v6500
        %v6502 = vand.u32 %v6501, 4294901760
        %6503 = vmatpush1.msra.mxu0 %v6502
        %6504 = vmatprep.subr.mxu0 0.0
        %v6505 = vand.u32 %v5995, 4294901760
        %v6506 = vsub.f32 %v5995, %v6505
        %v6507 = vand.u32 %v6506, 4294901760
        %6508 = vmatpush1.msra.mxu0 %v6507
        %6509 = vmatprep.subr.mxu0 0.0
        %v6510 = vand.u32 %v5994, 4294901760
        %v6511 = vsub.f32 %v5994, %v6510
        %v6512 = vand.u32 %v6511, 4294901760
        %6513 = vmatpush1.msra.mxu0 %v6512
        %6514 = vmatprep.subr.mxu0 0.0
        %v6515 = vand.u32 %v5993, 4294901760
        %v6516 = vsub.f32 %v5993, %v6515
        %v6517 = vand.u32 %v6516, 4294901760
        %6518 = vmatpush1.msra.mxu0 %v6517
        %6519 = vmatprep.subr.mxu0 0.0
        %v6520 = vand.u32 %v5992, 4294901760
        %v6521 = vsub.f32 %v5992, %v6520
        %v6522 = vand.u32 %v6521, 4294901760
        %6523 = vmatpush1.msra.mxu0 %v6522
        %6524 = vmatprep.subr.mxu0 0.0
        %v6525 = vand.u32 %v5991, 4294901760
        %v6526 = vsub.f32 %v5991, %v6525
        %v6527 = vand.u32 %v6526, 4294901760
        %6528 = vmatpush1.msra.mxu0 %v6527
        %6529 = vmatprep.subr.mxu0 0.0
        %6530 = vmatpush2.msra.mxu0 0.0
        %6531 = vmatprep.subr.mxu0 0.0
        %6532 = vmatpush2.msra.mxu0 0.0
        %6533 = vmatprep.subr.mxu0 0.0
        %6534 = vmatpush2.msra.mxu0 0.0
        %6535 = vmatprep.subr.mxu0 0.0
        %6536 = vmatpush2.msra.mxu0 0.0
        %6537 = vmatprep.subr.mxu0 0.0
        %6538 = vmatpush2.msra.mxu0 0.0
        %6539 = vmatprep.subr.mxu0 0.0
        %6540 = vmatpush2.msra.mxu0 0.0
        %6541 = vmatprep.subr.mxu0 0.0
        %6542 = vmatpush2.msra.mxu0 0.0
        %6543 = vmatprep.subr.mxu0 0.0
        %6544 = vmatpush2.msra.mxu0 0.0
        %6545 = vmatprep.subr.mxu0 0.0
        %6546 = vmatpush2.msra.mxu0 0.0
        %6547 = vmatprep.subr.mxu0 0.0
        %6548 = vmatpush2.msra.mxu0 0.0
        %6549 = vmatprep.subr.mxu0 0.0
        %6550 = vmatpush2.msra.mxu0 0.0
        %6551 = vmatprep.subr.mxu0 0.0
        %6552 = vmatpush2.msra.mxu0 0.0
        %6553 = vmatprep.subr.mxu0 0.0
        %6554 = vmatpush2.msra.mxu0 0.0
        %6555 = vmatprep.subr.mxu0 0.0
        %6556 = vmatpush2.msra.mxu0 0.0
        %6557 = vmatprep.subr.mxu0 0.0
        %6558 = vmatpush2.msra.mxu0 0.0
        %6559 = vmatprep.subr.mxu0 0.0
        %6560 = vmatpush2.msra.mxu0 0.0
        %6561 = vmatprep.mubr.f32.mxu0 0.0
        %v6562 = vand.u32 %v5990, 4294901760
        %6563 = vmatmul.mubr.f32.gmra.mxu0 %v6562
        %v6564 = vpop.f32.mrf.mxu0
        %v6565 = vadd.f32 %v6446, %v6564
        %v6566 = vpop.f32.mrf.mxu0
        %6567 = vdwg.mxu0
        %6568 = vmatprep.subr.mxu0 0.0
        %v6569 = vand.u32 %v6006, 4294901760
        %6570 = vmatpush1.msra.mxu0 %v6569
        %6571 = vmatprep.subr.mxu0 0.0
        %v6572 = vand.u32 %v6005, 4294901760
        %6573 = vmatpush1.msra.mxu0 %v6572
        %6574 = vmatprep.subr.mxu0 0.0
        %v6575 = vand.u32 %v6004, 4294901760
        %6576 = vmatpush1.msra.mxu0 %v6575
        %6577 = vmatprep.subr.mxu0 0.0
        %v6578 = vand.u32 %v6003, 4294901760
        %6579 = vmatpush1.msra.mxu0 %v6578
        %6580 = vmatprep.subr.mxu0 0.0
        %v6581 = vand.u32 %v6002, 4294901760
        %6582 = vmatpush1.msra.mxu0 %v6581
        %6583 = vmatprep.subr.mxu0 0.0
        %v6584 = vand.u32 %v6001, 4294901760
        %6585 = vmatpush1.msra.mxu0 %v6584
        %6586 = vmatprep.subr.mxu0 0.0
        %v6587 = vand.u32 %v6000, 4294901760
        %6588 = vmatpush1.msra.mxu0 %v6587
        %6589 = vmatprep.subr.mxu0 0.0
        %v6590 = vand.u32 %v5999, 4294901760
        %6591 = vmatpush1.msra.mxu0 %v6590
        %6592 = vmatprep.subr.mxu0 0.0
        %v6593 = vand.u32 %v5998, 4294901760
        %6594 = vmatpush1.msra.mxu0 %v6593
        %6595 = vmatprep.subr.mxu0 0.0
        %v6596 = vand.u32 %v5997, 4294901760
        %6597 = vmatpush1.msra.mxu0 %v6596
        %6598 = vmatprep.subr.mxu0 0.0
        %v6599 = vand.u32 %v5996, 4294901760
        %6600 = vmatpush1.msra.mxu0 %v6599
        %6601 = vmatprep.subr.mxu0 0.0
        %v6602 = vand.u32 %v5995, 4294901760
        %6603 = vmatpush1.msra.mxu0 %v6602
        %6604 = vmatprep.subr.mxu0 0.0
        %v6605 = vand.u32 %v5994, 4294901760
        %6606 = vmatpush1.msra.mxu0 %v6605
        %6607 = vmatprep.subr.mxu0 0.0
        %v6608 = vand.u32 %v5993, 4294901760
        %6609 = vmatpush1.msra.mxu0 %v6608
        %6610 = vmatprep.subr.mxu0 0.0
        %v6611 = vand.u32 %v5992, 4294901760
        %6612 = vmatpush1.msra.mxu0 %v6611
        %6613 = vmatprep.subr.mxu0 0.0
        %v6614 = vand.u32 %v5991, 4294901760
        %6615 = vmatpush1.msra.mxu0 %v6614
        %6616 = vmatprep.subr.mxu0 0.0
        %6617 = vmatpush2.msra.mxu0 0.0
        %6618 = vmatprep.subr.mxu0 0.0
        %6619 = vmatpush2.msra.mxu0 0.0
        %6620 = vmatprep.subr.mxu0 0.0
        %6621 = vmatpush2.msra.mxu0 0.0
        %6622 = vmatprep.subr.mxu0 0.0
        %6623 = vmatpush2.msra.mxu0 0.0
        %6624 = vmatprep.subr.mxu0 0.0
        %6625 = vmatpush2.msra.mxu0 0.0
        %6626 = vmatprep.subr.mxu0 0.0
        %6627 = vmatpush2.msra.mxu0 0.0
        %6628 = vmatprep.subr.mxu0 0.0
        %6629 = vmatpush2.msra.mxu0 0.0
        %6630 = vmatprep.subr.mxu0 0.0
        %6631 = vmatpush2.msra.mxu0 0.0
        %6632 = vmatprep.subr.mxu0 0.0
        %6633 = vmatpush2.msra.mxu0 0.0
        %6634 = vmatprep.subr.mxu0 0.0
        %6635 = vmatpush2.msra.mxu0 0.0
        %6636 = vmatprep.subr.mxu0 0.0
        %6637 = vmatpush2.msra.mxu0 0.0
        %6638 = vmatprep.subr.mxu0 0.0
        %6639 = vmatpush2.msra.mxu0 0.0
        %6640 = vmatprep.subr.mxu0 0.0
        %6641 = vmatpush2.msra.mxu0 0.0
        %6642 = vmatprep.subr.mxu0 0.0
        %6643 = vmatpush2.msra.mxu0 0.0
        %6644 = vmatprep.subr.mxu0 0.0
        %6645 = vmatpush2.msra.mxu0 0.0
        %6646 = vmatprep.subr.mxu0 0.0
        %6647 = vmatpush2.msra.mxu0 0.0
        %6648 = vmatprep.mubr.f32.mxu0 0.0
        %v6649 = vand.u32 %v5990, 4294901760
        %6650 = vmatmul.mubr.f32.gmra.mxu0 %v6649
        %v6651 = vpop.f32.mrf.mxu0
        %v6652 = vadd.f32 %v6565, %v6651
        %v6653 = vpop.f32.mrf.mxu0
        %6654 = vdwg.mxu0
        %6655 = vadd.xlane.f32.xlu0 %v6652
        %v6656 = vpop.xlane.xlu0 %6655
        %v6657 = vrcp.pop 128.0
        %v6658 = vmul.f32 %v6656, %v6657
        %v6659 = vsub.f32 %v6652, %v6658
        %v6660 = vmul.f32 %v6659, %v6659
        %6661 = vadd.xlane.f32.xlu0 %v6660
        %v6662 = vpop.xlane.xlu0 %6661
        %v6663 = vmul.f32 %v6662, %v6657
        %v6664 = vadd.f32 %v6663, 1e-05
        %v6665 = vrsqrt.pop %v6664
        %v6666 = vmul.f32 %v6659, %v6665
        %v6667 = vld [vmem:[%s5] sm:$0x1]
        %v6669 = vlaneseq
        %v6670 = vshrl.u32 %v6669, 7
        %v6671 = vsub.s32 0, %v6670
        %v6672 = vrot.slane %v6667, %v6671
        %v6674 = vmul.f32 %v6666, %v6672
        %v6675 = vld [vmem:[%s6] sm:$0x1]
        %v6677 = vlaneseq
        %v6678 = vshrl.u32 %v6677, 7
        %v6679 = vsub.s32 0, %v6678
        %v6680 = vrot.slane %v6675, %v6679
        %v6682 = vadd.f32 %v6674, %v6680
        %v6683 = vadd.f32 %v6682, %v323
        %6684 = vst [vmem:[%s322] sm:$0xff] %v6683
        %s6685 = sand.u32 %s185, 1
        %s6686 = scalar_lea.sflag [#allocation4], %s6685
        %s6687 = sand.u32 %s185, 1
        %s6688 = smul.addr %s6687, 8
        %s6689 = scalar_lea.vmem [#allocation8], %s6688
        // Predicated region
        $region61: #{tpu_custom_call.1} parent=47 // pred_check
          %p6690 = pneg %p195
        $region62: #{tpu_custom_call.1} parent=47 // pred_check_branch
          %6692 = sbr.rel (%p6690) target = $region64
        $region63: #{tpu_custom_call.1} parent=47 // pred_region
          %s6694 = ssub.s32 128, 128
          %6695 = vsyncadd %s6686, %s6694
          %s6696 = smul.addr %s25, 128
          %s6697 = scalar_lea.hbm %s7, %s6696
          %s6699 = sshll.u32 %s6689, 4
          %s6700 = int_to_ptr.vmem [resolvable:$true] %s6699
          %6702 = dma.vmem_to_hbm [thread:$0]  %s6700, 128, %s6697, %s6686
        $region64: #{tpu_custom_call.1} parent=47 // pred_fallthru
          _
      $region48: #{tpu_custom_call.1} parent=5 // pred_fallthru
        _
      %p6703 = scmp.le.s32.totalorder 2, %s20
      // Predicated region
      $region65: #{tpu_custom_call.1} parent=5 // pred_check
        %p6704 = pneg %p6703
      $region66: #{tpu_custom_call.1} parent=5 // pred_check_branch
        %6706 = sbr.rel (%p6704) target = $region68
      $region67: #{tpu_custom_call.1} parent=5 // pred_region
        %s6707 = ssub.s32 %s20, 2
        // Predicated region
        $region69: #{tpu_custom_call.1} parent=67 // pred_check
          %p6708 = pneg %p201
        $region70: #{tpu_custom_call.1} parent=67 // pred_check_branch
          %6710 = sbr.rel (%p6708) target = $region72
        $region71: #{tpu_custom_call.1} parent=67 // pred_region
          %s6711 = sand.u32 %s186, 1
          %s6712 = scalar_lea.sflag [#allocation4], %s6711
          %s6713 = sand.u32 %s186, 1
          %s6714 = smul.addr %s6713, 8
          %s6715 = scalar_lea.vmem [#allocation8], %s6714
          %6716 = dma.done %s6712, 128
        $region72: #{tpu_custom_call.1} parent=67 // pred_fallthru
          _
      $region68: #{tpu_custom_call.1} parent=5 // pred_fallthru
        _
    $region6: #{tpu_custom_call.1} parent=1 // loop_footer
      %s24 = sadd.s32 1, %s20
    $region7: #{tpu_custom_call.1} parent=1 // loop_footer_branch
      %19 = sbr.rel target = $region3
    $region8: #{tpu_custom_call.1} parent=1 // loop_exit
      _
    %6717 = vsyncpa [#allocation3], 1
    %s6718 = scalar_lea.sflag [#allocation3], 1
    %6719 = vsyncpa %s6718, 1
    %6720 = vsyncpa [#allocation6], 1
    %6721 = vsyncpa [#allocation4], 1
    %s6722 = scalar_lea.sflag [#allocation4], 1
    %6723 = vsyncpa %s6722, 1

</llo_original>
